<compile_context>
chip_gen: v5e
topology: v5e:2x2
jax: 0.10.0
libtpu: 0.0.40
codegen_flags: <defaults>
</compile_context>

<pallas_src>
import jax
import jax.numpy as jnp
from jax.experimental import pallas as pl
from jax.experimental.pallas import tpu as pltpu


def _mylstm_kernel(x_ref, h0_ref, c0_ref, wih0_ref, whh0_ref, wcat_ref, b_ref,
                   wout_ref, bout_ref, out_ref, gx_ref, seq_ref):
    """Whole forward pass in VMEM: stacked LSTM layers (wavefront) + final Linear.

    x_ref:     (T, B, D_in)   f32
    h0_ref:    (L, B, H)      f32
    c0_ref:    (L, B, H)      f32
    wih0_ref:  (D_in, 4H)     bf16   layer-0 input weights (gate-permuted)
    whh0_ref:  (H, 4H)        bf16   layer-0 hidden weights
    wcat_ref:  (max(L-1,1), 2H, 4H) bf16   layers>=1: [Wih; Whh] stacked along K
    b_ref:     (L, 1, 4H)     f32    b_ih + b_hh per layer (gate-permuted)
    wout_ref:  (H, D_pad)     bf16,  bout_ref: (1, D_pad) f32
    out_ref:   (T, B, D_pad)  f32
    gx_ref:    scratch (T, B, 4H) f32   hoisted layer-0 input projection
    seq_ref:   scratch (T, B, H)  bf16  last layer's output sequence
    """
    T, B, D_in = x_ref.shape
    L = h0_ref.shape[0]
    H = h0_ref.shape[2]
    D_pad = out_ref.shape[-1]
    bf16 = jnp.bfloat16

    # ---- hoisted layer-0 input projection: one big MXU matmul (+ bias once) ----
    gx = jnp.dot(x_ref[...].reshape(T * B, D_in).astype(bf16), wih0_ref[...],
                 preferred_element_type=jnp.float32) + b_ref[0]
    gx_ref[...] = gx.reshape(T, B, 4 * H)

    # Tiny per-layer biases hoisted once (~half a vreg each).
    b_vals = [b_ref[l] for l in range(L)]

    # Per-layer carries: h in bf16 (only consumed by bf16 matmuls / bf16 seq),
    # c in f32 (the accumulating state).
    h = [h0_ref[l].astype(bf16) for l in range(L)]
    c = [c0_ref[l] for l in range(L)]

    def cell(gates, c_prev):
        # Kernel gate order (i, f, o, g): one sigmoid over 3H, one tanh over H.
        act = jax.nn.sigmoid(gates[:, :3 * H])
        i = act[:, :H]
        f = act[:, H:2 * H]
        o = act[:, 2 * H:3 * H]
        g = jnp.tanh(gates[:, 3 * H:])
        c_new = f * c_prev + i * g
        h_new = o * jnp.tanh(c_new)
        return h_new, c_new

    # ---- layer-time wavefront: cell (l, t) runs at wavefront s = t + l ----
    # Within one wavefront step the up-to-L matmuls are mutually independent
    # (they only read carries from the previous wavefront), so the scheduler can
    # pipeline them in the MXU.  T and L are static -> full Python unroll.
    for s in range(T + L - 1):
        new_h, new_c = {}, {}
        for l in range(L):
            t = s - l
            if not (0 <= t < T):
                continue
            if l == 0:
                # Input projection precomputed; only h @ Whh on the serial path.
                gates = gx_ref[t] + jnp.dot(h[0], whh0_ref[...],
                                            preferred_element_type=jnp.float32)
            else:
                # K=256 fused matmul: [h_{l-1}(t), h_l(t-1)] @ [Wih; Whh].
                xin = jnp.concatenate([h[l - 1], h[l]], axis=-1)        # (B, 2H) bf16
                gates = jnp.dot(xin, wcat_ref[l - 1],
                                preferred_element_type=jnp.float32) + b_vals[l]
            h_new, c_new = cell(gates, c[l])
            new_h[l] = h_new.astype(bf16)
            new_c[l] = c_new
            if l == L - 1:
                seq_ref[t] = new_h[l]                                   # feed head
        # Commit after all reads in this wavefront (snapshot semantics).
        for l in new_h:
            h[l] = new_h[l]
            c[l] = new_c[l]

    # ---- output Linear: one matmul + one lane-dense store ----
    out = (jnp.dot(seq_ref[...].reshape(T * B, H), wout_ref[...],
                   preferred_element_type=jnp.float32) + bout_ref[...])
    out_ref[...] = out.reshape(T, B, D_pad)


def _permute_gates(w):
    """torch gate order (i, f, g, o) -> kernel order (i, f, o, g) along 4H."""
    i, f, g, o = jnp.split(w, 4, axis=-1)
    return jnp.concatenate([i, f, o, g], axis=-1)


def mylstm_forward(x, h0, c0, params):
    T, B, D_in = x.shape
    L, _, H = h0.shape
    D_out = params["wout"].shape[1]

    # Pad batch to a multiple of 8 so (B, ·) tiles fill whole f32 sublanes.
    B_pad = max(8, ((B + 7) // 8) * 8)
    if B_pad != B:
        pad = [(0, 0), (0, B_pad - B), (0, 0)]
        x = jnp.pad(x, pad)
        h0 = jnp.pad(h0, pad)
        c0 = jnp.pad(c0, pad)

    # Pad D_out to a multiple of 128 so the final store is lane-dense.
    D_pad = ((D_out + 127) // 128) * 128

    bf16 = jnp.bfloat16
    wih0 = _permute_gates(params["wih0"]).astype(bf16)            # (D_in, 4H)
    whh = _permute_gates(params["whh"])                           # (L, H, 4H) f32
    whh0 = whh[0].astype(bf16)                                    # (H, 4H)
    if L > 1:
        wih_rest = _permute_gates(params["wih_rest"])             # (L-1, H, 4H)
        wcat = jnp.concatenate([wih_rest, whh[1:]], axis=1).astype(bf16)  # (L-1, 2H, 4H)
    else:
        wcat = jnp.zeros((1, 2 * H, 4 * H), bf16)                 # dummy, never read
    b = _permute_gates(params["b"]).astype(jnp.float32)           # (L, 1, 4H)
    wout = jnp.zeros((H, D_pad), bf16).at[:, :D_out].set(params["wout"].astype(bf16))
    bout = jnp.zeros((1, D_pad), jnp.float32).at[:, :D_out].set(params["bout"])

    # Rough resident-VMEM estimate (inputs + output + scratch) with headroom.
    bytes_f32 = 4 * (T * B_pad * D_in + 2 * L * B_pad * H + L * 4 * H + D_pad
                     + T * B_pad * D_pad + T * B_pad * 4 * H)
    bytes_bf16 = 2 * (D_in * 4 * H + H * 4 * H + max(L - 1, 1) * 2 * H * 4 * H
                      + H * D_pad + T * B_pad * H)
    est = bytes_f32 + bytes_bf16
    vmem_limit = int(min(max(4 * est, 16 * 1024 * 1024), 32 * 1024 * 1024))

    kernel = pl.pallas_call(
        _mylstm_kernel,
        out_shape=jax.ShapeDtypeStruct((T, B_pad, D_pad), jnp.float32),
        in_specs=[pl.BlockSpec(memory_space=pltpu.MemorySpace.VMEM)] * 9,
        out_specs=pl.BlockSpec(memory_space=pltpu.MemorySpace.VMEM),
        scratch_shapes=[pltpu.VMEM((T, B_pad, 4 * H), jnp.float32),
                        pltpu.VMEM((T, B_pad, H), jnp.bfloat16)],
        compiler_params=pltpu.CompilerParams(vmem_limit_bytes=vmem_limit),
    )
    out = kernel(x, h0, c0, wih0, whh0, wcat, b, wout, bout)
    return out[:, :B, :D_out]


def init_params(key, D_in, H, D_out, L):
    """Deterministic init, torch-style uniform(-1/sqrt(H), 1/sqrt(H)), all f32.

    Kept in torch gate order (i, f, g, o); the wrapper permutes for the kernel.
    """
    k = 1.0 / jnp.sqrt(jnp.float32(H))
    keys = jax.random.split(key, 8)
    u = lambda kk, shape: jax.random.uniform(kk, shape, jnp.float32, -k, k)
    return {
        "wih0": u(keys[0], (D_in, 4 * H)),
        "wih_rest": u(keys[1], (max(L - 1, 0), H, 4 * H)),
        "whh": u(keys[2], (L, H, 4 * H)),
        # b = b_ih + b_hh fused per layer, kept 2-D to avoid 1-D VMEM layouts
        "b": u(keys[3], (L, 1, 4 * H)) + u(keys[4], (L, 1, 4 * H)),
        "wout": u(keys[5], (H, D_out)),
        "bout": u(keys[6], (1, D_out)),
    }


def reference_forward(x, h0, c0, params):
    """Pure-JAX f32 reference matching torch nn.LSTM + Linear semantics."""
    T, _, _ = x.shape
    L, _, H = h0.shape
    seq = x
    for l in range(L):
        wih = params["wih0"] if l == 0 else params["wih_rest"][l - 1]
        whh = params["whh"][l]
        b = params["b"][l]
        h, c = h0[l], c0[l]
        outs = []
        for t in range(T):
            gates = seq[t] @ wih + h @ whh + b
            i = jax.nn.sigmoid(gates[:, :H])
            f = jax.nn.sigmoid(gates[:, H:2 * H])
            g = jnp.tanh(gates[:, 2 * H:3 * H])
            o = jax.nn.sigmoid(gates[:, 3 * H:4 * H])
            c = f * c + i * g
            h = o * jnp.tanh(c)
            outs.append(h)
        seq = jnp.stack(outs)
    return seq @ params["wout"] + params["bout"]


if __name__ == "__main__":
    # Small shapes consistent with MyLSTM.forward(sequence, h, c)
    T, B = 8, 4            # seq length, batch
    D_in, H, D_out, L = 32, 128, 64, 3

    key = jax.random.PRNGKey(0)
    kx, kp = jax.random.split(key)
    x = jax.random.normal(kx, (T, B, D_in), jnp.float32)
    # init_hidden(x): zeros of shape (num_layers * num_directions, B, H)
    h0 = jnp.zeros((L, B, H), jnp.float32)
    c0 = jnp.zeros((L, B, H), jnp.float32)
    params = init_params(kp, D_in, H, D_out, L)

    out = mylstm_forward(x, h0, c0, params)
    out = jax.block_until_ready(out)

    ref = reference_forward(x, h0, c0, params)
    assert out.shape == (T, B, D_out)
    # bf16 MXU operands with f32 accumulation / f32 cell state: within 1e-2 of f32 ref.
    assert jnp.allclose(out, ref, rtol=1e-2, atol=1e-2), "kernel vs reference mismatch"

    print("KERNEL_OK")
</pallas_src>

<mosaic_0001>
module attributes {stable_mosaic.version = 11 : i64} {
  func.func @_mylstm_kernel(%arg0: memref<8x8x32xf32, #tpu.memory_space<vmem>>, %arg1: memref<3x8x128xf32, #tpu.memory_space<vmem>>, %arg2: memref<3x8x128xf32, #tpu.memory_space<vmem>>, %arg3: memref<32x512xbf16, #tpu.memory_space<vmem>>, %arg4: memref<128x512xbf16, #tpu.memory_space<vmem>>, %arg5: memref<2x256x512xbf16, #tpu.memory_space<vmem>>, %arg6: memref<3x1x512xf32, #tpu.memory_space<vmem>>, %arg7: memref<128x128xbf16, #tpu.memory_space<vmem>>, %arg8: memref<1x128xf32, #tpu.memory_space<vmem>>, %arg9: memref<8x8x128xf32, #tpu.memory_space<vmem>>, %arg10: memref<8x8x512xf32, #tpu.memory_space<vmem>>, %arg11: memref<8x8x128xbf16, #tpu.memory_space<vmem>>) attributes {dimension_semantics = [], scalar_prefetch = 0 : i64, scratch_operands = 2 : i64, tpu.core_type = #tpu.core_type<tc>} {
    %c0 = arith.constant 0 : index
    %c0_0 = arith.constant 0 : index
    %c0_1 = arith.constant 0 : index
    %0 = vector.load %arg0[%c0, %c0_0, %c0_1] : memref<8x8x32xf32, #tpu.memory_space<vmem>>, vector<8x8x32xf32>
    %1 = vector.shape_cast %0 : vector<8x8x32xf32> to vector<64x32xf32>
    %2 = arith.truncf %1 : vector<64x32xf32> to vector<64x32xbf16>
    %c0_2 = arith.constant 0 : index
    %c0_3 = arith.constant 0 : index
    %3 = vector.load %arg3[%c0_2, %c0_3] : memref<32x512xbf16, #tpu.memory_space<vmem>>, vector<32x512xbf16>
    %cst = arith.constant dense<0.000000e+00> : vector<64x512xf32>
    %4 = tpu.matmul %2, %3, %cst {dimension_numbers = #tpu.dot_dimension_numbers<[1], [0], [0], [1], [0, 0, 1, 1], [], []>} : vector<64x32xbf16>, vector<32x512xbf16>, vector<64x512xf32> -> vector<64x512xf32>
    %c0_4 = arith.constant 0 : index
    %c0_5 = arith.constant 0 : index
    %c0_6 = arith.constant 0 : index
    %5 = vector.load %arg6[%c0_4, %c0_5, %c0_6] : memref<3x1x512xf32, #tpu.memory_space<vmem>>, vector<1x1x512xf32>
    %6 = vector.shape_cast %5 : vector<1x1x512xf32> to vector<1x512xf32>
    %7 = vector.broadcast %6 : vector<1x512xf32> to vector<64x512xf32>
    %8 = arith.addf %4, %7 : vector<64x512xf32>
    %9 = vector.shape_cast %8 : vector<64x512xf32> to vector<8x8x512xf32>
    %c0_7 = arith.constant 0 : index
    %c0_8 = arith.constant 0 : index
    %c0_9 = arith.constant 0 : index
    %10 = vector.load %arg10[%c0_7, %c0_8, %c0_9] : memref<8x8x512xf32, #tpu.memory_space<vmem>>, vector<8x8x512xf32>
    tpu.vector_store %arg10[%c0_7, %c0_8, %c0_9], %9 {strides = array<i32>} : memref<8x8x512xf32, #tpu.memory_space<vmem>>, vector<8x8x512xf32>,
    %c1 = arith.constant 1 : index
    %c0_10 = arith.constant 0 : index
    %c0_11 = arith.constant 0 : index
    %11 = vector.load %arg6[%c1, %c0_10, %c0_11] : memref<3x1x512xf32, #tpu.memory_space<vmem>>, vector<1x1x512xf32>
    %12 = vector.shape_cast %11 : vector<1x1x512xf32> to vector<1x512xf32>
    %c2 = arith.constant 2 : index
    %c0_12 = arith.constant 0 : index
    %c0_13 = arith.constant 0 : index
    %13 = vector.load %arg6[%c2, %c0_12, %c0_13] : memref<3x1x512xf32, #tpu.memory_space<vmem>>, vector<1x1x512xf32>
    %14 = vector.shape_cast %13 : vector<1x1x512xf32> to vector<1x512xf32>
    %c0_14 = arith.constant 0 : index
    %c0_15 = arith.constant 0 : index
    %c0_16 = arith.constant 0 : index
    %15 = vector.load %arg1[%c0_14, %c0_15, %c0_16] : memref<3x8x128xf32, #tpu.memory_space<vmem>>, vector<1x8x128xf32>
    %16 = vector.shape_cast %15 : vector<1x8x128xf32> to vector<8x128xf32>
    %17 = arith.truncf %16 : vector<8x128xf32> to vector<8x128xbf16>
    %c1_17 = arith.constant 1 : index
    %c0_18 = arith.constant 0 : index
    %c0_19 = arith.constant 0 : index
    %18 = vector.load %arg1[%c1_17, %c0_18, %c0_19] : memref<3x8x128xf32, #tpu.memory_space<vmem>>, vector<1x8x128xf32>
    %19 = vector.shape_cast %18 : vector<1x8x128xf32> to vector<8x128xf32>
    %20 = arith.truncf %19 : vector<8x128xf32> to vector<8x128xbf16>
    %c2_20 = arith.constant 2 : index
    %c0_21 = arith.constant 0 : index
    %c0_22 = arith.constant 0 : index
    %21 = vector.load %arg1[%c2_20, %c0_21, %c0_22] : memref<3x8x128xf32, #tpu.memory_space<vmem>>, vector<1x8x128xf32>
    %22 = vector.shape_cast %21 : vector<1x8x128xf32> to vector<8x128xf32>
    %23 = arith.truncf %22 : vector<8x128xf32> to vector<8x128xbf16>
    %c0_23 = arith.constant 0 : index
    %c0_24 = arith.constant 0 : index
    %c0_25 = arith.constant 0 : index
    %24 = vector.load %arg2[%c0_23, %c0_24, %c0_25] : memref<3x8x128xf32, #tpu.memory_space<vmem>>, vector<1x8x128xf32>
    %25 = vector.shape_cast %24 : vector<1x8x128xf32> to vector<8x128xf32>
    %c1_26 = arith.constant 1 : index
    %c0_27 = arith.constant 0 : index
    %c0_28 = arith.constant 0 : index
    %26 = vector.load %arg2[%c1_26, %c0_27, %c0_28] : memref<3x8x128xf32, #tpu.memory_space<vmem>>, vector<1x8x128xf32>
    %27 = vector.shape_cast %26 : vector<1x8x128xf32> to vector<8x128xf32>
    %c2_29 = arith.constant 2 : index
    %c0_30 = arith.constant 0 : index
    %c0_31 = arith.constant 0 : index
    %28 = vector.load %arg2[%c2_29, %c0_30, %c0_31] : memref<3x8x128xf32, #tpu.memory_space<vmem>>, vector<1x8x128xf32>
    %29 = vector.shape_cast %28 : vector<1x8x128xf32> to vector<8x128xf32>
    %c0_32 = arith.constant 0 : index
    %c0_33 = arith.constant 0 : index
    %c0_34 = arith.constant 0 : index
    %30 = vector.load %arg10[%c0_32, %c0_33, %c0_34] : memref<8x8x512xf32, #tpu.memory_space<vmem>>, vector<1x8x512xf32>
    %31 = vector.shape_cast %30 : vector<1x8x512xf32> to vector<8x512xf32>
    %c0_35 = arith.constant 0 : index
    %c0_36 = arith.constant 0 : index
    %32 = vector.load %arg4[%c0_35, %c0_36] : memref<128x512xbf16, #tpu.memory_space<vmem>>, vector<128x512xbf16>
    %cst_37 = arith.constant dense<0.000000e+00> : vector<8x512xf32>
    %33 = tpu.matmul %17, %32, %cst_37 {dimension_numbers = #tpu.dot_dimension_numbers<[1], [0], [0], [1], [0, 0, 1, 1], [], []>} : vector<8x128xbf16>, vector<128x512xbf16>, vector<8x512xf32> -> vector<8x512xf32>
    %34 = arith.addf %31, %33 : vector<8x512xf32>
    %35 = vector.extract_strided_slice %34 {offsets = [0, 0], sizes = [8, 384], strides = [1, 1]} : vector<8x512xf32> to vector<8x384xf32>
    %36 = arith.negf %35 : vector<8x384xf32>
    %37 = math.exp %36 : vector<8x384xf32>
    %cst_38 = arith.constant 1.000000e+00 : f32
    %38 = vector.broadcast %cst_38 : f32 to vector<8x384xf32>
    %39 = arith.addf %38, %37 : vector<8x384xf32>
    %40 = arith.divf %38, %39 : vector<8x384xf32>
    %41 = vector.extract_strided_slice %40 {offsets = [0, 0], sizes = [8, 128], strides = [1, 1]} : vector<8x384xf32> to vector<8x128xf32>
    %42 = vector.extract_strided_slice %40 {offsets = [0, 128], sizes = [8, 128], strides = [1, 1]} : vector<8x384xf32> to vector<8x128xf32>
    %43 = vector.extract_strided_slice %40 {offsets = [0, 256], sizes = [8, 128], strides = [1, 1]} : vector<8x384xf32> to vector<8x128xf32>
    %44 = vector.extract_strided_slice %34 {offsets = [0, 384], sizes = [8, 128], strides = [1, 1]} : vector<8x512xf32> to vector<8x128xf32>
    %45 = math.tanh %44 : vector<8x128xf32>
    %46 = arith.mulf %42, %25 : vector<8x128xf32>
    %47 = arith.mulf %41, %45 : vector<8x128xf32>
    %48 = arith.addf %46, %47 : vector<8x128xf32>
    %49 = math.tanh %48 : vector<8x128xf32>
    %50 = arith.mulf %43, %49 : vector<8x128xf32>
    %51 = arith.truncf %50 : vector<8x128xf32> to vector<8x128xbf16>
    %c1_39 = arith.constant 1 : index
    %c0_40 = arith.constant 0 : index
    %c0_41 = arith.constant 0 : index
    %52 = vector.load %arg10[%c1_39, %c0_40, %c0_41] : memref<8x8x512xf32, #tpu.memory_space<vmem>>, vector<1x8x512xf32>
    %53 = vector.shape_cast %52 : vector<1x8x512xf32> to vector<8x512xf32>
    %c0_42 = arith.constant 0 : index
    %c0_43 = arith.constant 0 : index
    %54 = vector.load %arg4[%c0_42, %c0_43] : memref<128x512xbf16, #tpu.memory_space<vmem>>, vector<128x512xbf16>
    %cst_44 = arith.constant dense<0.000000e+00> : vector<8x512xf32>
    %55 = tpu.matmul %51, %54, %cst_44 {dimension_numbers = #tpu.dot_dimension_numbers<[1], [0], [0], [1], [0, 0, 1, 1], [], []>} : vector<8x128xbf16>, vector<128x512xbf16>, vector<8x512xf32> -> vector<8x512xf32>
    %56 = arith.addf %53, %55 : vector<8x512xf32>
    %57 = vector.extract_strided_slice %56 {offsets = [0, 0], sizes = [8, 384], strides = [1, 1]} : vector<8x512xf32> to vector<8x384xf32>
    %58 = arith.negf %57 : vector<8x384xf32>
    %59 = math.exp %58 : vector<8x384xf32>
    %cst_45 = arith.constant 1.000000e+00 : f32
    %60 = vector.broadcast %cst_45 : f32 to vector<8x384xf32>
    %61 = arith.addf %60, %59 : vector<8x384xf32>
    %62 = arith.divf %60, %61 : vector<8x384xf32>
    %63 = vector.extract_strided_slice %62 {offsets = [0, 0], sizes = [8, 128], strides = [1, 1]} : vector<8x384xf32> to vector<8x128xf32>
    %64 = vector.extract_strided_slice %62 {offsets = [0, 128], sizes = [8, 128], strides = [1, 1]} : vector<8x384xf32> to vector<8x128xf32>
    %65 = vector.extract_strided_slice %62 {offsets = [0, 256], sizes = [8, 128], strides = [1, 1]} : vector<8x384xf32> to vector<8x128xf32>
    %66 = vector.extract_strided_slice %56 {offsets = [0, 384], sizes = [8, 128], strides = [1, 1]} : vector<8x512xf32> to vector<8x128xf32>
    %67 = math.tanh %66 : vector<8x128xf32>
    %68 = arith.mulf %64, %48 : vector<8x128xf32>
    %69 = arith.mulf %63, %67 : vector<8x128xf32>
    %70 = arith.addf %68, %69 : vector<8x128xf32>
    %71 = math.tanh %70 : vector<8x128xf32>
    %72 = arith.mulf %65, %71 : vector<8x128xf32>
    %73 = arith.truncf %72 : vector<8x128xf32> to vector<8x128xbf16>
    %74 = tpu.concatenate %51, %20 in 1 : vector<8x128xbf16>, vector<8x128xbf16> -> vector<8x256xbf16>
    %c0_46 = arith.constant 0 : index
    %c0_47 = arith.constant 0 : index
    %c0_48 = arith.constant 0 : index
    %75 = vector.load %arg5[%c0_46, %c0_47, %c0_48] : memref<2x256x512xbf16, #tpu.memory_space<vmem>>, vector<1x256x512xbf16>
    %76 = vector.shape_cast %75 : vector<1x256x512xbf16> to vector<256x512xbf16>
    %cst_49 = arith.constant dense<0.000000e+00> : vector<8x512xf32>
    %77 = tpu.matmul %74, %76, %cst_49 {dimension_numbers = #tpu.dot_dimension_numbers<[1], [0], [0], [1], [0, 0, 1, 1], [], []>} : vector<8x256xbf16>, vector<256x512xbf16>, vector<8x512xf32> -> vector<8x512xf32>
    %78 = vector.broadcast %12 : vector<1x512xf32> to vector<8x512xf32>
    %79 = arith.addf %77, %78 : vector<8x512xf32>
    %80 = vector.extract_strided_slice %79 {offsets = [0, 0], sizes = [8, 384], strides = [1, 1]} : vector<8x512xf32> to vector<8x384xf32>
    %81 = arith.negf %80 : vector<8x384xf32>
    %82 = math.exp %81 : vector<8x384xf32>
    %cst_50 = arith.constant 1.000000e+00 : f32
    %83 = vector.broadcast %cst_50 : f32 to vector<8x384xf32>
    %84 = arith.addf %83, %82 : vector<8x384xf32>
    %85 = arith.divf %83, %84 : vector<8x384xf32>
    %86 = vector.extract_strided_slice %85 {offsets = [0, 0], sizes = [8, 128], strides = [1, 1]} : vector<8x384xf32> to vector<8x128xf32>
    %87 = vector.extract_strided_slice %85 {offsets = [0, 128], sizes = [8, 128], strides = [1, 1]} : vector<8x384xf32> to vector<8x128xf32>
    %88 = vector.extract_strided_slice %85 {offsets = [0, 256], sizes = [8, 128], strides = [1, 1]} : vector<8x384xf32> to vector<8x128xf32>
    %89 = vector.extract_strided_slice %79 {offsets = [0, 384], sizes = [8, 128], strides = [1, 1]} : vector<8x512xf32> to vector<8x128xf32>
    %90 = math.tanh %89 : vector<8x128xf32>
    %91 = arith.mulf %87, %27 : vector<8x128xf32>
    %92 = arith.mulf %86, %90 : vector<8x128xf32>
    %93 = arith.addf %91, %92 : vector<8x128xf32>
    %94 = math.tanh %93 : vector<8x128xf32>
    %95 = arith.mulf %88, %94 : vector<8x128xf32>
    %96 = arith.truncf %95 : vector<8x128xf32> to vector<8x128xbf16>
    %c2_51 = arith.constant 2 : index
    %c0_52 = arith.constant 0 : index
    %c0_53 = arith.constant 0 : index
    %97 = vector.load %arg10[%c2_51, %c0_52, %c0_53] : memref<8x8x512xf32, #tpu.memory_space<vmem>>, vector<1x8x512xf32>
    %98 = vector.shape_cast %97 : vector<1x8x512xf32> to vector<8x512xf32>
    %c0_54 = arith.constant 0 : index
    %c0_55 = arith.constant 0 : index
    %99 = vector.load %arg4[%c0_54, %c0_55] : memref<128x512xbf16, #tpu.memory_space<vmem>>, vector<128x512xbf16>
    %cst_56 = arith.constant dense<0.000000e+00> : vector<8x512xf32>
    %100 = tpu.matmul %73, %99, %cst_56 {dimension_numbers = #tpu.dot_dimension_numbers<[1], [0], [0], [1], [0, 0, 1, 1], [], []>} : vector<8x128xbf16>, vector<128x512xbf16>, vector<8x512xf32> -> vector<8x512xf32>
    %101 = arith.addf %98, %100 : vector<8x512xf32>
    %102 = vector.extract_strided_slice %101 {offsets = [0, 0], sizes = [8, 384], strides = [1, 1]} : vector<8x512xf32> to vector<8x384xf32>
    %103 = arith.negf %102 : vector<8x384xf32>
    %104 = math.exp %103 : vector<8x384xf32>
    %cst_57 = arith.constant 1.000000e+00 : f32
    %105 = vector.broadcast %cst_57 : f32 to vector<8x384xf32>
    %106 = arith.addf %105, %104 : vector<8x384xf32>
    %107 = arith.divf %105, %106 : vector<8x384xf32>
    %108 = vector.extract_strided_slice %107 {offsets = [0, 0], sizes = [8, 128], strides = [1, 1]} : vector<8x384xf32> to vector<8x128xf32>
    %109 = vector.extract_strided_slice %107 {offsets = [0, 128], sizes = [8, 128], strides = [1, 1]} : vector<8x384xf32> to vector<8x128xf32>
    %110 = vector.extract_strided_slice %107 {offsets = [0, 256], sizes = [8, 128], strides = [1, 1]} : vector<8x384xf32> to vector<8x128xf32>
    %111 = vector.extract_strided_slice %101 {offsets = [0, 384], sizes = [8, 128], strides = [1, 1]} : vector<8x512xf32> to vector<8x128xf32>
    %112 = math.tanh %111 : vector<8x128xf32>
    %113 = arith.mulf %109, %70 : vector<8x128xf32>
    %114 = arith.mulf %108, %112 : vector<8x128xf32>
    %115 = arith.addf %113, %114 : vector<8x128xf32>
    %116 = math.tanh %115 : vector<8x128xf32>
    %117 = arith.mulf %110, %116 : vector<8x128xf32>
    %118 = arith.truncf %117 : vector<8x128xf32> to vector<8x128xbf16>
    %119 = tpu.concatenate %73, %96 in 1 : vector<8x128xbf16>, vector<8x128xbf16> -> vector<8x256xbf16>
    %c0_58 = arith.constant 0 : index
    %c0_59 = arith.constant 0 : index
    %c0_60 = arith.constant 0 : index
    %120 = vector.load %arg5[%c0_58, %c0_59, %c0_60] : memref<2x256x512xbf16, #tpu.memory_space<vmem>>, vector<1x256x512xbf16>
    %121 = vector.shape_cast %120 : vector<1x256x512xbf16> to vector<256x512xbf16>
    %cst_61 = arith.constant dense<0.000000e+00> : vector<8x512xf32>
    %122 = tpu.matmul %119, %121, %cst_61 {dimension_numbers = #tpu.dot_dimension_numbers<[1], [0], [0], [1], [0, 0, 1, 1], [], []>} : vector<8x256xbf16>, vector<256x512xbf16>, vector<8x512xf32> -> vector<8x512xf32>
    %123 = vector.broadcast %12 : vector<1x512xf32> to vector<8x512xf32>
    %124 = arith.addf %122, %123 : vector<8x512xf32>
    %125 = vector.extract_strided_slice %124 {offsets = [0, 0], sizes = [8, 384], strides = [1, 1]} : vector<8x512xf32> to vector<8x384xf32>
    %126 = arith.negf %125 : vector<8x384xf32>
    %127 = math.exp %126 : vector<8x384xf32>
    %cst_62 = arith.constant 1.000000e+00 : f32
    %128 = vector.broadcast %cst_62 : f32 to vector<8x384xf32>
    %129 = arith.addf %128, %127 : vector<8x384xf32>
    %130 = arith.divf %128, %129 : vector<8x384xf32>
    %131 = vector.extract_strided_slice %130 {offsets = [0, 0], sizes = [8, 128], strides = [1, 1]} : vector<8x384xf32> to vector<8x128xf32>
    %132 = vector.extract_strided_slice %130 {offsets = [0, 128], sizes = [8, 128], strides = [1, 1]} : vector<8x384xf32> to vector<8x128xf32>
    %133 = vector.extract_strided_slice %130 {offsets = [0, 256], sizes = [8, 128], strides = [1, 1]} : vector<8x384xf32> to vector<8x128xf32>
    %134 = vector.extract_strided_slice %124 {offsets = [0, 384], sizes = [8, 128], strides = [1, 1]} : vector<8x512xf32> to vector<8x128xf32>
    %135 = math.tanh %134 : vector<8x128xf32>
    %136 = arith.mulf %132, %93 : vector<8x128xf32>
    %137 = arith.mulf %131, %135 : vector<8x128xf32>
    %138 = arith.addf %136, %137 : vector<8x128xf32>
    %139 = math.tanh %138 : vector<8x128xf32>
    %140 = arith.mulf %133, %139 : vector<8x128xf32>
    %141 = arith.truncf %140 : vector<8x128xf32> to vector<8x128xbf16>
    %142 = tpu.concatenate %96, %23 in 1 : vector<8x128xbf16>, vector<8x128xbf16> -> vector<8x256xbf16>
    %c1_63 = arith.constant 1 : index
    %c0_64 = arith.constant 0 : index
    %c0_65 = arith.constant 0 : index
    %143 = vector.load %arg5[%c1_63, %c0_64, %c0_65] : memref<2x256x512xbf16, #tpu.memory_space<vmem>>, vector<1x256x512xbf16>
    %144 = vector.shape_cast %143 : vector<1x256x512xbf16> to vector<256x512xbf16>
    %cst_66 = arith.constant dense<0.000000e+00> : vector<8x512xf32>
    %145 = tpu.matmul %142, %144, %cst_66 {dimension_numbers = #tpu.dot_dimension_numbers<[1], [0], [0], [1], [0, 0, 1, 1], [], []>} : vector<8x256xbf16>, vector<256x512xbf16>, vector<8x512xf32> -> vector<8x512xf32>
    %146 = vector.broadcast %14 : vector<1x512xf32> to vector<8x512xf32>
    %147 = arith.addf %145, %146 : vector<8x512xf32>
    %148 = vector.extract_strided_slice %147 {offsets = [0, 0], sizes = [8, 384], strides = [1, 1]} : vector<8x512xf32> to vector<8x384xf32>
    %149 = arith.negf %148 : vector<8x384xf32>
    %150 = math.exp %149 : vector<8x384xf32>
    %cst_67 = arith.constant 1.000000e+00 : f32
    %151 = vector.broadcast %cst_67 : f32 to vector<8x384xf32>
    %152 = arith.addf %151, %150 : vector<8x384xf32>
    %153 = arith.divf %151, %152 : vector<8x384xf32>
    %154 = vector.extract_strided_slice %153 {offsets = [0, 0], sizes = [8, 128], strides = [1, 1]} : vector<8x384xf32> to vector<8x128xf32>
    %155 = vector.extract_strided_slice %153 {offsets = [0, 128], sizes = [8, 128], strides = [1, 1]} : vector<8x384xf32> to vector<8x128xf32>
    %156 = vector.extract_strided_slice %153 {offsets = [0, 256], sizes = [8, 128], strides = [1, 1]} : vector<8x384xf32> to vector<8x128xf32>
    %157 = vector.extract_strided_slice %147 {offsets = [0, 384], sizes = [8, 128], strides = [1, 1]} : vector<8x512xf32> to vector<8x128xf32>
    %158 = math.tanh %157 : vector<8x128xf32>
    %159 = arith.mulf %155, %29 : vector<8x128xf32>
    %160 = arith.mulf %154, %158 : vector<8x128xf32>
    %161 = arith.addf %159, %160 : vector<8x128xf32>
    %162 = math.tanh %161 : vector<8x128xf32>
    %163 = arith.mulf %156, %162 : vector<8x128xf32>
    %164 = arith.truncf %163 : vector<8x128xf32> to vector<8x128xbf16>
    %c0_68 = arith.constant 0 : index
    %c0_69 = arith.constant 0 : index
    %c0_70 = arith.constant 0 : index
    %165 = vector.load %arg11[%c0_68, %c0_69, %c0_70] : memref<8x8x128xbf16, #tpu.memory_space<vmem>>, vector<1x8x128xbf16>
    %166 = vector.shape_cast %165 : vector<1x8x128xbf16> to vector<8x128xbf16>
    %167 = vector.shape_cast %164 : vector<8x128xbf16> to vector<1x8x128xbf16>
    tpu.vector_store %arg11[%c0_68, %c0_69, %c0_70], %167 {strides = array<i32>} : memref<8x8x128xbf16, #tpu.memory_space<vmem>>, vector<1x8x128xbf16>,
    %c3 = arith.constant 3 : index
    %c0_71 = arith.constant 0 : index
    %c0_72 = arith.constant 0 : index
    %168 = vector.load %arg10[%c3, %c0_71, %c0_72] : memref<8x8x512xf32, #tpu.memory_space<vmem>>, vector<1x8x512xf32>
    %169 = vector.shape_cast %168 : vector<1x8x512xf32> to vector<8x512xf32>
    %c0_73 = arith.constant 0 : index
    %c0_74 = arith.constant 0 : index
    %170 = vector.load %arg4[%c0_73, %c0_74] : memref<128x512xbf16, #tpu.memory_space<vmem>>, vector<128x512xbf16>
    %cst_75 = arith.constant dense<0.000000e+00> : vector<8x512xf32>
    %171 = tpu.matmul %118, %170, %cst_75 {dimension_numbers = #tpu.dot_dimension_numbers<[1], [0], [0], [1], [0, 0, 1, 1], [], []>} : vector<8x128xbf16>, vector<128x512xbf16>, vector<8x512xf32> -> vector<8x512xf32>
    %172 = arith.addf %169, %171 : vector<8x512xf32>
    %173 = vector.extract_strided_slice %172 {offsets = [0, 0], sizes = [8, 384], strides = [1, 1]} : vector<8x512xf32> to vector<8x384xf32>
    %174 = arith.negf %173 : vector<8x384xf32>
    %175 = math.exp %174 : vector<8x384xf32>
    %cst_76 = arith.constant 1.000000e+00 : f32
    %176 = vector.broadcast %cst_76 : f32 to vector<8x384xf32>
    %177 = arith.addf %176, %175 : vector<8x384xf32>
    %178 = arith.divf %176, %177 : vector<8x384xf32>
    %179 = vector.extract_strided_slice %178 {offsets = [0, 0], sizes = [8, 128], strides = [1, 1]} : vector<8x384xf32> to vector<8x128xf32>
    %180 = vector.extract_strided_slice %178 {offsets = [0, 128], sizes = [8, 128], strides = [1, 1]} : vector<8x384xf32> to vector<8x128xf32>
    %181 = vector.extract_strided_slice %178 {offsets = [0, 256], sizes = [8, 128], strides = [1, 1]} : vector<8x384xf32> to vector<8x128xf32>
    %182 = vector.extract_strided_slice %172 {offsets = [0, 384], sizes = [8, 128], strides = [1, 1]} : vector<8x512xf32> to vector<8x128xf32>
    %183 = math.tanh %182 : vector<8x128xf32>
    %184 = arith.mulf %180, %115 : vector<8x128xf32>
    %185 = arith.mulf %179, %183 : vector<8x128xf32>
    %186 = arith.addf %184, %185 : vector<8x128xf32>
    %187 = math.tanh %186 : vector<8x128xf32>
    %188 = arith.mulf %181, %187 : vector<8x128xf32>
    %189 = arith.truncf %188 : vector<8x128xf32> to vector<8x128xbf16>
    %190 = tpu.concatenate %118, %141 in 1 : vector<8x128xbf16>, vector<8x128xbf16> -> vector<8x256xbf16>
    %c0_77 = arith.constant 0 : index
    %c0_78 = arith.constant 0 : index
    %c0_79 = arith.constant 0 : index
    %191 = vector.load %arg5[%c0_77, %c0_78, %c0_79] : memref<2x256x512xbf16, #tpu.memory_space<vmem>>, vector<1x256x512xbf16>
    %192 = vector.shape_cast %191 : vector<1x256x512xbf16> to vector<256x512xbf16>
    %cst_80 = arith.constant dense<0.000000e+00> : vector<8x512xf32>
    %193 = tpu.matmul %190, %192, %cst_80 {dimension_numbers = #tpu.dot_dimension_numbers<[1], [0], [0], [1], [0, 0, 1, 1], [], []>} : vector<8x256xbf16>, vector<256x512xbf16>, vector<8x512xf32> -> vector<8x512xf32>
    %194 = vector.broadcast %12 : vector<1x512xf32> to vector<8x512xf32>
    %195 = arith.addf %193, %194 : vector<8x512xf32>
    %196 = vector.extract_strided_slice %195 {offsets = [0, 0], sizes = [8, 384], strides = [1, 1]} : vector<8x512xf32> to vector<8x384xf32>
    %197 = arith.negf %196 : vector<8x384xf32>
    %198 = math.exp %197 : vector<8x384xf32>
    %cst_81 = arith.constant 1.000000e+00 : f32
    %199 = vector.broadcast %cst_81 : f32 to vector<8x384xf32>
    %200 = arith.addf %199, %198 : vector<8x384xf32>
    %201 = arith.divf %199, %200 : vector<8x384xf32>
    %202 = vector.extract_strided_slice %201 {offsets = [0, 0], sizes = [8, 128], strides = [1, 1]} : vector<8x384xf32> to vector<8x128xf32>
    %203 = vector.extract_strided_slice %201 {offsets = [0, 128], sizes = [8, 128], strides = [1, 1]} : vector<8x384xf32> to vector<8x128xf32>
    %204 = vector.extract_strided_slice %201 {offsets = [0, 256], sizes = [8, 128], strides = [1, 1]} : vector<8x384xf32> to vector<8x128xf32>
    %205 = vector.extract_strided_slice %195 {offsets = [0, 384], sizes = [8, 128], strides = [1, 1]} : vector<8x512xf32> to vector<8x128xf32>
    %206 = math.tanh %205 : vector<8x128xf32>
    %207 = arith.mulf %203, %138 : vector<8x128xf32>
    %208 = arith.mulf %202, %206 : vector<8x128xf32>
    %209 = arith.addf %207, %208 : vector<8x128xf32>
    %210 = math.tanh %209 : vector<8x128xf32>
    %211 = arith.mulf %204, %210 : vector<8x128xf32>
    %212 = arith.truncf %211 : vector<8x128xf32> to vector<8x128xbf16>
    %213 = tpu.concatenate %141, %164 in 1 : vector<8x128xbf16>, vector<8x128xbf16> -> vector<8x256xbf16>
    %c1_82 = arith.constant 1 : index
    %c0_83 = arith.constant 0 : index
    %c0_84 = arith.constant 0 : index
    %214 = vector.load %arg5[%c1_82, %c0_83, %c0_84] : memref<2x256x512xbf16, #tpu.memory_space<vmem>>, vector<1x256x512xbf16>
    %215 = vector.shape_cast %214 : vector<1x256x512xbf16> to vector<256x512xbf16>
    %cst_85 = arith.constant dense<0.000000e+00> : vector<8x512xf32>
    %216 = tpu.matmul %213, %215, %cst_85 {dimension_numbers = #tpu.dot_dimension_numbers<[1], [0], [0], [1], [0, 0, 1, 1], [], []>} : vector<8x256xbf16>, vector<256x512xbf16>, vector<8x512xf32> -> vector<8x512xf32>
    %217 = vector.broadcast %14 : vector<1x512xf32> to vector<8x512xf32>
    %218 = arith.addf %216, %217 : vector<8x512xf32>
    %219 = vector.extract_strided_slice %218 {offsets = [0, 0], sizes = [8, 384], strides = [1, 1]} : vector<8x512xf32> to vector<8x384xf32>
    %220 = arith.negf %219 : vector<8x384xf32>
    %221 = math.exp %220 : vector<8x384xf32>
    %cst_86 = arith.constant 1.000000e+00 : f32
    %222 = vector.broadcast %cst_86 : f32 to vector<8x384xf32>
    %223 = arith.addf %222, %221 : vector<8x384xf32>
    %224 = arith.divf %222, %223 : vector<8x384xf32>
    %225 = vector.extract_strided_slice %224 {offsets = [0, 0], sizes = [8, 128], strides = [1, 1]} : vector<8x384xf32> to vector<8x128xf32>
    %226 = vector.extract_strided_slice %224 {offsets = [0, 128], sizes = [8, 128], strides = [1, 1]} : vector<8x384xf32> to vector<8x128xf32>
    %227 = vector.extract_strided_slice %224 {offsets = [0, 256], sizes = [8, 128], strides = [1, 1]} : vector<8x384xf32> to vector<8x128xf32>
    %228 = vector.extract_strided_slice %218 {offsets = [0, 384], sizes = [8, 128], strides = [1, 1]} : vector<8x512xf32> to vector<8x128xf32>
    %229 = math.tanh %228 : vector<8x128xf32>
    %230 = arith.mulf %226, %161 : vector<8x128xf32>
    %231 = arith.mulf %225, %229 : vector<8x128xf32>
    %232 = arith.addf %230, %231 : vector<8x128xf32>
    %233 = math.tanh %232 : vector<8x128xf32>
    %234 = arith.mulf %227, %233 : vector<8x128xf32>
    %235 = arith.truncf %234 : vector<8x128xf32> to vector<8x128xbf16>
    %c1_87 = arith.constant 1 : index
    %c0_88 = arith.constant 0 : index
    %c0_89 = arith.constant 0 : index
    %236 = vector.load %arg11[%c1_87, %c0_88, %c0_89] : memref<8x8x128xbf16, #tpu.memory_space<vmem>>, vector<1x8x128xbf16>
    %237 = vector.shape_cast %236 : vector<1x8x128xbf16> to vector<8x128xbf16>
    %238 = vector.shape_cast %235 : vector<8x128xbf16> to vector<1x8x128xbf16>
    tpu.vector_store %arg11[%c1_87, %c0_88, %c0_89], %238 {strides = array<i32>} : memref<8x8x128xbf16, #tpu.memory_space<vmem>>, vector<1x8x128xbf16>,
    %c4 = arith.constant 4 : index
    %c0_90 = arith.constant 0 : index
    %c0_91 = arith.constant 0 : index
    %239 = vector.load %arg10[%c4, %c0_90, %c0_91] : memref<8x8x512xf32, #tpu.memory_space<vmem>>, vector<1x8x512xf32>
    %240 = vector.shape_cast %239 : vector<1x8x512xf32> to vector<8x512xf32>
    %c0_92 = arith.constant 0 : index
    %c0_93 = arith.constant 0 : index
    %241 = vector.load %arg4[%c0_92, %c0_93] : memref<128x512xbf16, #tpu.memory_space<vmem>>, vector<128x512xbf16>
    %cst_94 = arith.constant dense<0.000000e+00> : vector<8x512xf32>
    %242 = tpu.matmul %189, %241, %cst_94 {dimension_numbers = #tpu.dot_dimension_numbers<[1], [0], [0], [1], [0, 0, 1, 1], [], []>} : vector<8x128xbf16>, vector<128x512xbf16>, vector<8x512xf32> -> vector<8x512xf32>
    %243 = arith.addf %240, %242 : vector<8x512xf32>
    %244 = vector.extract_strided_slice %243 {offsets = [0, 0], sizes = [8, 384], strides = [1, 1]} : vector<8x512xf32> to vector<8x384xf32>
    %245 = arith.negf %244 : vector<8x384xf32>
    %246 = math.exp %245 : vector<8x384xf32>
    %cst_95 = arith.constant 1.000000e+00 : f32
    %247 = vector.broadcast %cst_95 : f32 to vector<8x384xf32>
    %248 = arith.addf %247, %246 : vector<8x384xf32>
    %249 = arith.divf %247, %248 : vector<8x384xf32>
    %250 = vector.extract_strided_slice %249 {offsets = [0, 0], sizes = [8, 128], strides = [1, 1]} : vector<8x384xf32> to vector<8x128xf32>
    %251 = vector.extract_strided_slice %249 {offsets = [0, 128], sizes = [8, 128], strides = [1, 1]} : vector<8x384xf32> to vector<8x128xf32>
    %252 = vector.extract_strided_slice %249 {offsets = [0, 256], sizes = [8, 128], strides = [1, 1]} : vector<8x384xf32> to vector<8x128xf32>
    %253 = vector.extract_strided_slice %243 {offsets = [0, 384], sizes = [8, 128], strides = [1, 1]} : vector<8x512xf32> to vector<8x128xf32>
    %254 = math.tanh %253 : vector<8x128xf32>
    %255 = arith.mulf %251, %186 : vector<8x128xf32>
    %256 = arith.mulf %250, %254 : vector<8x128xf32>
    %257 = arith.addf %255, %256 : vector<8x128xf32>
    %258 = math.tanh %257 : vector<8x128xf32>
    %259 = arith.mulf %252, %258 : vector<8x128xf32>
    %260 = arith.truncf %259 : vector<8x128xf32> to vector<8x128xbf16>
    %261 = tpu.concatenate %189, %212 in 1 : vector<8x128xbf16>, vector<8x128xbf16> -> vector<8x256xbf16>
    %c0_96 = arith.constant 0 : index
    %c0_97 = arith.constant 0 : index
    %c0_98 = arith.constant 0 : index
    %262 = vector.load %arg5[%c0_96, %c0_97, %c0_98] : memref<2x256x512xbf16, #tpu.memory_space<vmem>>, vector<1x256x512xbf16>
    %263 = vector.shape_cast %262 : vector<1x256x512xbf16> to vector<256x512xbf16>
    %cst_99 = arith.constant dense<0.000000e+00> : vector<8x512xf32>
    %264 = tpu.matmul %261, %263, %cst_99 {dimension_numbers = #tpu.dot_dimension_numbers<[1], [0], [0], [1], [0, 0, 1, 1], [], []>} : vector<8x256xbf16>, vector<256x512xbf16>, vector<8x512xf32> -> vector<8x512xf32>
    %265 = vector.broadcast %12 : vector<1x512xf32> to vector<8x512xf32>
    %266 = arith.addf %264, %265 : vector<8x512xf32>
    %267 = vector.extract_strided_slice %266 {offsets = [0, 0], sizes = [8, 384], strides = [1, 1]} : vector<8x512xf32> to vector<8x384xf32>
    %268 = arith.negf %267 : vector<8x384xf32>
    %269 = math.exp %268 : vector<8x384xf32>
    %cst_100 = arith.constant 1.000000e+00 : f32
    %270 = vector.broadcast %cst_100 : f32 to vector<8x384xf32>
    %271 = arith.addf %270, %269 : vector<8x384xf32>
    %272 = arith.divf %270, %271 : vector<8x384xf32>
    %273 = vector.extract_strided_slice %272 {offsets = [0, 0], sizes = [8, 128], strides = [1, 1]} : vector<8x384xf32> to vector<8x128xf32>
    %274 = vector.extract_strided_slice %272 {offsets = [0, 128], sizes = [8, 128], strides = [1, 1]} : vector<8x384xf32> to vector<8x128xf32>
    %275 = vector.extract_strided_slice %272 {offsets = [0, 256], sizes = [8, 128], strides = [1, 1]} : vector<8x384xf32> to vector<8x128xf32>
    %276 = vector.extract_strided_slice %266 {offsets = [0, 384], sizes = [8, 128], strides = [1, 1]} : vector<8x512xf32> to vector<8x128xf32>
    %277 = math.tanh %276 : vector<8x128xf32>
    %278 = arith.mulf %274, %209 : vector<8x128xf32>
    %279 = arith.mulf %273, %277 : vector<8x128xf32>
    %280 = arith.addf %278, %279 : vector<8x128xf32>
    %281 = math.tanh %280 : vector<8x128xf32>
    %282 = arith.mulf %275, %281 : vector<8x128xf32>
    %283 = arith.truncf %282 : vector<8x128xf32> to vector<8x128xbf16>
    %284 = tpu.concatenate %212, %235 in 1 : vector<8x128xbf16>, vector<8x128xbf16> -> vector<8x256xbf16>
    %c1_101 = arith.constant 1 : index
    %c0_102 = arith.constant 0 : index
    %c0_103 = arith.constant 0 : index
    %285 = vector.load %arg5[%c1_101, %c0_102, %c0_103] : memref<2x256x512xbf16, #tpu.memory_space<vmem>>, vector<1x256x512xbf16>
    %286 = vector.shape_cast %285 : vector<1x256x512xbf16> to vector<256x512xbf16>
    %cst_104 = arith.constant dense<0.000000e+00> : vector<8x512xf32>
    %287 = tpu.matmul %284, %286, %cst_104 {dimension_numbers = #tpu.dot_dimension_numbers<[1], [0], [0], [1], [0, 0, 1, 1], [], []>} : vector<8x256xbf16>, vector<256x512xbf16>, vector<8x512xf32> -> vector<8x512xf32>
    %288 = vector.broadcast %14 : vector<1x512xf32> to vector<8x512xf32>
    %289 = arith.addf %287, %288 : vector<8x512xf32>
    %290 = vector.extract_strided_slice %289 {offsets = [0, 0], sizes = [8, 384], strides = [1, 1]} : vector<8x512xf32> to vector<8x384xf32>
    %291 = arith.negf %290 : vector<8x384xf32>
    %292 = math.exp %291 : vector<8x384xf32>
    %cst_105 = arith.constant 1.000000e+00 : f32
    %293 = vector.broadcast %cst_105 : f32 to vector<8x384xf32>
    %294 = arith.addf %293, %292 : vector<8x384xf32>
    %295 = arith.divf %293, %294 : vector<8x384xf32>
    %296 = vector.extract_strided_slice %295 {offsets = [0, 0], sizes = [8, 128], strides = [1, 1]} : vector<8x384xf32> to vector<8x128xf32>
    %297 = vector.extract_strided_slice %295 {offsets = [0, 128], sizes = [8, 128], strides = [1, 1]} : vector<8x384xf32> to vector<8x128xf32>
    %298 = vector.extract_strided_slice %295 {offsets = [0, 256], sizes = [8, 128], strides = [1, 1]} : vector<8x384xf32> to vector<8x128xf32>
    %299 = vector.extract_strided_slice %289 {offsets = [0, 384], sizes = [8, 128], strides = [1, 1]} : vector<8x512xf32> to vector<8x128xf32>
    %300 = math.tanh %299 : vector<8x128xf32>
    %301 = arith.mulf %297, %232 : vector<8x128xf32>
    %302 = arith.mulf %296, %300 : vector<8x128xf32>
    %303 = arith.addf %301, %302 : vector<8x128xf32>
    %304 = math.tanh %303 : vector<8x128xf32>
    %305 = arith.mulf %298, %304 : vector<8x128xf32>
    %306 = arith.truncf %305 : vector<8x128xf32> to vector<8x128xbf16>
    %c2_106 = arith.constant 2 : index
    %c0_107 = arith.constant 0 : index
    %c0_108 = arith.constant 0 : index
    %307 = vector.load %arg11[%c2_106, %c0_107, %c0_108] : memref<8x8x128xbf16, #tpu.memory_space<vmem>>, vector<1x8x128xbf16>
    %308 = vector.shape_cast %307 : vector<1x8x128xbf16> to vector<8x128xbf16>
    %309 = vector.shape_cast %306 : vector<8x128xbf16> to vector<1x8x128xbf16>
    tpu.vector_store %arg11[%c2_106, %c0_107, %c0_108], %309 {strides = array<i32>} : memref<8x8x128xbf16, #tpu.memory_space<vmem>>, vector<1x8x128xbf16>,
    %c5 = arith.constant 5 : index
    %c0_109 = arith.constant 0 : index
    %c0_110 = arith.constant 0 : index
    %310 = vector.load %arg10[%c5, %c0_109, %c0_110] : memref<8x8x512xf32, #tpu.memory_space<vmem>>, vector<1x8x512xf32>
    %311 = vector.shape_cast %310 : vector<1x8x512xf32> to vector<8x512xf32>
    %c0_111 = arith.constant 0 : index
    %c0_112 = arith.constant 0 : index
    %312 = vector.load %arg4[%c0_111, %c0_112] : memref<128x512xbf16, #tpu.memory_space<vmem>>, vector<128x512xbf16>
    %cst_113 = arith.constant dense<0.000000e+00> : vector<8x512xf32>
    %313 = tpu.matmul %260, %312, %cst_113 {dimension_numbers = #tpu.dot_dimension_numbers<[1], [0], [0], [1], [0, 0, 1, 1], [], []>} : vector<8x128xbf16>, vector<128x512xbf16>, vector<8x512xf32> -> vector<8x512xf32>
    %314 = arith.addf %311, %313 : vector<8x512xf32>
    %315 = vector.extract_strided_slice %314 {offsets = [0, 0], sizes = [8, 384], strides = [1, 1]} : vector<8x512xf32> to vector<8x384xf32>
    %316 = arith.negf %315 : vector<8x384xf32>
    %317 = math.exp %316 : vector<8x384xf32>
    %cst_114 = arith.constant 1.000000e+00 : f32
    %318 = vector.broadcast %cst_114 : f32 to vector<8x384xf32>
    %319 = arith.addf %318, %317 : vector<8x384xf32>
    %320 = arith.divf %318, %319 : vector<8x384xf32>
    %321 = vector.extract_strided_slice %320 {offsets = [0, 0], sizes = [8, 128], strides = [1, 1]} : vector<8x384xf32> to vector<8x128xf32>
    %322 = vector.extract_strided_slice %320 {offsets = [0, 128], sizes = [8, 128], strides = [1, 1]} : vector<8x384xf32> to vector<8x128xf32>
    %323 = vector.extract_strided_slice %320 {offsets = [0, 256], sizes = [8, 128], strides = [1, 1]} : vector<8x384xf32> to vector<8x128xf32>
    %324 = vector.extract_strided_slice %314 {offsets = [0, 384], sizes = [8, 128], strides = [1, 1]} : vector<8x512xf32> to vector<8x128xf32>
    %325 = math.tanh %324 : vector<8x128xf32>
    %326 = arith.mulf %322, %257 : vector<8x128xf32>
    %327 = arith.mulf %321, %325 : vector<8x128xf32>
    %328 = arith.addf %326, %327 : vector<8x128xf32>
    %329 = math.tanh %328 : vector<8x128xf32>
    %330 = arith.mulf %323, %329 : vector<8x128xf32>
    %331 = arith.truncf %330 : vector<8x128xf32> to vector<8x128xbf16>
    %332 = tpu.concatenate %260, %283 in 1 : vector<8x128xbf16>, vector<8x128xbf16> -> vector<8x256xbf16>
    %c0_115 = arith.constant 0 : index
    %c0_116 = arith.constant 0 : index
    %c0_117 = arith.constant 0 : index
    %333 = vector.load %arg5[%c0_115, %c0_116, %c0_117] : memref<2x256x512xbf16, #tpu.memory_space<vmem>>, vector<1x256x512xbf16>
    %334 = vector.shape_cast %333 : vector<1x256x512xbf16> to vector<256x512xbf16>
    %cst_118 = arith.constant dense<0.000000e+00> : vector<8x512xf32>
    %335 = tpu.matmul %332, %334, %cst_118 {dimension_numbers = #tpu.dot_dimension_numbers<[1], [0], [0], [1], [0, 0, 1, 1], [], []>} : vector<8x256xbf16>, vector<256x512xbf16>, vector<8x512xf32> -> vector<8x512xf32>
    %336 = vector.broadcast %12 : vector<1x512xf32> to vector<8x512xf32>
    %337 = arith.addf %335, %336 : vector<8x512xf32>
    %338 = vector.extract_strided_slice %337 {offsets = [0, 0], sizes = [8, 384], strides = [1, 1]} : vector<8x512xf32> to vector<8x384xf32>
    %339 = arith.negf %338 : vector<8x384xf32>
    %340 = math.exp %339 : vector<8x384xf32>
    %cst_119 = arith.constant 1.000000e+00 : f32
    %341 = vector.broadcast %cst_119 : f32 to vector<8x384xf32>
    %342 = arith.addf %341, %340 : vector<8x384xf32>
    %343 = arith.divf %341, %342 : vector<8x384xf32>
    %344 = vector.extract_strided_slice %343 {offsets = [0, 0], sizes = [8, 128], strides = [1, 1]} : vector<8x384xf32> to vector<8x128xf32>
    %345 = vector.extract_strided_slice %343 {offsets = [0, 128], sizes = [8, 128], strides = [1, 1]} : vector<8x384xf32> to vector<8x128xf32>
    %346 = vector.extract_strided_slice %343 {offsets = [0, 256], sizes = [8, 128], strides = [1, 1]} : vector<8x384xf32> to vector<8x128xf32>
    %347 = vector.extract_strided_slice %337 {offsets = [0, 384], sizes = [8, 128], strides = [1, 1]} : vector<8x512xf32> to vector<8x128xf32>
    %348 = math.tanh %347 : vector<8x128xf32>
    %349 = arith.mulf %345, %280 : vector<8x128xf32>
    %350 = arith.mulf %344, %348 : vector<8x128xf32>
    %351 = arith.addf %349, %350 : vector<8x128xf32>
    %352 = math.tanh %351 : vector<8x128xf32>
    %353 = arith.mulf %346, %352 : vector<8x128xf32>
    %354 = arith.truncf %353 : vector<8x128xf32> to vector<8x128xbf16>
    %355 = tpu.concatenate %283, %306 in 1 : vector<8x128xbf16>, vector<8x128xbf16> -> vector<8x256xbf16>
    %c1_120 = arith.constant 1 : index
    %c0_121 = arith.constant 0 : index
    %c0_122 = arith.constant 0 : index
    %356 = vector.load %arg5[%c1_120, %c0_121, %c0_122] : memref<2x256x512xbf16, #tpu.memory_space<vmem>>, vector<1x256x512xbf16>
    %357 = vector.shape_cast %356 : vector<1x256x512xbf16> to vector<256x512xbf16>
    %cst_123 = arith.constant dense<0.000000e+00> : vector<8x512xf32>
    %358 = tpu.matmul %355, %357, %cst_123 {dimension_numbers = #tpu.dot_dimension_numbers<[1], [0], [0], [1], [0, 0, 1, 1], [], []>} : vector<8x256xbf16>, vector<256x512xbf16>, vector<8x512xf32> -> vector<8x512xf32>
    %359 = vector.broadcast %14 : vector<1x512xf32> to vector<8x512xf32>
    %360 = arith.addf %358, %359 : vector<8x512xf32>
    %361 = vector.extract_strided_slice %360 {offsets = [0, 0], sizes = [8, 384], strides = [1, 1]} : vector<8x512xf32> to vector<8x384xf32>
    %362 = arith.negf %361 : vector<8x384xf32>
    %363 = math.exp %362 : vector<8x384xf32>
    %cst_124 = arith.constant 1.000000e+00 : f32
    %364 = vector.broadcast %cst_124 : f32 to vector<8x384xf32>
    %365 = arith.addf %364, %363 : vector<8x384xf32>
    %366 = arith.divf %364, %365 : vector<8x384xf32>
    %367 = vector.extract_strided_slice %366 {offsets = [0, 0], sizes = [8, 128], strides = [1, 1]} : vector<8x384xf32> to vector<8x128xf32>
    %368 = vector.extract_strided_slice %366 {offsets = [0, 128], sizes = [8, 128], strides = [1, 1]} : vector<8x384xf32> to vector<8x128xf32>
    %369 = vector.extract_strided_slice %366 {offsets = [0, 256], sizes = [8, 128], strides = [1, 1]} : vector<8x384xf32> to vector<8x128xf32>
    %370 = vector.extract_strided_slice %360 {offsets = [0, 384], sizes = [8, 128], strides = [1, 1]} : vector<8x512xf32> to vector<8x128xf32>
    %371 = math.tanh %370 : vector<8x128xf32>
    %372 = arith.mulf %368, %303 : vector<8x128xf32>
    %373 = arith.mulf %367, %371 : vector<8x128xf32>
    %374 = arith.addf %372, %373 : vector<8x128xf32>
    %375 = math.tanh %374 : vector<8x128xf32>
    %376 = arith.mulf %369, %375 : vector<8x128xf32>
    %377 = arith.truncf %376 : vector<8x128xf32> to vector<8x128xbf16>
    %c3_125 = arith.constant 3 : index
    %c0_126 = arith.constant 0 : index
    %c0_127 = arith.constant 0 : index
    %378 = vector.load %arg11[%c3_125, %c0_126, %c0_127] : memref<8x8x128xbf16, #tpu.memory_space<vmem>>, vector<1x8x128xbf16>
    %379 = vector.shape_cast %378 : vector<1x8x128xbf16> to vector<8x128xbf16>
    %380 = vector.shape_cast %377 : vector<8x128xbf16> to vector<1x8x128xbf16>
    tpu.vector_store %arg11[%c3_125, %c0_126, %c0_127], %380 {strides = array<i32>} : memref<8x8x128xbf16, #tpu.memory_space<vmem>>, vector<1x8x128xbf16>,
    %c6 = arith.constant 6 : index
    %c0_128 = arith.constant 0 : index
    %c0_129 = arith.constant 0 : index
    %381 = vector.load %arg10[%c6, %c0_128, %c0_129] : memref<8x8x512xf32, #tpu.memory_space<vmem>>, vector<1x8x512xf32>
    %382 = vector.shape_cast %381 : vector<1x8x512xf32> to vector<8x512xf32>
    %c0_130 = arith.constant 0 : index
    %c0_131 = arith.constant 0 : index
    %383 = vector.load %arg4[%c0_130, %c0_131] : memref<128x512xbf16, #tpu.memory_space<vmem>>, vector<128x512xbf16>
    %cst_132 = arith.constant dense<0.000000e+00> : vector<8x512xf32>
    %384 = tpu.matmul %331, %383, %cst_132 {dimension_numbers = #tpu.dot_dimension_numbers<[1], [0], [0], [1], [0, 0, 1, 1], [], []>} : vector<8x128xbf16>, vector<128x512xbf16>, vector<8x512xf32> -> vector<8x512xf32>
    %385 = arith.addf %382, %384 : vector<8x512xf32>
    %386 = vector.extract_strided_slice %385 {offsets = [0, 0], sizes = [8, 384], strides = [1, 1]} : vector<8x512xf32> to vector<8x384xf32>
    %387 = arith.negf %386 : vector<8x384xf32>
    %388 = math.exp %387 : vector<8x384xf32>
    %cst_133 = arith.constant 1.000000e+00 : f32
    %389 = vector.broadcast %cst_133 : f32 to vector<8x384xf32>
    %390 = arith.addf %389, %388 : vector<8x384xf32>
    %391 = arith.divf %389, %390 : vector<8x384xf32>
    %392 = vector.extract_strided_slice %391 {offsets = [0, 0], sizes = [8, 128], strides = [1, 1]} : vector<8x384xf32> to vector<8x128xf32>
    %393 = vector.extract_strided_slice %391 {offsets = [0, 128], sizes = [8, 128], strides = [1, 1]} : vector<8x384xf32> to vector<8x128xf32>
    %394 = vector.extract_strided_slice %391 {offsets = [0, 256], sizes = [8, 128], strides = [1, 1]} : vector<8x384xf32> to vector<8x128xf32>
    %395 = vector.extract_strided_slice %385 {offsets = [0, 384], sizes = [8, 128], strides = [1, 1]} : vector<8x512xf32> to vector<8x128xf32>
    %396 = math.tanh %395 : vector<8x128xf32>
    %397 = arith.mulf %393, %328 : vector<8x128xf32>
    %398 = arith.mulf %392, %396 : vector<8x128xf32>
    %399 = arith.addf %397, %398 : vector<8x128xf32>
    %400 = math.tanh %399 : vector<8x128xf32>
    %401 = arith.mulf %394, %400 : vector<8x128xf32>
    %402 = arith.truncf %401 : vector<8x128xf32> to vector<8x128xbf16>
    %403 = tpu.concatenate %331, %354 in 1 : vector<8x128xbf16>, vector<8x128xbf16> -> vector<8x256xbf16>
    %c0_134 = arith.constant 0 : index
    %c0_135 = arith.constant 0 : index
    %c0_136 = arith.constant 0 : index
    %404 = vector.load %arg5[%c0_134, %c0_135, %c0_136] : memref<2x256x512xbf16, #tpu.memory_space<vmem>>, vector<1x256x512xbf16>
    %405 = vector.shape_cast %404 : vector<1x256x512xbf16> to vector<256x512xbf16>
    %cst_137 = arith.constant dense<0.000000e+00> : vector<8x512xf32>
    %406 = tpu.matmul %403, %405, %cst_137 {dimension_numbers = #tpu.dot_dimension_numbers<[1], [0], [0], [1], [0, 0, 1, 1], [], []>} : vector<8x256xbf16>, vector<256x512xbf16>, vector<8x512xf32> -> vector<8x512xf32>
    %407 = vector.broadcast %12 : vector<1x512xf32> to vector<8x512xf32>
    %408 = arith.addf %406, %407 : vector<8x512xf32>
    %409 = vector.extract_strided_slice %408 {offsets = [0, 0], sizes = [8, 384], strides = [1, 1]} : vector<8x512xf32> to vector<8x384xf32>
    %410 = arith.negf %409 : vector<8x384xf32>
    %411 = math.exp %410 : vector<8x384xf32>
    %cst_138 = arith.constant 1.000000e+00 : f32
    %412 = vector.broadcast %cst_138 : f32 to vector<8x384xf32>
    %413 = arith.addf %412, %411 : vector<8x384xf32>
    %414 = arith.divf %412, %413 : vector<8x384xf32>
    %415 = vector.extract_strided_slice %414 {offsets = [0, 0], sizes = [8, 128], strides = [1, 1]} : vector<8x384xf32> to vector<8x128xf32>
    %416 = vector.extract_strided_slice %414 {offsets = [0, 128], sizes = [8, 128], strides = [1, 1]} : vector<8x384xf32> to vector<8x128xf32>
    %417 = vector.extract_strided_slice %414 {offsets = [0, 256], sizes = [8, 128], strides = [1, 1]} : vector<8x384xf32> to vector<8x128xf32>
    %418 = vector.extract_strided_slice %408 {offsets = [0, 384], sizes = [8, 128], strides = [1, 1]} : vector<8x512xf32> to vector<8x128xf32>
    %419 = math.tanh %418 : vector<8x128xf32>
    %420 = arith.mulf %416, %351 : vector<8x128xf32>
    %421 = arith.mulf %415, %419 : vector<8x128xf32>
    %422 = arith.addf %420, %421 : vector<8x128xf32>
    %423 = math.tanh %422 : vector<8x128xf32>
    %424 = arith.mulf %417, %423 : vector<8x128xf32>
    %425 = arith.truncf %424 : vector<8x128xf32> to vector<8x128xbf16>
    %426 = tpu.concatenate %354, %377 in 1 : vector<8x128xbf16>, vector<8x128xbf16> -> vector<8x256xbf16>
    %c1_139 = arith.constant 1 : index
    %c0_140 = arith.constant 0 : index
    %c0_141 = arith.constant 0 : index
    %427 = vector.load %arg5[%c1_139, %c0_140, %c0_141] : memref<2x256x512xbf16, #tpu.memory_space<vmem>>, vector<1x256x512xbf16>
    %428 = vector.shape_cast %427 : vector<1x256x512xbf16> to vector<256x512xbf16>
    %cst_142 = arith.constant dense<0.000000e+00> : vector<8x512xf32>
    %429 = tpu.matmul %426, %428, %cst_142 {dimension_numbers = #tpu.dot_dimension_numbers<[1], [0], [0], [1], [0, 0, 1, 1], [], []>} : vector<8x256xbf16>, vector<256x512xbf16>, vector<8x512xf32> -> vector<8x512xf32>
    %430 = vector.broadcast %14 : vector<1x512xf32> to vector<8x512xf32>
    %431 = arith.addf %429, %430 : vector<8x512xf32>
    %432 = vector.extract_strided_slice %431 {offsets = [0, 0], sizes = [8, 384], strides = [1, 1]} : vector<8x512xf32> to vector<8x384xf32>
    %433 = arith.negf %432 : vector<8x384xf32>
    %434 = math.exp %433 : vector<8x384xf32>
    %cst_143 = arith.constant 1.000000e+00 : f32
    %435 = vector.broadcast %cst_143 : f32 to vector<8x384xf32>
    %436 = arith.addf %435, %434 : vector<8x384xf32>
    %437 = arith.divf %435, %436 : vector<8x384xf32>
    %438 = vector.extract_strided_slice %437 {offsets = [0, 0], sizes = [8, 128], strides = [1, 1]} : vector<8x384xf32> to vector<8x128xf32>
    %439 = vector.extract_strided_slice %437 {offsets = [0, 128], sizes = [8, 128], strides = [1, 1]} : vector<8x384xf32> to vector<8x128xf32>
    %440 = vector.extract_strided_slice %437 {offsets = [0, 256], sizes = [8, 128], strides = [1, 1]} : vector<8x384xf32> to vector<8x128xf32>
    %441 = vector.extract_strided_slice %431 {offsets = [0, 384], sizes = [8, 128], strides = [1, 1]} : vector<8x512xf32> to vector<8x128xf32>
    %442 = math.tanh %441 : vector<8x128xf32>
    %443 = arith.mulf %439, %374 : vector<8x128xf32>
    %444 = arith.mulf %438, %442 : vector<8x128xf32>
    %445 = arith.addf %443, %444 : vector<8x128xf32>
    %446 = math.tanh %445 : vector<8x128xf32>
    %447 = arith.mulf %440, %446 : vector<8x128xf32>
    %448 = arith.truncf %447 : vector<8x128xf32> to vector<8x128xbf16>
    %c4_144 = arith.constant 4 : index
    %c0_145 = arith.constant 0 : index
    %c0_146 = arith.constant 0 : index
    %449 = vector.load %arg11[%c4_144, %c0_145, %c0_146] : memref<8x8x128xbf16, #tpu.memory_space<vmem>>, vector<1x8x128xbf16>
    %450 = vector.shape_cast %449 : vector<1x8x128xbf16> to vector<8x128xbf16>
    %451 = vector.shape_cast %448 : vector<8x128xbf16> to vector<1x8x128xbf16>
    tpu.vector_store %arg11[%c4_144, %c0_145, %c0_146], %451 {strides = array<i32>} : memref<8x8x128xbf16, #tpu.memory_space<vmem>>, vector<1x8x128xbf16>,
    %c7 = arith.constant 7 : index
    %c0_147 = arith.constant 0 : index
    %c0_148 = arith.constant 0 : index
    %452 = vector.load %arg10[%c7, %c0_147, %c0_148] : memref<8x8x512xf32, #tpu.memory_space<vmem>>, vector<1x8x512xf32>
    %453 = vector.shape_cast %452 : vector<1x8x512xf32> to vector<8x512xf32>
    %c0_149 = arith.constant 0 : index
    %c0_150 = arith.constant 0 : index
    %454 = vector.load %arg4[%c0_149, %c0_150] : memref<128x512xbf16, #tpu.memory_space<vmem>>, vector<128x512xbf16>
    %cst_151 = arith.constant dense<0.000000e+00> : vector<8x512xf32>
    %455 = tpu.matmul %402, %454, %cst_151 {dimension_numbers = #tpu.dot_dimension_numbers<[1], [0], [0], [1], [0, 0, 1, 1], [], []>} : vector<8x128xbf16>, vector<128x512xbf16>, vector<8x512xf32> -> vector<8x512xf32>
    %456 = arith.addf %453, %455 : vector<8x512xf32>
    %457 = vector.extract_strided_slice %456 {offsets = [0, 0], sizes = [8, 384], strides = [1, 1]} : vector<8x512xf32> to vector<8x384xf32>
    %458 = arith.negf %457 : vector<8x384xf32>
    %459 = math.exp %458 : vector<8x384xf32>
    %cst_152 = arith.constant 1.000000e+00 : f32
    %460 = vector.broadcast %cst_152 : f32 to vector<8x384xf32>
    %461 = arith.addf %460, %459 : vector<8x384xf32>
    %462 = arith.divf %460, %461 : vector<8x384xf32>
    %463 = vector.extract_strided_slice %462 {offsets = [0, 0], sizes = [8, 128], strides = [1, 1]} : vector<8x384xf32> to vector<8x128xf32>
    %464 = vector.extract_strided_slice %462 {offsets = [0, 128], sizes = [8, 128], strides = [1, 1]} : vector<8x384xf32> to vector<8x128xf32>
    %465 = vector.extract_strided_slice %462 {offsets = [0, 256], sizes = [8, 128], strides = [1, 1]} : vector<8x384xf32> to vector<8x128xf32>
    %466 = vector.extract_strided_slice %456 {offsets = [0, 384], sizes = [8, 128], strides = [1, 1]} : vector<8x512xf32> to vector<8x128xf32>
    %467 = math.tanh %466 : vector<8x128xf32>
    %468 = arith.mulf %464, %399 : vector<8x128xf32>
    %469 = arith.mulf %463, %467 : vector<8x128xf32>
    %470 = arith.addf %468, %469 : vector<8x128xf32>
    %471 = math.tanh %470 : vector<8x128xf32>
    %472 = arith.mulf %465, %471 : vector<8x128xf32>
    %473 = arith.truncf %472 : vector<8x128xf32> to vector<8x128xbf16>
    %474 = tpu.concatenate %402, %425 in 1 : vector<8x128xbf16>, vector<8x128xbf16> -> vector<8x256xbf16>
    %c0_153 = arith.constant 0 : index
    %c0_154 = arith.constant 0 : index
    %c0_155 = arith.constant 0 : index
    %475 = vector.load %arg5[%c0_153, %c0_154, %c0_155] : memref<2x256x512xbf16, #tpu.memory_space<vmem>>, vector<1x256x512xbf16>
    %476 = vector.shape_cast %475 : vector<1x256x512xbf16> to vector<256x512xbf16>
    %cst_156 = arith.constant dense<0.000000e+00> : vector<8x512xf32>
    %477 = tpu.matmul %474, %476, %cst_156 {dimension_numbers = #tpu.dot_dimension_numbers<[1], [0], [0], [1], [0, 0, 1, 1], [], []>} : vector<8x256xbf16>, vector<256x512xbf16>, vector<8x512xf32> -> vector<8x512xf32>
    %478 = vector.broadcast %12 : vector<1x512xf32> to vector<8x512xf32>
    %479 = arith.addf %477, %478 : vector<8x512xf32>
    %480 = vector.extract_strided_slice %479 {offsets = [0, 0], sizes = [8, 384], strides = [1, 1]} : vector<8x512xf32> to vector<8x384xf32>
    %481 = arith.negf %480 : vector<8x384xf32>
    %482 = math.exp %481 : vector<8x384xf32>
    %cst_157 = arith.constant 1.000000e+00 : f32
    %483 = vector.broadcast %cst_157 : f32 to vector<8x384xf32>
    %484 = arith.addf %483, %482 : vector<8x384xf32>
    %485 = arith.divf %483, %484 : vector<8x384xf32>
    %486 = vector.extract_strided_slice %485 {offsets = [0, 0], sizes = [8, 128], strides = [1, 1]} : vector<8x384xf32> to vector<8x128xf32>
    %487 = vector.extract_strided_slice %485 {offsets = [0, 128], sizes = [8, 128], strides = [1, 1]} : vector<8x384xf32> to vector<8x128xf32>
    %488 = vector.extract_strided_slice %485 {offsets = [0, 256], sizes = [8, 128], strides = [1, 1]} : vector<8x384xf32> to vector<8x128xf32>
    %489 = vector.extract_strided_slice %479 {offsets = [0, 384], sizes = [8, 128], strides = [1, 1]} : vector<8x512xf32> to vector<8x128xf32>
    %490 = math.tanh %489 : vector<8x128xf32>
    %491 = arith.mulf %487, %422 : vector<8x128xf32>
    %492 = arith.mulf %486, %490 : vector<8x128xf32>
    %493 = arith.addf %491, %492 : vector<8x128xf32>
    %494 = math.tanh %493 : vector<8x128xf32>
    %495 = arith.mulf %488, %494 : vector<8x128xf32>
    %496 = arith.truncf %495 : vector<8x128xf32> to vector<8x128xbf16>
    %497 = tpu.concatenate %425, %448 in 1 : vector<8x128xbf16>, vector<8x128xbf16> -> vector<8x256xbf16>
    %c1_158 = arith.constant 1 : index
    %c0_159 = arith.constant 0 : index
    %c0_160 = arith.constant 0 : index
    %498 = vector.load %arg5[%c1_158, %c0_159, %c0_160] : memref<2x256x512xbf16, #tpu.memory_space<vmem>>, vector<1x256x512xbf16>
    %499 = vector.shape_cast %498 : vector<1x256x512xbf16> to vector<256x512xbf16>
    %cst_161 = arith.constant dense<0.000000e+00> : vector<8x512xf32>
    %500 = tpu.matmul %497, %499, %cst_161 {dimension_numbers = #tpu.dot_dimension_numbers<[1], [0], [0], [1], [0, 0, 1, 1], [], []>} : vector<8x256xbf16>, vector<256x512xbf16>, vector<8x512xf32> -> vector<8x512xf32>
    %501 = vector.broadcast %14 : vector<1x512xf32> to vector<8x512xf32>
    %502 = arith.addf %500, %501 : vector<8x512xf32>
    %503 = vector.extract_strided_slice %502 {offsets = [0, 0], sizes = [8, 384], strides = [1, 1]} : vector<8x512xf32> to vector<8x384xf32>
    %504 = arith.negf %503 : vector<8x384xf32>
    %505 = math.exp %504 : vector<8x384xf32>
    %cst_162 = arith.constant 1.000000e+00 : f32
    %506 = vector.broadcast %cst_162 : f32 to vector<8x384xf32>
    %507 = arith.addf %506, %505 : vector<8x384xf32>
    %508 = arith.divf %506, %507 : vector<8x384xf32>
    %509 = vector.extract_strided_slice %508 {offsets = [0, 0], sizes = [8, 128], strides = [1, 1]} : vector<8x384xf32> to vector<8x128xf32>
    %510 = vector.extract_strided_slice %508 {offsets = [0, 128], sizes = [8, 128], strides = [1, 1]} : vector<8x384xf32> to vector<8x128xf32>
    %511 = vector.extract_strided_slice %508 {offsets = [0, 256], sizes = [8, 128], strides = [1, 1]} : vector<8x384xf32> to vector<8x128xf32>
    %512 = vector.extract_strided_slice %502 {offsets = [0, 384], sizes = [8, 128], strides = [1, 1]} : vector<8x512xf32> to vector<8x128xf32>
    %513 = math.tanh %512 : vector<8x128xf32>
    %514 = arith.mulf %510, %445 : vector<8x128xf32>
    %515 = arith.mulf %509, %513 : vector<8x128xf32>
    %516 = arith.addf %514, %515 : vector<8x128xf32>
    %517 = math.tanh %516 : vector<8x128xf32>
    %518 = arith.mulf %511, %517 : vector<8x128xf32>
    %519 = arith.truncf %518 : vector<8x128xf32> to vector<8x128xbf16>
    %c5_163 = arith.constant 5 : index
    %c0_164 = arith.constant 0 : index
    %c0_165 = arith.constant 0 : index
    %520 = vector.load %arg11[%c5_163, %c0_164, %c0_165] : memref<8x8x128xbf16, #tpu.memory_space<vmem>>, vector<1x8x128xbf16>
    %521 = vector.shape_cast %520 : vector<1x8x128xbf16> to vector<8x128xbf16>
    %522 = vector.shape_cast %519 : vector<8x128xbf16> to vector<1x8x128xbf16>
    tpu.vector_store %arg11[%c5_163, %c0_164, %c0_165], %522 {strides = array<i32>} : memref<8x8x128xbf16, #tpu.memory_space<vmem>>, vector<1x8x128xbf16>,
    %523 = tpu.concatenate %473, %496 in 1 : vector<8x128xbf16>, vector<8x128xbf16> -> vector<8x256xbf16>
    %c0_166 = arith.constant 0 : index
    %c0_167 = arith.constant 0 : index
    %c0_168 = arith.constant 0 : index
    %524 = vector.load %arg5[%c0_166, %c0_167, %c0_168] : memref<2x256x512xbf16, #tpu.memory_space<vmem>>, vector<1x256x512xbf16>
    %525 = vector.shape_cast %524 : vector<1x256x512xbf16> to vector<256x512xbf16>
    %cst_169 = arith.constant dense<0.000000e+00> : vector<8x512xf32>
    %526 = tpu.matmul %523, %525, %cst_169 {dimension_numbers = #tpu.dot_dimension_numbers<[1], [0], [0], [1], [0, 0, 1, 1], [], []>} : vector<8x256xbf16>, vector<256x512xbf16>, vector<8x512xf32> -> vector<8x512xf32>
    %527 = vector.broadcast %12 : vector<1x512xf32> to vector<8x512xf32>
    %528 = arith.addf %526, %527 : vector<8x512xf32>
    %529 = vector.extract_strided_slice %528 {offsets = [0, 0], sizes = [8, 384], strides = [1, 1]} : vector<8x512xf32> to vector<8x384xf32>
    %530 = arith.negf %529 : vector<8x384xf32>
    %531 = math.exp %530 : vector<8x384xf32>
    %cst_170 = arith.constant 1.000000e+00 : f32
    %532 = vector.broadcast %cst_170 : f32 to vector<8x384xf32>
    %533 = arith.addf %532, %531 : vector<8x384xf32>
    %534 = arith.divf %532, %533 : vector<8x384xf32>
    %535 = vector.extract_strided_slice %534 {offsets = [0, 0], sizes = [8, 128], strides = [1, 1]} : vector<8x384xf32> to vector<8x128xf32>
    %536 = vector.extract_strided_slice %534 {offsets = [0, 128], sizes = [8, 128], strides = [1, 1]} : vector<8x384xf32> to vector<8x128xf32>
    %537 = vector.extract_strided_slice %534 {offsets = [0, 256], sizes = [8, 128], strides = [1, 1]} : vector<8x384xf32> to vector<8x128xf32>
    %538 = vector.extract_strided_slice %528 {offsets = [0, 384], sizes = [8, 128], strides = [1, 1]} : vector<8x512xf32> to vector<8x128xf32>
    %539 = math.tanh %538 : vector<8x128xf32>
    %540 = arith.mulf %536, %493 : vector<8x128xf32>
    %541 = arith.mulf %535, %539 : vector<8x128xf32>
    %542 = arith.addf %540, %541 : vector<8x128xf32>
    %543 = math.tanh %542 : vector<8x128xf32>
    %544 = arith.mulf %537, %543 : vector<8x128xf32>
    %545 = arith.truncf %544 : vector<8x128xf32> to vector<8x128xbf16>
    %546 = tpu.concatenate %496, %519 in 1 : vector<8x128xbf16>, vector<8x128xbf16> -> vector<8x256xbf16>
    %c1_171 = arith.constant 1 : index
    %c0_172 = arith.constant 0 : index
    %c0_173 = arith.constant 0 : index
    %547 = vector.load %arg5[%c1_171, %c0_172, %c0_173] : memref<2x256x512xbf16, #tpu.memory_space<vmem>>, vector<1x256x512xbf16>
    %548 = vector.shape_cast %547 : vector<1x256x512xbf16> to vector<256x512xbf16>
    %cst_174 = arith.constant dense<0.000000e+00> : vector<8x512xf32>
    %549 = tpu.matmul %546, %548, %cst_174 {dimension_numbers = #tpu.dot_dimension_numbers<[1], [0], [0], [1], [0, 0, 1, 1], [], []>} : vector<8x256xbf16>, vector<256x512xbf16>, vector<8x512xf32> -> vector<8x512xf32>
    %550 = vector.broadcast %14 : vector<1x512xf32> to vector<8x512xf32>
    %551 = arith.addf %549, %550 : vector<8x512xf32>
    %552 = vector.extract_strided_slice %551 {offsets = [0, 0], sizes = [8, 384], strides = [1, 1]} : vector<8x512xf32> to vector<8x384xf32>
    %553 = arith.negf %552 : vector<8x384xf32>
    %554 = math.exp %553 : vector<8x384xf32>
    %cst_175 = arith.constant 1.000000e+00 : f32
    %555 = vector.broadcast %cst_175 : f32 to vector<8x384xf32>
    %556 = arith.addf %555, %554 : vector<8x384xf32>
    %557 = arith.divf %555, %556 : vector<8x384xf32>
    %558 = vector.extract_strided_slice %557 {offsets = [0, 0], sizes = [8, 128], strides = [1, 1]} : vector<8x384xf32> to vector<8x128xf32>
    %559 = vector.extract_strided_slice %557 {offsets = [0, 128], sizes = [8, 128], strides = [1, 1]} : vector<8x384xf32> to vector<8x128xf32>
    %560 = vector.extract_strided_slice %557 {offsets = [0, 256], sizes = [8, 128], strides = [1, 1]} : vector<8x384xf32> to vector<8x128xf32>
    %561 = vector.extract_strided_slice %551 {offsets = [0, 384], sizes = [8, 128], strides = [1, 1]} : vector<8x512xf32> to vector<8x128xf32>
    %562 = math.tanh %561 : vector<8x128xf32>
    %563 = arith.mulf %559, %516 : vector<8x128xf32>
    %564 = arith.mulf %558, %562 : vector<8x128xf32>
    %565 = arith.addf %563, %564 : vector<8x128xf32>
    %566 = math.tanh %565 : vector<8x128xf32>
    %567 = arith.mulf %560, %566 : vector<8x128xf32>
    %568 = arith.truncf %567 : vector<8x128xf32> to vector<8x128xbf16>
    %c6_176 = arith.constant 6 : index
    %c0_177 = arith.constant 0 : index
    %c0_178 = arith.constant 0 : index
    %569 = vector.load %arg11[%c6_176, %c0_177, %c0_178] : memref<8x8x128xbf16, #tpu.memory_space<vmem>>, vector<1x8x128xbf16>
    %570 = vector.shape_cast %569 : vector<1x8x128xbf16> to vector<8x128xbf16>
    %571 = vector.shape_cast %568 : vector<8x128xbf16> to vector<1x8x128xbf16>
    tpu.vector_store %arg11[%c6_176, %c0_177, %c0_178], %571 {strides = array<i32>} : memref<8x8x128xbf16, #tpu.memory_space<vmem>>, vector<1x8x128xbf16>,
    %572 = tpu.concatenate %545, %568 in 1 : vector<8x128xbf16>, vector<8x128xbf16> -> vector<8x256xbf16>
    %c1_179 = arith.constant 1 : index
    %c0_180 = arith.constant 0 : index
    %c0_181 = arith.constant 0 : index
    %573 = vector.load %arg5[%c1_179, %c0_180, %c0_181] : memref<2x256x512xbf16, #tpu.memory_space<vmem>>, vector<1x256x512xbf16>
    %574 = vector.shape_cast %573 : vector<1x256x512xbf16> to vector<256x512xbf16>
    %cst_182 = arith.constant dense<0.000000e+00> : vector<8x512xf32>
    %575 = tpu.matmul %572, %574, %cst_182 {dimension_numbers = #tpu.dot_dimension_numbers<[1], [0], [0], [1], [0, 0, 1, 1], [], []>} : vector<8x256xbf16>, vector<256x512xbf16>, vector<8x512xf32> -> vector<8x512xf32>
    %576 = vector.broadcast %14 : vector<1x512xf32> to vector<8x512xf32>
    %577 = arith.addf %575, %576 : vector<8x512xf32>
    %578 = vector.extract_strided_slice %577 {offsets = [0, 0], sizes = [8, 384], strides = [1, 1]} : vector<8x512xf32> to vector<8x384xf32>
    %579 = arith.negf %578 : vector<8x384xf32>
    %580 = math.exp %579 : vector<8x384xf32>
    %cst_183 = arith.constant 1.000000e+00 : f32
    %581 = vector.broadcast %cst_183 : f32 to vector<8x384xf32>
    %582 = arith.addf %581, %580 : vector<8x384xf32>
    %583 = arith.divf %581, %582 : vector<8x384xf32>
    %584 = vector.extract_strided_slice %583 {offsets = [0, 0], sizes = [8, 128], strides = [1, 1]} : vector<8x384xf32> to vector<8x128xf32>
    %585 = vector.extract_strided_slice %583 {offsets = [0, 128], sizes = [8, 128], strides = [1, 1]} : vector<8x384xf32> to vector<8x128xf32>
    %586 = vector.extract_strided_slice %583 {offsets = [0, 256], sizes = [8, 128], strides = [1, 1]} : vector<8x384xf32> to vector<8x128xf32>
    %587 = vector.extract_strided_slice %577 {offsets = [0, 384], sizes = [8, 128], strides = [1, 1]} : vector<8x512xf32> to vector<8x128xf32>
    %588 = math.tanh %587 : vector<8x128xf32>
    %589 = arith.mulf %585, %565 : vector<8x128xf32>
    %590 = arith.mulf %584, %588 : vector<8x128xf32>
    %591 = arith.addf %589, %590 : vector<8x128xf32>
    %592 = math.tanh %591 : vector<8x128xf32>
    %593 = arith.mulf %586, %592 : vector<8x128xf32>
    %594 = arith.truncf %593 : vector<8x128xf32> to vector<8x128xbf16>
    %c7_184 = arith.constant 7 : index
    %c0_185 = arith.constant 0 : index
    %c0_186 = arith.constant 0 : index
    %595 = vector.load %arg11[%c7_184, %c0_185, %c0_186] : memref<8x8x128xbf16, #tpu.memory_space<vmem>>, vector<1x8x128xbf16>
    %596 = vector.shape_cast %595 : vector<1x8x128xbf16> to vector<8x128xbf16>
    %597 = vector.shape_cast %594 : vector<8x128xbf16> to vector<1x8x128xbf16>
    tpu.vector_store %arg11[%c7_184, %c0_185, %c0_186], %597 {strides = array<i32>} : memref<8x8x128xbf16, #tpu.memory_space<vmem>>, vector<1x8x128xbf16>,
    %c0_187 = arith.constant 0 : index
    %c0_188 = arith.constant 0 : index
    %c0_189 = arith.constant 0 : index
    %598 = vector.load %arg11[%c0_187, %c0_188, %c0_189] : memref<8x8x128xbf16, #tpu.memory_space<vmem>>, vector<8x8x128xbf16>
    %599 = vector.shape_cast %598 : vector<8x8x128xbf16> to vector<64x128xbf16>
    %c0_190 = arith.constant 0 : index
    %c0_191 = arith.constant 0 : index
    %600 = vector.load %arg7[%c0_190, %c0_191] : memref<128x128xbf16, #tpu.memory_space<vmem>>, vector<128x128xbf16>
    %cst_192 = arith.constant dense<0.000000e+00> : vector<64x128xf32>
    %601 = tpu.matmul %599, %600, %cst_192 {dimension_numbers = #tpu.dot_dimension_numbers<[1], [0], [0], [1], [0, 0, 1, 1], [], []>} : vector<64x128xbf16>, vector<128x128xbf16>, vector<64x128xf32> -> vector<64x128xf32>
    %c0_193 = arith.constant 0 : index
    %c0_194 = arith.constant 0 : index
    %602 = vector.load %arg8[%c0_193, %c0_194] : memref<1x128xf32, #tpu.memory_space<vmem>>, vector<1x128xf32>
    %603 = vector.broadcast %602 : vector<1x128xf32> to vector<64x128xf32>
    %604 = arith.addf %601, %603 : vector<64x128xf32>
    %605 = vector.shape_cast %604 : vector<64x128xf32> to vector<8x8x128xf32>
    %c0_195 = arith.constant 0 : index
    %c0_196 = arith.constant 0 : index
    %c0_197 = arith.constant 0 : index
    %606 = vector.load %arg9[%c0_195, %c0_196, %c0_197] : memref<8x8x128xf32, #tpu.memory_space<vmem>>, vector<8x8x128xf32>
    tpu.vector_store %arg9[%c0_195, %c0_196, %c0_197], %605 {strides = array<i32>} : memref<8x8x128xf32, #tpu.memory_space<vmem>>, vector<8x8x128xf32>,
    return
  }
}

</mosaic_0001>

<llo_original>
// kernel: tpu_custom_call.1
$region0: #{tpu_custom_call.1}
  #allocation0 [shape = 'u32[]', space=smem, size = 0x4, offset = 0x4, fixed_abs, tag = 'smem constant byte address 0x4 - core index']
  #allocation1 [shape = 'u32[72,128]{1,0:T(1,128)}', space=vmem, size = 0x9000, scoped, tag = 'internal scratch']
  #allocation2 [shape = 'f32[8,8,512]{2,1,0:T(8,128)}', space=vmem, size = 0x20000, scoped, tag = 'scratch operand']
  #allocation3 [shape = 'bf16[8,8,128]{2,1,0:T(8,128)(2,1)}', space=vmem, size = 0x4000, scoped, tag = 'scratch operand']
  %s0 = inlined_call_operand.hbm [shape: f32[8,8,32], index: 0, kind: input, shape index: {}]
  %s1 = inlined_call_operand.hbm [shape: f32[3,8,128], index: 1, kind: input, shape index: {}]
  %s2 = inlined_call_operand.hbm [shape: f32[3,8,128], index: 2, kind: input, shape index: {}]
  %s3 = inlined_call_operand.hbm [shape: bf16[32,512], index: 3, kind: input, shape index: {}]
  %s4 = inlined_call_operand.hbm [shape: bf16[128,512], index: 4, kind: input, shape index: {}]
  %s5 = inlined_call_operand.hbm [shape: bf16[2,256,512], index: 5, kind: input, shape index: {}]
  %s6 = inlined_call_operand.hbm [shape: f32[3,1,512], index: 6, kind: input, shape index: {}]
  %s7 = inlined_call_operand.hbm [shape: bf16[128,128], index: 7, kind: input, shape index: {}]
  %s8 = inlined_call_operand.vmem [shape: f32[1,128], index: 8, kind: input, shape index: {}]
  %s9 = inlined_call_operand.hbm [shape: f32[8,8,128], index: 9, kind: output, shape index: {}]
  %s10 = sld [smem:[#allocation0]]
  $region78: #{tpu_custom_call.1} parent=0
    _
  %s12 = ssub.s32 1, %s10
  %s13 = scalar_select 0, %s12, %s10
  $region1: #{tpu_custom_call.1} parent=0
    #allocation4 [shape = 'u8[32768]{0}', space=vmem, size = 0x8000, scoped, tag = 'input window, operand 0, single buffered']
    #allocation5 [shape = 's32[1]{0}', space=sflag, size = 0x4, scoped, tag = 'scoped memory for tpu_custom_call.1']
    #allocation6 [shape = 's32[1]{0}', space=sflag, size = 0x4, scoped, tag = 'scoped memory for tpu_custom_call.1']
    #allocation7 [shape = 'u8[12288]{0}', space=vmem, size = 0x3000, scoped, tag = 'input window, operand 1, single buffered']
    #allocation8 [shape = 's32[1]{0}', space=sflag, size = 0x4, scoped, tag = 'scoped memory for tpu_custom_call.1']
    #allocation9 [shape = 'u8[12288]{0}', space=vmem, size = 0x3000, scoped, tag = 'input window, operand 2, single buffered']
    #allocation10 [shape = 'u8[32768]{0}', space=vmem, size = 0x8000, scoped, tag = 'input window, operand 3, single buffered']
    #allocation11 [shape = 's32[1]{0}', space=sflag, size = 0x4, scoped, tag = 'scoped memory for tpu_custom_call.1']
    #allocation12 [shape = 'u8[131072]{0}', space=vmem, size = 0x20000, scoped, tag = 'input window, operand 4, single buffered']
    #allocation13 [shape = 'u8[524288]{0}', space=vmem, size = 0x80000, scoped, tag = 'input window, operand 5, single buffered']
    #allocation14 [shape = 's32[1]{0}', space=sflag, size = 0x4, scoped, tag = 'scoped memory for tpu_custom_call.1']
    #allocation15 [shape = 'u8[6144]{0}', space=vmem, size = 0x1800, scoped, tag = 'input window, operand 6, single buffered']
    #allocation16 [shape = 'u8[32768]{0}', space=vmem, size = 0x8000, scoped, tag = 'input window, operand 7, single buffered']
    #allocation17 [shape = 's32[1]{0}', space=sflag, size = 0x4, scoped, tag = 'scoped memory for tpu_custom_call.1']
    #allocation18 [shape = 'u8[32768]{0}', space=vmem, size = 0x8000, scoped, tag = 'output window, operand 0, single buffered']
    %14 = vsyncpa [#allocation5], 0
    %15 = vsyncpa [#allocation8], 0
    %16 = vsyncpa [#allocation11], 0
    %17 = vsyncpa [#allocation14], 0
    %18 = vsyncpa [#allocation17], 0
    %19 = vsyncpa [#allocation6], 0
    // Predicated region
    $region2: #{tpu_custom_call.1} parent=1 // pred_check
      _
    $region3: #{tpu_custom_call.1} parent=1 // pred_check_branch
      %21 = sbr.rel (0) target = $region5
    $region4: #{tpu_custom_call.1} parent=1 // pred_region
      %23 = vsyncadd [#allocation5], 0
      %s24 = sshll.u32 %s0, 4
      %s25 = int_to_ptr.hbm [resolvable:$true] %s24
      %s26 = sshll.u32 [#allocation4], 4
      %s27 = int_to_ptr.vmem [resolvable:$true] %s26
      %32 = dma.hbm_to_vmem [thread:$0]  %s25, 1024, %s27, [#allocation5], 128, 128, 8
    $region5: #{tpu_custom_call.1} parent=1 // pred_fallthru
      _
    // Predicated region
    $region6: #{tpu_custom_call.1} parent=1 // pred_check
      _
    $region7: #{tpu_custom_call.1} parent=1 // pred_check_branch
      %34 = sbr.rel (0) target = $region9
    $region8: #{tpu_custom_call.1} parent=1 // pred_region
      %36 = vsyncadd [#allocation8], 0
      %s37 = sshll.u32 %s1, 4
      %s38 = int_to_ptr.hbm [resolvable:$true] %s37
      %s39 = sshll.u32 [#allocation7], 4
      %s40 = int_to_ptr.vmem [resolvable:$true] %s39
      %45 = dma.hbm_to_vmem [thread:$0]  %s38, 384, %s40, [#allocation8], 128, 128, 8
    $region9: #{tpu_custom_call.1} parent=1 // pred_fallthru
      _
    // Predicated region
    $region10: #{tpu_custom_call.1} parent=1 // pred_check
      _
    $region11: #{tpu_custom_call.1} parent=1 // pred_check_branch
      %47 = sbr.rel (0) target = $region13
    $region12: #{tpu_custom_call.1} parent=1 // pred_region
      %49 = vsyncadd [#allocation8], 0
      %s50 = sshll.u32 %s2, 4
      %s51 = int_to_ptr.hbm [resolvable:$true] %s50
      %s52 = sshll.u32 [#allocation9], 4
      %s53 = int_to_ptr.vmem [resolvable:$true] %s52
      %58 = dma.hbm_to_vmem [thread:$0]  %s51, 384, %s53, [#allocation8], 128, 128, 8
    $region13: #{tpu_custom_call.1} parent=1 // pred_fallthru
      _
    // Predicated region
    $region14: #{tpu_custom_call.1} parent=1 // pred_check
      _
    $region15: #{tpu_custom_call.1} parent=1 // pred_check_branch
      %60 = sbr.rel (0) target = $region17
    $region16: #{tpu_custom_call.1} parent=1 // pred_region
      %62 = vsyncadd [#allocation11], 0
      %s63 = sshll.u32 %s3, 4
      %s64 = int_to_ptr.hbm [resolvable:$true] %s63
      %s65 = sshll.u32 [#allocation10], 4
      %s66 = int_to_ptr.vmem [resolvable:$true] %s65
      %71 = dma.hbm_to_vmem [thread:$0]  %s64, 1024, %s66, [#allocation11], 256, 256, 16
    $region17: #{tpu_custom_call.1} parent=1 // pred_fallthru
      _
    // Predicated region
    $region18: #{tpu_custom_call.1} parent=1 // pred_check
      _
    $region19: #{tpu_custom_call.1} parent=1 // pred_check_branch
      %73 = sbr.rel (0) target = $region21
    $region20: #{tpu_custom_call.1} parent=1 // pred_region
      %75 = vsyncadd [#allocation11], 0
      %s76 = sshll.u32 %s4, 4
      %s77 = int_to_ptr.hbm [resolvable:$true] %s76
      %s78 = sshll.u32 [#allocation12], 4
      %s79 = int_to_ptr.vmem [resolvable:$true] %s78
      %84 = dma.hbm_to_vmem [thread:$0]  %s77, 4096, %s79, [#allocation11], 256, 256, 16
    $region21: #{tpu_custom_call.1} parent=1 // pred_fallthru
      _
    // Predicated region
    $region22: #{tpu_custom_call.1} parent=1 // pred_check
      _
    $region23: #{tpu_custom_call.1} parent=1 // pred_check_branch
      %86 = sbr.rel (0) target = $region25
    $region24: #{tpu_custom_call.1} parent=1 // pred_region
      %88 = vsyncadd [#allocation14], 0
      %s89 = sshll.u32 %s5, 4
      %s90 = int_to_ptr.hbm [resolvable:$true] %s89
      %s91 = sshll.u32 [#allocation13], 4
      %s92 = int_to_ptr.vmem [resolvable:$true] %s91
      %97 = dma.hbm_to_vmem [thread:$0]  %s90, 16384, %s92, [#allocation14], 256, 256, 16
    $region25: #{tpu_custom_call.1} parent=1 // pred_fallthru
      _
    // Predicated region
    $region26: #{tpu_custom_call.1} parent=1 // pred_check
      _
    $region27: #{tpu_custom_call.1} parent=1 // pred_check_branch
      %99 = sbr.rel (0) target = $region29
    $region28: #{tpu_custom_call.1} parent=1 // pred_region
      %101 = vsyncadd [#allocation14], 0
      %s102 = sshll.u32 %s6, 4
      %s103 = int_to_ptr.hbm [resolvable:$true] %s102
      %s104 = sshll.u32 [#allocation15], 4
      %s105 = int_to_ptr.vmem [resolvable:$true] %s104
      %110 = dma.hbm_to_vmem [thread:$0]  %s103, 192, %s105, [#allocation14], 64, 64, 4
    $region29: #{tpu_custom_call.1} parent=1 // pred_fallthru
      _
    // Predicated region
    $region30: #{tpu_custom_call.1} parent=1 // pred_check
      _
    $region31: #{tpu_custom_call.1} parent=1 // pred_check_branch
      %112 = sbr.rel (0) target = $region33
    $region32: #{tpu_custom_call.1} parent=1 // pred_region
      %114 = vsyncadd [#allocation17], 0
      %s115 = sshll.u32 %s7, 4
      %s116 = int_to_ptr.hbm [resolvable:$true] %s115
      %s117 = sshll.u32 [#allocation16], 4
      %s118 = int_to_ptr.vmem [resolvable:$true] %s117
      %123 = dma.hbm_to_vmem [thread:$0]  %s116, 1024, %s118, [#allocation17], 64, 64, 4
    $region33: #{tpu_custom_call.1} parent=1 // pred_fallthru
      _
    // Predicated region
    $region34: #{tpu_custom_call.1} parent=1 // pred_check
      _
    $region35: #{tpu_custom_call.1} parent=1 // pred_check_branch
      %125 = sbr.rel (0) target = $region37
    $region36: #{tpu_custom_call.1} parent=1 // pred_region
      _
    $region37: #{tpu_custom_call.1} parent=1 // pred_fallthru
      _
    // Predicated region
    $region38: #{tpu_custom_call.1} parent=1 // pred_check
      _
    $region39: #{tpu_custom_call.1} parent=1 // pred_check_branch
      %127 = sbr.rel (0) target = $region41
    $region40: #{tpu_custom_call.1} parent=1 // pred_region
      %129 = dma.done [#allocation5], 1024
    $region41: #{tpu_custom_call.1} parent=1 // pred_fallthru
      _
    // Predicated region
    $region42: #{tpu_custom_call.1} parent=1 // pred_check
      _
    $region43: #{tpu_custom_call.1} parent=1 // pred_check_branch
      %131 = sbr.rel (0) target = $region45
    $region44: #{tpu_custom_call.1} parent=1 // pred_region
      %133 = dma.done [#allocation8], 384
    $region45: #{tpu_custom_call.1} parent=1 // pred_fallthru
      _
    // Predicated region
    $region46: #{tpu_custom_call.1} parent=1 // pred_check
      _
    $region47: #{tpu_custom_call.1} parent=1 // pred_check_branch
      %135 = sbr.rel (0) target = $region49
    $region48: #{tpu_custom_call.1} parent=1 // pred_region
      %137 = dma.done [#allocation8], 384
    $region49: #{tpu_custom_call.1} parent=1 // pred_fallthru
      _
    // Predicated region
    $region50: #{tpu_custom_call.1} parent=1 // pred_check
      _
    $region51: #{tpu_custom_call.1} parent=1 // pred_check_branch
      %139 = sbr.rel (0) target = $region53
    $region52: #{tpu_custom_call.1} parent=1 // pred_region
      %141 = dma.done [#allocation11], 1024
    $region53: #{tpu_custom_call.1} parent=1 // pred_fallthru
      _
    // Predicated region
    $region54: #{tpu_custom_call.1} parent=1 // pred_check
      _
    $region55: #{tpu_custom_call.1} parent=1 // pred_check_branch
      %143 = sbr.rel (0) target = $region57
    $region56: #{tpu_custom_call.1} parent=1 // pred_region
      %145 = dma.done [#allocation11], 4096
    $region57: #{tpu_custom_call.1} parent=1 // pred_fallthru
      _
    // Predicated region
    $region58: #{tpu_custom_call.1} parent=1 // pred_check
      _
    $region59: #{tpu_custom_call.1} parent=1 // pred_check_branch
      %147 = sbr.rel (0) target = $region61
    $region60: #{tpu_custom_call.1} parent=1 // pred_region
      %149 = dma.done [#allocation14], 16384
    $region61: #{tpu_custom_call.1} parent=1 // pred_fallthru
      _
    // Predicated region
    $region62: #{tpu_custom_call.1} parent=1 // pred_check
      _
    $region63: #{tpu_custom_call.1} parent=1 // pred_check_branch
      %151 = sbr.rel (0) target = $region65
    $region64: #{tpu_custom_call.1} parent=1 // pred_region
      %153 = dma.done [#allocation14], 192
    $region65: #{tpu_custom_call.1} parent=1 // pred_fallthru
      _
    // Predicated region
    $region66: #{tpu_custom_call.1} parent=1 // pred_check
      _
    $region67: #{tpu_custom_call.1} parent=1 // pred_check_branch
      %155 = sbr.rel (0) target = $region69
    $region68: #{tpu_custom_call.1} parent=1 // pred_region
      %157 = dma.done [#allocation17], 1024
    $region69: #{tpu_custom_call.1} parent=1 // pred_fallthru
      _
    %v159 = vld [vmem:[#allocation4] sm:$0xff]
    %v160 = vld [vmem:[#allocation4 + $0x8] sm:$0xff]
    %v161 = vld [vmem:[#allocation4 + $0x10] sm:$0xff]
    %v162 = vld [vmem:[#allocation4 + $0x18] sm:$0xff]
    %v163 = vld [vmem:[#allocation4 + $0x20] sm:$0xff]
    %v164 = vld [vmem:[#allocation4 + $0x28] sm:$0xff]
    %v165 = vld [vmem:[#allocation4 + $0x30] sm:$0xff]
    %v166 = vld [vmem:[#allocation4 + $0x38] sm:$0xff]
    %v167 = vpack.c.bf16 %v160, %v159
    %v168 = vpack.c.bf16 %v162, %v161
    %v169 = vpack.c.bf16 %v164, %v163
    %v170 = vpack.c.bf16 %v166, %v165
    %v171 = vld [vmem:[#allocation10] sm:$0xff]
    %v172 = vld [vmem:[#allocation10 + $0x8] sm:$0xff]
    %v173 = vld [vmem:[#allocation10 + $0x10] sm:$0xff]
    %v174 = vld [vmem:[#allocation10 + $0x18] sm:$0xff]
    %v175 = vld [vmem:[#allocation10 + $0x20] sm:$0xff]
    %v176 = vld [vmem:[#allocation10 + $0x28] sm:$0xff]
    %v177 = vld [vmem:[#allocation10 + $0x30] sm:$0xff]
    %v178 = vld [vmem:[#allocation10 + $0x38] sm:$0xff]
    %v179 = vld [vmem:[#allocation15] sm:$0xf]
    %v181 = vperm.slane %v179, 0
    %v182 = vperm.slane %v179, 1
    %v183 = vperm.slane %v179, 2
    %v184 = vperm.slane %v179, 3
    %v197 = vunpack.c.l.b16 %v171
    %v198 = vunpack.c.h.b16 %v171
    %v199 = vunpack.c.l.b16 %v172
    %v200 = vunpack.c.h.b16 %v172
    %v201 = vunpack.c.l.b16 %v173
    %v202 = vunpack.c.h.b16 %v173
    %v203 = vunpack.c.l.b16 %v174
    %v204 = vunpack.c.h.b16 %v174
    %v205 = vunpack.c.l.b16 %v175
    %v206 = vunpack.c.h.b16 %v175
    %v207 = vunpack.c.l.b16 %v176
    %v208 = vunpack.c.h.b16 %v176
    %v209 = vunpack.c.l.b16 %v177
    %v210 = vunpack.c.h.b16 %v177
    %v211 = vunpack.c.l.b16 %v178
    %v212 = vunpack.c.h.b16 %v178
    %v213 = vpack.c.b16 %v201, %v197
    %v214 = vpack.c.b16 %v202, %v198
    %v215 = vpack.c.b16 %v203, %v199
    %v216 = vpack.c.b16 %v204, %v200
    %v217 = vpack.c.b16 %v209, %v205
    %v218 = vpack.c.b16 %v210, %v206
    %v219 = vpack.c.b16 %v211, %v207
    %v220 = vpack.c.b16 %v212, %v208
    %vm229 = vcmask 261120
    %v231 = vsel %vm229, %v167, 0
    %v234 = vsel %vm229, %v168, 0
    %v237 = vsel %vm229, %v169, 0
    %v240 = vsel %vm229, %v170, 0
    %242 = vmatpush.bf16.msra.mxu0 0
    %243 = vmatpush.bf16.msra.mxu0 0
    %244 = vmatpush.bf16.msra.mxu0 0
    %245 = vmatpush.bf16.msra.mxu0 0
    %246 = vmatpush.bf16.msra.mxu0 0
    %247 = vmatpush.bf16.msra.mxu0 0
    %248 = vmatpush.bf16.msra.mxu0 %v217
    %249 = vmatpush.bf16.msra.mxu0 %v213
    %250 = vmatmul.bf16.gmra.mxu0 %v231
    %v251 = vpop.f32.mrf.mxu0
    %v252 = vadd.f32 %v181, %v251
    %v253 = vpop.f32.mrf.mxu0
    %v254 = vadd.f32 %v181, %v253
    %255 = vmatmul.bf16.gmra.mxu0 %v234
    %v256 = vpop.f32.mrf.mxu0
    %v257 = vadd.f32 %v181, %v256
    %v258 = vpop.f32.mrf.mxu0
    %v259 = vadd.f32 %v181, %v258
    %260 = vmatmul.bf16.gmra.mxu0 %v237
    %v261 = vpop.f32.mrf.mxu0
    %v262 = vadd.f32 %v181, %v261
    %v263 = vpop.f32.mrf.mxu0
    %v264 = vadd.f32 %v181, %v263
    %265 = vmatmul.bf16.gmra.mxu0 %v240
    %v266 = vpop.f32.mrf.mxu0
    %v267 = vadd.f32 %v181, %v266
    %v268 = vpop.f32.mrf.mxu0
    %v269 = vadd.f32 %v181, %v268
    %270 = vdwg.mxu0
    %271 = vmatpush.bf16.msra.mxu0 0
    %272 = vmatpush.bf16.msra.mxu0 0
    %273 = vmatpush.bf16.msra.mxu0 0
    %274 = vmatpush.bf16.msra.mxu0 0
    %275 = vmatpush.bf16.msra.mxu0 0
    %276 = vmatpush.bf16.msra.mxu0 0
    %277 = vmatpush.bf16.msra.mxu0 %v218
    %278 = vmatpush.bf16.msra.mxu0 %v214
    %279 = vmatmul.bf16.gmra.mxu0 %v231
    %v280 = vpop.f32.mrf.mxu0
    %v281 = vadd.f32 %v182, %v280
    %v282 = vpop.f32.mrf.mxu0
    %v283 = vadd.f32 %v182, %v282
    %284 = vmatmul.bf16.gmra.mxu0 %v234
    %v285 = vpop.f32.mrf.mxu0
    %v286 = vadd.f32 %v182, %v285
    %v287 = vpop.f32.mrf.mxu0
    %v288 = vadd.f32 %v182, %v287
    %289 = vmatmul.bf16.gmra.mxu0 %v237
    %v290 = vpop.f32.mrf.mxu0
    %v291 = vadd.f32 %v182, %v290
    %v292 = vpop.f32.mrf.mxu0
    %v293 = vadd.f32 %v182, %v292
    %294 = vmatmul.bf16.gmra.mxu0 %v240
    %v295 = vpop.f32.mrf.mxu0
    %v296 = vadd.f32 %v182, %v295
    %v297 = vpop.f32.mrf.mxu0
    %v298 = vadd.f32 %v182, %v297
    %299 = vdwg.mxu0
    %300 = vmatpush.bf16.msra.mxu0 0
    %301 = vmatpush.bf16.msra.mxu0 0
    %302 = vmatpush.bf16.msra.mxu0 0
    %303 = vmatpush.bf16.msra.mxu0 0
    %304 = vmatpush.bf16.msra.mxu0 0
    %305 = vmatpush.bf16.msra.mxu0 0
    %306 = vmatpush.bf16.msra.mxu0 %v219
    %307 = vmatpush.bf16.msra.mxu0 %v215
    %308 = vmatmul.bf16.gmra.mxu0 %v231
    %v309 = vpop.f32.mrf.mxu0
    %v310 = vadd.f32 %v183, %v309
    %v311 = vpop.f32.mrf.mxu0
    %v312 = vadd.f32 %v183, %v311
    %313 = vmatmul.bf16.gmra.mxu0 %v234
    %v314 = vpop.f32.mrf.mxu0
    %v315 = vadd.f32 %v183, %v314
    %v316 = vpop.f32.mrf.mxu0
    %v317 = vadd.f32 %v183, %v316
    %318 = vmatmul.bf16.gmra.mxu0 %v237
    %v319 = vpop.f32.mrf.mxu0
    %v320 = vadd.f32 %v183, %v319
    %v321 = vpop.f32.mrf.mxu0
    %v322 = vadd.f32 %v183, %v321
    %323 = vmatmul.bf16.gmra.mxu0 %v240
    %v324 = vpop.f32.mrf.mxu0
    %v325 = vadd.f32 %v183, %v324
    %v326 = vpop.f32.mrf.mxu0
    %v327 = vadd.f32 %v183, %v326
    %328 = vdwg.mxu0
    %329 = vmatpush.bf16.msra.mxu0 0
    %330 = vmatpush.bf16.msra.mxu0 0
    %331 = vmatpush.bf16.msra.mxu0 0
    %332 = vmatpush.bf16.msra.mxu0 0
    %333 = vmatpush.bf16.msra.mxu0 0
    %334 = vmatpush.bf16.msra.mxu0 0
    %335 = vmatpush.bf16.msra.mxu0 %v220
    %336 = vmatpush.bf16.msra.mxu0 %v216
    %337 = vmatmul.bf16.gmra.mxu0 %v231
    %v338 = vpop.f32.mrf.mxu0
    %v339 = vadd.f32 %v184, %v338
    %v340 = vpop.f32.mrf.mxu0
    %v341 = vadd.f32 %v184, %v340
    %342 = vmatmul.bf16.gmra.mxu0 %v234
    %v343 = vpop.f32.mrf.mxu0
    %v344 = vadd.f32 %v184, %v343
    %v345 = vpop.f32.mrf.mxu0
    %v346 = vadd.f32 %v184, %v345
    %347 = vmatmul.bf16.gmra.mxu0 %v237
    %v348 = vpop.f32.mrf.mxu0
    %v349 = vadd.f32 %v184, %v348
    %v350 = vpop.f32.mrf.mxu0
    %v351 = vadd.f32 %v184, %v350
    %352 = vmatmul.bf16.gmra.mxu0 %v240
    %v353 = vpop.f32.mrf.mxu0
    %v354 = vadd.f32 %v184, %v353
    %v355 = vpop.f32.mrf.mxu0
    %v356 = vadd.f32 %v184, %v355
    %357 = vdwg.mxu0
    %358 = vst [vmem:[#allocation2] sm:$0xff] %v252
    %359 = vst [vmem:[#allocation2 + $0x8] sm:$0xff] %v281
    %360 = vst [vmem:[#allocation2 + $0x10] sm:$0xff] %v310
    %361 = vst [vmem:[#allocation2 + $0x18] sm:$0xff] %v339
    %362 = vst [vmem:[#allocation2 + $0x20] sm:$0xff] %v254
    %363 = vst [vmem:[#allocation2 + $0x28] sm:$0xff] %v283
    %364 = vst [vmem:[#allocation2 + $0x30] sm:$0xff] %v312
    %365 = vst [vmem:[#allocation2 + $0x38] sm:$0xff] %v341
    %366 = vst [vmem:[#allocation2 + $0x40] sm:$0xff] %v257
    %367 = vst [vmem:[#allocation2 + $0x48] sm:$0xff] %v286
    %368 = vst [vmem:[#allocation2 + $0x50] sm:$0xff] %v315
    %369 = vst [vmem:[#allocation2 + $0x58] sm:$0xff] %v344
    %370 = vst [vmem:[#allocation2 + $0x60] sm:$0xff] %v259
    %371 = vst [vmem:[#allocation2 + $0x68] sm:$0xff] %v288
    %372 = vst [vmem:[#allocation2 + $0x70] sm:$0xff] %v317
    %373 = vst [vmem:[#allocation2 + $0x78] sm:$0xff] %v346
    %374 = vst [vmem:[#allocation2 + $0x80] sm:$0xff] %v262
    %375 = vst [vmem:[#allocation2 + $0x88] sm:$0xff] %v291
    %376 = vst [vmem:[#allocation2 + $0x90] sm:$0xff] %v320
    %377 = vst [vmem:[#allocation2 + $0x98] sm:$0xff] %v349
    %378 = vst [vmem:[#allocation2 + $0xa0] sm:$0xff] %v264
    %379 = vst [vmem:[#allocation2 + $0xa8] sm:$0xff] %v293
    %380 = vst [vmem:[#allocation2 + $0xb0] sm:$0xff] %v322
    %381 = vst [vmem:[#allocation2 + $0xb8] sm:$0xff] %v351
    %382 = vst [vmem:[#allocation2 + $0xc0] sm:$0xff] %v267
    %383 = vst [vmem:[#allocation2 + $0xc8] sm:$0xff] %v296
    %384 = vst [vmem:[#allocation2 + $0xd0] sm:$0xff] %v325
    %385 = vst [vmem:[#allocation2 + $0xd8] sm:$0xff] %v354
    %386 = vst [vmem:[#allocation2 + $0xe0] sm:$0xff] %v269
    %387 = vst [vmem:[#allocation2 + $0xe8] sm:$0xff] %v298
    %388 = vst [vmem:[#allocation2 + $0xf0] sm:$0xff] %v327
    %389 = vst [vmem:[#allocation2 + $0xf8] sm:$0xff] %v356
    %s390 = scalar_lea.vmem [#allocation15], 4
    %v391 = vld [vmem:[%s390] sm:$0xf]
    %s392 = scalar_lea.vmem [#allocation15], 8
    %v393 = vld [vmem:[%s392] sm:$0xf]
    %v394 = vld [vmem:[#allocation7] sm:$0xff]
    %v395 = vpack.c.bf16 %v394, %v394
    %s396 = scalar_lea.vmem [#allocation7], 8
    %v397 = vld [vmem:[%s396] sm:$0xff]
    %v398 = vpack.c.bf16 %v397, %v397
    %s399 = scalar_lea.vmem [#allocation7], 16
    %v400 = vld [vmem:[%s399] sm:$0xff]
    %v401 = vpack.c.bf16 %v400, %v400
    %v402 = vld [vmem:[#allocation9] sm:$0xff]
    %s403 = scalar_lea.vmem [#allocation9], 8
    %v404 = vld [vmem:[%s403] sm:$0xff]
    %s405 = scalar_lea.vmem [#allocation9], 16
    %v406 = vld [vmem:[%s405] sm:$0xff]
    %v407 = vld [vmem:[#allocation2] sm:$0xff]
    %v408 = vld [vmem:[#allocation2 + $0x8] sm:$0xff]
    %v409 = vld [vmem:[#allocation2 + $0x10] sm:$0xff]
    %v410 = vld [vmem:[#allocation2 + $0x18] sm:$0xff]
    %v411 = vld [vmem:[#allocation12] sm:$0xff]
    %v412 = vld [vmem:[#allocation12 + $0x8] sm:$0xff]
    %v413 = vld [vmem:[#allocation12 + $0x10] sm:$0xff]
    %v414 = vld [vmem:[#allocation12 + $0x18] sm:$0xff]
    %v415 = vld [vmem:[#allocation12 + $0x20] sm:$0xff]
    %v416 = vld [vmem:[#allocation12 + $0x28] sm:$0xff]
    %v417 = vld [vmem:[#allocation12 + $0x30] sm:$0xff]
    %v418 = vld [vmem:[#allocation12 + $0x38] sm:$0xff]
    %v419 = vld [vmem:[#allocation12 + $0x40] sm:$0xff]
    %v420 = vld [vmem:[#allocation12 + $0x48] sm:$0xff]
    %v421 = vld [vmem:[#allocation12 + $0x50] sm:$0xff]
    %v422 = vld [vmem:[#allocation12 + $0x58] sm:$0xff]
    %v423 = vld [vmem:[#allocation12 + $0x60] sm:$0xff]
    %v424 = vld [vmem:[#allocation12 + $0x68] sm:$0xff]
    %v425 = vld [vmem:[#allocation12 + $0x70] sm:$0xff]
    %v426 = vld [vmem:[#allocation12 + $0x78] sm:$0xff]
    %v427 = vld [vmem:[#allocation12 + $0x80] sm:$0xff]
    %v428 = vld [vmem:[#allocation12 + $0x88] sm:$0xff]
    %v429 = vld [vmem:[#allocation12 + $0x90] sm:$0xff]
    %v430 = vld [vmem:[#allocation12 + $0x98] sm:$0xff]
    %v431 = vld [vmem:[#allocation12 + $0xa0] sm:$0xff]
    %v432 = vld [vmem:[#allocation12 + $0xa8] sm:$0xff]
    %v433 = vld [vmem:[#allocation12 + $0xb0] sm:$0xff]
    %v434 = vld [vmem:[#allocation12 + $0xb8] sm:$0xff]
    %v435 = vld [vmem:[#allocation12 + $0xc0] sm:$0xff]
    %v436 = vld [vmem:[#allocation12 + $0xc8] sm:$0xff]
    %v437 = vld [vmem:[#allocation12 + $0xd0] sm:$0xff]
    %v438 = vld [vmem:[#allocation12 + $0xd8] sm:$0xff]
    %v439 = vld [vmem:[#allocation12 + $0xe0] sm:$0xff]
    %v440 = vld [vmem:[#allocation12 + $0xe8] sm:$0xff]
    %v441 = vld [vmem:[#allocation12 + $0xf0] sm:$0xff]
    %v442 = vld [vmem:[#allocation12 + $0xf8] sm:$0xff]
    %v475 = vunpack.c.l.b16 %v411
    %v476 = vunpack.c.h.b16 %v411
    %v477 = vunpack.c.l.b16 %v412
    %v478 = vunpack.c.h.b16 %v412
    %v479 = vunpack.c.l.b16 %v413
    %v480 = vunpack.c.h.b16 %v413
    %v481 = vunpack.c.l.b16 %v414
    %v482 = vunpack.c.h.b16 %v414
    %v483 = vunpack.c.l.b16 %v415
    %v484 = vunpack.c.h.b16 %v415
    %v485 = vunpack.c.l.b16 %v416
    %v486 = vunpack.c.h.b16 %v416
    %v487 = vunpack.c.l.b16 %v417
    %v488 = vunpack.c.h.b16 %v417
    %v489 = vunpack.c.l.b16 %v418
    %v490 = vunpack.c.h.b16 %v418
    %v491 = vunpack.c.l.b16 %v419
    %v492 = vunpack.c.h.b16 %v419
    %v493 = vunpack.c.l.b16 %v420
    %v494 = vunpack.c.h.b16 %v420
    %v495 = vunpack.c.l.b16 %v421
    %v496 = vunpack.c.h.b16 %v421
    %v497 = vunpack.c.l.b16 %v422
    %v498 = vunpack.c.h.b16 %v422
    %v499 = vunpack.c.l.b16 %v423
    %v500 = vunpack.c.h.b16 %v423
    %v501 = vunpack.c.l.b16 %v424
    %v502 = vunpack.c.h.b16 %v424
    %v503 = vunpack.c.l.b16 %v425
    %v504 = vunpack.c.h.b16 %v425
    %v505 = vunpack.c.l.b16 %v426
    %v506 = vunpack.c.h.b16 %v426
    %v507 = vunpack.c.l.b16 %v427
    %v508 = vunpack.c.h.b16 %v427
    %v509 = vunpack.c.l.b16 %v428
    %v510 = vunpack.c.h.b16 %v428
    %v511 = vunpack.c.l.b16 %v429
    %v512 = vunpack.c.h.b16 %v429
    %v513 = vunpack.c.l.b16 %v430
    %v514 = vunpack.c.h.b16 %v430
    %v515 = vunpack.c.l.b16 %v431
    %v516 = vunpack.c.h.b16 %v431
    %v517 = vunpack.c.l.b16 %v432
    %v518 = vunpack.c.h.b16 %v432
    %v519 = vunpack.c.l.b16 %v433
    %v520 = vunpack.c.h.b16 %v433
    %v521 = vunpack.c.l.b16 %v434
    %v522 = vunpack.c.h.b16 %v434
    %v523 = vunpack.c.l.b16 %v435
    %v524 = vunpack.c.h.b16 %v435
    %v525 = vunpack.c.l.b16 %v436
    %v526 = vunpack.c.h.b16 %v436
    %v527 = vunpack.c.l.b16 %v437
    %v528 = vunpack.c.h.b16 %v437
    %v529 = vunpack.c.l.b16 %v438
    %v530 = vunpack.c.h.b16 %v438
    %v531 = vunpack.c.l.b16 %v439
    %v532 = vunpack.c.h.b16 %v439
    %v533 = vunpack.c.l.b16 %v440
    %v534 = vunpack.c.h.b16 %v440
    %v535 = vunpack.c.l.b16 %v441
    %v536 = vunpack.c.h.b16 %v441
    %v537 = vunpack.c.l.b16 %v442
    %v538 = vunpack.c.h.b16 %v442
    %v539 = vpack.c.b16 %v479, %v475
    %v540 = vpack.c.b16 %v480, %v476
    %v541 = vpack.c.b16 %v481, %v477
    %v542 = vpack.c.b16 %v482, %v478
    %v543 = vpack.c.b16 %v487, %v483
    %v544 = vpack.c.b16 %v488, %v484
    %v545 = vpack.c.b16 %v489, %v485
    %v546 = vpack.c.b16 %v490, %v486
    %v547 = vpack.c.b16 %v495, %v491
    %v548 = vpack.c.b16 %v496, %v492
    %v549 = vpack.c.b16 %v497, %v493
    %v550 = vpack.c.b16 %v498, %v494
    %v551 = vpack.c.b16 %v503, %v499
    %v552 = vpack.c.b16 %v504, %v500
    %v553 = vpack.c.b16 %v505, %v501
    %v554 = vpack.c.b16 %v506, %v502
    %v555 = vpack.c.b16 %v511, %v507
    %v556 = vpack.c.b16 %v512, %v508
    %v557 = vpack.c.b16 %v513, %v509
    %v558 = vpack.c.b16 %v514, %v510
    %v559 = vpack.c.b16 %v519, %v515
    %v560 = vpack.c.b16 %v520, %v516
    %v561 = vpack.c.b16 %v521, %v517
    %v562 = vpack.c.b16 %v522, %v518
    %v563 = vpack.c.b16 %v527, %v523
    %v564 = vpack.c.b16 %v528, %v524
    %v565 = vpack.c.b16 %v529, %v525
    %v566 = vpack.c.b16 %v530, %v526
    %v567 = vpack.c.b16 %v535, %v531
    %v568 = vpack.c.b16 %v536, %v532
    %v569 = vpack.c.b16 %v537, %v533
    %v570 = vpack.c.b16 %v538, %v534
    %603 = vmatpush.bf16.msra.mxu0 %v567
    %604 = vmatpush.bf16.msra.mxu0 %v563
    %605 = vmatpush.bf16.msra.mxu0 %v559
    %606 = vmatpush.bf16.msra.mxu0 %v555
    %607 = vmatpush.bf16.msra.mxu0 %v551
    %608 = vmatpush.bf16.msra.mxu0 %v547
    %609 = vmatpush.bf16.msra.mxu0 %v543
    %610 = vmatpush.bf16.msra.mxu0 %v539
    %611 = vmatmul.bf16.gmra.mxu0 %v395
    %v612 = vpop.f32.mrf.mxu0
    %v613 = vadd.f32 0.0, %v612
    %v614 = vpop.f32.mrf.mxu0
    %615 = vdwg.mxu0
    %616 = vmatpush.bf16.msra.mxu0 %v568
    %617 = vmatpush.bf16.msra.mxu0 %v564
    %618 = vmatpush.bf16.msra.mxu0 %v560
    %619 = vmatpush.bf16.msra.mxu0 %v556
    %620 = vmatpush.bf16.msra.mxu0 %v552
    %621 = vmatpush.bf16.msra.mxu0 %v548
    %622 = vmatpush.bf16.msra.mxu0 %v544
    %623 = vmatpush.bf16.msra.mxu0 %v540
    %624 = vmatmul.bf16.gmra.mxu0 %v395
    %v625 = vpop.f32.mrf.mxu0
    %v626 = vadd.f32 0.0, %v625
    %v627 = vpop.f32.mrf.mxu0
    %628 = vdwg.mxu0
    %629 = vmatpush.bf16.msra.mxu0 %v569
    %630 = vmatpush.bf16.msra.mxu0 %v565
    %631 = vmatpush.bf16.msra.mxu0 %v561
    %632 = vmatpush.bf16.msra.mxu0 %v557
    %633 = vmatpush.bf16.msra.mxu0 %v553
    %634 = vmatpush.bf16.msra.mxu0 %v549
    %635 = vmatpush.bf16.msra.mxu0 %v545
    %636 = vmatpush.bf16.msra.mxu0 %v541
    %637 = vmatmul.bf16.gmra.mxu0 %v395
    %v638 = vpop.f32.mrf.mxu0
    %v639 = vadd.f32 0.0, %v638
    %v640 = vpop.f32.mrf.mxu0
    %641 = vdwg.mxu0
    %642 = vmatpush.bf16.msra.mxu0 %v570
    %643 = vmatpush.bf16.msra.mxu0 %v566
    %644 = vmatpush.bf16.msra.mxu0 %v562
    %645 = vmatpush.bf16.msra.mxu0 %v558
    %646 = vmatpush.bf16.msra.mxu0 %v554
    %647 = vmatpush.bf16.msra.mxu0 %v550
    %648 = vmatpush.bf16.msra.mxu0 %v546
    %649 = vmatpush.bf16.msra.mxu0 %v542
    %650 = vmatmul.bf16.gmra.mxu0 %v395
    %v651 = vpop.f32.mrf.mxu0
    %v652 = vadd.f32 0.0, %v651
    %v653 = vpop.f32.mrf.mxu0
    %654 = vdwg.mxu0
    %v655 = vadd.f32 %v407, %v613
    %v656 = vadd.f32 %v408, %v626
    %v657 = vadd.f32 %v409, %v639
    %v658 = vadd.f32 %v410, %v652
    %v659 = vxor.u32 %v655, 2147483648
    %v660 = vxor.u32 %v656, 2147483648
    %v661 = vxor.u32 %v657, 2147483648
    %v662 = vmul.f32 %v659, 1.442695
    %v663 = vpow.pop %v662
    %v664 = vmul.f32 %v660, 1.442695
    %v665 = vpow.pop %v664
    %v666 = vmul.f32 %v661, 1.442695
    %v667 = vpow.pop %v666
    %v668 = vadd.f32 %v663, 1.0
    %v669 = vadd.f32 %v665, 1.0
    %v670 = vadd.f32 %v667, 1.0
    %v671 = vrcp.pop %v668
    %v672 = vmul.f32 %v668, %v671
    %v673 = vsub.f32 1.0, %v672
    %v674 = vmul.f32 %v671, %v673
    %v675 = vadd.f32 %v671, %v674
    %vm676 = vweird.f32 %v668
    %vm677 = vweird.f32 %v671
    %vm678 = vmor %vm676, %vm677
    %v679 = vsel %vm678, %v671, %v675
    %v680 = vand.u32 2147483647, %v668
    %vm681 = vcmp.eq.f32.partialorder %v680, 8.507059e+37
    %v682 = vand.u32 %v668, 2147483648
    %v683 = vor.u32 1.1754944e-38, %v682
    %v684 = vsel %vm681, %v683, %v679
    %v685 = vmul.f32 1.0, %v684
    %v686 = vrcp.pop %v669
    %v687 = vmul.f32 %v669, %v686
    %v688 = vsub.f32 1.0, %v687
    %v689 = vmul.f32 %v686, %v688
    %v690 = vadd.f32 %v686, %v689
    %vm691 = vweird.f32 %v669
    %vm692 = vweird.f32 %v686
    %vm693 = vmor %vm691, %vm692
    %v694 = vsel %vm693, %v686, %v690
    %v695 = vand.u32 2147483647, %v669
    %vm696 = vcmp.eq.f32.partialorder %v695, 8.507059e+37
    %v697 = vand.u32 %v669, 2147483648
    %v698 = vor.u32 1.1754944e-38, %v697
    %v699 = vsel %vm696, %v698, %v694
    %v700 = vmul.f32 1.0, %v699
    %v701 = vrcp.pop %v670
    %v702 = vmul.f32 %v670, %v701
    %v703 = vsub.f32 1.0, %v702
    %v704 = vmul.f32 %v701, %v703
    %v705 = vadd.f32 %v701, %v704
    %vm706 = vweird.f32 %v670
    %vm707 = vweird.f32 %v701
    %vm708 = vmor %vm706, %vm707
    %v709 = vsel %vm708, %v701, %v705
    %v710 = vand.u32 2147483647, %v670
    %vm711 = vcmp.eq.f32.partialorder %v710, 8.507059e+37
    %v712 = vand.u32 %v670, 2147483648
    %v713 = vor.u32 1.1754944e-38, %v712
    %v714 = vsel %vm711, %v713, %v709
    %v715 = vmul.f32 1.0, %v714
    %v716 = vtanh.pop %v658
    %v717 = vmul.f32 %v700, %v402
    %v718 = vmul.f32 %v685, %v716
    %v719 = vadd.f32 %v717, %v718
    %v720 = vtanh.pop %v719
    %v721 = vmul.f32 %v715, %v720
    %v722 = vpack.c.bf16 %v721, %v721
    %s723 = scalar_lea.vmem [#allocation2], 32
    %v724 = vld [vmem:[%s723] sm:$0xff]
    %v725 = vld [vmem:[%s723 + $0x8] sm:$0xff]
    %v726 = vld [vmem:[%s723 + $0x10] sm:$0xff]
    %v727 = vld [vmem:[%s723 + $0x18] sm:$0xff]
    %728 = vmatpush.bf16.msra.mxu0 %v567
    %729 = vmatpush.bf16.msra.mxu0 %v563
    %730 = vmatpush.bf16.msra.mxu0 %v559
    %731 = vmatpush.bf16.msra.mxu0 %v555
    %732 = vmatpush.bf16.msra.mxu0 %v551
    %733 = vmatpush.bf16.msra.mxu0 %v547
    %734 = vmatpush.bf16.msra.mxu0 %v543
    %735 = vmatpush.bf16.msra.mxu0 %v539
    %736 = vmatmul.bf16.gmra.mxu0 %v722
    %v737 = vpop.f32.mrf.mxu0
    %v738 = vadd.f32 0.0, %v737
    %v739 = vpop.f32.mrf.mxu0
    %740 = vdwg.mxu0
    %741 = vmatpush.bf16.msra.mxu0 %v568
    %742 = vmatpush.bf16.msra.mxu0 %v564
    %743 = vmatpush.bf16.msra.mxu0 %v560
    %744 = vmatpush.bf16.msra.mxu0 %v556
    %745 = vmatpush.bf16.msra.mxu0 %v552
    %746 = vmatpush.bf16.msra.mxu0 %v548
    %747 = vmatpush.bf16.msra.mxu0 %v544
    %748 = vmatpush.bf16.msra.mxu0 %v540
    %749 = vmatmul.bf16.gmra.mxu0 %v722
    %v750 = vpop.f32.mrf.mxu0
    %v751 = vadd.f32 0.0, %v750
    %v752 = vpop.f32.mrf.mxu0
    %753 = vdwg.mxu0
    %754 = vmatpush.bf16.msra.mxu0 %v569
    %755 = vmatpush.bf16.msra.mxu0 %v565
    %756 = vmatpush.bf16.msra.mxu0 %v561
    %757 = vmatpush.bf16.msra.mxu0 %v557
    %758 = vmatpush.bf16.msra.mxu0 %v553
    %759 = vmatpush.bf16.msra.mxu0 %v549
    %760 = vmatpush.bf16.msra.mxu0 %v545
    %761 = vmatpush.bf16.msra.mxu0 %v541
    %762 = vmatmul.bf16.gmra.mxu0 %v722
    %v763 = vpop.f32.mrf.mxu0
    %v764 = vadd.f32 0.0, %v763
    %v765 = vpop.f32.mrf.mxu0
    %766 = vdwg.mxu0
    %767 = vmatpush.bf16.msra.mxu0 %v570
    %768 = vmatpush.bf16.msra.mxu0 %v566
    %769 = vmatpush.bf16.msra.mxu0 %v562
    %770 = vmatpush.bf16.msra.mxu0 %v558
    %771 = vmatpush.bf16.msra.mxu0 %v554
    %772 = vmatpush.bf16.msra.mxu0 %v550
    %773 = vmatpush.bf16.msra.mxu0 %v546
    %774 = vmatpush.bf16.msra.mxu0 %v542
    %775 = vmatmul.bf16.gmra.mxu0 %v722
    %v776 = vpop.f32.mrf.mxu0
    %v777 = vadd.f32 0.0, %v776
    %v778 = vpop.f32.mrf.mxu0
    %779 = vdwg.mxu0
    %v780 = vadd.f32 %v724, %v738
    %v781 = vadd.f32 %v725, %v751
    %v782 = vadd.f32 %v726, %v764
    %v783 = vadd.f32 %v727, %v777
    %v784 = vxor.u32 %v780, 2147483648
    %v785 = vxor.u32 %v781, 2147483648
    %v786 = vxor.u32 %v782, 2147483648
    %v787 = vmul.f32 %v784, 1.442695
    %v788 = vpow.pop %v787
    %v789 = vmul.f32 %v785, 1.442695
    %v790 = vpow.pop %v789
    %v791 = vmul.f32 %v786, 1.442695
    %v792 = vpow.pop %v791
    %v793 = vadd.f32 %v788, 1.0
    %v794 = vadd.f32 %v790, 1.0
    %v795 = vadd.f32 %v792, 1.0
    %v796 = vrcp.pop %v793
    %v797 = vmul.f32 %v793, %v796
    %v798 = vsub.f32 1.0, %v797
    %v799 = vmul.f32 %v796, %v798
    %v800 = vadd.f32 %v796, %v799
    %vm801 = vweird.f32 %v793
    %vm802 = vweird.f32 %v796
    %vm803 = vmor %vm801, %vm802
    %v804 = vsel %vm803, %v796, %v800
    %v805 = vand.u32 2147483647, %v793
    %vm806 = vcmp.eq.f32.partialorder %v805, 8.507059e+37
    %v807 = vand.u32 %v793, 2147483648
    %v808 = vor.u32 1.1754944e-38, %v807
    %v809 = vsel %vm806, %v808, %v804
    %v810 = vmul.f32 1.0, %v809
    %v811 = vrcp.pop %v794
    %v812 = vmul.f32 %v794, %v811
    %v813 = vsub.f32 1.0, %v812
    %v814 = vmul.f32 %v811, %v813
    %v815 = vadd.f32 %v811, %v814
    %vm816 = vweird.f32 %v794
    %vm817 = vweird.f32 %v811
    %vm818 = vmor %vm816, %vm817
    %v819 = vsel %vm818, %v811, %v815
    %v820 = vand.u32 2147483647, %v794
    %vm821 = vcmp.eq.f32.partialorder %v820, 8.507059e+37
    %v822 = vand.u32 %v794, 2147483648
    %v823 = vor.u32 1.1754944e-38, %v822
    %v824 = vsel %vm821, %v823, %v819
    %v825 = vmul.f32 1.0, %v824
    %v826 = vrcp.pop %v795
    %v827 = vmul.f32 %v795, %v826
    %v828 = vsub.f32 1.0, %v827
    %v829 = vmul.f32 %v826, %v828
    %v830 = vadd.f32 %v826, %v829
    %vm831 = vweird.f32 %v795
    %vm832 = vweird.f32 %v826
    %vm833 = vmor %vm831, %vm832
    %v834 = vsel %vm833, %v826, %v830
    %v835 = vand.u32 2147483647, %v795
    %vm836 = vcmp.eq.f32.partialorder %v835, 8.507059e+37
    %v837 = vand.u32 %v795, 2147483648
    %v838 = vor.u32 1.1754944e-38, %v837
    %v839 = vsel %vm836, %v838, %v834
    %v840 = vmul.f32 1.0, %v839
    %v841 = vtanh.pop %v783
    %v842 = vmul.f32 %v825, %v719
    %v843 = vmul.f32 %v810, %v841
    %v844 = vadd.f32 %v842, %v843
    %v845 = vtanh.pop %v844
    %v846 = vmul.f32 %v840, %v845
    %v847 = vpack.c.bf16 %v846, %v846
    %v848 = vld [vmem:[#allocation13] sm:$0xff]
    %v849 = vld [vmem:[#allocation13 + $0x8] sm:$0xff]
    %v850 = vld [vmem:[#allocation13 + $0x10] sm:$0xff]
    %v851 = vld [vmem:[#allocation13 + $0x18] sm:$0xff]
    %v852 = vld [vmem:[#allocation13 + $0x20] sm:$0xff]
    %v853 = vld [vmem:[#allocation13 + $0x28] sm:$0xff]
    %v854 = vld [vmem:[#allocation13 + $0x30] sm:$0xff]
    %v855 = vld [vmem:[#allocation13 + $0x38] sm:$0xff]
    %v856 = vld [vmem:[#allocation13 + $0x40] sm:$0xff]
    %v857 = vld [vmem:[#allocation13 + $0x48] sm:$0xff]
    %v858 = vld [vmem:[#allocation13 + $0x50] sm:$0xff]
    %v859 = vld [vmem:[#allocation13 + $0x58] sm:$0xff]
    %v860 = vld [vmem:[#allocation13 + $0x60] sm:$0xff]
    %v861 = vld [vmem:[#allocation13 + $0x68] sm:$0xff]
    %v862 = vld [vmem:[#allocation13 + $0x70] sm:$0xff]
    %v863 = vld [vmem:[#allocation13 + $0x78] sm:$0xff]
    %v864 = vld [vmem:[#allocation13 + $0x80] sm:$0xff]
    %v865 = vld [vmem:[#allocation13 + $0x88] sm:$0xff]
    %v866 = vld [vmem:[#allocation13 + $0x90] sm:$0xff]
    %v867 = vld [vmem:[#allocation13 + $0x98] sm:$0xff]
    %v868 = vld [vmem:[#allocation13 + $0xa0] sm:$0xff]
    %v869 = vld [vmem:[#allocation13 + $0xa8] sm:$0xff]
    %v870 = vld [vmem:[#allocation13 + $0xb0] sm:$0xff]
    %v871 = vld [vmem:[#allocation13 + $0xb8] sm:$0xff]
    %v872 = vld [vmem:[#allocation13 + $0xc0] sm:$0xff]
    %v873 = vld [vmem:[#allocation13 + $0xc8] sm:$0xff]
    %v874 = vld [vmem:[#allocation13 + $0xd0] sm:$0xff]
    %v875 = vld [vmem:[#allocation13 + $0xd8] sm:$0xff]
    %v876 = vld [vmem:[#allocation13 + $0xe0] sm:$0xff]
    %v877 = vld [vmem:[#allocation13 + $0xe8] sm:$0xff]
    %v878 = vld [vmem:[#allocation13 + $0xf0] sm:$0xff]
    %v879 = vld [vmem:[#allocation13 + $0xf8] sm:$0xff]
    %v880 = vld [vmem:[#allocation13 + $0x100] sm:$0xff]
    %v881 = vld [vmem:[#allocation13 + $0x108] sm:$0xff]
    %v882 = vld [vmem:[#allocation13 + $0x110] sm:$0xff]
    %v883 = vld [vmem:[#allocation13 + $0x118] sm:$0xff]
    %v884 = vld [vmem:[#allocation13 + $0x120] sm:$0xff]
    %v885 = vld [vmem:[#allocation13 + $0x128] sm:$0xff]
    %v886 = vld [vmem:[#allocation13 + $0x130] sm:$0xff]
    %v887 = vld [vmem:[#allocation13 + $0x138] sm:$0xff]
    %v888 = vld [vmem:[#allocation13 + $0x140] sm:$0xff]
    %v889 = vld [vmem:[#allocation13 + $0x148] sm:$0xff]
    %v890 = vld [vmem:[#allocation13 + $0x150] sm:$0xff]
    %v891 = vld [vmem:[#allocation13 + $0x158] sm:$0xff]
    %v892 = vld [vmem:[#allocation13 + $0x160] sm:$0xff]
    %v893 = vld [vmem:[#allocation13 + $0x168] sm:$0xff]
    %v894 = vld [vmem:[#allocation13 + $0x170] sm:$0xff]
    %v895 = vld [vmem:[#allocation13 + $0x178] sm:$0xff]
    %v896 = vld [vmem:[#allocation13 + $0x180] sm:$0xff]
    %v897 = vld [vmem:[#allocation13 + $0x188] sm:$0xff]
    %v898 = vld [vmem:[#allocation13 + $0x190] sm:$0xff]
    %v899 = vld [vmem:[#allocation13 + $0x198] sm:$0xff]
    %v900 = vld [vmem:[#allocation13 + $0x1a0] sm:$0xff]
    %v901 = vld [vmem:[#allocation13 + $0x1a8] sm:$0xff]
    %v902 = vld [vmem:[#allocation13 + $0x1b0] sm:$0xff]
    %v903 = vld [vmem:[#allocation13 + $0x1b8] sm:$0xff]
    %v904 = vld [vmem:[#allocation13 + $0x1c0] sm:$0xff]
    %v905 = vld [vmem:[#allocation13 + $0x1c8] sm:$0xff]
    %v906 = vld [vmem:[#allocation13 + $0x1d0] sm:$0xff]
    %v907 = vld [vmem:[#allocation13 + $0x1d8] sm:$0xff]
    %v908 = vld [vmem:[#allocation13 + $0x1e0] sm:$0xff]
    %v909 = vld [vmem:[#allocation13 + $0x1e8] sm:$0xff]
    %v910 = vld [vmem:[#allocation13 + $0x1f0] sm:$0xff]
    %v911 = vld [vmem:[#allocation13 + $0x1f8] sm:$0xff]
    %v913 = vperm.slane %v391, 0
    %v914 = vperm.slane %v391, 1
    %v915 = vperm.slane %v391, 2
    %v916 = vperm.slane %v391, 3
    %v985 = vunpack.c.l.b16 %v848
    %v986 = vunpack.c.h.b16 %v848
    %v987 = vunpack.c.l.b16 %v849
    %v988 = vunpack.c.h.b16 %v849
    %v989 = vunpack.c.l.b16 %v850
    %v990 = vunpack.c.h.b16 %v850
    %v991 = vunpack.c.l.b16 %v851
    %v992 = vunpack.c.h.b16 %v851
    %v993 = vunpack.c.l.b16 %v852
    %v994 = vunpack.c.h.b16 %v852
    %v995 = vunpack.c.l.b16 %v853
    %v996 = vunpack.c.h.b16 %v853
    %v997 = vunpack.c.l.b16 %v854
    %v998 = vunpack.c.h.b16 %v854
    %v999 = vunpack.c.l.b16 %v855
    %v1000 = vunpack.c.h.b16 %v855
    %v1001 = vunpack.c.l.b16 %v856
    %v1002 = vunpack.c.h.b16 %v856
    %v1003 = vunpack.c.l.b16 %v857
    %v1004 = vunpack.c.h.b16 %v857
    %v1005 = vunpack.c.l.b16 %v858
    %v1006 = vunpack.c.h.b16 %v858
    %v1007 = vunpack.c.l.b16 %v859
    %v1008 = vunpack.c.h.b16 %v859
    %v1009 = vunpack.c.l.b16 %v860
    %v1010 = vunpack.c.h.b16 %v860
    %v1011 = vunpack.c.l.b16 %v861
    %v1012 = vunpack.c.h.b16 %v861
    %v1013 = vunpack.c.l.b16 %v862
    %v1014 = vunpack.c.h.b16 %v862
    %v1015 = vunpack.c.l.b16 %v863
    %v1016 = vunpack.c.h.b16 %v863
    %v1017 = vunpack.c.l.b16 %v864
    %v1018 = vunpack.c.h.b16 %v864
    %v1019 = vunpack.c.l.b16 %v865
    %v1020 = vunpack.c.h.b16 %v865
    %v1021 = vunpack.c.l.b16 %v866
    %v1022 = vunpack.c.h.b16 %v866
    %v1023 = vunpack.c.l.b16 %v867
    %v1024 = vunpack.c.h.b16 %v867
    %v1025 = vunpack.c.l.b16 %v868
    %v1026 = vunpack.c.h.b16 %v868
    %v1027 = vunpack.c.l.b16 %v869
    %v1028 = vunpack.c.h.b16 %v869
    %v1029 = vunpack.c.l.b16 %v870
    %v1030 = vunpack.c.h.b16 %v870
    %v1031 = vunpack.c.l.b16 %v871
    %v1032 = vunpack.c.h.b16 %v871
    %v1033 = vunpack.c.l.b16 %v872
    %v1034 = vunpack.c.h.b16 %v872
    %v1035 = vunpack.c.l.b16 %v873
    %v1036 = vunpack.c.h.b16 %v873
    %v1037 = vunpack.c.l.b16 %v874
    %v1038 = vunpack.c.h.b16 %v874
    %v1039 = vunpack.c.l.b16 %v875
    %v1040 = vunpack.c.h.b16 %v875
    %v1041 = vunpack.c.l.b16 %v876
    %v1042 = vunpack.c.h.b16 %v876
    %v1043 = vunpack.c.l.b16 %v877
    %v1044 = vunpack.c.h.b16 %v877
    %v1045 = vunpack.c.l.b16 %v878
    %v1046 = vunpack.c.h.b16 %v878
    %v1047 = vunpack.c.l.b16 %v879
    %v1048 = vunpack.c.h.b16 %v879
    %v1049 = vunpack.c.l.b16 %v880
    %v1050 = vunpack.c.h.b16 %v880
    %v1051 = vunpack.c.l.b16 %v881
    %v1052 = vunpack.c.h.b16 %v881
    %v1053 = vunpack.c.l.b16 %v882
    %v1054 = vunpack.c.h.b16 %v882
    %v1055 = vunpack.c.l.b16 %v883
    %v1056 = vunpack.c.h.b16 %v883
    %v1057 = vunpack.c.l.b16 %v884
    %v1058 = vunpack.c.h.b16 %v884
    %v1059 = vunpack.c.l.b16 %v885
    %v1060 = vunpack.c.h.b16 %v885
    %v1061 = vunpack.c.l.b16 %v886
    %v1062 = vunpack.c.h.b16 %v886
    %v1063 = vunpack.c.l.b16 %v887
    %v1064 = vunpack.c.h.b16 %v887
    %v1065 = vunpack.c.l.b16 %v888
    %v1066 = vunpack.c.h.b16 %v888
    %v1067 = vunpack.c.l.b16 %v889
    %v1068 = vunpack.c.h.b16 %v889
    %v1069 = vunpack.c.l.b16 %v890
    %v1070 = vunpack.c.h.b16 %v890
    %v1071 = vunpack.c.l.b16 %v891
    %v1072 = vunpack.c.h.b16 %v891
    %v1073 = vunpack.c.l.b16 %v892
    %v1074 = vunpack.c.h.b16 %v892
    %v1075 = vunpack.c.l.b16 %v893
    %v1076 = vunpack.c.h.b16 %v893
    %v1077 = vunpack.c.l.b16 %v894
    %v1078 = vunpack.c.h.b16 %v894
    %v1079 = vunpack.c.l.b16 %v895
    %v1080 = vunpack.c.h.b16 %v895
    %v1081 = vunpack.c.l.b16 %v896
    %v1082 = vunpack.c.h.b16 %v896
    %v1083 = vunpack.c.l.b16 %v897
    %v1084 = vunpack.c.h.b16 %v897
    %v1085 = vunpack.c.l.b16 %v898
    %v1086 = vunpack.c.h.b16 %v898
    %v1087 = vunpack.c.l.b16 %v899
    %v1088 = vunpack.c.h.b16 %v899
    %v1089 = vunpack.c.l.b16 %v900
    %v1090 = vunpack.c.h.b16 %v900
    %v1091 = vunpack.c.l.b16 %v901
    %v1092 = vunpack.c.h.b16 %v901
    %v1093 = vunpack.c.l.b16 %v902
    %v1094 = vunpack.c.h.b16 %v902
    %v1095 = vunpack.c.l.b16 %v903
    %v1096 = vunpack.c.h.b16 %v903
    %v1097 = vunpack.c.l.b16 %v904
    %v1098 = vunpack.c.h.b16 %v904
    %v1099 = vunpack.c.l.b16 %v905
    %v1100 = vunpack.c.h.b16 %v905
    %v1101 = vunpack.c.l.b16 %v906
    %v1102 = vunpack.c.h.b16 %v906
    %v1103 = vunpack.c.l.b16 %v907
    %v1104 = vunpack.c.h.b16 %v907
    %v1105 = vunpack.c.l.b16 %v908
    %v1106 = vunpack.c.h.b16 %v908
    %v1107 = vunpack.c.l.b16 %v909
    %v1108 = vunpack.c.h.b16 %v909
    %v1109 = vunpack.c.l.b16 %v910
    %v1110 = vunpack.c.h.b16 %v910
    %v1111 = vunpack.c.l.b16 %v911
    %v1112 = vunpack.c.h.b16 %v911
    %v1113 = vpack.c.b16 %v989, %v985
    %v1114 = vpack.c.b16 %v990, %v986
    %v1115 = vpack.c.b16 %v991, %v987
    %v1116 = vpack.c.b16 %v992, %v988
    %v1117 = vpack.c.b16 %v997, %v993
    %v1118 = vpack.c.b16 %v998, %v994
    %v1119 = vpack.c.b16 %v999, %v995
    %v1120 = vpack.c.b16 %v1000, %v996
    %v1121 = vpack.c.b16 %v1005, %v1001
    %v1122 = vpack.c.b16 %v1006, %v1002
    %v1123 = vpack.c.b16 %v1007, %v1003
    %v1124 = vpack.c.b16 %v1008, %v1004
    %v1125 = vpack.c.b16 %v1013, %v1009
    %v1126 = vpack.c.b16 %v1014, %v1010
    %v1127 = vpack.c.b16 %v1015, %v1011
    %v1128 = vpack.c.b16 %v1016, %v1012
    %v1129 = vpack.c.b16 %v1021, %v1017
    %v1130 = vpack.c.b16 %v1022, %v1018
    %v1131 = vpack.c.b16 %v1023, %v1019
    %v1132 = vpack.c.b16 %v1024, %v1020
    %v1133 = vpack.c.b16 %v1029, %v1025
    %v1134 = vpack.c.b16 %v1030, %v1026
    %v1135 = vpack.c.b16 %v1031, %v1027
    %v1136 = vpack.c.b16 %v1032, %v1028
    %v1137 = vpack.c.b16 %v1037, %v1033
    %v1138 = vpack.c.b16 %v1038, %v1034
    %v1139 = vpack.c.b16 %v1039, %v1035
    %v1140 = vpack.c.b16 %v1040, %v1036
    %v1141 = vpack.c.b16 %v1045, %v1041
    %v1142 = vpack.c.b16 %v1046, %v1042
    %v1143 = vpack.c.b16 %v1047, %v1043
    %v1144 = vpack.c.b16 %v1048, %v1044
    %v1145 = vpack.c.b16 %v1053, %v1049
    %v1146 = vpack.c.b16 %v1054, %v1050
    %v1147 = vpack.c.b16 %v1055, %v1051
    %v1148 = vpack.c.b16 %v1056, %v1052
    %v1149 = vpack.c.b16 %v1061, %v1057
    %v1150 = vpack.c.b16 %v1062, %v1058
    %v1151 = vpack.c.b16 %v1063, %v1059
    %v1152 = vpack.c.b16 %v1064, %v1060
    %v1153 = vpack.c.b16 %v1069, %v1065
    %v1154 = vpack.c.b16 %v1070, %v1066
    %v1155 = vpack.c.b16 %v1071, %v1067
    %v1156 = vpack.c.b16 %v1072, %v1068
    %v1157 = vpack.c.b16 %v1077, %v1073
    %v1158 = vpack.c.b16 %v1078, %v1074
    %v1159 = vpack.c.b16 %v1079, %v1075
    %v1160 = vpack.c.b16 %v1080, %v1076
    %v1161 = vpack.c.b16 %v1085, %v1081
    %v1162 = vpack.c.b16 %v1086, %v1082
    %v1163 = vpack.c.b16 %v1087, %v1083
    %v1164 = vpack.c.b16 %v1088, %v1084
    %v1165 = vpack.c.b16 %v1093, %v1089
    %v1166 = vpack.c.b16 %v1094, %v1090
    %v1167 = vpack.c.b16 %v1095, %v1091
    %v1168 = vpack.c.b16 %v1096, %v1092
    %v1169 = vpack.c.b16 %v1101, %v1097
    %v1170 = vpack.c.b16 %v1102, %v1098
    %v1171 = vpack.c.b16 %v1103, %v1099
    %v1172 = vpack.c.b16 %v1104, %v1100
    %v1173 = vpack.c.b16 %v1109, %v1105
    %v1174 = vpack.c.b16 %v1110, %v1106
    %v1175 = vpack.c.b16 %v1111, %v1107
    %v1176 = vpack.c.b16 %v1112, %v1108
    %1241 = vmatpush.bf16.msra.mxu0 %v1141
    %1242 = vmatpush.bf16.msra.mxu0 %v1137
    %1243 = vmatpush.bf16.msra.mxu0 %v1133
    %1244 = vmatpush.bf16.msra.mxu0 %v1129
    %1245 = vmatpush.bf16.msra.mxu0 %v1125
    %1246 = vmatpush.bf16.msra.mxu0 %v1121
    %1247 = vmatpush.bf16.msra.mxu0 %v1117
    %1248 = vmatpush.bf16.msra.mxu0 %v1113
    %1249 = vmatmul.bf16.gmra.mxu0 %v722
    %v1250 = vpop.f32.mrf.mxu0
    %v1251 = vadd.f32 %v913, %v1250
    %v1252 = vpop.f32.mrf.mxu0
    %1253 = vdwg.mxu0
    %1254 = vmatpush.bf16.msra.mxu0 %v1173
    %1255 = vmatpush.bf16.msra.mxu0 %v1169
    %1256 = vmatpush.bf16.msra.mxu0 %v1165
    %1257 = vmatpush.bf16.msra.mxu0 %v1161
    %1258 = vmatpush.bf16.msra.mxu0 %v1157
    %1259 = vmatpush.bf16.msra.mxu0 %v1153
    %1260 = vmatpush.bf16.msra.mxu0 %v1149
    %1261 = vmatpush.bf16.msra.mxu0 %v1145
    %1262 = vmatmul.bf16.gmra.mxu0 %v398
    %v1263 = vpop.f32.mrf.mxu0
    %v1264 = vadd.f32 %v1251, %v1263
    %v1265 = vpop.f32.mrf.mxu0
    %1266 = vdwg.mxu0
    %1267 = vmatpush.bf16.msra.mxu0 %v1142
    %1268 = vmatpush.bf16.msra.mxu0 %v1138
    %1269 = vmatpush.bf16.msra.mxu0 %v1134
    %1270 = vmatpush.bf16.msra.mxu0 %v1130
    %1271 = vmatpush.bf16.msra.mxu0 %v1126
    %1272 = vmatpush.bf16.msra.mxu0 %v1122
    %1273 = vmatpush.bf16.msra.mxu0 %v1118
    %1274 = vmatpush.bf16.msra.mxu0 %v1114
    %1275 = vmatmul.bf16.gmra.mxu0 %v722
    %v1276 = vpop.f32.mrf.mxu0
    %v1277 = vadd.f32 %v914, %v1276
    %v1278 = vpop.f32.mrf.mxu0
    %1279 = vdwg.mxu0
    %1280 = vmatpush.bf16.msra.mxu0 %v1174
    %1281 = vmatpush.bf16.msra.mxu0 %v1170
    %1282 = vmatpush.bf16.msra.mxu0 %v1166
    %1283 = vmatpush.bf16.msra.mxu0 %v1162
    %1284 = vmatpush.bf16.msra.mxu0 %v1158
    %1285 = vmatpush.bf16.msra.mxu0 %v1154
    %1286 = vmatpush.bf16.msra.mxu0 %v1150
    %1287 = vmatpush.bf16.msra.mxu0 %v1146
    %1288 = vmatmul.bf16.gmra.mxu0 %v398
    %v1289 = vpop.f32.mrf.mxu0
    %v1290 = vadd.f32 %v1277, %v1289
    %v1291 = vpop.f32.mrf.mxu0
    %1292 = vdwg.mxu0
    %1293 = vmatpush.bf16.msra.mxu0 %v1143
    %1294 = vmatpush.bf16.msra.mxu0 %v1139
    %1295 = vmatpush.bf16.msra.mxu0 %v1135
    %1296 = vmatpush.bf16.msra.mxu0 %v1131
    %1297 = vmatpush.bf16.msra.mxu0 %v1127
    %1298 = vmatpush.bf16.msra.mxu0 %v1123
    %1299 = vmatpush.bf16.msra.mxu0 %v1119
    %1300 = vmatpush.bf16.msra.mxu0 %v1115
    %1301 = vmatmul.bf16.gmra.mxu0 %v722
    %v1302 = vpop.f32.mrf.mxu0
    %v1303 = vadd.f32 %v915, %v1302
    %v1304 = vpop.f32.mrf.mxu0
    %1305 = vdwg.mxu0
    %1306 = vmatpush.bf16.msra.mxu0 %v1175
    %1307 = vmatpush.bf16.msra.mxu0 %v1171
    %1308 = vmatpush.bf16.msra.mxu0 %v1167
    %1309 = vmatpush.bf16.msra.mxu0 %v1163
    %1310 = vmatpush.bf16.msra.mxu0 %v1159
    %1311 = vmatpush.bf16.msra.mxu0 %v1155
    %1312 = vmatpush.bf16.msra.mxu0 %v1151
    %1313 = vmatpush.bf16.msra.mxu0 %v1147
    %1314 = vmatmul.bf16.gmra.mxu0 %v398
    %v1315 = vpop.f32.mrf.mxu0
    %v1316 = vadd.f32 %v1303, %v1315
    %v1317 = vpop.f32.mrf.mxu0
    %1318 = vdwg.mxu0
    %1319 = vmatpush.bf16.msra.mxu0 %v1144
    %1320 = vmatpush.bf16.msra.mxu0 %v1140
    %1321 = vmatpush.bf16.msra.mxu0 %v1136
    %1322 = vmatpush.bf16.msra.mxu0 %v1132
    %1323 = vmatpush.bf16.msra.mxu0 %v1128
    %1324 = vmatpush.bf16.msra.mxu0 %v1124
    %1325 = vmatpush.bf16.msra.mxu0 %v1120
    %1326 = vmatpush.bf16.msra.mxu0 %v1116
    %1327 = vmatmul.bf16.gmra.mxu0 %v722
    %v1328 = vpop.f32.mrf.mxu0
    %v1329 = vadd.f32 %v916, %v1328
    %v1330 = vpop.f32.mrf.mxu0
    %1331 = vdwg.mxu0
    %1332 = vmatpush.bf16.msra.mxu0 %v1176
    %1333 = vmatpush.bf16.msra.mxu0 %v1172
    %1334 = vmatpush.bf16.msra.mxu0 %v1168
    %1335 = vmatpush.bf16.msra.mxu0 %v1164
    %1336 = vmatpush.bf16.msra.mxu0 %v1160
    %1337 = vmatpush.bf16.msra.mxu0 %v1156
    %1338 = vmatpush.bf16.msra.mxu0 %v1152
    %1339 = vmatpush.bf16.msra.mxu0 %v1148
    %1340 = vmatmul.bf16.gmra.mxu0 %v398
    %v1341 = vpop.f32.mrf.mxu0
    %v1342 = vadd.f32 %v1329, %v1341
    %v1343 = vpop.f32.mrf.mxu0
    %1344 = vdwg.mxu0
    %v1345 = vxor.u32 %v1264, 2147483648
    %v1346 = vxor.u32 %v1290, 2147483648
    %v1347 = vxor.u32 %v1316, 2147483648
    %v1348 = vmul.f32 %v1345, 1.442695
    %v1349 = vpow.pop %v1348
    %v1350 = vmul.f32 %v1346, 1.442695
    %v1351 = vpow.pop %v1350
    %v1352 = vmul.f32 %v1347, 1.442695
    %v1353 = vpow.pop %v1352
    %v1354 = vadd.f32 %v1349, 1.0
    %v1355 = vadd.f32 %v1351, 1.0
    %v1356 = vadd.f32 %v1353, 1.0
    %v1357 = vrcp.pop %v1354
    %v1358 = vmul.f32 %v1354, %v1357
    %v1359 = vsub.f32 1.0, %v1358
    %v1360 = vmul.f32 %v1357, %v1359
    %v1361 = vadd.f32 %v1357, %v1360
    %vm1362 = vweird.f32 %v1354
    %vm1363 = vweird.f32 %v1357
    %vm1364 = vmor %vm1362, %vm1363
    %v1365 = vsel %vm1364, %v1357, %v1361
    %v1366 = vand.u32 2147483647, %v1354
    %vm1367 = vcmp.eq.f32.partialorder %v1366, 8.507059e+37
    %v1368 = vand.u32 %v1354, 2147483648
    %v1369 = vor.u32 1.1754944e-38, %v1368
    %v1370 = vsel %vm1367, %v1369, %v1365
    %v1371 = vmul.f32 1.0, %v1370
    %v1372 = vrcp.pop %v1355
    %v1373 = vmul.f32 %v1355, %v1372
    %v1374 = vsub.f32 1.0, %v1373
    %v1375 = vmul.f32 %v1372, %v1374
    %v1376 = vadd.f32 %v1372, %v1375
    %vm1377 = vweird.f32 %v1355
    %vm1378 = vweird.f32 %v1372
    %vm1379 = vmor %vm1377, %vm1378
    %v1380 = vsel %vm1379, %v1372, %v1376
    %v1381 = vand.u32 2147483647, %v1355
    %vm1382 = vcmp.eq.f32.partialorder %v1381, 8.507059e+37
    %v1383 = vand.u32 %v1355, 2147483648
    %v1384 = vor.u32 1.1754944e-38, %v1383
    %v1385 = vsel %vm1382, %v1384, %v1380
    %v1386 = vmul.f32 1.0, %v1385
    %v1387 = vrcp.pop %v1356
    %v1388 = vmul.f32 %v1356, %v1387
    %v1389 = vsub.f32 1.0, %v1388
    %v1390 = vmul.f32 %v1387, %v1389
    %v1391 = vadd.f32 %v1387, %v1390
    %vm1392 = vweird.f32 %v1356
    %vm1393 = vweird.f32 %v1387
    %vm1394 = vmor %vm1392, %vm1393
    %v1395 = vsel %vm1394, %v1387, %v1391
    %v1396 = vand.u32 2147483647, %v1356
    %vm1397 = vcmp.eq.f32.partialorder %v1396, 8.507059e+37
    %v1398 = vand.u32 %v1356, 2147483648
    %v1399 = vor.u32 1.1754944e-38, %v1398
    %v1400 = vsel %vm1397, %v1399, %v1395
    %v1401 = vmul.f32 1.0, %v1400
    %v1402 = vtanh.pop %v1342
    %v1403 = vmul.f32 %v1386, %v404
    %v1404 = vmul.f32 %v1371, %v1402
    %v1405 = vadd.f32 %v1403, %v1404
    %v1406 = vtanh.pop %v1405
    %v1407 = vmul.f32 %v1401, %v1406
    %v1408 = vpack.c.bf16 %v1407, %v1407
    %s1409 = scalar_lea.vmem [#allocation2], 64
    %v1410 = vld [vmem:[%s1409] sm:$0xff]
    %v1411 = vld [vmem:[%s1409 + $0x8] sm:$0xff]
    %v1412 = vld [vmem:[%s1409 + $0x10] sm:$0xff]
    %v1413 = vld [vmem:[%s1409 + $0x18] sm:$0xff]
    %1414 = vmatpush.bf16.msra.mxu0 %v567
    %1415 = vmatpush.bf16.msra.mxu0 %v563
    %1416 = vmatpush.bf16.msra.mxu0 %v559
    %1417 = vmatpush.bf16.msra.mxu0 %v555
    %1418 = vmatpush.bf16.msra.mxu0 %v551
    %1419 = vmatpush.bf16.msra.mxu0 %v547
    %1420 = vmatpush.bf16.msra.mxu0 %v543
    %1421 = vmatpush.bf16.msra.mxu0 %v539
    %1422 = vmatmul.bf16.gmra.mxu0 %v847
    %v1423 = vpop.f32.mrf.mxu0
    %v1424 = vadd.f32 0.0, %v1423
    %v1425 = vpop.f32.mrf.mxu0
    %1426 = vdwg.mxu0
    %1427 = vmatpush.bf16.msra.mxu0 %v568
    %1428 = vmatpush.bf16.msra.mxu0 %v564
    %1429 = vmatpush.bf16.msra.mxu0 %v560
    %1430 = vmatpush.bf16.msra.mxu0 %v556
    %1431 = vmatpush.bf16.msra.mxu0 %v552
    %1432 = vmatpush.bf16.msra.mxu0 %v548
    %1433 = vmatpush.bf16.msra.mxu0 %v544
    %1434 = vmatpush.bf16.msra.mxu0 %v540
    %1435 = vmatmul.bf16.gmra.mxu0 %v847
    %v1436 = vpop.f32.mrf.mxu0
    %v1437 = vadd.f32 0.0, %v1436
    %v1438 = vpop.f32.mrf.mxu0
    %1439 = vdwg.mxu0
    %1440 = vmatpush.bf16.msra.mxu0 %v569
    %1441 = vmatpush.bf16.msra.mxu0 %v565
    %1442 = vmatpush.bf16.msra.mxu0 %v561
    %1443 = vmatpush.bf16.msra.mxu0 %v557
    %1444 = vmatpush.bf16.msra.mxu0 %v553
    %1445 = vmatpush.bf16.msra.mxu0 %v549
    %1446 = vmatpush.bf16.msra.mxu0 %v545
    %1447 = vmatpush.bf16.msra.mxu0 %v541
    %1448 = vmatmul.bf16.gmra.mxu0 %v847
    %v1449 = vpop.f32.mrf.mxu0
    %v1450 = vadd.f32 0.0, %v1449
    %v1451 = vpop.f32.mrf.mxu0
    %1452 = vdwg.mxu0
    %1453 = vmatpush.bf16.msra.mxu0 %v570
    %1454 = vmatpush.bf16.msra.mxu0 %v566
    %1455 = vmatpush.bf16.msra.mxu0 %v562
    %1456 = vmatpush.bf16.msra.mxu0 %v558
    %1457 = vmatpush.bf16.msra.mxu0 %v554
    %1458 = vmatpush.bf16.msra.mxu0 %v550
    %1459 = vmatpush.bf16.msra.mxu0 %v546
    %1460 = vmatpush.bf16.msra.mxu0 %v542
    %1461 = vmatmul.bf16.gmra.mxu0 %v847
    %v1462 = vpop.f32.mrf.mxu0
    %v1463 = vadd.f32 0.0, %v1462
    %v1464 = vpop.f32.mrf.mxu0
    %1465 = vdwg.mxu0
    %v1466 = vadd.f32 %v1410, %v1424
    %v1467 = vadd.f32 %v1411, %v1437
    %v1468 = vadd.f32 %v1412, %v1450
    %v1469 = vadd.f32 %v1413, %v1463
    %v1470 = vxor.u32 %v1466, 2147483648
    %v1471 = vxor.u32 %v1467, 2147483648
    %v1472 = vxor.u32 %v1468, 2147483648
    %v1473 = vmul.f32 %v1470, 1.442695
    %v1474 = vpow.pop %v1473
    %v1475 = vmul.f32 %v1471, 1.442695
    %v1476 = vpow.pop %v1475
    %v1477 = vmul.f32 %v1472, 1.442695
    %v1478 = vpow.pop %v1477
    %v1479 = vadd.f32 %v1474, 1.0
    %v1480 = vadd.f32 %v1476, 1.0
    %v1481 = vadd.f32 %v1478, 1.0
    %v1482 = vrcp.pop %v1479
    %v1483 = vmul.f32 %v1479, %v1482
    %v1484 = vsub.f32 1.0, %v1483
    %v1485 = vmul.f32 %v1482, %v1484
    %v1486 = vadd.f32 %v1482, %v1485
    %vm1487 = vweird.f32 %v1479
    %vm1488 = vweird.f32 %v1482
    %vm1489 = vmor %vm1487, %vm1488
    %v1490 = vsel %vm1489, %v1482, %v1486
    %v1491 = vand.u32 2147483647, %v1479
    %vm1492 = vcmp.eq.f32.partialorder %v1491, 8.507059e+37
    %v1493 = vand.u32 %v1479, 2147483648
    %v1494 = vor.u32 1.1754944e-38, %v1493
    %v1495 = vsel %vm1492, %v1494, %v1490
    %v1496 = vmul.f32 1.0, %v1495
    %v1497 = vrcp.pop %v1480
    %v1498 = vmul.f32 %v1480, %v1497
    %v1499 = vsub.f32 1.0, %v1498
    %v1500 = vmul.f32 %v1497, %v1499
    %v1501 = vadd.f32 %v1497, %v1500
    %vm1502 = vweird.f32 %v1480
    %vm1503 = vweird.f32 %v1497
    %vm1504 = vmor %vm1502, %vm1503
    %v1505 = vsel %vm1504, %v1497, %v1501
    %v1506 = vand.u32 2147483647, %v1480
    %vm1507 = vcmp.eq.f32.partialorder %v1506, 8.507059e+37
    %v1508 = vand.u32 %v1480, 2147483648
    %v1509 = vor.u32 1.1754944e-38, %v1508
    %v1510 = vsel %vm1507, %v1509, %v1505
    %v1511 = vmul.f32 1.0, %v1510
    %v1512 = vrcp.pop %v1481
    %v1513 = vmul.f32 %v1481, %v1512
    %v1514 = vsub.f32 1.0, %v1513
    %v1515 = vmul.f32 %v1512, %v1514
    %v1516 = vadd.f32 %v1512, %v1515
    %vm1517 = vweird.f32 %v1481
    %vm1518 = vweird.f32 %v1512
    %vm1519 = vmor %vm1517, %vm1518
    %v1520 = vsel %vm1519, %v1512, %v1516
    %v1521 = vand.u32 2147483647, %v1481
    %vm1522 = vcmp.eq.f32.partialorder %v1521, 8.507059e+37
    %v1523 = vand.u32 %v1481, 2147483648
    %v1524 = vor.u32 1.1754944e-38, %v1523
    %v1525 = vsel %vm1522, %v1524, %v1520
    %v1526 = vmul.f32 1.0, %v1525
    %v1527 = vtanh.pop %v1469
    %v1528 = vmul.f32 %v1511, %v844
    %v1529 = vmul.f32 %v1496, %v1527
    %v1530 = vadd.f32 %v1528, %v1529
    %v1531 = vtanh.pop %v1530
    %v1532 = vmul.f32 %v1526, %v1531
    %v1533 = vpack.c.bf16 %v1532, %v1532
    %1534 = vmatpush.bf16.msra.mxu0 %v1141
    %1535 = vmatpush.bf16.msra.mxu0 %v1137
    %1536 = vmatpush.bf16.msra.mxu0 %v1133
    %1537 = vmatpush.bf16.msra.mxu0 %v1129
    %1538 = vmatpush.bf16.msra.mxu0 %v1125
    %1539 = vmatpush.bf16.msra.mxu0 %v1121
    %1540 = vmatpush.bf16.msra.mxu0 %v1117
    %1541 = vmatpush.bf16.msra.mxu0 %v1113
    %1542 = vmatmul.bf16.gmra.mxu0 %v847
    %v1543 = vpop.f32.mrf.mxu0
    %v1544 = vadd.f32 %v913, %v1543
    %v1545 = vpop.f32.mrf.mxu0
    %1546 = vdwg.mxu0
    %1547 = vmatpush.bf16.msra.mxu0 %v1173
    %1548 = vmatpush.bf16.msra.mxu0 %v1169
    %1549 = vmatpush.bf16.msra.mxu0 %v1165
    %1550 = vmatpush.bf16.msra.mxu0 %v1161
    %1551 = vmatpush.bf16.msra.mxu0 %v1157
    %1552 = vmatpush.bf16.msra.mxu0 %v1153
    %1553 = vmatpush.bf16.msra.mxu0 %v1149
    %1554 = vmatpush.bf16.msra.mxu0 %v1145
    %1555 = vmatmul.bf16.gmra.mxu0 %v1408
    %v1556 = vpop.f32.mrf.mxu0
    %v1557 = vadd.f32 %v1544, %v1556
    %v1558 = vpop.f32.mrf.mxu0
    %1559 = vdwg.mxu0
    %1560 = vmatpush.bf16.msra.mxu0 %v1142
    %1561 = vmatpush.bf16.msra.mxu0 %v1138
    %1562 = vmatpush.bf16.msra.mxu0 %v1134
    %1563 = vmatpush.bf16.msra.mxu0 %v1130
    %1564 = vmatpush.bf16.msra.mxu0 %v1126
    %1565 = vmatpush.bf16.msra.mxu0 %v1122
    %1566 = vmatpush.bf16.msra.mxu0 %v1118
    %1567 = vmatpush.bf16.msra.mxu0 %v1114
    %1568 = vmatmul.bf16.gmra.mxu0 %v847
    %v1569 = vpop.f32.mrf.mxu0
    %v1570 = vadd.f32 %v914, %v1569
    %v1571 = vpop.f32.mrf.mxu0
    %1572 = vdwg.mxu0
    %1573 = vmatpush.bf16.msra.mxu0 %v1174
    %1574 = vmatpush.bf16.msra.mxu0 %v1170
    %1575 = vmatpush.bf16.msra.mxu0 %v1166
    %1576 = vmatpush.bf16.msra.mxu0 %v1162
    %1577 = vmatpush.bf16.msra.mxu0 %v1158
    %1578 = vmatpush.bf16.msra.mxu0 %v1154
    %1579 = vmatpush.bf16.msra.mxu0 %v1150
    %1580 = vmatpush.bf16.msra.mxu0 %v1146
    %1581 = vmatmul.bf16.gmra.mxu0 %v1408
    %v1582 = vpop.f32.mrf.mxu0
    %v1583 = vadd.f32 %v1570, %v1582
    %v1584 = vpop.f32.mrf.mxu0
    %1585 = vdwg.mxu0
    %1586 = vmatpush.bf16.msra.mxu0 %v1143
    %1587 = vmatpush.bf16.msra.mxu0 %v1139
    %1588 = vmatpush.bf16.msra.mxu0 %v1135
    %1589 = vmatpush.bf16.msra.mxu0 %v1131
    %1590 = vmatpush.bf16.msra.mxu0 %v1127
    %1591 = vmatpush.bf16.msra.mxu0 %v1123
    %1592 = vmatpush.bf16.msra.mxu0 %v1119
    %1593 = vmatpush.bf16.msra.mxu0 %v1115
    %1594 = vmatmul.bf16.gmra.mxu0 %v847
    %v1595 = vpop.f32.mrf.mxu0
    %v1596 = vadd.f32 %v915, %v1595
    %v1597 = vpop.f32.mrf.mxu0
    %1598 = vdwg.mxu0
    %1599 = vmatpush.bf16.msra.mxu0 %v1175
    %1600 = vmatpush.bf16.msra.mxu0 %v1171
    %1601 = vmatpush.bf16.msra.mxu0 %v1167
    %1602 = vmatpush.bf16.msra.mxu0 %v1163
    %1603 = vmatpush.bf16.msra.mxu0 %v1159
    %1604 = vmatpush.bf16.msra.mxu0 %v1155
    %1605 = vmatpush.bf16.msra.mxu0 %v1151
    %1606 = vmatpush.bf16.msra.mxu0 %v1147
    %1607 = vmatmul.bf16.gmra.mxu0 %v1408
    %v1608 = vpop.f32.mrf.mxu0
    %v1609 = vadd.f32 %v1596, %v1608
    %v1610 = vpop.f32.mrf.mxu0
    %1611 = vdwg.mxu0
    %1612 = vmatpush.bf16.msra.mxu0 %v1144
    %1613 = vmatpush.bf16.msra.mxu0 %v1140
    %1614 = vmatpush.bf16.msra.mxu0 %v1136
    %1615 = vmatpush.bf16.msra.mxu0 %v1132
    %1616 = vmatpush.bf16.msra.mxu0 %v1128
    %1617 = vmatpush.bf16.msra.mxu0 %v1124
    %1618 = vmatpush.bf16.msra.mxu0 %v1120
    %1619 = vmatpush.bf16.msra.mxu0 %v1116
    %1620 = vmatmul.bf16.gmra.mxu0 %v847
    %v1621 = vpop.f32.mrf.mxu0
    %v1622 = vadd.f32 %v916, %v1621
    %v1623 = vpop.f32.mrf.mxu0
    %1624 = vdwg.mxu0
    %1625 = vmatpush.bf16.msra.mxu0 %v1176
    %1626 = vmatpush.bf16.msra.mxu0 %v1172
    %1627 = vmatpush.bf16.msra.mxu0 %v1168
    %1628 = vmatpush.bf16.msra.mxu0 %v1164
    %1629 = vmatpush.bf16.msra.mxu0 %v1160
    %1630 = vmatpush.bf16.msra.mxu0 %v1156
    %1631 = vmatpush.bf16.msra.mxu0 %v1152
    %1632 = vmatpush.bf16.msra.mxu0 %v1148
    %1633 = vmatmul.bf16.gmra.mxu0 %v1408
    %v1634 = vpop.f32.mrf.mxu0
    %v1635 = vadd.f32 %v1622, %v1634
    %v1636 = vpop.f32.mrf.mxu0
    %1637 = vdwg.mxu0
    %v1638 = vxor.u32 %v1557, 2147483648
    %v1639 = vxor.u32 %v1583, 2147483648
    %v1640 = vxor.u32 %v1609, 2147483648
    %v1641 = vmul.f32 %v1638, 1.442695
    %v1642 = vpow.pop %v1641
    %v1643 = vmul.f32 %v1639, 1.442695
    %v1644 = vpow.pop %v1643
    %v1645 = vmul.f32 %v1640, 1.442695
    %v1646 = vpow.pop %v1645
    %v1647 = vadd.f32 %v1642, 1.0
    %v1648 = vadd.f32 %v1644, 1.0
    %v1649 = vadd.f32 %v1646, 1.0
    %v1650 = vrcp.pop %v1647
    %v1651 = vmul.f32 %v1647, %v1650
    %v1652 = vsub.f32 1.0, %v1651
    %v1653 = vmul.f32 %v1650, %v1652
    %v1654 = vadd.f32 %v1650, %v1653
    %vm1655 = vweird.f32 %v1647
    %vm1656 = vweird.f32 %v1650
    %vm1657 = vmor %vm1655, %vm1656
    %v1658 = vsel %vm1657, %v1650, %v1654
    %v1659 = vand.u32 2147483647, %v1647
    %vm1660 = vcmp.eq.f32.partialorder %v1659, 8.507059e+37
    %v1661 = vand.u32 %v1647, 2147483648
    %v1662 = vor.u32 1.1754944e-38, %v1661
    %v1663 = vsel %vm1660, %v1662, %v1658
    %v1664 = vmul.f32 1.0, %v1663
    %v1665 = vrcp.pop %v1648
    %v1666 = vmul.f32 %v1648, %v1665
    %v1667 = vsub.f32 1.0, %v1666
    %v1668 = vmul.f32 %v1665, %v1667
    %v1669 = vadd.f32 %v1665, %v1668
    %vm1670 = vweird.f32 %v1648
    %vm1671 = vweird.f32 %v1665
    %vm1672 = vmor %vm1670, %vm1671
    %v1673 = vsel %vm1672, %v1665, %v1669
    %v1674 = vand.u32 2147483647, %v1648
    %vm1675 = vcmp.eq.f32.partialorder %v1674, 8.507059e+37
    %v1676 = vand.u32 %v1648, 2147483648
    %v1677 = vor.u32 1.1754944e-38, %v1676
    %v1678 = vsel %vm1675, %v1677, %v1673
    %v1679 = vmul.f32 1.0, %v1678
    %v1680 = vrcp.pop %v1649
    %v1681 = vmul.f32 %v1649, %v1680
    %v1682 = vsub.f32 1.0, %v1681
    %v1683 = vmul.f32 %v1680, %v1682
    %v1684 = vadd.f32 %v1680, %v1683
    %vm1685 = vweird.f32 %v1649
    %vm1686 = vweird.f32 %v1680
    %vm1687 = vmor %vm1685, %vm1686
    %v1688 = vsel %vm1687, %v1680, %v1684
    %v1689 = vand.u32 2147483647, %v1649
    %vm1690 = vcmp.eq.f32.partialorder %v1689, 8.507059e+37
    %v1691 = vand.u32 %v1649, 2147483648
    %v1692 = vor.u32 1.1754944e-38, %v1691
    %v1693 = vsel %vm1690, %v1692, %v1688
    %v1694 = vmul.f32 1.0, %v1693
    %v1695 = vtanh.pop %v1635
    %v1696 = vmul.f32 %v1679, %v1405
    %v1697 = vmul.f32 %v1664, %v1695
    %v1698 = vadd.f32 %v1696, %v1697
    %v1699 = vtanh.pop %v1698
    %v1700 = vmul.f32 %v1694, %v1699
    %v1701 = vpack.c.bf16 %v1700, %v1700
    %s1702 = scalar_lea.vmem [#allocation13], 512
    %v1703 = vld [vmem:[%s1702] sm:$0xff]
    %v1704 = vld [vmem:[%s1702 + $0x8] sm:$0xff]
    %v1705 = vld [vmem:[%s1702 + $0x10] sm:$0xff]
    %v1706 = vld [vmem:[%s1702 + $0x18] sm:$0xff]
    %v1707 = vld [vmem:[%s1702 + $0x20] sm:$0xff]
    %v1708 = vld [vmem:[%s1702 + $0x28] sm:$0xff]
    %v1709 = vld [vmem:[%s1702 + $0x30] sm:$0xff]
    %v1710 = vld [vmem:[%s1702 + $0x38] sm:$0xff]
    %v1711 = vld [vmem:[%s1702 + $0x40] sm:$0xff]
    %v1712 = vld [vmem:[%s1702 + $0x48] sm:$0xff]
    %v1713 = vld [vmem:[%s1702 + $0x50] sm:$0xff]
    %v1714 = vld [vmem:[%s1702 + $0x58] sm:$0xff]
    %v1715 = vld [vmem:[%s1702 + $0x60] sm:$0xff]
    %v1716 = vld [vmem:[%s1702 + $0x68] sm:$0xff]
    %v1717 = vld [vmem:[%s1702 + $0x70] sm:$0xff]
    %v1718 = vld [vmem:[%s1702 + $0x78] sm:$0xff]
    %v1719 = vld [vmem:[%s1702 + $0x80] sm:$0xff]
    %v1720 = vld [vmem:[%s1702 + $0x88] sm:$0xff]
    %v1721 = vld [vmem:[%s1702 + $0x90] sm:$0xff]
    %v1722 = vld [vmem:[%s1702 + $0x98] sm:$0xff]
    %v1723 = vld [vmem:[%s1702 + $0xa0] sm:$0xff]
    %v1724 = vld [vmem:[%s1702 + $0xa8] sm:$0xff]
    %v1725 = vld [vmem:[%s1702 + $0xb0] sm:$0xff]
    %v1726 = vld [vmem:[%s1702 + $0xb8] sm:$0xff]
    %v1727 = vld [vmem:[%s1702 + $0xc0] sm:$0xff]
    %v1728 = vld [vmem:[%s1702 + $0xc8] sm:$0xff]
    %v1729 = vld [vmem:[%s1702 + $0xd0] sm:$0xff]
    %v1730 = vld [vmem:[%s1702 + $0xd8] sm:$0xff]
    %v1731 = vld [vmem:[%s1702 + $0xe0] sm:$0xff]
    %v1732 = vld [vmem:[%s1702 + $0xe8] sm:$0xff]
    %v1733 = vld [vmem:[%s1702 + $0xf0] sm:$0xff]
    %v1734 = vld [vmem:[%s1702 + $0xf8] sm:$0xff]
    %v1735 = vld [vmem:[%s1702 + $0x100] sm:$0xff]
    %v1736 = vld [vmem:[%s1702 + $0x108] sm:$0xff]
    %v1737 = vld [vmem:[%s1702 + $0x110] sm:$0xff]
    %v1738 = vld [vmem:[%s1702 + $0x118] sm:$0xff]
    %v1739 = vld [vmem:[%s1702 + $0x120] sm:$0xff]
    %v1740 = vld [vmem:[%s1702 + $0x128] sm:$0xff]
    %v1741 = vld [vmem:[%s1702 + $0x130] sm:$0xff]
    %v1742 = vld [vmem:[%s1702 + $0x138] sm:$0xff]
    %v1743 = vld [vmem:[%s1702 + $0x140] sm:$0xff]
    %v1744 = vld [vmem:[%s1702 + $0x148] sm:$0xff]
    %v1745 = vld [vmem:[%s1702 + $0x150] sm:$0xff]
    %v1746 = vld [vmem:[%s1702 + $0x158] sm:$0xff]
    %v1747 = vld [vmem:[%s1702 + $0x160] sm:$0xff]
    %v1748 = vld [vmem:[%s1702 + $0x168] sm:$0xff]
    %v1749 = vld [vmem:[%s1702 + $0x170] sm:$0xff]
    %v1750 = vld [vmem:[%s1702 + $0x178] sm:$0xff]
    %v1751 = vld [vmem:[%s1702 + $0x180] sm:$0xff]
    %v1752 = vld [vmem:[%s1702 + $0x188] sm:$0xff]
    %v1753 = vld [vmem:[%s1702 + $0x190] sm:$0xff]
    %v1754 = vld [vmem:[%s1702 + $0x198] sm:$0xff]
    %v1755 = vld [vmem:[%s1702 + $0x1a0] sm:$0xff]
    %v1756 = vld [vmem:[%s1702 + $0x1a8] sm:$0xff]
    %v1757 = vld [vmem:[%s1702 + $0x1b0] sm:$0xff]
    %v1758 = vld [vmem:[%s1702 + $0x1b8] sm:$0xff]
    %v1759 = vld [vmem:[%s1702 + $0x1c0] sm:$0xff]
    %v1760 = vld [vmem:[%s1702 + $0x1c8] sm:$0xff]
    %v1761 = vld [vmem:[%s1702 + $0x1d0] sm:$0xff]
    %v1762 = vld [vmem:[%s1702 + $0x1d8] sm:$0xff]
    %v1763 = vld [vmem:[%s1702 + $0x1e0] sm:$0xff]
    %v1764 = vld [vmem:[%s1702 + $0x1e8] sm:$0xff]
    %v1765 = vld [vmem:[%s1702 + $0x1f0] sm:$0xff]
    %v1766 = vld [vmem:[%s1702 + $0x1f8] sm:$0xff]
    %v1768 = vperm.slane %v393, 0
    %v1769 = vperm.slane %v393, 1
    %v1770 = vperm.slane %v393, 2
    %v1771 = vperm.slane %v393, 3
    %v1840 = vunpack.c.l.b16 %v1703
    %v1841 = vunpack.c.h.b16 %v1703
    %v1842 = vunpack.c.l.b16 %v1704
    %v1843 = vunpack.c.h.b16 %v1704
    %v1844 = vunpack.c.l.b16 %v1705
    %v1845 = vunpack.c.h.b16 %v1705
    %v1846 = vunpack.c.l.b16 %v1706
    %v1847 = vunpack.c.h.b16 %v1706
    %v1848 = vunpack.c.l.b16 %v1707
    %v1849 = vunpack.c.h.b16 %v1707
    %v1850 = vunpack.c.l.b16 %v1708
    %v1851 = vunpack.c.h.b16 %v1708
    %v1852 = vunpack.c.l.b16 %v1709
    %v1853 = vunpack.c.h.b16 %v1709
    %v1854 = vunpack.c.l.b16 %v1710
    %v1855 = vunpack.c.h.b16 %v1710
    %v1856 = vunpack.c.l.b16 %v1711
    %v1857 = vunpack.c.h.b16 %v1711
    %v1858 = vunpack.c.l.b16 %v1712
    %v1859 = vunpack.c.h.b16 %v1712
    %v1860 = vunpack.c.l.b16 %v1713
    %v1861 = vunpack.c.h.b16 %v1713
    %v1862 = vunpack.c.l.b16 %v1714
    %v1863 = vunpack.c.h.b16 %v1714
    %v1864 = vunpack.c.l.b16 %v1715
    %v1865 = vunpack.c.h.b16 %v1715
    %v1866 = vunpack.c.l.b16 %v1716
    %v1867 = vunpack.c.h.b16 %v1716
    %v1868 = vunpack.c.l.b16 %v1717
    %v1869 = vunpack.c.h.b16 %v1717
    %v1870 = vunpack.c.l.b16 %v1718
    %v1871 = vunpack.c.h.b16 %v1718
    %v1872 = vunpack.c.l.b16 %v1719
    %v1873 = vunpack.c.h.b16 %v1719
    %v1874 = vunpack.c.l.b16 %v1720
    %v1875 = vunpack.c.h.b16 %v1720
    %v1876 = vunpack.c.l.b16 %v1721
    %v1877 = vunpack.c.h.b16 %v1721
    %v1878 = vunpack.c.l.b16 %v1722
    %v1879 = vunpack.c.h.b16 %v1722
    %v1880 = vunpack.c.l.b16 %v1723
    %v1881 = vunpack.c.h.b16 %v1723
    %v1882 = vunpack.c.l.b16 %v1724
    %v1883 = vunpack.c.h.b16 %v1724
    %v1884 = vunpack.c.l.b16 %v1725
    %v1885 = vunpack.c.h.b16 %v1725
    %v1886 = vunpack.c.l.b16 %v1726
    %v1887 = vunpack.c.h.b16 %v1726
    %v1888 = vunpack.c.l.b16 %v1727
    %v1889 = vunpack.c.h.b16 %v1727
    %v1890 = vunpack.c.l.b16 %v1728
    %v1891 = vunpack.c.h.b16 %v1728
    %v1892 = vunpack.c.l.b16 %v1729
    %v1893 = vunpack.c.h.b16 %v1729
    %v1894 = vunpack.c.l.b16 %v1730
    %v1895 = vunpack.c.h.b16 %v1730
    %v1896 = vunpack.c.l.b16 %v1731
    %v1897 = vunpack.c.h.b16 %v1731
    %v1898 = vunpack.c.l.b16 %v1732
    %v1899 = vunpack.c.h.b16 %v1732
    %v1900 = vunpack.c.l.b16 %v1733
    %v1901 = vunpack.c.h.b16 %v1733
    %v1902 = vunpack.c.l.b16 %v1734
    %v1903 = vunpack.c.h.b16 %v1734
    %v1904 = vunpack.c.l.b16 %v1735
    %v1905 = vunpack.c.h.b16 %v1735
    %v1906 = vunpack.c.l.b16 %v1736
    %v1907 = vunpack.c.h.b16 %v1736
    %v1908 = vunpack.c.l.b16 %v1737
    %v1909 = vunpack.c.h.b16 %v1737
    %v1910 = vunpack.c.l.b16 %v1738
    %v1911 = vunpack.c.h.b16 %v1738
    %v1912 = vunpack.c.l.b16 %v1739
    %v1913 = vunpack.c.h.b16 %v1739
    %v1914 = vunpack.c.l.b16 %v1740
    %v1915 = vunpack.c.h.b16 %v1740
    %v1916 = vunpack.c.l.b16 %v1741
    %v1917 = vunpack.c.h.b16 %v1741
    %v1918 = vunpack.c.l.b16 %v1742
    %v1919 = vunpack.c.h.b16 %v1742
    %v1920 = vunpack.c.l.b16 %v1743
    %v1921 = vunpack.c.h.b16 %v1743
    %v1922 = vunpack.c.l.b16 %v1744
    %v1923 = vunpack.c.h.b16 %v1744
    %v1924 = vunpack.c.l.b16 %v1745
    %v1925 = vunpack.c.h.b16 %v1745
    %v1926 = vunpack.c.l.b16 %v1746
    %v1927 = vunpack.c.h.b16 %v1746
    %v1928 = vunpack.c.l.b16 %v1747
    %v1929 = vunpack.c.h.b16 %v1747
    %v1930 = vunpack.c.l.b16 %v1748
    %v1931 = vunpack.c.h.b16 %v1748
    %v1932 = vunpack.c.l.b16 %v1749
    %v1933 = vunpack.c.h.b16 %v1749
    %v1934 = vunpack.c.l.b16 %v1750
    %v1935 = vunpack.c.h.b16 %v1750
    %v1936 = vunpack.c.l.b16 %v1751
    %v1937 = vunpack.c.h.b16 %v1751
    %v1938 = vunpack.c.l.b16 %v1752
    %v1939 = vunpack.c.h.b16 %v1752
    %v1940 = vunpack.c.l.b16 %v1753
    %v1941 = vunpack.c.h.b16 %v1753
    %v1942 = vunpack.c.l.b16 %v1754
    %v1943 = vunpack.c.h.b16 %v1754
    %v1944 = vunpack.c.l.b16 %v1755
    %v1945 = vunpack.c.h.b16 %v1755
    %v1946 = vunpack.c.l.b16 %v1756
    %v1947 = vunpack.c.h.b16 %v1756
    %v1948 = vunpack.c.l.b16 %v1757
    %v1949 = vunpack.c.h.b16 %v1757
    %v1950 = vunpack.c.l.b16 %v1758
    %v1951 = vunpack.c.h.b16 %v1758
    %v1952 = vunpack.c.l.b16 %v1759
    %v1953 = vunpack.c.h.b16 %v1759
    %v1954 = vunpack.c.l.b16 %v1760
    %v1955 = vunpack.c.h.b16 %v1760
    %v1956 = vunpack.c.l.b16 %v1761
    %v1957 = vunpack.c.h.b16 %v1761
    %v1958 = vunpack.c.l.b16 %v1762
    %v1959 = vunpack.c.h.b16 %v1762
    %v1960 = vunpack.c.l.b16 %v1763
    %v1961 = vunpack.c.h.b16 %v1763
    %v1962 = vunpack.c.l.b16 %v1764
    %v1963 = vunpack.c.h.b16 %v1764
    %v1964 = vunpack.c.l.b16 %v1765
    %v1965 = vunpack.c.h.b16 %v1765
    %v1966 = vunpack.c.l.b16 %v1766
    %v1967 = vunpack.c.h.b16 %v1766
    %v1968 = vpack.c.b16 %v1844, %v1840
    %v1969 = vpack.c.b16 %v1845, %v1841
    %v1970 = vpack.c.b16 %v1846, %v1842
    %v1971 = vpack.c.b16 %v1847, %v1843
    %v1972 = vpack.c.b16 %v1852, %v1848
    %v1973 = vpack.c.b16 %v1853, %v1849
    %v1974 = vpack.c.b16 %v1854, %v1850
    %v1975 = vpack.c.b16 %v1855, %v1851
    %v1976 = vpack.c.b16 %v1860, %v1856
    %v1977 = vpack.c.b16 %v1861, %v1857
    %v1978 = vpack.c.b16 %v1862, %v1858
    %v1979 = vpack.c.b16 %v1863, %v1859
    %v1980 = vpack.c.b16 %v1868, %v1864
    %v1981 = vpack.c.b16 %v1869, %v1865
    %v1982 = vpack.c.b16 %v1870, %v1866
    %v1983 = vpack.c.b16 %v1871, %v1867
    %v1984 = vpack.c.b16 %v1876, %v1872
    %v1985 = vpack.c.b16 %v1877, %v1873
    %v1986 = vpack.c.b16 %v1878, %v1874
    %v1987 = vpack.c.b16 %v1879, %v1875
    %v1988 = vpack.c.b16 %v1884, %v1880
    %v1989 = vpack.c.b16 %v1885, %v1881
    %v1990 = vpack.c.b16 %v1886, %v1882
    %v1991 = vpack.c.b16 %v1887, %v1883
    %v1992 = vpack.c.b16 %v1892, %v1888
    %v1993 = vpack.c.b16 %v1893, %v1889
    %v1994 = vpack.c.b16 %v1894, %v1890
    %v1995 = vpack.c.b16 %v1895, %v1891
    %v1996 = vpack.c.b16 %v1900, %v1896
    %v1997 = vpack.c.b16 %v1901, %v1897
    %v1998 = vpack.c.b16 %v1902, %v1898
    %v1999 = vpack.c.b16 %v1903, %v1899
    %v2000 = vpack.c.b16 %v1908, %v1904
    %v2001 = vpack.c.b16 %v1909, %v1905
    %v2002 = vpack.c.b16 %v1910, %v1906
    %v2003 = vpack.c.b16 %v1911, %v1907
    %v2004 = vpack.c.b16 %v1916, %v1912
    %v2005 = vpack.c.b16 %v1917, %v1913
    %v2006 = vpack.c.b16 %v1918, %v1914
    %v2007 = vpack.c.b16 %v1919, %v1915
    %v2008 = vpack.c.b16 %v1924, %v1920
    %v2009 = vpack.c.b16 %v1925, %v1921
    %v2010 = vpack.c.b16 %v1926, %v1922
    %v2011 = vpack.c.b16 %v1927, %v1923
    %v2012 = vpack.c.b16 %v1932, %v1928
    %v2013 = vpack.c.b16 %v1933, %v1929
    %v2014 = vpack.c.b16 %v1934, %v1930
    %v2015 = vpack.c.b16 %v1935, %v1931
    %v2016 = vpack.c.b16 %v1940, %v1936
    %v2017 = vpack.c.b16 %v1941, %v1937
    %v2018 = vpack.c.b16 %v1942, %v1938
    %v2019 = vpack.c.b16 %v1943, %v1939
    %v2020 = vpack.c.b16 %v1948, %v1944
    %v2021 = vpack.c.b16 %v1949, %v1945
    %v2022 = vpack.c.b16 %v1950, %v1946
    %v2023 = vpack.c.b16 %v1951, %v1947
    %v2024 = vpack.c.b16 %v1956, %v1952
    %v2025 = vpack.c.b16 %v1957, %v1953
    %v2026 = vpack.c.b16 %v1958, %v1954
    %v2027 = vpack.c.b16 %v1959, %v1955
    %v2028 = vpack.c.b16 %v1964, %v1960
    %v2029 = vpack.c.b16 %v1965, %v1961
    %v2030 = vpack.c.b16 %v1966, %v1962
    %v2031 = vpack.c.b16 %v1967, %v1963
    %2096 = vmatpush.bf16.msra.mxu0 %v1996
    %2097 = vmatpush.bf16.msra.mxu0 %v1992
    %2098 = vmatpush.bf16.msra.mxu0 %v1988
    %2099 = vmatpush.bf16.msra.mxu0 %v1984
    %2100 = vmatpush.bf16.msra.mxu0 %v1980
    %2101 = vmatpush.bf16.msra.mxu0 %v1976
    %2102 = vmatpush.bf16.msra.mxu0 %v1972
    %2103 = vmatpush.bf16.msra.mxu0 %v1968
    %2104 = vmatmul.bf16.gmra.mxu0 %v1408
    %v2105 = vpop.f32.mrf.mxu0
    %v2106 = vadd.f32 %v1768, %v2105
    %v2107 = vpop.f32.mrf.mxu0
    %2108 = vdwg.mxu0
    %2109 = vmatpush.bf16.msra.mxu0 %v2028
    %2110 = vmatpush.bf16.msra.mxu0 %v2024
    %2111 = vmatpush.bf16.msra.mxu0 %v2020
    %2112 = vmatpush.bf16.msra.mxu0 %v2016
    %2113 = vmatpush.bf16.msra.mxu0 %v2012
    %2114 = vmatpush.bf16.msra.mxu0 %v2008
    %2115 = vmatpush.bf16.msra.mxu0 %v2004
    %2116 = vmatpush.bf16.msra.mxu0 %v2000
    %2117 = vmatmul.bf16.gmra.mxu0 %v401
    %v2118 = vpop.f32.mrf.mxu0
    %v2119 = vadd.f32 %v2106, %v2118
    %v2120 = vpop.f32.mrf.mxu0
    %2121 = vdwg.mxu0
    %2122 = vmatpush.bf16.msra.mxu0 %v1997
    %2123 = vmatpush.bf16.msra.mxu0 %v1993
    %2124 = vmatpush.bf16.msra.mxu0 %v1989
    %2125 = vmatpush.bf16.msra.mxu0 %v1985
    %2126 = vmatpush.bf16.msra.mxu0 %v1981
    %2127 = vmatpush.bf16.msra.mxu0 %v1977
    %2128 = vmatpush.bf16.msra.mxu0 %v1973
    %2129 = vmatpush.bf16.msra.mxu0 %v1969
    %2130 = vmatmul.bf16.gmra.mxu0 %v1408
    %v2131 = vpop.f32.mrf.mxu0
    %v2132 = vadd.f32 %v1769, %v2131
    %v2133 = vpop.f32.mrf.mxu0
    %2134 = vdwg.mxu0
    %2135 = vmatpush.bf16.msra.mxu0 %v2029
    %2136 = vmatpush.bf16.msra.mxu0 %v2025
    %2137 = vmatpush.bf16.msra.mxu0 %v2021
    %2138 = vmatpush.bf16.msra.mxu0 %v2017
    %2139 = vmatpush.bf16.msra.mxu0 %v2013
    %2140 = vmatpush.bf16.msra.mxu0 %v2009
    %2141 = vmatpush.bf16.msra.mxu0 %v2005
    %2142 = vmatpush.bf16.msra.mxu0 %v2001
    %2143 = vmatmul.bf16.gmra.mxu0 %v401
    %v2144 = vpop.f32.mrf.mxu0
    %v2145 = vadd.f32 %v2132, %v2144
    %v2146 = vpop.f32.mrf.mxu0
    %2147 = vdwg.mxu0
    %2148 = vmatpush.bf16.msra.mxu0 %v1998
    %2149 = vmatpush.bf16.msra.mxu0 %v1994
    %2150 = vmatpush.bf16.msra.mxu0 %v1990
    %2151 = vmatpush.bf16.msra.mxu0 %v1986
    %2152 = vmatpush.bf16.msra.mxu0 %v1982
    %2153 = vmatpush.bf16.msra.mxu0 %v1978
    %2154 = vmatpush.bf16.msra.mxu0 %v1974
    %2155 = vmatpush.bf16.msra.mxu0 %v1970
    %2156 = vmatmul.bf16.gmra.mxu0 %v1408
    %v2157 = vpop.f32.mrf.mxu0
    %v2158 = vadd.f32 %v1770, %v2157
    %v2159 = vpop.f32.mrf.mxu0
    %2160 = vdwg.mxu0
    %2161 = vmatpush.bf16.msra.mxu0 %v2030
    %2162 = vmatpush.bf16.msra.mxu0 %v2026
    %2163 = vmatpush.bf16.msra.mxu0 %v2022
    %2164 = vmatpush.bf16.msra.mxu0 %v2018
    %2165 = vmatpush.bf16.msra.mxu0 %v2014
    %2166 = vmatpush.bf16.msra.mxu0 %v2010
    %2167 = vmatpush.bf16.msra.mxu0 %v2006
    %2168 = vmatpush.bf16.msra.mxu0 %v2002
    %2169 = vmatmul.bf16.gmra.mxu0 %v401
    %v2170 = vpop.f32.mrf.mxu0
    %v2171 = vadd.f32 %v2158, %v2170
    %v2172 = vpop.f32.mrf.mxu0
    %2173 = vdwg.mxu0
    %2174 = vmatpush.bf16.msra.mxu0 %v1999
    %2175 = vmatpush.bf16.msra.mxu0 %v1995
    %2176 = vmatpush.bf16.msra.mxu0 %v1991
    %2177 = vmatpush.bf16.msra.mxu0 %v1987
    %2178 = vmatpush.bf16.msra.mxu0 %v1983
    %2179 = vmatpush.bf16.msra.mxu0 %v1979
    %2180 = vmatpush.bf16.msra.mxu0 %v1975
    %2181 = vmatpush.bf16.msra.mxu0 %v1971
    %2182 = vmatmul.bf16.gmra.mxu0 %v1408
    %v2183 = vpop.f32.mrf.mxu0
    %v2184 = vadd.f32 %v1771, %v2183
    %v2185 = vpop.f32.mrf.mxu0
    %2186 = vdwg.mxu0
    %2187 = vmatpush.bf16.msra.mxu0 %v2031
    %2188 = vmatpush.bf16.msra.mxu0 %v2027
    %2189 = vmatpush.bf16.msra.mxu0 %v2023
    %2190 = vmatpush.bf16.msra.mxu0 %v2019
    %2191 = vmatpush.bf16.msra.mxu0 %v2015
    %2192 = vmatpush.bf16.msra.mxu0 %v2011
    %2193 = vmatpush.bf16.msra.mxu0 %v2007
    %2194 = vmatpush.bf16.msra.mxu0 %v2003
    %2195 = vmatmul.bf16.gmra.mxu0 %v401
    %v2196 = vpop.f32.mrf.mxu0
    %v2197 = vadd.f32 %v2184, %v2196
    %v2198 = vpop.f32.mrf.mxu0
    %2199 = vdwg.mxu0
    %v2200 = vxor.u32 %v2119, 2147483648
    %v2201 = vxor.u32 %v2145, 2147483648
    %v2202 = vxor.u32 %v2171, 2147483648
    %v2203 = vmul.f32 %v2200, 1.442695
    %v2204 = vpow.pop %v2203
    %v2205 = vmul.f32 %v2201, 1.442695
    %v2206 = vpow.pop %v2205
    %v2207 = vmul.f32 %v2202, 1.442695
    %v2208 = vpow.pop %v2207
    %v2209 = vadd.f32 %v2204, 1.0
    %v2210 = vadd.f32 %v2206, 1.0
    %v2211 = vadd.f32 %v2208, 1.0
    %v2212 = vrcp.pop %v2209
    %v2213 = vmul.f32 %v2209, %v2212
    %v2214 = vsub.f32 1.0, %v2213
    %v2215 = vmul.f32 %v2212, %v2214
    %v2216 = vadd.f32 %v2212, %v2215
    %vm2217 = vweird.f32 %v2209
    %vm2218 = vweird.f32 %v2212
    %vm2219 = vmor %vm2217, %vm2218
    %v2220 = vsel %vm2219, %v2212, %v2216
    %v2221 = vand.u32 2147483647, %v2209
    %vm2222 = vcmp.eq.f32.partialorder %v2221, 8.507059e+37
    %v2223 = vand.u32 %v2209, 2147483648
    %v2224 = vor.u32 1.1754944e-38, %v2223
    %v2225 = vsel %vm2222, %v2224, %v2220
    %v2226 = vmul.f32 1.0, %v2225
    %v2227 = vrcp.pop %v2210
    %v2228 = vmul.f32 %v2210, %v2227
    %v2229 = vsub.f32 1.0, %v2228
    %v2230 = vmul.f32 %v2227, %v2229
    %v2231 = vadd.f32 %v2227, %v2230
    %vm2232 = vweird.f32 %v2210
    %vm2233 = vweird.f32 %v2227
    %vm2234 = vmor %vm2232, %vm2233
    %v2235 = vsel %vm2234, %v2227, %v2231
    %v2236 = vand.u32 2147483647, %v2210
    %vm2237 = vcmp.eq.f32.partialorder %v2236, 8.507059e+37
    %v2238 = vand.u32 %v2210, 2147483648
    %v2239 = vor.u32 1.1754944e-38, %v2238
    %v2240 = vsel %vm2237, %v2239, %v2235
    %v2241 = vmul.f32 1.0, %v2240
    %v2242 = vrcp.pop %v2211
    %v2243 = vmul.f32 %v2211, %v2242
    %v2244 = vsub.f32 1.0, %v2243
    %v2245 = vmul.f32 %v2242, %v2244
    %v2246 = vadd.f32 %v2242, %v2245
    %vm2247 = vweird.f32 %v2211
    %vm2248 = vweird.f32 %v2242
    %vm2249 = vmor %vm2247, %vm2248
    %v2250 = vsel %vm2249, %v2242, %v2246
    %v2251 = vand.u32 2147483647, %v2211
    %vm2252 = vcmp.eq.f32.partialorder %v2251, 8.507059e+37
    %v2253 = vand.u32 %v2211, 2147483648
    %v2254 = vor.u32 1.1754944e-38, %v2253
    %v2255 = vsel %vm2252, %v2254, %v2250
    %v2256 = vmul.f32 1.0, %v2255
    %v2257 = vtanh.pop %v2197
    %v2258 = vmul.f32 %v2241, %v406
    %v2259 = vmul.f32 %v2226, %v2257
    %v2260 = vadd.f32 %v2258, %v2259
    %v2261 = vtanh.pop %v2260
    %v2262 = vmul.f32 %v2256, %v2261
    %v2263 = vpack.c.bf16 %v2262, %v2262
    %2264 = vst [vmem:[#allocation3] sm:$0xf] %v2263
    %s2265 = scalar_lea.vmem [#allocation2], 96
    %v2266 = vld [vmem:[%s2265] sm:$0xff]
    %v2267 = vld [vmem:[%s2265 + $0x8] sm:$0xff]
    %v2268 = vld [vmem:[%s2265 + $0x10] sm:$0xff]
    %v2269 = vld [vmem:[%s2265 + $0x18] sm:$0xff]
    %v2270 = vld [vmem:[#allocation12] sm:$0xff]
    %v2271 = vld [vmem:[#allocation12 + $0x8] sm:$0xff]
    %v2272 = vld [vmem:[#allocation12 + $0x10] sm:$0xff]
    %v2273 = vld [vmem:[#allocation12 + $0x18] sm:$0xff]
    %v2274 = vld [vmem:[#allocation12 + $0x20] sm:$0xff]
    %v2275 = vld [vmem:[#allocation12 + $0x28] sm:$0xff]
    %v2276 = vld [vmem:[#allocation12 + $0x30] sm:$0xff]
    %v2277 = vld [vmem:[#allocation12 + $0x38] sm:$0xff]
    %v2278 = vld [vmem:[#allocation12 + $0x40] sm:$0xff]
    %v2279 = vld [vmem:[#allocation12 + $0x48] sm:$0xff]
    %v2280 = vld [vmem:[#allocation12 + $0x50] sm:$0xff]
    %v2281 = vld [vmem:[#allocation12 + $0x58] sm:$0xff]
    %v2282 = vld [vmem:[#allocation12 + $0x60] sm:$0xff]
    %v2283 = vld [vmem:[#allocation12 + $0x68] sm:$0xff]
    %v2284 = vld [vmem:[#allocation12 + $0x70] sm:$0xff]
    %v2285 = vld [vmem:[#allocation12 + $0x78] sm:$0xff]
    %v2286 = vld [vmem:[#allocation12 + $0x80] sm:$0xff]
    %v2287 = vld [vmem:[#allocation12 + $0x88] sm:$0xff]
    %v2288 = vld [vmem:[#allocation12 + $0x90] sm:$0xff]
    %v2289 = vld [vmem:[#allocation12 + $0x98] sm:$0xff]
    %v2290 = vld [vmem:[#allocation12 + $0xa0] sm:$0xff]
    %v2291 = vld [vmem:[#allocation12 + $0xa8] sm:$0xff]
    %v2292 = vld [vmem:[#allocation12 + $0xb0] sm:$0xff]
    %v2293 = vld [vmem:[#allocation12 + $0xb8] sm:$0xff]
    %v2294 = vld [vmem:[#allocation12 + $0xc0] sm:$0xff]
    %v2295 = vld [vmem:[#allocation12 + $0xc8] sm:$0xff]
    %v2296 = vld [vmem:[#allocation12 + $0xd0] sm:$0xff]
    %v2297 = vld [vmem:[#allocation12 + $0xd8] sm:$0xff]
    %v2298 = vld [vmem:[#allocation12 + $0xe0] sm:$0xff]
    %v2299 = vld [vmem:[#allocation12 + $0xe8] sm:$0xff]
    %v2300 = vld [vmem:[#allocation12 + $0xf0] sm:$0xff]
    %v2301 = vld [vmem:[#allocation12 + $0xf8] sm:$0xff]
    %v2334 = vunpack.c.l.b16 %v2270
    %v2335 = vunpack.c.h.b16 %v2270
    %v2336 = vunpack.c.l.b16 %v2271
    %v2337 = vunpack.c.h.b16 %v2271
    %v2338 = vunpack.c.l.b16 %v2272
    %v2339 = vunpack.c.h.b16 %v2272
    %v2340 = vunpack.c.l.b16 %v2273
    %v2341 = vunpack.c.h.b16 %v2273
    %v2342 = vunpack.c.l.b16 %v2274
    %v2343 = vunpack.c.h.b16 %v2274
    %v2344 = vunpack.c.l.b16 %v2275
    %v2345 = vunpack.c.h.b16 %v2275
    %v2346 = vunpack.c.l.b16 %v2276
    %v2347 = vunpack.c.h.b16 %v2276
    %v2348 = vunpack.c.l.b16 %v2277
    %v2349 = vunpack.c.h.b16 %v2277
    %v2350 = vunpack.c.l.b16 %v2278
    %v2351 = vunpack.c.h.b16 %v2278
    %v2352 = vunpack.c.l.b16 %v2279
    %v2353 = vunpack.c.h.b16 %v2279
    %v2354 = vunpack.c.l.b16 %v2280
    %v2355 = vunpack.c.h.b16 %v2280
    %v2356 = vunpack.c.l.b16 %v2281
    %v2357 = vunpack.c.h.b16 %v2281
    %v2358 = vunpack.c.l.b16 %v2282
    %v2359 = vunpack.c.h.b16 %v2282
    %v2360 = vunpack.c.l.b16 %v2283
    %v2361 = vunpack.c.h.b16 %v2283
    %v2362 = vunpack.c.l.b16 %v2284
    %v2363 = vunpack.c.h.b16 %v2284
    %v2364 = vunpack.c.l.b16 %v2285
    %v2365 = vunpack.c.h.b16 %v2285
    %v2366 = vunpack.c.l.b16 %v2286
    %v2367 = vunpack.c.h.b16 %v2286
    %v2368 = vunpack.c.l.b16 %v2287
    %v2369 = vunpack.c.h.b16 %v2287
    %v2370 = vunpack.c.l.b16 %v2288
    %v2371 = vunpack.c.h.b16 %v2288
    %v2372 = vunpack.c.l.b16 %v2289
    %v2373 = vunpack.c.h.b16 %v2289
    %v2374 = vunpack.c.l.b16 %v2290
    %v2375 = vunpack.c.h.b16 %v2290
    %v2376 = vunpack.c.l.b16 %v2291
    %v2377 = vunpack.c.h.b16 %v2291
    %v2378 = vunpack.c.l.b16 %v2292
    %v2379 = vunpack.c.h.b16 %v2292
    %v2380 = vunpack.c.l.b16 %v2293
    %v2381 = vunpack.c.h.b16 %v2293
    %v2382 = vunpack.c.l.b16 %v2294
    %v2383 = vunpack.c.h.b16 %v2294
    %v2384 = vunpack.c.l.b16 %v2295
    %v2385 = vunpack.c.h.b16 %v2295
    %v2386 = vunpack.c.l.b16 %v2296
    %v2387 = vunpack.c.h.b16 %v2296
    %v2388 = vunpack.c.l.b16 %v2297
    %v2389 = vunpack.c.h.b16 %v2297
    %v2390 = vunpack.c.l.b16 %v2298
    %v2391 = vunpack.c.h.b16 %v2298
    %v2392 = vunpack.c.l.b16 %v2299
    %v2393 = vunpack.c.h.b16 %v2299
    %v2394 = vunpack.c.l.b16 %v2300
    %v2395 = vunpack.c.h.b16 %v2300
    %v2396 = vunpack.c.l.b16 %v2301
    %v2397 = vunpack.c.h.b16 %v2301
    %v2398 = vpack.c.b16 %v2338, %v2334
    %v2399 = vpack.c.b16 %v2339, %v2335
    %v2400 = vpack.c.b16 %v2340, %v2336
    %v2401 = vpack.c.b16 %v2341, %v2337
    %v2402 = vpack.c.b16 %v2346, %v2342
    %v2403 = vpack.c.b16 %v2347, %v2343
    %v2404 = vpack.c.b16 %v2348, %v2344
    %v2405 = vpack.c.b16 %v2349, %v2345
    %v2406 = vpack.c.b16 %v2354, %v2350
    %v2407 = vpack.c.b16 %v2355, %v2351
    %v2408 = vpack.c.b16 %v2356, %v2352
    %v2409 = vpack.c.b16 %v2357, %v2353
    %v2410 = vpack.c.b16 %v2362, %v2358
    %v2411 = vpack.c.b16 %v2363, %v2359
    %v2412 = vpack.c.b16 %v2364, %v2360
    %v2413 = vpack.c.b16 %v2365, %v2361
    %v2414 = vpack.c.b16 %v2370, %v2366
    %v2415 = vpack.c.b16 %v2371, %v2367
    %v2416 = vpack.c.b16 %v2372, %v2368
    %v2417 = vpack.c.b16 %v2373, %v2369
    %v2418 = vpack.c.b16 %v2378, %v2374
    %v2419 = vpack.c.b16 %v2379, %v2375
    %v2420 = vpack.c.b16 %v2380, %v2376
    %v2421 = vpack.c.b16 %v2381, %v2377
    %v2422 = vpack.c.b16 %v2386, %v2382
    %v2423 = vpack.c.b16 %v2387, %v2383
    %v2424 = vpack.c.b16 %v2388, %v2384
    %v2425 = vpack.c.b16 %v2389, %v2385
    %v2426 = vpack.c.b16 %v2394, %v2390
    %v2427 = vpack.c.b16 %v2395, %v2391
    %v2428 = vpack.c.b16 %v2396, %v2392
    %v2429 = vpack.c.b16 %v2397, %v2393
    %2462 = vmatpush.bf16.msra.mxu0 %v2426
    %2463 = vmatpush.bf16.msra.mxu0 %v2422
    %2464 = vmatpush.bf16.msra.mxu0 %v2418
    %2465 = vmatpush.bf16.msra.mxu0 %v2414
    %2466 = vmatpush.bf16.msra.mxu0 %v2410
    %2467 = vmatpush.bf16.msra.mxu0 %v2406
    %2468 = vmatpush.bf16.msra.mxu0 %v2402
    %2469 = vmatpush.bf16.msra.mxu0 %v2398
    %2470 = vmatmul.bf16.gmra.mxu0 %v1533
    %v2471 = vpop.f32.mrf.mxu0
    %v2472 = vadd.f32 0.0, %v2471
    %v2473 = vpop.f32.mrf.mxu0
    %2474 = vdwg.mxu0
    %2475 = vmatpush.bf16.msra.mxu0 %v2427
    %2476 = vmatpush.bf16.msra.mxu0 %v2423
    %2477 = vmatpush.bf16.msra.mxu0 %v2419
    %2478 = vmatpush.bf16.msra.mxu0 %v2415
    %2479 = vmatpush.bf16.msra.mxu0 %v2411
    %2480 = vmatpush.bf16.msra.mxu0 %v2407
    %2481 = vmatpush.bf16.msra.mxu0 %v2403
    %2482 = vmatpush.bf16.msra.mxu0 %v2399
    %2483 = vmatmul.bf16.gmra.mxu0 %v1533
    %v2484 = vpop.f32.mrf.mxu0
    %v2485 = vadd.f32 0.0, %v2484
    %v2486 = vpop.f32.mrf.mxu0
    %2487 = vdwg.mxu0
    %2488 = vmatpush.bf16.msra.mxu0 %v2428
    %2489 = vmatpush.bf16.msra.mxu0 %v2424
    %2490 = vmatpush.bf16.msra.mxu0 %v2420
    %2491 = vmatpush.bf16.msra.mxu0 %v2416
    %2492 = vmatpush.bf16.msra.mxu0 %v2412
    %2493 = vmatpush.bf16.msra.mxu0 %v2408
    %2494 = vmatpush.bf16.msra.mxu0 %v2404
    %2495 = vmatpush.bf16.msra.mxu0 %v2400
    %2496 = vmatmul.bf16.gmra.mxu0 %v1533
    %v2497 = vpop.f32.mrf.mxu0
    %v2498 = vadd.f32 0.0, %v2497
    %v2499 = vpop.f32.mrf.mxu0
    %2500 = vdwg.mxu0
    %2501 = vmatpush.bf16.msra.mxu0 %v2429
    %2502 = vmatpush.bf16.msra.mxu0 %v2425
    %2503 = vmatpush.bf16.msra.mxu0 %v2421
    %2504 = vmatpush.bf16.msra.mxu0 %v2417
    %2505 = vmatpush.bf16.msra.mxu0 %v2413
    %2506 = vmatpush.bf16.msra.mxu0 %v2409
    %2507 = vmatpush.bf16.msra.mxu0 %v2405
    %2508 = vmatpush.bf16.msra.mxu0 %v2401
    %2509 = vmatmul.bf16.gmra.mxu0 %v1533
    %v2510 = vpop.f32.mrf.mxu0
    %v2511 = vadd.f32 0.0, %v2510
    %v2512 = vpop.f32.mrf.mxu0
    %2513 = vdwg.mxu0
    %v2514 = vadd.f32 %v2266, %v2472
    %v2515 = vadd.f32 %v2267, %v2485
    %v2516 = vadd.f32 %v2268, %v2498
    %v2517 = vadd.f32 %v2269, %v2511
    %v2518 = vxor.u32 %v2514, 2147483648
    %v2519 = vxor.u32 %v2515, 2147483648
    %v2520 = vxor.u32 %v2516, 2147483648
    %v2521 = vmul.f32 %v2518, 1.442695
    %v2522 = vpow.pop %v2521
    %v2523 = vmul.f32 %v2519, 1.442695
    %v2524 = vpow.pop %v2523
    %v2525 = vmul.f32 %v2520, 1.442695
    %v2526 = vpow.pop %v2525
    %v2527 = vadd.f32 %v2522, 1.0
    %v2528 = vadd.f32 %v2524, 1.0
    %v2529 = vadd.f32 %v2526, 1.0
    %v2530 = vrcp.pop %v2527
    %v2531 = vmul.f32 %v2527, %v2530
    %v2532 = vsub.f32 1.0, %v2531
    %v2533 = vmul.f32 %v2530, %v2532
    %v2534 = vadd.f32 %v2530, %v2533
    %vm2535 = vweird.f32 %v2527
    %vm2536 = vweird.f32 %v2530
    %vm2537 = vmor %vm2535, %vm2536
    %v2538 = vsel %vm2537, %v2530, %v2534
    %v2539 = vand.u32 2147483647, %v2527
    %vm2540 = vcmp.eq.f32.partialorder %v2539, 8.507059e+37
    %v2541 = vand.u32 %v2527, 2147483648
    %v2542 = vor.u32 1.1754944e-38, %v2541
    %v2543 = vsel %vm2540, %v2542, %v2538
    %v2544 = vmul.f32 1.0, %v2543
    %v2545 = vrcp.pop %v2528
    %v2546 = vmul.f32 %v2528, %v2545
    %v2547 = vsub.f32 1.0, %v2546
    %v2548 = vmul.f32 %v2545, %v2547
    %v2549 = vadd.f32 %v2545, %v2548
    %vm2550 = vweird.f32 %v2528
    %vm2551 = vweird.f32 %v2545
    %vm2552 = vmor %vm2550, %vm2551
    %v2553 = vsel %vm2552, %v2545, %v2549
    %v2554 = vand.u32 2147483647, %v2528
    %vm2555 = vcmp.eq.f32.partialorder %v2554, 8.507059e+37
    %v2556 = vand.u32 %v2528, 2147483648
    %v2557 = vor.u32 1.1754944e-38, %v2556
    %v2558 = vsel %vm2555, %v2557, %v2553
    %v2559 = vmul.f32 1.0, %v2558
    %v2560 = vrcp.pop %v2529
    %v2561 = vmul.f32 %v2529, %v2560
    %v2562 = vsub.f32 1.0, %v2561
    %v2563 = vmul.f32 %v2560, %v2562
    %v2564 = vadd.f32 %v2560, %v2563
    %vm2565 = vweird.f32 %v2529
    %vm2566 = vweird.f32 %v2560
    %vm2567 = vmor %vm2565, %vm2566
    %v2568 = vsel %vm2567, %v2560, %v2564
    %v2569 = vand.u32 2147483647, %v2529
    %vm2570 = vcmp.eq.f32.partialorder %v2569, 8.507059e+37
    %v2571 = vand.u32 %v2529, 2147483648
    %v2572 = vor.u32 1.1754944e-38, %v2571
    %v2573 = vsel %vm2570, %v2572, %v2568
    %v2574 = vmul.f32 1.0, %v2573
    %v2575 = vtanh.pop %v2517
    %v2576 = vmul.f32 %v2559, %v1530
    %v2577 = vmul.f32 %v2544, %v2575
    %v2578 = vadd.f32 %v2576, %v2577
    %v2579 = vtanh.pop %v2578
    %v2580 = vmul.f32 %v2574, %v2579
    %v2581 = vpack.c.bf16 %v2580, %v2580
    %v2582 = vld [vmem:[#allocation13] sm:$0xff]
    %v2583 = vld [vmem:[#allocation13 + $0x8] sm:$0xff]
    %v2584 = vld [vmem:[#allocation13 + $0x10] sm:$0xff]
    %v2585 = vld [vmem:[#allocation13 + $0x18] sm:$0xff]
    %v2586 = vld [vmem:[#allocation13 + $0x20] sm:$0xff]
    %v2587 = vld [vmem:[#allocation13 + $0x28] sm:$0xff]
    %v2588 = vld [vmem:[#allocation13 + $0x30] sm:$0xff]
    %v2589 = vld [vmem:[#allocation13 + $0x38] sm:$0xff]
    %v2590 = vld [vmem:[#allocation13 + $0x40] sm:$0xff]
    %v2591 = vld [vmem:[#allocation13 + $0x48] sm:$0xff]
    %v2592 = vld [vmem:[#allocation13 + $0x50] sm:$0xff]
    %v2593 = vld [vmem:[#allocation13 + $0x58] sm:$0xff]
    %v2594 = vld [vmem:[#allocation13 + $0x60] sm:$0xff]
    %v2595 = vld [vmem:[#allocation13 + $0x68] sm:$0xff]
    %v2596 = vld [vmem:[#allocation13 + $0x70] sm:$0xff]
    %v2597 = vld [vmem:[#allocation13 + $0x78] sm:$0xff]
    %v2598 = vld [vmem:[#allocation13 + $0x80] sm:$0xff]
    %v2599 = vld [vmem:[#allocation13 + $0x88] sm:$0xff]
    %v2600 = vld [vmem:[#allocation13 + $0x90] sm:$0xff]
    %v2601 = vld [vmem:[#allocation13 + $0x98] sm:$0xff]
    %v2602 = vld [vmem:[#allocation13 + $0xa0] sm:$0xff]
    %v2603 = vld [vmem:[#allocation13 + $0xa8] sm:$0xff]
    %v2604 = vld [vmem:[#allocation13 + $0xb0] sm:$0xff]
    %v2605 = vld [vmem:[#allocation13 + $0xb8] sm:$0xff]
    %v2606 = vld [vmem:[#allocation13 + $0xc0] sm:$0xff]
    %v2607 = vld [vmem:[#allocation13 + $0xc8] sm:$0xff]
    %v2608 = vld [vmem:[#allocation13 + $0xd0] sm:$0xff]
    %v2609 = vld [vmem:[#allocation13 + $0xd8] sm:$0xff]
    %v2610 = vld [vmem:[#allocation13 + $0xe0] sm:$0xff]
    %v2611 = vld [vmem:[#allocation13 + $0xe8] sm:$0xff]
    %v2612 = vld [vmem:[#allocation13 + $0xf0] sm:$0xff]
    %v2613 = vld [vmem:[#allocation13 + $0xf8] sm:$0xff]
    %v2614 = vld [vmem:[#allocation13 + $0x100] sm:$0xff]
    %v2615 = vld [vmem:[#allocation13 + $0x108] sm:$0xff]
    %v2616 = vld [vmem:[#allocation13 + $0x110] sm:$0xff]
    %v2617 = vld [vmem:[#allocation13 + $0x118] sm:$0xff]
    %v2618 = vld [vmem:[#allocation13 + $0x120] sm:$0xff]
    %v2619 = vld [vmem:[#allocation13 + $0x128] sm:$0xff]
    %v2620 = vld [vmem:[#allocation13 + $0x130] sm:$0xff]
    %v2621 = vld [vmem:[#allocation13 + $0x138] sm:$0xff]
    %v2622 = vld [vmem:[#allocation13 + $0x140] sm:$0xff]
    %v2623 = vld [vmem:[#allocation13 + $0x148] sm:$0xff]
    %v2624 = vld [vmem:[#allocation13 + $0x150] sm:$0xff]
    %v2625 = vld [vmem:[#allocation13 + $0x158] sm:$0xff]
    %v2626 = vld [vmem:[#allocation13 + $0x160] sm:$0xff]
    %v2627 = vld [vmem:[#allocation13 + $0x168] sm:$0xff]
    %v2628 = vld [vmem:[#allocation13 + $0x170] sm:$0xff]
    %v2629 = vld [vmem:[#allocation13 + $0x178] sm:$0xff]
    %v2630 = vld [vmem:[#allocation13 + $0x180] sm:$0xff]
    %v2631 = vld [vmem:[#allocation13 + $0x188] sm:$0xff]
    %v2632 = vld [vmem:[#allocation13 + $0x190] sm:$0xff]
    %v2633 = vld [vmem:[#allocation13 + $0x198] sm:$0xff]
    %v2634 = vld [vmem:[#allocation13 + $0x1a0] sm:$0xff]
    %v2635 = vld [vmem:[#allocation13 + $0x1a8] sm:$0xff]
    %v2636 = vld [vmem:[#allocation13 + $0x1b0] sm:$0xff]
    %v2637 = vld [vmem:[#allocation13 + $0x1b8] sm:$0xff]
    %v2638 = vld [vmem:[#allocation13 + $0x1c0] sm:$0xff]
    %v2639 = vld [vmem:[#allocation13 + $0x1c8] sm:$0xff]
    %v2640 = vld [vmem:[#allocation13 + $0x1d0] sm:$0xff]
    %v2641 = vld [vmem:[#allocation13 + $0x1d8] sm:$0xff]
    %v2642 = vld [vmem:[#allocation13 + $0x1e0] sm:$0xff]
    %v2643 = vld [vmem:[#allocation13 + $0x1e8] sm:$0xff]
    %v2644 = vld [vmem:[#allocation13 + $0x1f0] sm:$0xff]
    %v2645 = vld [vmem:[#allocation13 + $0x1f8] sm:$0xff]
    %v2710 = vunpack.c.l.b16 %v2582
    %v2711 = vunpack.c.h.b16 %v2582
    %v2712 = vunpack.c.l.b16 %v2583
    %v2713 = vunpack.c.h.b16 %v2583
    %v2714 = vunpack.c.l.b16 %v2584
    %v2715 = vunpack.c.h.b16 %v2584
    %v2716 = vunpack.c.l.b16 %v2585
    %v2717 = vunpack.c.h.b16 %v2585
    %v2718 = vunpack.c.l.b16 %v2586
    %v2719 = vunpack.c.h.b16 %v2586
    %v2720 = vunpack.c.l.b16 %v2587
    %v2721 = vunpack.c.h.b16 %v2587
    %v2722 = vunpack.c.l.b16 %v2588
    %v2723 = vunpack.c.h.b16 %v2588
    %v2724 = vunpack.c.l.b16 %v2589
    %v2725 = vunpack.c.h.b16 %v2589
    %v2726 = vunpack.c.l.b16 %v2590
    %v2727 = vunpack.c.h.b16 %v2590
    %v2728 = vunpack.c.l.b16 %v2591
    %v2729 = vunpack.c.h.b16 %v2591
    %v2730 = vunpack.c.l.b16 %v2592
    %v2731 = vunpack.c.h.b16 %v2592
    %v2732 = vunpack.c.l.b16 %v2593
    %v2733 = vunpack.c.h.b16 %v2593
    %v2734 = vunpack.c.l.b16 %v2594
    %v2735 = vunpack.c.h.b16 %v2594
    %v2736 = vunpack.c.l.b16 %v2595
    %v2737 = vunpack.c.h.b16 %v2595
    %v2738 = vunpack.c.l.b16 %v2596
    %v2739 = vunpack.c.h.b16 %v2596
    %v2740 = vunpack.c.l.b16 %v2597
    %v2741 = vunpack.c.h.b16 %v2597
    %v2742 = vunpack.c.l.b16 %v2598
    %v2743 = vunpack.c.h.b16 %v2598
    %v2744 = vunpack.c.l.b16 %v2599
    %v2745 = vunpack.c.h.b16 %v2599
    %v2746 = vunpack.c.l.b16 %v2600
    %v2747 = vunpack.c.h.b16 %v2600
    %v2748 = vunpack.c.l.b16 %v2601
    %v2749 = vunpack.c.h.b16 %v2601
    %v2750 = vunpack.c.l.b16 %v2602
    %v2751 = vunpack.c.h.b16 %v2602
    %v2752 = vunpack.c.l.b16 %v2603
    %v2753 = vunpack.c.h.b16 %v2603
    %v2754 = vunpack.c.l.b16 %v2604
    %v2755 = vunpack.c.h.b16 %v2604
    %v2756 = vunpack.c.l.b16 %v2605
    %v2757 = vunpack.c.h.b16 %v2605
    %v2758 = vunpack.c.l.b16 %v2606
    %v2759 = vunpack.c.h.b16 %v2606
    %v2760 = vunpack.c.l.b16 %v2607
    %v2761 = vunpack.c.h.b16 %v2607
    %v2762 = vunpack.c.l.b16 %v2608
    %v2763 = vunpack.c.h.b16 %v2608
    %v2764 = vunpack.c.l.b16 %v2609
    %v2765 = vunpack.c.h.b16 %v2609
    %v2766 = vunpack.c.l.b16 %v2610
    %v2767 = vunpack.c.h.b16 %v2610
    %v2768 = vunpack.c.l.b16 %v2611
    %v2769 = vunpack.c.h.b16 %v2611
    %v2770 = vunpack.c.l.b16 %v2612
    %v2771 = vunpack.c.h.b16 %v2612
    %v2772 = vunpack.c.l.b16 %v2613
    %v2773 = vunpack.c.h.b16 %v2613
    %v2774 = vunpack.c.l.b16 %v2614
    %v2775 = vunpack.c.h.b16 %v2614
    %v2776 = vunpack.c.l.b16 %v2615
    %v2777 = vunpack.c.h.b16 %v2615
    %v2778 = vunpack.c.l.b16 %v2616
    %v2779 = vunpack.c.h.b16 %v2616
    %v2780 = vunpack.c.l.b16 %v2617
    %v2781 = vunpack.c.h.b16 %v2617
    %v2782 = vunpack.c.l.b16 %v2618
    %v2783 = vunpack.c.h.b16 %v2618
    %v2784 = vunpack.c.l.b16 %v2619
    %v2785 = vunpack.c.h.b16 %v2619
    %v2786 = vunpack.c.l.b16 %v2620
    %v2787 = vunpack.c.h.b16 %v2620
    %v2788 = vunpack.c.l.b16 %v2621
    %v2789 = vunpack.c.h.b16 %v2621
    %v2790 = vunpack.c.l.b16 %v2622
    %v2791 = vunpack.c.h.b16 %v2622
    %v2792 = vunpack.c.l.b16 %v2623
    %v2793 = vunpack.c.h.b16 %v2623
    %v2794 = vunpack.c.l.b16 %v2624
    %v2795 = vunpack.c.h.b16 %v2624
    %v2796 = vunpack.c.l.b16 %v2625
    %v2797 = vunpack.c.h.b16 %v2625
    %v2798 = vunpack.c.l.b16 %v2626
    %v2799 = vunpack.c.h.b16 %v2626
    %v2800 = vunpack.c.l.b16 %v2627
    %v2801 = vunpack.c.h.b16 %v2627
    %v2802 = vunpack.c.l.b16 %v2628
    %v2803 = vunpack.c.h.b16 %v2628
    %v2804 = vunpack.c.l.b16 %v2629
    %v2805 = vunpack.c.h.b16 %v2629
    %v2806 = vunpack.c.l.b16 %v2630
    %v2807 = vunpack.c.h.b16 %v2630
    %v2808 = vunpack.c.l.b16 %v2631
    %v2809 = vunpack.c.h.b16 %v2631
    %v2810 = vunpack.c.l.b16 %v2632
    %v2811 = vunpack.c.h.b16 %v2632
    %v2812 = vunpack.c.l.b16 %v2633
    %v2813 = vunpack.c.h.b16 %v2633
    %v2814 = vunpack.c.l.b16 %v2634
    %v2815 = vunpack.c.h.b16 %v2634
    %v2816 = vunpack.c.l.b16 %v2635
    %v2817 = vunpack.c.h.b16 %v2635
    %v2818 = vunpack.c.l.b16 %v2636
    %v2819 = vunpack.c.h.b16 %v2636
    %v2820 = vunpack.c.l.b16 %v2637
    %v2821 = vunpack.c.h.b16 %v2637
    %v2822 = vunpack.c.l.b16 %v2638
    %v2823 = vunpack.c.h.b16 %v2638
    %v2824 = vunpack.c.l.b16 %v2639
    %v2825 = vunpack.c.h.b16 %v2639
    %v2826 = vunpack.c.l.b16 %v2640
    %v2827 = vunpack.c.h.b16 %v2640
    %v2828 = vunpack.c.l.b16 %v2641
    %v2829 = vunpack.c.h.b16 %v2641
    %v2830 = vunpack.c.l.b16 %v2642
    %v2831 = vunpack.c.h.b16 %v2642
    %v2832 = vunpack.c.l.b16 %v2643
    %v2833 = vunpack.c.h.b16 %v2643
    %v2834 = vunpack.c.l.b16 %v2644
    %v2835 = vunpack.c.h.b16 %v2644
    %v2836 = vunpack.c.l.b16 %v2645
    %v2837 = vunpack.c.h.b16 %v2645
    %v2838 = vpack.c.b16 %v2714, %v2710
    %v2839 = vpack.c.b16 %v2715, %v2711
    %v2840 = vpack.c.b16 %v2716, %v2712
    %v2841 = vpack.c.b16 %v2717, %v2713
    %v2842 = vpack.c.b16 %v2722, %v2718
    %v2843 = vpack.c.b16 %v2723, %v2719
    %v2844 = vpack.c.b16 %v2724, %v2720
    %v2845 = vpack.c.b16 %v2725, %v2721
    %v2846 = vpack.c.b16 %v2730, %v2726
    %v2847 = vpack.c.b16 %v2731, %v2727
    %v2848 = vpack.c.b16 %v2732, %v2728
    %v2849 = vpack.c.b16 %v2733, %v2729
    %v2850 = vpack.c.b16 %v2738, %v2734
    %v2851 = vpack.c.b16 %v2739, %v2735
    %v2852 = vpack.c.b16 %v2740, %v2736
    %v2853 = vpack.c.b16 %v2741, %v2737
    %v2854 = vpack.c.b16 %v2746, %v2742
    %v2855 = vpack.c.b16 %v2747, %v2743
    %v2856 = vpack.c.b16 %v2748, %v2744
    %v2857 = vpack.c.b16 %v2749, %v2745
    %v2858 = vpack.c.b16 %v2754, %v2750
    %v2859 = vpack.c.b16 %v2755, %v2751
    %v2860 = vpack.c.b16 %v2756, %v2752
    %v2861 = vpack.c.b16 %v2757, %v2753
    %v2862 = vpack.c.b16 %v2762, %v2758
    %v2863 = vpack.c.b16 %v2763, %v2759
    %v2864 = vpack.c.b16 %v2764, %v2760
    %v2865 = vpack.c.b16 %v2765, %v2761
    %v2866 = vpack.c.b16 %v2770, %v2766
    %v2867 = vpack.c.b16 %v2771, %v2767
    %v2868 = vpack.c.b16 %v2772, %v2768
    %v2869 = vpack.c.b16 %v2773, %v2769
    %v2870 = vpack.c.b16 %v2778, %v2774
    %v2871 = vpack.c.b16 %v2779, %v2775
    %v2872 = vpack.c.b16 %v2780, %v2776
    %v2873 = vpack.c.b16 %v2781, %v2777
    %v2874 = vpack.c.b16 %v2786, %v2782
    %v2875 = vpack.c.b16 %v2787, %v2783
    %v2876 = vpack.c.b16 %v2788, %v2784
    %v2877 = vpack.c.b16 %v2789, %v2785
    %v2878 = vpack.c.b16 %v2794, %v2790
    %v2879 = vpack.c.b16 %v2795, %v2791
    %v2880 = vpack.c.b16 %v2796, %v2792
    %v2881 = vpack.c.b16 %v2797, %v2793
    %v2882 = vpack.c.b16 %v2802, %v2798
    %v2883 = vpack.c.b16 %v2803, %v2799
    %v2884 = vpack.c.b16 %v2804, %v2800
    %v2885 = vpack.c.b16 %v2805, %v2801
    %v2886 = vpack.c.b16 %v2810, %v2806
    %v2887 = vpack.c.b16 %v2811, %v2807
    %v2888 = vpack.c.b16 %v2812, %v2808
    %v2889 = vpack.c.b16 %v2813, %v2809
    %v2890 = vpack.c.b16 %v2818, %v2814
    %v2891 = vpack.c.b16 %v2819, %v2815
    %v2892 = vpack.c.b16 %v2820, %v2816
    %v2893 = vpack.c.b16 %v2821, %v2817
    %v2894 = vpack.c.b16 %v2826, %v2822
    %v2895 = vpack.c.b16 %v2827, %v2823
    %v2896 = vpack.c.b16 %v2828, %v2824
    %v2897 = vpack.c.b16 %v2829, %v2825
    %v2898 = vpack.c.b16 %v2834, %v2830
    %v2899 = vpack.c.b16 %v2835, %v2831
    %v2900 = vpack.c.b16 %v2836, %v2832
    %v2901 = vpack.c.b16 %v2837, %v2833
    %2966 = vmatpush.bf16.msra.mxu0 %v2866
    %2967 = vmatpush.bf16.msra.mxu0 %v2862
    %2968 = vmatpush.bf16.msra.mxu0 %v2858
    %2969 = vmatpush.bf16.msra.mxu0 %v2854
    %2970 = vmatpush.bf16.msra.mxu0 %v2850
    %2971 = vmatpush.bf16.msra.mxu0 %v2846
    %2972 = vmatpush.bf16.msra.mxu0 %v2842
    %2973 = vmatpush.bf16.msra.mxu0 %v2838
    %2974 = vmatmul.bf16.gmra.mxu0 %v1533
    %v2975 = vpop.f32.mrf.mxu0
    %v2976 = vadd.f32 %v913, %v2975
    %v2977 = vpop.f32.mrf.mxu0
    %2978 = vdwg.mxu0
    %2979 = vmatpush.bf16.msra.mxu0 %v2898
    %2980 = vmatpush.bf16.msra.mxu0 %v2894
    %2981 = vmatpush.bf16.msra.mxu0 %v2890
    %2982 = vmatpush.bf16.msra.mxu0 %v2886
    %2983 = vmatpush.bf16.msra.mxu0 %v2882
    %2984 = vmatpush.bf16.msra.mxu0 %v2878
    %2985 = vmatpush.bf16.msra.mxu0 %v2874
    %2986 = vmatpush.bf16.msra.mxu0 %v2870
    %2987 = vmatmul.bf16.gmra.mxu0 %v1701
    %v2988 = vpop.f32.mrf.mxu0
    %v2989 = vadd.f32 %v2976, %v2988
    %v2990 = vpop.f32.mrf.mxu0
    %2991 = vdwg.mxu0
    %2992 = vmatpush.bf16.msra.mxu0 %v2867
    %2993 = vmatpush.bf16.msra.mxu0 %v2863
    %2994 = vmatpush.bf16.msra.mxu0 %v2859
    %2995 = vmatpush.bf16.msra.mxu0 %v2855
    %2996 = vmatpush.bf16.msra.mxu0 %v2851
    %2997 = vmatpush.bf16.msra.mxu0 %v2847
    %2998 = vmatpush.bf16.msra.mxu0 %v2843
    %2999 = vmatpush.bf16.msra.mxu0 %v2839
    %3000 = vmatmul.bf16.gmra.mxu0 %v1533
    %v3001 = vpop.f32.mrf.mxu0
    %v3002 = vadd.f32 %v914, %v3001
    %v3003 = vpop.f32.mrf.mxu0
    %3004 = vdwg.mxu0
    %3005 = vmatpush.bf16.msra.mxu0 %v2899
    %3006 = vmatpush.bf16.msra.mxu0 %v2895
    %3007 = vmatpush.bf16.msra.mxu0 %v2891
    %3008 = vmatpush.bf16.msra.mxu0 %v2887
    %3009 = vmatpush.bf16.msra.mxu0 %v2883
    %3010 = vmatpush.bf16.msra.mxu0 %v2879
    %3011 = vmatpush.bf16.msra.mxu0 %v2875
    %3012 = vmatpush.bf16.msra.mxu0 %v2871
    %3013 = vmatmul.bf16.gmra.mxu0 %v1701
    %v3014 = vpop.f32.mrf.mxu0
    %v3015 = vadd.f32 %v3002, %v3014
    %v3016 = vpop.f32.mrf.mxu0
    %3017 = vdwg.mxu0
    %3018 = vmatpush.bf16.msra.mxu0 %v2868
    %3019 = vmatpush.bf16.msra.mxu0 %v2864
    %3020 = vmatpush.bf16.msra.mxu0 %v2860
    %3021 = vmatpush.bf16.msra.mxu0 %v2856
    %3022 = vmatpush.bf16.msra.mxu0 %v2852
    %3023 = vmatpush.bf16.msra.mxu0 %v2848
    %3024 = vmatpush.bf16.msra.mxu0 %v2844
    %3025 = vmatpush.bf16.msra.mxu0 %v2840
    %3026 = vmatmul.bf16.gmra.mxu0 %v1533
    %v3027 = vpop.f32.mrf.mxu0
    %v3028 = vadd.f32 %v915, %v3027
    %v3029 = vpop.f32.mrf.mxu0
    %3030 = vdwg.mxu0
    %3031 = vmatpush.bf16.msra.mxu0 %v2900
    %3032 = vmatpush.bf16.msra.mxu0 %v2896
    %3033 = vmatpush.bf16.msra.mxu0 %v2892
    %3034 = vmatpush.bf16.msra.mxu0 %v2888
    %3035 = vmatpush.bf16.msra.mxu0 %v2884
    %3036 = vmatpush.bf16.msra.mxu0 %v2880
    %3037 = vmatpush.bf16.msra.mxu0 %v2876
    %3038 = vmatpush.bf16.msra.mxu0 %v2872
    %3039 = vmatmul.bf16.gmra.mxu0 %v1701
    %v3040 = vpop.f32.mrf.mxu0
    %v3041 = vadd.f32 %v3028, %v3040
    %v3042 = vpop.f32.mrf.mxu0
    %3043 = vdwg.mxu0
    %3044 = vmatpush.bf16.msra.mxu0 %v2869
    %3045 = vmatpush.bf16.msra.mxu0 %v2865
    %3046 = vmatpush.bf16.msra.mxu0 %v2861
    %3047 = vmatpush.bf16.msra.mxu0 %v2857
    %3048 = vmatpush.bf16.msra.mxu0 %v2853
    %3049 = vmatpush.bf16.msra.mxu0 %v2849
    %3050 = vmatpush.bf16.msra.mxu0 %v2845
    %3051 = vmatpush.bf16.msra.mxu0 %v2841
    %3052 = vmatmul.bf16.gmra.mxu0 %v1533
    %v3053 = vpop.f32.mrf.mxu0
    %v3054 = vadd.f32 %v916, %v3053
    %v3055 = vpop.f32.mrf.mxu0
    %3056 = vdwg.mxu0
    %3057 = vmatpush.bf16.msra.mxu0 %v2901
    %3058 = vmatpush.bf16.msra.mxu0 %v2897
    %3059 = vmatpush.bf16.msra.mxu0 %v2893
    %3060 = vmatpush.bf16.msra.mxu0 %v2889
    %3061 = vmatpush.bf16.msra.mxu0 %v2885
    %3062 = vmatpush.bf16.msra.mxu0 %v2881
    %3063 = vmatpush.bf16.msra.mxu0 %v2877
    %3064 = vmatpush.bf16.msra.mxu0 %v2873
    %3065 = vmatmul.bf16.gmra.mxu0 %v1701
    %v3066 = vpop.f32.mrf.mxu0
    %v3067 = vadd.f32 %v3054, %v3066
    %v3068 = vpop.f32.mrf.mxu0
    %3069 = vdwg.mxu0
    %v3070 = vxor.u32 %v2989, 2147483648
    %v3071 = vxor.u32 %v3015, 2147483648
    %v3072 = vxor.u32 %v3041, 2147483648
    %v3073 = vmul.f32 %v3070, 1.442695
    %v3074 = vpow.pop %v3073
    %v3075 = vmul.f32 %v3071, 1.442695
    %v3076 = vpow.pop %v3075
    %v3077 = vmul.f32 %v3072, 1.442695
    %v3078 = vpow.pop %v3077
    %v3079 = vadd.f32 %v3074, 1.0
    %v3080 = vadd.f32 %v3076, 1.0
    %v3081 = vadd.f32 %v3078, 1.0
    %v3082 = vrcp.pop %v3079
    %v3083 = vmul.f32 %v3079, %v3082
    %v3084 = vsub.f32 1.0, %v3083
    %v3085 = vmul.f32 %v3082, %v3084
    %v3086 = vadd.f32 %v3082, %v3085
    %vm3087 = vweird.f32 %v3079
    %vm3088 = vweird.f32 %v3082
    %vm3089 = vmor %vm3087, %vm3088
    %v3090 = vsel %vm3089, %v3082, %v3086
    %v3091 = vand.u32 2147483647, %v3079
    %vm3092 = vcmp.eq.f32.partialorder %v3091, 8.507059e+37
    %v3093 = vand.u32 %v3079, 2147483648
    %v3094 = vor.u32 1.1754944e-38, %v3093
    %v3095 = vsel %vm3092, %v3094, %v3090
    %v3096 = vmul.f32 1.0, %v3095
    %v3097 = vrcp.pop %v3080
    %v3098 = vmul.f32 %v3080, %v3097
    %v3099 = vsub.f32 1.0, %v3098
    %v3100 = vmul.f32 %v3097, %v3099
    %v3101 = vadd.f32 %v3097, %v3100
    %vm3102 = vweird.f32 %v3080
    %vm3103 = vweird.f32 %v3097
    %vm3104 = vmor %vm3102, %vm3103
    %v3105 = vsel %vm3104, %v3097, %v3101
    %v3106 = vand.u32 2147483647, %v3080
    %vm3107 = vcmp.eq.f32.partialorder %v3106, 8.507059e+37
    %v3108 = vand.u32 %v3080, 2147483648
    %v3109 = vor.u32 1.1754944e-38, %v3108
    %v3110 = vsel %vm3107, %v3109, %v3105
    %v3111 = vmul.f32 1.0, %v3110
    %v3112 = vrcp.pop %v3081
    %v3113 = vmul.f32 %v3081, %v3112
    %v3114 = vsub.f32 1.0, %v3113
    %v3115 = vmul.f32 %v3112, %v3114
    %v3116 = vadd.f32 %v3112, %v3115
    %vm3117 = vweird.f32 %v3081
    %vm3118 = vweird.f32 %v3112
    %vm3119 = vmor %vm3117, %vm3118
    %v3120 = vsel %vm3119, %v3112, %v3116
    %v3121 = vand.u32 2147483647, %v3081
    %vm3122 = vcmp.eq.f32.partialorder %v3121, 8.507059e+37
    %v3123 = vand.u32 %v3081, 2147483648
    %v3124 = vor.u32 1.1754944e-38, %v3123
    %v3125 = vsel %vm3122, %v3124, %v3120
    %v3126 = vmul.f32 1.0, %v3125
    %v3127 = vtanh.pop %v3067
    %v3128 = vmul.f32 %v3111, %v1698
    %v3129 = vmul.f32 %v3096, %v3127
    %v3130 = vadd.f32 %v3128, %v3129
    %v3131 = vtanh.pop %v3130
    %v3132 = vmul.f32 %v3126, %v3131
    %v3133 = vpack.c.bf16 %v3132, %v3132
    %v3134 = vld [vmem:[%s1702] sm:$0xff]
    %v3135 = vld [vmem:[%s1702 + $0x8] sm:$0xff]
    %v3136 = vld [vmem:[%s1702 + $0x10] sm:$0xff]
    %v3137 = vld [vmem:[%s1702 + $0x18] sm:$0xff]
    %v3138 = vld [vmem:[%s1702 + $0x20] sm:$0xff]
    %v3139 = vld [vmem:[%s1702 + $0x28] sm:$0xff]
    %v3140 = vld [vmem:[%s1702 + $0x30] sm:$0xff]
    %v3141 = vld [vmem:[%s1702 + $0x38] sm:$0xff]
    %v3142 = vld [vmem:[%s1702 + $0x40] sm:$0xff]
    %v3143 = vld [vmem:[%s1702 + $0x48] sm:$0xff]
    %v3144 = vld [vmem:[%s1702 + $0x50] sm:$0xff]
    %v3145 = vld [vmem:[%s1702 + $0x58] sm:$0xff]
    %v3146 = vld [vmem:[%s1702 + $0x60] sm:$0xff]
    %v3147 = vld [vmem:[%s1702 + $0x68] sm:$0xff]
    %v3148 = vld [vmem:[%s1702 + $0x70] sm:$0xff]
    %v3149 = vld [vmem:[%s1702 + $0x78] sm:$0xff]
    %v3150 = vld [vmem:[%s1702 + $0x80] sm:$0xff]
    %v3151 = vld [vmem:[%s1702 + $0x88] sm:$0xff]
    %v3152 = vld [vmem:[%s1702 + $0x90] sm:$0xff]
    %v3153 = vld [vmem:[%s1702 + $0x98] sm:$0xff]
    %v3154 = vld [vmem:[%s1702 + $0xa0] sm:$0xff]
    %v3155 = vld [vmem:[%s1702 + $0xa8] sm:$0xff]
    %v3156 = vld [vmem:[%s1702 + $0xb0] sm:$0xff]
    %v3157 = vld [vmem:[%s1702 + $0xb8] sm:$0xff]
    %v3158 = vld [vmem:[%s1702 + $0xc0] sm:$0xff]
    %v3159 = vld [vmem:[%s1702 + $0xc8] sm:$0xff]
    %v3160 = vld [vmem:[%s1702 + $0xd0] sm:$0xff]
    %v3161 = vld [vmem:[%s1702 + $0xd8] sm:$0xff]
    %v3162 = vld [vmem:[%s1702 + $0xe0] sm:$0xff]
    %v3163 = vld [vmem:[%s1702 + $0xe8] sm:$0xff]
    %v3164 = vld [vmem:[%s1702 + $0xf0] sm:$0xff]
    %v3165 = vld [vmem:[%s1702 + $0xf8] sm:$0xff]
    %v3166 = vld [vmem:[%s1702 + $0x100] sm:$0xff]
    %v3167 = vld [vmem:[%s1702 + $0x108] sm:$0xff]
    %v3168 = vld [vmem:[%s1702 + $0x110] sm:$0xff]
    %v3169 = vld [vmem:[%s1702 + $0x118] sm:$0xff]
    %v3170 = vld [vmem:[%s1702 + $0x120] sm:$0xff]
    %v3171 = vld [vmem:[%s1702 + $0x128] sm:$0xff]
    %v3172 = vld [vmem:[%s1702 + $0x130] sm:$0xff]
    %v3173 = vld [vmem:[%s1702 + $0x138] sm:$0xff]
    %v3174 = vld [vmem:[%s1702 + $0x140] sm:$0xff]
    %v3175 = vld [vmem:[%s1702 + $0x148] sm:$0xff]
    %v3176 = vld [vmem:[%s1702 + $0x150] sm:$0xff]
    %v3177 = vld [vmem:[%s1702 + $0x158] sm:$0xff]
    %v3178 = vld [vmem:[%s1702 + $0x160] sm:$0xff]
    %v3179 = vld [vmem:[%s1702 + $0x168] sm:$0xff]
    %v3180 = vld [vmem:[%s1702 + $0x170] sm:$0xff]
    %v3181 = vld [vmem:[%s1702 + $0x178] sm:$0xff]
    %v3182 = vld [vmem:[%s1702 + $0x180] sm:$0xff]
    %v3183 = vld [vmem:[%s1702 + $0x188] sm:$0xff]
    %v3184 = vld [vmem:[%s1702 + $0x190] sm:$0xff]
    %v3185 = vld [vmem:[%s1702 + $0x198] sm:$0xff]
    %v3186 = vld [vmem:[%s1702 + $0x1a0] sm:$0xff]
    %v3187 = vld [vmem:[%s1702 + $0x1a8] sm:$0xff]
    %v3188 = vld [vmem:[%s1702 + $0x1b0] sm:$0xff]
    %v3189 = vld [vmem:[%s1702 + $0x1b8] sm:$0xff]
    %v3190 = vld [vmem:[%s1702 + $0x1c0] sm:$0xff]
    %v3191 = vld [vmem:[%s1702 + $0x1c8] sm:$0xff]
    %v3192 = vld [vmem:[%s1702 + $0x1d0] sm:$0xff]
    %v3193 = vld [vmem:[%s1702 + $0x1d8] sm:$0xff]
    %v3194 = vld [vmem:[%s1702 + $0x1e0] sm:$0xff]
    %v3195 = vld [vmem:[%s1702 + $0x1e8] sm:$0xff]
    %v3196 = vld [vmem:[%s1702 + $0x1f0] sm:$0xff]
    %v3197 = vld [vmem:[%s1702 + $0x1f8] sm:$0xff]
    %v3262 = vunpack.c.l.b16 %v3134
    %v3263 = vunpack.c.h.b16 %v3134
    %v3264 = vunpack.c.l.b16 %v3135
    %v3265 = vunpack.c.h.b16 %v3135
    %v3266 = vunpack.c.l.b16 %v3136
    %v3267 = vunpack.c.h.b16 %v3136
    %v3268 = vunpack.c.l.b16 %v3137
    %v3269 = vunpack.c.h.b16 %v3137
    %v3270 = vunpack.c.l.b16 %v3138
    %v3271 = vunpack.c.h.b16 %v3138
    %v3272 = vunpack.c.l.b16 %v3139
    %v3273 = vunpack.c.h.b16 %v3139
    %v3274 = vunpack.c.l.b16 %v3140
    %v3275 = vunpack.c.h.b16 %v3140
    %v3276 = vunpack.c.l.b16 %v3141
    %v3277 = vunpack.c.h.b16 %v3141
    %v3278 = vunpack.c.l.b16 %v3142
    %v3279 = vunpack.c.h.b16 %v3142
    %v3280 = vunpack.c.l.b16 %v3143
    %v3281 = vunpack.c.h.b16 %v3143
    %v3282 = vunpack.c.l.b16 %v3144
    %v3283 = vunpack.c.h.b16 %v3144
    %v3284 = vunpack.c.l.b16 %v3145
    %v3285 = vunpack.c.h.b16 %v3145
    %v3286 = vunpack.c.l.b16 %v3146
    %v3287 = vunpack.c.h.b16 %v3146
    %v3288 = vunpack.c.l.b16 %v3147
    %v3289 = vunpack.c.h.b16 %v3147
    %v3290 = vunpack.c.l.b16 %v3148
    %v3291 = vunpack.c.h.b16 %v3148
    %v3292 = vunpack.c.l.b16 %v3149
    %v3293 = vunpack.c.h.b16 %v3149
    %v3294 = vunpack.c.l.b16 %v3150
    %v3295 = vunpack.c.h.b16 %v3150
    %v3296 = vunpack.c.l.b16 %v3151
    %v3297 = vunpack.c.h.b16 %v3151
    %v3298 = vunpack.c.l.b16 %v3152
    %v3299 = vunpack.c.h.b16 %v3152
    %v3300 = vunpack.c.l.b16 %v3153
    %v3301 = vunpack.c.h.b16 %v3153
    %v3302 = vunpack.c.l.b16 %v3154
    %v3303 = vunpack.c.h.b16 %v3154
    %v3304 = vunpack.c.l.b16 %v3155
    %v3305 = vunpack.c.h.b16 %v3155
    %v3306 = vunpack.c.l.b16 %v3156
    %v3307 = vunpack.c.h.b16 %v3156
    %v3308 = vunpack.c.l.b16 %v3157
    %v3309 = vunpack.c.h.b16 %v3157
    %v3310 = vunpack.c.l.b16 %v3158
    %v3311 = vunpack.c.h.b16 %v3158
    %v3312 = vunpack.c.l.b16 %v3159
    %v3313 = vunpack.c.h.b16 %v3159
    %v3314 = vunpack.c.l.b16 %v3160
    %v3315 = vunpack.c.h.b16 %v3160
    %v3316 = vunpack.c.l.b16 %v3161
    %v3317 = vunpack.c.h.b16 %v3161
    %v3318 = vunpack.c.l.b16 %v3162
    %v3319 = vunpack.c.h.b16 %v3162
    %v3320 = vunpack.c.l.b16 %v3163
    %v3321 = vunpack.c.h.b16 %v3163
    %v3322 = vunpack.c.l.b16 %v3164
    %v3323 = vunpack.c.h.b16 %v3164
    %v3324 = vunpack.c.l.b16 %v3165
    %v3325 = vunpack.c.h.b16 %v3165
    %v3326 = vunpack.c.l.b16 %v3166
    %v3327 = vunpack.c.h.b16 %v3166
    %v3328 = vunpack.c.l.b16 %v3167
    %v3329 = vunpack.c.h.b16 %v3167
    %v3330 = vunpack.c.l.b16 %v3168
    %v3331 = vunpack.c.h.b16 %v3168
    %v3332 = vunpack.c.l.b16 %v3169
    %v3333 = vunpack.c.h.b16 %v3169
    %v3334 = vunpack.c.l.b16 %v3170
    %v3335 = vunpack.c.h.b16 %v3170
    %v3336 = vunpack.c.l.b16 %v3171
    %v3337 = vunpack.c.h.b16 %v3171
    %v3338 = vunpack.c.l.b16 %v3172
    %v3339 = vunpack.c.h.b16 %v3172
    %v3340 = vunpack.c.l.b16 %v3173
    %v3341 = vunpack.c.h.b16 %v3173
    %v3342 = vunpack.c.l.b16 %v3174
    %v3343 = vunpack.c.h.b16 %v3174
    %v3344 = vunpack.c.l.b16 %v3175
    %v3345 = vunpack.c.h.b16 %v3175
    %v3346 = vunpack.c.l.b16 %v3176
    %v3347 = vunpack.c.h.b16 %v3176
    %v3348 = vunpack.c.l.b16 %v3177
    %v3349 = vunpack.c.h.b16 %v3177
    %v3350 = vunpack.c.l.b16 %v3178
    %v3351 = vunpack.c.h.b16 %v3178
    %v3352 = vunpack.c.l.b16 %v3179
    %v3353 = vunpack.c.h.b16 %v3179
    %v3354 = vunpack.c.l.b16 %v3180
    %v3355 = vunpack.c.h.b16 %v3180
    %v3356 = vunpack.c.l.b16 %v3181
    %v3357 = vunpack.c.h.b16 %v3181
    %v3358 = vunpack.c.l.b16 %v3182
    %v3359 = vunpack.c.h.b16 %v3182
    %v3360 = vunpack.c.l.b16 %v3183
    %v3361 = vunpack.c.h.b16 %v3183
    %v3362 = vunpack.c.l.b16 %v3184
    %v3363 = vunpack.c.h.b16 %v3184
    %v3364 = vunpack.c.l.b16 %v3185
    %v3365 = vunpack.c.h.b16 %v3185
    %v3366 = vunpack.c.l.b16 %v3186
    %v3367 = vunpack.c.h.b16 %v3186
    %v3368 = vunpack.c.l.b16 %v3187
    %v3369 = vunpack.c.h.b16 %v3187
    %v3370 = vunpack.c.l.b16 %v3188
    %v3371 = vunpack.c.h.b16 %v3188
    %v3372 = vunpack.c.l.b16 %v3189
    %v3373 = vunpack.c.h.b16 %v3189
    %v3374 = vunpack.c.l.b16 %v3190
    %v3375 = vunpack.c.h.b16 %v3190
    %v3376 = vunpack.c.l.b16 %v3191
    %v3377 = vunpack.c.h.b16 %v3191
    %v3378 = vunpack.c.l.b16 %v3192
    %v3379 = vunpack.c.h.b16 %v3192
    %v3380 = vunpack.c.l.b16 %v3193
    %v3381 = vunpack.c.h.b16 %v3193
    %v3382 = vunpack.c.l.b16 %v3194
    %v3383 = vunpack.c.h.b16 %v3194
    %v3384 = vunpack.c.l.b16 %v3195
    %v3385 = vunpack.c.h.b16 %v3195
    %v3386 = vunpack.c.l.b16 %v3196
    %v3387 = vunpack.c.h.b16 %v3196
    %v3388 = vunpack.c.l.b16 %v3197
    %v3389 = vunpack.c.h.b16 %v3197
    %v3390 = vpack.c.b16 %v3266, %v3262
    %v3391 = vpack.c.b16 %v3267, %v3263
    %v3392 = vpack.c.b16 %v3268, %v3264
    %v3393 = vpack.c.b16 %v3269, %v3265
    %v3394 = vpack.c.b16 %v3274, %v3270
    %v3395 = vpack.c.b16 %v3275, %v3271
    %v3396 = vpack.c.b16 %v3276, %v3272
    %v3397 = vpack.c.b16 %v3277, %v3273
    %v3398 = vpack.c.b16 %v3282, %v3278
    %v3399 = vpack.c.b16 %v3283, %v3279
    %v3400 = vpack.c.b16 %v3284, %v3280
    %v3401 = vpack.c.b16 %v3285, %v3281
    %v3402 = vpack.c.b16 %v3290, %v3286
    %v3403 = vpack.c.b16 %v3291, %v3287
    %v3404 = vpack.c.b16 %v3292, %v3288
    %v3405 = vpack.c.b16 %v3293, %v3289
    %v3406 = vpack.c.b16 %v3298, %v3294
    %v3407 = vpack.c.b16 %v3299, %v3295
    %v3408 = vpack.c.b16 %v3300, %v3296
    %v3409 = vpack.c.b16 %v3301, %v3297
    %v3410 = vpack.c.b16 %v3306, %v3302
    %v3411 = vpack.c.b16 %v3307, %v3303
    %v3412 = vpack.c.b16 %v3308, %v3304
    %v3413 = vpack.c.b16 %v3309, %v3305
    %v3414 = vpack.c.b16 %v3314, %v3310
    %v3415 = vpack.c.b16 %v3315, %v3311
    %v3416 = vpack.c.b16 %v3316, %v3312
    %v3417 = vpack.c.b16 %v3317, %v3313
    %v3418 = vpack.c.b16 %v3322, %v3318
    %v3419 = vpack.c.b16 %v3323, %v3319
    %v3420 = vpack.c.b16 %v3324, %v3320
    %v3421 = vpack.c.b16 %v3325, %v3321
    %v3422 = vpack.c.b16 %v3330, %v3326
    %v3423 = vpack.c.b16 %v3331, %v3327
    %v3424 = vpack.c.b16 %v3332, %v3328
    %v3425 = vpack.c.b16 %v3333, %v3329
    %v3426 = vpack.c.b16 %v3338, %v3334
    %v3427 = vpack.c.b16 %v3339, %v3335
    %v3428 = vpack.c.b16 %v3340, %v3336
    %v3429 = vpack.c.b16 %v3341, %v3337
    %v3430 = vpack.c.b16 %v3346, %v3342
    %v3431 = vpack.c.b16 %v3347, %v3343
    %v3432 = vpack.c.b16 %v3348, %v3344
    %v3433 = vpack.c.b16 %v3349, %v3345
    %v3434 = vpack.c.b16 %v3354, %v3350
    %v3435 = vpack.c.b16 %v3355, %v3351
    %v3436 = vpack.c.b16 %v3356, %v3352
    %v3437 = vpack.c.b16 %v3357, %v3353
    %v3438 = vpack.c.b16 %v3362, %v3358
    %v3439 = vpack.c.b16 %v3363, %v3359
    %v3440 = vpack.c.b16 %v3364, %v3360
    %v3441 = vpack.c.b16 %v3365, %v3361
    %v3442 = vpack.c.b16 %v3370, %v3366
    %v3443 = vpack.c.b16 %v3371, %v3367
    %v3444 = vpack.c.b16 %v3372, %v3368
    %v3445 = vpack.c.b16 %v3373, %v3369
    %v3446 = vpack.c.b16 %v3378, %v3374
    %v3447 = vpack.c.b16 %v3379, %v3375
    %v3448 = vpack.c.b16 %v3380, %v3376
    %v3449 = vpack.c.b16 %v3381, %v3377
    %v3450 = vpack.c.b16 %v3386, %v3382
    %v3451 = vpack.c.b16 %v3387, %v3383
    %v3452 = vpack.c.b16 %v3388, %v3384
    %v3453 = vpack.c.b16 %v3389, %v3385
    %3518 = vmatpush.bf16.msra.mxu0 %v3418
    %3519 = vmatpush.bf16.msra.mxu0 %v3414
    %3520 = vmatpush.bf16.msra.mxu0 %v3410
    %3521 = vmatpush.bf16.msra.mxu0 %v3406
    %3522 = vmatpush.bf16.msra.mxu0 %v3402
    %3523 = vmatpush.bf16.msra.mxu0 %v3398
    %3524 = vmatpush.bf16.msra.mxu0 %v3394
    %3525 = vmatpush.bf16.msra.mxu0 %v3390
    %3526 = vmatmul.bf16.gmra.mxu0 %v1701
    %v3527 = vpop.f32.mrf.mxu0
    %v3528 = vadd.f32 %v1768, %v3527
    %v3529 = vpop.f32.mrf.mxu0
    %3530 = vdwg.mxu0
    %3531 = vmatpush.bf16.msra.mxu0 %v3450
    %3532 = vmatpush.bf16.msra.mxu0 %v3446
    %3533 = vmatpush.bf16.msra.mxu0 %v3442
    %3534 = vmatpush.bf16.msra.mxu0 %v3438
    %3535 = vmatpush.bf16.msra.mxu0 %v3434
    %3536 = vmatpush.bf16.msra.mxu0 %v3430
    %3537 = vmatpush.bf16.msra.mxu0 %v3426
    %3538 = vmatpush.bf16.msra.mxu0 %v3422
    %3539 = vmatmul.bf16.gmra.mxu0 %v2263
    %v3540 = vpop.f32.mrf.mxu0
    %v3541 = vadd.f32 %v3528, %v3540
    %v3542 = vpop.f32.mrf.mxu0
    %3543 = vdwg.mxu0
    %3544 = vmatpush.bf16.msra.mxu0 %v3419
    %3545 = vmatpush.bf16.msra.mxu0 %v3415
    %3546 = vmatpush.bf16.msra.mxu0 %v3411
    %3547 = vmatpush.bf16.msra.mxu0 %v3407
    %3548 = vmatpush.bf16.msra.mxu0 %v3403
    %3549 = vmatpush.bf16.msra.mxu0 %v3399
    %3550 = vmatpush.bf16.msra.mxu0 %v3395
    %3551 = vmatpush.bf16.msra.mxu0 %v3391
    %3552 = vmatmul.bf16.gmra.mxu0 %v1701
    %v3553 = vpop.f32.mrf.mxu0
    %v3554 = vadd.f32 %v1769, %v3553
    %v3555 = vpop.f32.mrf.mxu0
    %3556 = vdwg.mxu0
    %3557 = vmatpush.bf16.msra.mxu0 %v3451
    %3558 = vmatpush.bf16.msra.mxu0 %v3447
    %3559 = vmatpush.bf16.msra.mxu0 %v3443
    %3560 = vmatpush.bf16.msra.mxu0 %v3439
    %3561 = vmatpush.bf16.msra.mxu0 %v3435
    %3562 = vmatpush.bf16.msra.mxu0 %v3431
    %3563 = vmatpush.bf16.msra.mxu0 %v3427
    %3564 = vmatpush.bf16.msra.mxu0 %v3423
    %3565 = vmatmul.bf16.gmra.mxu0 %v2263
    %v3566 = vpop.f32.mrf.mxu0
    %v3567 = vadd.f32 %v3554, %v3566
    %v3568 = vpop.f32.mrf.mxu0
    %3569 = vdwg.mxu0
    %3570 = vmatpush.bf16.msra.mxu0 %v3420
    %3571 = vmatpush.bf16.msra.mxu0 %v3416
    %3572 = vmatpush.bf16.msra.mxu0 %v3412
    %3573 = vmatpush.bf16.msra.mxu0 %v3408
    %3574 = vmatpush.bf16.msra.mxu0 %v3404
    %3575 = vmatpush.bf16.msra.mxu0 %v3400
    %3576 = vmatpush.bf16.msra.mxu0 %v3396
    %3577 = vmatpush.bf16.msra.mxu0 %v3392
    %3578 = vmatmul.bf16.gmra.mxu0 %v1701
    %v3579 = vpop.f32.mrf.mxu0
    %v3580 = vadd.f32 %v1770, %v3579
    %v3581 = vpop.f32.mrf.mxu0
    %3582 = vdwg.mxu0
    %3583 = vmatpush.bf16.msra.mxu0 %v3452
    %3584 = vmatpush.bf16.msra.mxu0 %v3448
    %3585 = vmatpush.bf16.msra.mxu0 %v3444
    %3586 = vmatpush.bf16.msra.mxu0 %v3440
    %3587 = vmatpush.bf16.msra.mxu0 %v3436
    %3588 = vmatpush.bf16.msra.mxu0 %v3432
    %3589 = vmatpush.bf16.msra.mxu0 %v3428
    %3590 = vmatpush.bf16.msra.mxu0 %v3424
    %3591 = vmatmul.bf16.gmra.mxu0 %v2263
    %v3592 = vpop.f32.mrf.mxu0
    %v3593 = vadd.f32 %v3580, %v3592
    %v3594 = vpop.f32.mrf.mxu0
    %3595 = vdwg.mxu0
    %3596 = vmatpush.bf16.msra.mxu0 %v3421
    %3597 = vmatpush.bf16.msra.mxu0 %v3417
    %3598 = vmatpush.bf16.msra.mxu0 %v3413
    %3599 = vmatpush.bf16.msra.mxu0 %v3409
    %3600 = vmatpush.bf16.msra.mxu0 %v3405
    %3601 = vmatpush.bf16.msra.mxu0 %v3401
    %3602 = vmatpush.bf16.msra.mxu0 %v3397
    %3603 = vmatpush.bf16.msra.mxu0 %v3393
    %3604 = vmatmul.bf16.gmra.mxu0 %v1701
    %v3605 = vpop.f32.mrf.mxu0
    %v3606 = vadd.f32 %v1771, %v3605
    %v3607 = vpop.f32.mrf.mxu0
    %3608 = vdwg.mxu0
    %3609 = vmatpush.bf16.msra.mxu0 %v3453
    %3610 = vmatpush.bf16.msra.mxu0 %v3449
    %3611 = vmatpush.bf16.msra.mxu0 %v3445
    %3612 = vmatpush.bf16.msra.mxu0 %v3441
    %3613 = vmatpush.bf16.msra.mxu0 %v3437
    %3614 = vmatpush.bf16.msra.mxu0 %v3433
    %3615 = vmatpush.bf16.msra.mxu0 %v3429
    %3616 = vmatpush.bf16.msra.mxu0 %v3425
    %3617 = vmatmul.bf16.gmra.mxu0 %v2263
    %v3618 = vpop.f32.mrf.mxu0
    %v3619 = vadd.f32 %v3606, %v3618
    %v3620 = vpop.f32.mrf.mxu0
    %3621 = vdwg.mxu0
    %v3622 = vxor.u32 %v3541, 2147483648
    %v3623 = vxor.u32 %v3567, 2147483648
    %v3624 = vxor.u32 %v3593, 2147483648
    %v3625 = vmul.f32 %v3622, 1.442695
    %v3626 = vpow.pop %v3625
    %v3627 = vmul.f32 %v3623, 1.442695
    %v3628 = vpow.pop %v3627
    %v3629 = vmul.f32 %v3624, 1.442695
    %v3630 = vpow.pop %v3629
    %v3631 = vadd.f32 %v3626, 1.0
    %v3632 = vadd.f32 %v3628, 1.0
    %v3633 = vadd.f32 %v3630, 1.0
    %v3634 = vrcp.pop %v3631
    %v3635 = vmul.f32 %v3631, %v3634
    %v3636 = vsub.f32 1.0, %v3635
    %v3637 = vmul.f32 %v3634, %v3636
    %v3638 = vadd.f32 %v3634, %v3637
    %vm3639 = vweird.f32 %v3631
    %vm3640 = vweird.f32 %v3634
    %vm3641 = vmor %vm3639, %vm3640
    %v3642 = vsel %vm3641, %v3634, %v3638
    %v3643 = vand.u32 2147483647, %v3631
    %vm3644 = vcmp.eq.f32.partialorder %v3643, 8.507059e+37
    %v3645 = vand.u32 %v3631, 2147483648
    %v3646 = vor.u32 1.1754944e-38, %v3645
    %v3647 = vsel %vm3644, %v3646, %v3642
    %v3648 = vmul.f32 1.0, %v3647
    %v3649 = vrcp.pop %v3632
    %v3650 = vmul.f32 %v3632, %v3649
    %v3651 = vsub.f32 1.0, %v3650
    %v3652 = vmul.f32 %v3649, %v3651
    %v3653 = vadd.f32 %v3649, %v3652
    %vm3654 = vweird.f32 %v3632
    %vm3655 = vweird.f32 %v3649
    %vm3656 = vmor %vm3654, %vm3655
    %v3657 = vsel %vm3656, %v3649, %v3653
    %v3658 = vand.u32 2147483647, %v3632
    %vm3659 = vcmp.eq.f32.partialorder %v3658, 8.507059e+37
    %v3660 = vand.u32 %v3632, 2147483648
    %v3661 = vor.u32 1.1754944e-38, %v3660
    %v3662 = vsel %vm3659, %v3661, %v3657
    %v3663 = vmul.f32 1.0, %v3662
    %v3664 = vrcp.pop %v3633
    %v3665 = vmul.f32 %v3633, %v3664
    %v3666 = vsub.f32 1.0, %v3665
    %v3667 = vmul.f32 %v3664, %v3666
    %v3668 = vadd.f32 %v3664, %v3667
    %vm3669 = vweird.f32 %v3633
    %vm3670 = vweird.f32 %v3664
    %vm3671 = vmor %vm3669, %vm3670
    %v3672 = vsel %vm3671, %v3664, %v3668
    %v3673 = vand.u32 2147483647, %v3633
    %vm3674 = vcmp.eq.f32.partialorder %v3673, 8.507059e+37
    %v3675 = vand.u32 %v3633, 2147483648
    %v3676 = vor.u32 1.1754944e-38, %v3675
    %v3677 = vsel %vm3674, %v3676, %v3672
    %v3678 = vmul.f32 1.0, %v3677
    %v3679 = vtanh.pop %v3619
    %v3680 = vmul.f32 %v3663, %v2260
    %v3681 = vmul.f32 %v3648, %v3679
    %v3682 = vadd.f32 %v3680, %v3681
    %v3683 = vtanh.pop %v3682
    %v3684 = vmul.f32 %v3678, %v3683
    %v3685 = vpack.c.bf16 %v3684, %v3684
    %s3686 = scalar_lea.vmem [#allocation3], 4
    %3687 = vst [vmem:[%s3686] sm:$0xf] %v3685
    %s3688 = scalar_lea.vmem [#allocation2], 128
    %v3689 = vld [vmem:[%s3688] sm:$0xff]
    %v3690 = vld [vmem:[%s3688 + $0x8] sm:$0xff]
    %v3691 = vld [vmem:[%s3688 + $0x10] sm:$0xff]
    %v3692 = vld [vmem:[%s3688 + $0x18] sm:$0xff]
    %v3693 = vld [vmem:[#allocation12] sm:$0xff]
    %v3694 = vld [vmem:[#allocation12 + $0x8] sm:$0xff]
    %v3695 = vld [vmem:[#allocation12 + $0x10] sm:$0xff]
    %v3696 = vld [vmem:[#allocation12 + $0x18] sm:$0xff]
    %v3697 = vld [vmem:[#allocation12 + $0x20] sm:$0xff]
    %v3698 = vld [vmem:[#allocation12 + $0x28] sm:$0xff]
    %v3699 = vld [vmem:[#allocation12 + $0x30] sm:$0xff]
    %v3700 = vld [vmem:[#allocation12 + $0x38] sm:$0xff]
    %v3701 = vld [vmem:[#allocation12 + $0x40] sm:$0xff]
    %v3702 = vld [vmem:[#allocation12 + $0x48] sm:$0xff]
    %v3703 = vld [vmem:[#allocation12 + $0x50] sm:$0xff]
    %v3704 = vld [vmem:[#allocation12 + $0x58] sm:$0xff]
    %v3705 = vld [vmem:[#allocation12 + $0x60] sm:$0xff]
    %v3706 = vld [vmem:[#allocation12 + $0x68] sm:$0xff]
    %v3707 = vld [vmem:[#allocation12 + $0x70] sm:$0xff]
    %v3708 = vld [vmem:[#allocation12 + $0x78] sm:$0xff]
    %v3709 = vld [vmem:[#allocation12 + $0x80] sm:$0xff]
    %v3710 = vld [vmem:[#allocation12 + $0x88] sm:$0xff]
    %v3711 = vld [vmem:[#allocation12 + $0x90] sm:$0xff]
    %v3712 = vld [vmem:[#allocation12 + $0x98] sm:$0xff]
    %v3713 = vld [vmem:[#allocation12 + $0xa0] sm:$0xff]
    %v3714 = vld [vmem:[#allocation12 + $0xa8] sm:$0xff]
    %v3715 = vld [vmem:[#allocation12 + $0xb0] sm:$0xff]
    %v3716 = vld [vmem:[#allocation12 + $0xb8] sm:$0xff]
    %v3717 = vld [vmem:[#allocation12 + $0xc0] sm:$0xff]
    %v3718 = vld [vmem:[#allocation12 + $0xc8] sm:$0xff]
    %v3719 = vld [vmem:[#allocation12 + $0xd0] sm:$0xff]
    %v3720 = vld [vmem:[#allocation12 + $0xd8] sm:$0xff]
    %v3721 = vld [vmem:[#allocation12 + $0xe0] sm:$0xff]
    %v3722 = vld [vmem:[#allocation12 + $0xe8] sm:$0xff]
    %v3723 = vld [vmem:[#allocation12 + $0xf0] sm:$0xff]
    %v3724 = vld [vmem:[#allocation12 + $0xf8] sm:$0xff]
    %v3757 = vunpack.c.l.b16 %v3693
    %v3758 = vunpack.c.h.b16 %v3693
    %v3759 = vunpack.c.l.b16 %v3694
    %v3760 = vunpack.c.h.b16 %v3694
    %v3761 = vunpack.c.l.b16 %v3695
    %v3762 = vunpack.c.h.b16 %v3695
    %v3763 = vunpack.c.l.b16 %v3696
    %v3764 = vunpack.c.h.b16 %v3696
    %v3765 = vunpack.c.l.b16 %v3697
    %v3766 = vunpack.c.h.b16 %v3697
    %v3767 = vunpack.c.l.b16 %v3698
    %v3768 = vunpack.c.h.b16 %v3698
    %v3769 = vunpack.c.l.b16 %v3699
    %v3770 = vunpack.c.h.b16 %v3699
    %v3771 = vunpack.c.l.b16 %v3700
    %v3772 = vunpack.c.h.b16 %v3700
    %v3773 = vunpack.c.l.b16 %v3701
    %v3774 = vunpack.c.h.b16 %v3701
    %v3775 = vunpack.c.l.b16 %v3702
    %v3776 = vunpack.c.h.b16 %v3702
    %v3777 = vunpack.c.l.b16 %v3703
    %v3778 = vunpack.c.h.b16 %v3703
    %v3779 = vunpack.c.l.b16 %v3704
    %v3780 = vunpack.c.h.b16 %v3704
    %v3781 = vunpack.c.l.b16 %v3705
    %v3782 = vunpack.c.h.b16 %v3705
    %v3783 = vunpack.c.l.b16 %v3706
    %v3784 = vunpack.c.h.b16 %v3706
    %v3785 = vunpack.c.l.b16 %v3707
    %v3786 = vunpack.c.h.b16 %v3707
    %v3787 = vunpack.c.l.b16 %v3708
    %v3788 = vunpack.c.h.b16 %v3708
    %v3789 = vunpack.c.l.b16 %v3709
    %v3790 = vunpack.c.h.b16 %v3709
    %v3791 = vunpack.c.l.b16 %v3710
    %v3792 = vunpack.c.h.b16 %v3710
    %v3793 = vunpack.c.l.b16 %v3711
    %v3794 = vunpack.c.h.b16 %v3711
    %v3795 = vunpack.c.l.b16 %v3712
    %v3796 = vunpack.c.h.b16 %v3712
    %v3797 = vunpack.c.l.b16 %v3713
    %v3798 = vunpack.c.h.b16 %v3713
    %v3799 = vunpack.c.l.b16 %v3714
    %v3800 = vunpack.c.h.b16 %v3714
    %v3801 = vunpack.c.l.b16 %v3715
    %v3802 = vunpack.c.h.b16 %v3715
    %v3803 = vunpack.c.l.b16 %v3716
    %v3804 = vunpack.c.h.b16 %v3716
    %v3805 = vunpack.c.l.b16 %v3717
    %v3806 = vunpack.c.h.b16 %v3717
    %v3807 = vunpack.c.l.b16 %v3718
    %v3808 = vunpack.c.h.b16 %v3718
    %v3809 = vunpack.c.l.b16 %v3719
    %v3810 = vunpack.c.h.b16 %v3719
    %v3811 = vunpack.c.l.b16 %v3720
    %v3812 = vunpack.c.h.b16 %v3720
    %v3813 = vunpack.c.l.b16 %v3721
    %v3814 = vunpack.c.h.b16 %v3721
    %v3815 = vunpack.c.l.b16 %v3722
    %v3816 = vunpack.c.h.b16 %v3722
    %v3817 = vunpack.c.l.b16 %v3723
    %v3818 = vunpack.c.h.b16 %v3723
    %v3819 = vunpack.c.l.b16 %v3724
    %v3820 = vunpack.c.h.b16 %v3724
    %v3821 = vpack.c.b16 %v3761, %v3757
    %v3822 = vpack.c.b16 %v3762, %v3758
    %v3823 = vpack.c.b16 %v3763, %v3759
    %v3824 = vpack.c.b16 %v3764, %v3760
    %v3825 = vpack.c.b16 %v3769, %v3765
    %v3826 = vpack.c.b16 %v3770, %v3766
    %v3827 = vpack.c.b16 %v3771, %v3767
    %v3828 = vpack.c.b16 %v3772, %v3768
    %v3829 = vpack.c.b16 %v3777, %v3773
    %v3830 = vpack.c.b16 %v3778, %v3774
    %v3831 = vpack.c.b16 %v3779, %v3775
    %v3832 = vpack.c.b16 %v3780, %v3776
    %v3833 = vpack.c.b16 %v3785, %v3781
    %v3834 = vpack.c.b16 %v3786, %v3782
    %v3835 = vpack.c.b16 %v3787, %v3783
    %v3836 = vpack.c.b16 %v3788, %v3784
    %v3837 = vpack.c.b16 %v3793, %v3789
    %v3838 = vpack.c.b16 %v3794, %v3790
    %v3839 = vpack.c.b16 %v3795, %v3791
    %v3840 = vpack.c.b16 %v3796, %v3792
    %v3841 = vpack.c.b16 %v3801, %v3797
    %v3842 = vpack.c.b16 %v3802, %v3798
    %v3843 = vpack.c.b16 %v3803, %v3799
    %v3844 = vpack.c.b16 %v3804, %v3800
    %v3845 = vpack.c.b16 %v3809, %v3805
    %v3846 = vpack.c.b16 %v3810, %v3806
    %v3847 = vpack.c.b16 %v3811, %v3807
    %v3848 = vpack.c.b16 %v3812, %v3808
    %v3849 = vpack.c.b16 %v3817, %v3813
    %v3850 = vpack.c.b16 %v3818, %v3814
    %v3851 = vpack.c.b16 %v3819, %v3815
    %v3852 = vpack.c.b16 %v3820, %v3816
    %3885 = vmatpush.bf16.msra.mxu0 %v3849
    %3886 = vmatpush.bf16.msra.mxu0 %v3845
    %3887 = vmatpush.bf16.msra.mxu0 %v3841
    %3888 = vmatpush.bf16.msra.mxu0 %v3837
    %3889 = vmatpush.bf16.msra.mxu0 %v3833
    %3890 = vmatpush.bf16.msra.mxu0 %v3829
    %3891 = vmatpush.bf16.msra.mxu0 %v3825
    %3892 = vmatpush.bf16.msra.mxu0 %v3821
    %3893 = vmatmul.bf16.gmra.mxu0 %v2581
    %v3894 = vpop.f32.mrf.mxu0
    %v3895 = vadd.f32 0.0, %v3894
    %v3896 = vpop.f32.mrf.mxu0
    %3897 = vdwg.mxu0
    %3898 = vmatpush.bf16.msra.mxu0 %v3850
    %3899 = vmatpush.bf16.msra.mxu0 %v3846
    %3900 = vmatpush.bf16.msra.mxu0 %v3842
    %3901 = vmatpush.bf16.msra.mxu0 %v3838
    %3902 = vmatpush.bf16.msra.mxu0 %v3834
    %3903 = vmatpush.bf16.msra.mxu0 %v3830
    %3904 = vmatpush.bf16.msra.mxu0 %v3826
    %3905 = vmatpush.bf16.msra.mxu0 %v3822
    %3906 = vmatmul.bf16.gmra.mxu0 %v2581
    %v3907 = vpop.f32.mrf.mxu0
    %v3908 = vadd.f32 0.0, %v3907
    %v3909 = vpop.f32.mrf.mxu0
    %3910 = vdwg.mxu0
    %3911 = vmatpush.bf16.msra.mxu0 %v3851
    %3912 = vmatpush.bf16.msra.mxu0 %v3847
    %3913 = vmatpush.bf16.msra.mxu0 %v3843
    %3914 = vmatpush.bf16.msra.mxu0 %v3839
    %3915 = vmatpush.bf16.msra.mxu0 %v3835
    %3916 = vmatpush.bf16.msra.mxu0 %v3831
    %3917 = vmatpush.bf16.msra.mxu0 %v3827
    %3918 = vmatpush.bf16.msra.mxu0 %v3823
    %3919 = vmatmul.bf16.gmra.mxu0 %v2581
    %v3920 = vpop.f32.mrf.mxu0
    %v3921 = vadd.f32 0.0, %v3920
    %v3922 = vpop.f32.mrf.mxu0
    %3923 = vdwg.mxu0
    %3924 = vmatpush.bf16.msra.mxu0 %v3852
    %3925 = vmatpush.bf16.msra.mxu0 %v3848
    %3926 = vmatpush.bf16.msra.mxu0 %v3844
    %3927 = vmatpush.bf16.msra.mxu0 %v3840
    %3928 = vmatpush.bf16.msra.mxu0 %v3836
    %3929 = vmatpush.bf16.msra.mxu0 %v3832
    %3930 = vmatpush.bf16.msra.mxu0 %v3828
    %3931 = vmatpush.bf16.msra.mxu0 %v3824
    %3932 = vmatmul.bf16.gmra.mxu0 %v2581
    %v3933 = vpop.f32.mrf.mxu0
    %v3934 = vadd.f32 0.0, %v3933
    %v3935 = vpop.f32.mrf.mxu0
    %3936 = vdwg.mxu0
    %v3937 = vadd.f32 %v3689, %v3895
    %v3938 = vadd.f32 %v3690, %v3908
    %v3939 = vadd.f32 %v3691, %v3921
    %v3940 = vadd.f32 %v3692, %v3934
    %v3941 = vxor.u32 %v3937, 2147483648
    %v3942 = vxor.u32 %v3938, 2147483648
    %v3943 = vxor.u32 %v3939, 2147483648
    %v3944 = vmul.f32 %v3941, 1.442695
    %v3945 = vpow.pop %v3944
    %v3946 = vmul.f32 %v3942, 1.442695
    %v3947 = vpow.pop %v3946
    %v3948 = vmul.f32 %v3943, 1.442695
    %v3949 = vpow.pop %v3948
    %v3950 = vadd.f32 %v3945, 1.0
    %v3951 = vadd.f32 %v3947, 1.0
    %v3952 = vadd.f32 %v3949, 1.0
    %v3953 = vrcp.pop %v3950
    %v3954 = vmul.f32 %v3950, %v3953
    %v3955 = vsub.f32 1.0, %v3954
    %v3956 = vmul.f32 %v3953, %v3955
    %v3957 = vadd.f32 %v3953, %v3956
    %vm3958 = vweird.f32 %v3950
    %vm3959 = vweird.f32 %v3953
    %vm3960 = vmor %vm3958, %vm3959
    %v3961 = vsel %vm3960, %v3953, %v3957
    %v3962 = vand.u32 2147483647, %v3950
    %vm3963 = vcmp.eq.f32.partialorder %v3962, 8.507059e+37
    %v3964 = vand.u32 %v3950, 2147483648
    %v3965 = vor.u32 1.1754944e-38, %v3964
    %v3966 = vsel %vm3963, %v3965, %v3961
    %v3967 = vmul.f32 1.0, %v3966
    %v3968 = vrcp.pop %v3951
    %v3969 = vmul.f32 %v3951, %v3968
    %v3970 = vsub.f32 1.0, %v3969
    %v3971 = vmul.f32 %v3968, %v3970
    %v3972 = vadd.f32 %v3968, %v3971
    %vm3973 = vweird.f32 %v3951
    %vm3974 = vweird.f32 %v3968
    %vm3975 = vmor %vm3973, %vm3974
    %v3976 = vsel %vm3975, %v3968, %v3972
    %v3977 = vand.u32 2147483647, %v3951
    %vm3978 = vcmp.eq.f32.partialorder %v3977, 8.507059e+37
    %v3979 = vand.u32 %v3951, 2147483648
    %v3980 = vor.u32 1.1754944e-38, %v3979
    %v3981 = vsel %vm3978, %v3980, %v3976
    %v3982 = vmul.f32 1.0, %v3981
    %v3983 = vrcp.pop %v3952
    %v3984 = vmul.f32 %v3952, %v3983
    %v3985 = vsub.f32 1.0, %v3984
    %v3986 = vmul.f32 %v3983, %v3985
    %v3987 = vadd.f32 %v3983, %v3986
    %vm3988 = vweird.f32 %v3952
    %vm3989 = vweird.f32 %v3983
    %vm3990 = vmor %vm3988, %vm3989
    %v3991 = vsel %vm3990, %v3983, %v3987
    %v3992 = vand.u32 2147483647, %v3952
    %vm3993 = vcmp.eq.f32.partialorder %v3992, 8.507059e+37
    %v3994 = vand.u32 %v3952, 2147483648
    %v3995 = vor.u32 1.1754944e-38, %v3994
    %v3996 = vsel %vm3993, %v3995, %v3991
    %v3997 = vmul.f32 1.0, %v3996
    %v3998 = vtanh.pop %v3940
    %v3999 = vmul.f32 %v3982, %v2578
    %v4000 = vmul.f32 %v3967, %v3998
    %v4001 = vadd.f32 %v3999, %v4000
    %v4002 = vtanh.pop %v4001
    %v4003 = vmul.f32 %v3997, %v4002
    %v4004 = vpack.c.bf16 %v4003, %v4003
    %v4005 = vld [vmem:[#allocation13] sm:$0xff]
    %v4006 = vld [vmem:[#allocation13 + $0x8] sm:$0xff]
    %v4007 = vld [vmem:[#allocation13 + $0x10] sm:$0xff]
    %v4008 = vld [vmem:[#allocation13 + $0x18] sm:$0xff]
    %v4009 = vld [vmem:[#allocation13 + $0x20] sm:$0xff]
    %v4010 = vld [vmem:[#allocation13 + $0x28] sm:$0xff]
    %v4011 = vld [vmem:[#allocation13 + $0x30] sm:$0xff]
    %v4012 = vld [vmem:[#allocation13 + $0x38] sm:$0xff]
    %v4013 = vld [vmem:[#allocation13 + $0x40] sm:$0xff]
    %v4014 = vld [vmem:[#allocation13 + $0x48] sm:$0xff]
    %v4015 = vld [vmem:[#allocation13 + $0x50] sm:$0xff]
    %v4016 = vld [vmem:[#allocation13 + $0x58] sm:$0xff]
    %v4017 = vld [vmem:[#allocation13 + $0x60] sm:$0xff]
    %v4018 = vld [vmem:[#allocation13 + $0x68] sm:$0xff]
    %v4019 = vld [vmem:[#allocation13 + $0x70] sm:$0xff]
    %v4020 = vld [vmem:[#allocation13 + $0x78] sm:$0xff]
    %v4021 = vld [vmem:[#allocation13 + $0x80] sm:$0xff]
    %v4022 = vld [vmem:[#allocation13 + $0x88] sm:$0xff]
    %v4023 = vld [vmem:[#allocation13 + $0x90] sm:$0xff]
    %v4024 = vld [vmem:[#allocation13 + $0x98] sm:$0xff]
    %v4025 = vld [vmem:[#allocation13 + $0xa0] sm:$0xff]
    %v4026 = vld [vmem:[#allocation13 + $0xa8] sm:$0xff]
    %v4027 = vld [vmem:[#allocation13 + $0xb0] sm:$0xff]
    %v4028 = vld [vmem:[#allocation13 + $0xb8] sm:$0xff]
    %v4029 = vld [vmem:[#allocation13 + $0xc0] sm:$0xff]
    %v4030 = vld [vmem:[#allocation13 + $0xc8] sm:$0xff]
    %v4031 = vld [vmem:[#allocation13 + $0xd0] sm:$0xff]
    %v4032 = vld [vmem:[#allocation13 + $0xd8] sm:$0xff]
    %v4033 = vld [vmem:[#allocation13 + $0xe0] sm:$0xff]
    %v4034 = vld [vmem:[#allocation13 + $0xe8] sm:$0xff]
    %v4035 = vld [vmem:[#allocation13 + $0xf0] sm:$0xff]
    %v4036 = vld [vmem:[#allocation13 + $0xf8] sm:$0xff]
    %v4037 = vld [vmem:[#allocation13 + $0x100] sm:$0xff]
    %v4038 = vld [vmem:[#allocation13 + $0x108] sm:$0xff]
    %v4039 = vld [vmem:[#allocation13 + $0x110] sm:$0xff]
    %v4040 = vld [vmem:[#allocation13 + $0x118] sm:$0xff]
    %v4041 = vld [vmem:[#allocation13 + $0x120] sm:$0xff]
    %v4042 = vld [vmem:[#allocation13 + $0x128] sm:$0xff]
    %v4043 = vld [vmem:[#allocation13 + $0x130] sm:$0xff]
    %v4044 = vld [vmem:[#allocation13 + $0x138] sm:$0xff]
    %v4045 = vld [vmem:[#allocation13 + $0x140] sm:$0xff]
    %v4046 = vld [vmem:[#allocation13 + $0x148] sm:$0xff]
    %v4047 = vld [vmem:[#allocation13 + $0x150] sm:$0xff]
    %v4048 = vld [vmem:[#allocation13 + $0x158] sm:$0xff]
    %v4049 = vld [vmem:[#allocation13 + $0x160] sm:$0xff]
    %v4050 = vld [vmem:[#allocation13 + $0x168] sm:$0xff]
    %v4051 = vld [vmem:[#allocation13 + $0x170] sm:$0xff]
    %v4052 = vld [vmem:[#allocation13 + $0x178] sm:$0xff]
    %v4053 = vld [vmem:[#allocation13 + $0x180] sm:$0xff]
    %v4054 = vld [vmem:[#allocation13 + $0x188] sm:$0xff]
    %v4055 = vld [vmem:[#allocation13 + $0x190] sm:$0xff]
    %v4056 = vld [vmem:[#allocation13 + $0x198] sm:$0xff]
    %v4057 = vld [vmem:[#allocation13 + $0x1a0] sm:$0xff]
    %v4058 = vld [vmem:[#allocation13 + $0x1a8] sm:$0xff]
    %v4059 = vld [vmem:[#allocation13 + $0x1b0] sm:$0xff]
    %v4060 = vld [vmem:[#allocation13 + $0x1b8] sm:$0xff]
    %v4061 = vld [vmem:[#allocation13 + $0x1c0] sm:$0xff]
    %v4062 = vld [vmem:[#allocation13 + $0x1c8] sm:$0xff]
    %v4063 = vld [vmem:[#allocation13 + $0x1d0] sm:$0xff]
    %v4064 = vld [vmem:[#allocation13 + $0x1d8] sm:$0xff]
    %v4065 = vld [vmem:[#allocation13 + $0x1e0] sm:$0xff]
    %v4066 = vld [vmem:[#allocation13 + $0x1e8] sm:$0xff]
    %v4067 = vld [vmem:[#allocation13 + $0x1f0] sm:$0xff]
    %v4068 = vld [vmem:[#allocation13 + $0x1f8] sm:$0xff]
    %v4133 = vunpack.c.l.b16 %v4005
    %v4134 = vunpack.c.h.b16 %v4005
    %v4135 = vunpack.c.l.b16 %v4006
    %v4136 = vunpack.c.h.b16 %v4006
    %v4137 = vunpack.c.l.b16 %v4007
    %v4138 = vunpack.c.h.b16 %v4007
    %v4139 = vunpack.c.l.b16 %v4008
    %v4140 = vunpack.c.h.b16 %v4008
    %v4141 = vunpack.c.l.b16 %v4009
    %v4142 = vunpack.c.h.b16 %v4009
    %v4143 = vunpack.c.l.b16 %v4010
    %v4144 = vunpack.c.h.b16 %v4010
    %v4145 = vunpack.c.l.b16 %v4011
    %v4146 = vunpack.c.h.b16 %v4011
    %v4147 = vunpack.c.l.b16 %v4012
    %v4148 = vunpack.c.h.b16 %v4012
    %v4149 = vunpack.c.l.b16 %v4013
    %v4150 = vunpack.c.h.b16 %v4013
    %v4151 = vunpack.c.l.b16 %v4014
    %v4152 = vunpack.c.h.b16 %v4014
    %v4153 = vunpack.c.l.b16 %v4015
    %v4154 = vunpack.c.h.b16 %v4015
    %v4155 = vunpack.c.l.b16 %v4016
    %v4156 = vunpack.c.h.b16 %v4016
    %v4157 = vunpack.c.l.b16 %v4017
    %v4158 = vunpack.c.h.b16 %v4017
    %v4159 = vunpack.c.l.b16 %v4018
    %v4160 = vunpack.c.h.b16 %v4018
    %v4161 = vunpack.c.l.b16 %v4019
    %v4162 = vunpack.c.h.b16 %v4019
    %v4163 = vunpack.c.l.b16 %v4020
    %v4164 = vunpack.c.h.b16 %v4020
    %v4165 = vunpack.c.l.b16 %v4021
    %v4166 = vunpack.c.h.b16 %v4021
    %v4167 = vunpack.c.l.b16 %v4022
    %v4168 = vunpack.c.h.b16 %v4022
    %v4169 = vunpack.c.l.b16 %v4023
    %v4170 = vunpack.c.h.b16 %v4023
    %v4171 = vunpack.c.l.b16 %v4024
    %v4172 = vunpack.c.h.b16 %v4024
    %v4173 = vunpack.c.l.b16 %v4025
    %v4174 = vunpack.c.h.b16 %v4025
    %v4175 = vunpack.c.l.b16 %v4026
    %v4176 = vunpack.c.h.b16 %v4026
    %v4177 = vunpack.c.l.b16 %v4027
    %v4178 = vunpack.c.h.b16 %v4027
    %v4179 = vunpack.c.l.b16 %v4028
    %v4180 = vunpack.c.h.b16 %v4028
    %v4181 = vunpack.c.l.b16 %v4029
    %v4182 = vunpack.c.h.b16 %v4029
    %v4183 = vunpack.c.l.b16 %v4030
    %v4184 = vunpack.c.h.b16 %v4030
    %v4185 = vunpack.c.l.b16 %v4031
    %v4186 = vunpack.c.h.b16 %v4031
    %v4187 = vunpack.c.l.b16 %v4032
    %v4188 = vunpack.c.h.b16 %v4032
    %v4189 = vunpack.c.l.b16 %v4033
    %v4190 = vunpack.c.h.b16 %v4033
    %v4191 = vunpack.c.l.b16 %v4034
    %v4192 = vunpack.c.h.b16 %v4034
    %v4193 = vunpack.c.l.b16 %v4035
    %v4194 = vunpack.c.h.b16 %v4035
    %v4195 = vunpack.c.l.b16 %v4036
    %v4196 = vunpack.c.h.b16 %v4036
    %v4197 = vunpack.c.l.b16 %v4037
    %v4198 = vunpack.c.h.b16 %v4037
    %v4199 = vunpack.c.l.b16 %v4038
    %v4200 = vunpack.c.h.b16 %v4038
    %v4201 = vunpack.c.l.b16 %v4039
    %v4202 = vunpack.c.h.b16 %v4039
    %v4203 = vunpack.c.l.b16 %v4040
    %v4204 = vunpack.c.h.b16 %v4040
    %v4205 = vunpack.c.l.b16 %v4041
    %v4206 = vunpack.c.h.b16 %v4041
    %v4207 = vunpack.c.l.b16 %v4042
    %v4208 = vunpack.c.h.b16 %v4042
    %v4209 = vunpack.c.l.b16 %v4043
    %v4210 = vunpack.c.h.b16 %v4043
    %v4211 = vunpack.c.l.b16 %v4044
    %v4212 = vunpack.c.h.b16 %v4044
    %v4213 = vunpack.c.l.b16 %v4045
    %v4214 = vunpack.c.h.b16 %v4045
    %v4215 = vunpack.c.l.b16 %v4046
    %v4216 = vunpack.c.h.b16 %v4046
    %v4217 = vunpack.c.l.b16 %v4047
    %v4218 = vunpack.c.h.b16 %v4047
    %v4219 = vunpack.c.l.b16 %v4048
    %v4220 = vunpack.c.h.b16 %v4048
    %v4221 = vunpack.c.l.b16 %v4049
    %v4222 = vunpack.c.h.b16 %v4049
    %v4223 = vunpack.c.l.b16 %v4050
    %v4224 = vunpack.c.h.b16 %v4050
    %v4225 = vunpack.c.l.b16 %v4051
    %v4226 = vunpack.c.h.b16 %v4051
    %v4227 = vunpack.c.l.b16 %v4052
    %v4228 = vunpack.c.h.b16 %v4052
    %v4229 = vunpack.c.l.b16 %v4053
    %v4230 = vunpack.c.h.b16 %v4053
    %v4231 = vunpack.c.l.b16 %v4054
    %v4232 = vunpack.c.h.b16 %v4054
    %v4233 = vunpack.c.l.b16 %v4055
    %v4234 = vunpack.c.h.b16 %v4055
    %v4235 = vunpack.c.l.b16 %v4056
    %v4236 = vunpack.c.h.b16 %v4056
    %v4237 = vunpack.c.l.b16 %v4057
    %v4238 = vunpack.c.h.b16 %v4057
    %v4239 = vunpack.c.l.b16 %v4058
    %v4240 = vunpack.c.h.b16 %v4058
    %v4241 = vunpack.c.l.b16 %v4059
    %v4242 = vunpack.c.h.b16 %v4059
    %v4243 = vunpack.c.l.b16 %v4060
    %v4244 = vunpack.c.h.b16 %v4060
    %v4245 = vunpack.c.l.b16 %v4061
    %v4246 = vunpack.c.h.b16 %v4061
    %v4247 = vunpack.c.l.b16 %v4062
    %v4248 = vunpack.c.h.b16 %v4062
    %v4249 = vunpack.c.l.b16 %v4063
    %v4250 = vunpack.c.h.b16 %v4063
    %v4251 = vunpack.c.l.b16 %v4064
    %v4252 = vunpack.c.h.b16 %v4064
    %v4253 = vunpack.c.l.b16 %v4065
    %v4254 = vunpack.c.h.b16 %v4065
    %v4255 = vunpack.c.l.b16 %v4066
    %v4256 = vunpack.c.h.b16 %v4066
    %v4257 = vunpack.c.l.b16 %v4067
    %v4258 = vunpack.c.h.b16 %v4067
    %v4259 = vunpack.c.l.b16 %v4068
    %v4260 = vunpack.c.h.b16 %v4068
    %v4261 = vpack.c.b16 %v4137, %v4133
    %v4262 = vpack.c.b16 %v4138, %v4134
    %v4263 = vpack.c.b16 %v4139, %v4135
    %v4264 = vpack.c.b16 %v4140, %v4136
    %v4265 = vpack.c.b16 %v4145, %v4141
    %v4266 = vpack.c.b16 %v4146, %v4142
    %v4267 = vpack.c.b16 %v4147, %v4143
    %v4268 = vpack.c.b16 %v4148, %v4144
    %v4269 = vpack.c.b16 %v4153, %v4149
    %v4270 = vpack.c.b16 %v4154, %v4150
    %v4271 = vpack.c.b16 %v4155, %v4151
    %v4272 = vpack.c.b16 %v4156, %v4152
    %v4273 = vpack.c.b16 %v4161, %v4157
    %v4274 = vpack.c.b16 %v4162, %v4158
    %v4275 = vpack.c.b16 %v4163, %v4159
    %v4276 = vpack.c.b16 %v4164, %v4160
    %v4277 = vpack.c.b16 %v4169, %v4165
    %v4278 = vpack.c.b16 %v4170, %v4166
    %v4279 = vpack.c.b16 %v4171, %v4167
    %v4280 = vpack.c.b16 %v4172, %v4168
    %v4281 = vpack.c.b16 %v4177, %v4173
    %v4282 = vpack.c.b16 %v4178, %v4174
    %v4283 = vpack.c.b16 %v4179, %v4175
    %v4284 = vpack.c.b16 %v4180, %v4176
    %v4285 = vpack.c.b16 %v4185, %v4181
    %v4286 = vpack.c.b16 %v4186, %v4182
    %v4287 = vpack.c.b16 %v4187, %v4183
    %v4288 = vpack.c.b16 %v4188, %v4184
    %v4289 = vpack.c.b16 %v4193, %v4189
    %v4290 = vpack.c.b16 %v4194, %v4190
    %v4291 = vpack.c.b16 %v4195, %v4191
    %v4292 = vpack.c.b16 %v4196, %v4192
    %v4293 = vpack.c.b16 %v4201, %v4197
    %v4294 = vpack.c.b16 %v4202, %v4198
    %v4295 = vpack.c.b16 %v4203, %v4199
    %v4296 = vpack.c.b16 %v4204, %v4200
    %v4297 = vpack.c.b16 %v4209, %v4205
    %v4298 = vpack.c.b16 %v4210, %v4206
    %v4299 = vpack.c.b16 %v4211, %v4207
    %v4300 = vpack.c.b16 %v4212, %v4208
    %v4301 = vpack.c.b16 %v4217, %v4213
    %v4302 = vpack.c.b16 %v4218, %v4214
    %v4303 = vpack.c.b16 %v4219, %v4215
    %v4304 = vpack.c.b16 %v4220, %v4216
    %v4305 = vpack.c.b16 %v4225, %v4221
    %v4306 = vpack.c.b16 %v4226, %v4222
    %v4307 = vpack.c.b16 %v4227, %v4223
    %v4308 = vpack.c.b16 %v4228, %v4224
    %v4309 = vpack.c.b16 %v4233, %v4229
    %v4310 = vpack.c.b16 %v4234, %v4230
    %v4311 = vpack.c.b16 %v4235, %v4231
    %v4312 = vpack.c.b16 %v4236, %v4232
    %v4313 = vpack.c.b16 %v4241, %v4237
    %v4314 = vpack.c.b16 %v4242, %v4238
    %v4315 = vpack.c.b16 %v4243, %v4239
    %v4316 = vpack.c.b16 %v4244, %v4240
    %v4317 = vpack.c.b16 %v4249, %v4245
    %v4318 = vpack.c.b16 %v4250, %v4246
    %v4319 = vpack.c.b16 %v4251, %v4247
    %v4320 = vpack.c.b16 %v4252, %v4248
    %v4321 = vpack.c.b16 %v4257, %v4253
    %v4322 = vpack.c.b16 %v4258, %v4254
    %v4323 = vpack.c.b16 %v4259, %v4255
    %v4324 = vpack.c.b16 %v4260, %v4256
    %4389 = vmatpush.bf16.msra.mxu0 %v4289
    %4390 = vmatpush.bf16.msra.mxu0 %v4285
    %4391 = vmatpush.bf16.msra.mxu0 %v4281
    %4392 = vmatpush.bf16.msra.mxu0 %v4277
    %4393 = vmatpush.bf16.msra.mxu0 %v4273
    %4394 = vmatpush.bf16.msra.mxu0 %v4269
    %4395 = vmatpush.bf16.msra.mxu0 %v4265
    %4396 = vmatpush.bf16.msra.mxu0 %v4261
    %4397 = vmatmul.bf16.gmra.mxu0 %v2581
    %v4398 = vpop.f32.mrf.mxu0
    %v4399 = vadd.f32 %v913, %v4398
    %v4400 = vpop.f32.mrf.mxu0
    %4401 = vdwg.mxu0
    %4402 = vmatpush.bf16.msra.mxu0 %v4321
    %4403 = vmatpush.bf16.msra.mxu0 %v4317
    %4404 = vmatpush.bf16.msra.mxu0 %v4313
    %4405 = vmatpush.bf16.msra.mxu0 %v4309
    %4406 = vmatpush.bf16.msra.mxu0 %v4305
    %4407 = vmatpush.bf16.msra.mxu0 %v4301
    %4408 = vmatpush.bf16.msra.mxu0 %v4297
    %4409 = vmatpush.bf16.msra.mxu0 %v4293
    %4410 = vmatmul.bf16.gmra.mxu0 %v3133
    %v4411 = vpop.f32.mrf.mxu0
    %v4412 = vadd.f32 %v4399, %v4411
    %v4413 = vpop.f32.mrf.mxu0
    %4414 = vdwg.mxu0
    %4415 = vmatpush.bf16.msra.mxu0 %v4290
    %4416 = vmatpush.bf16.msra.mxu0 %v4286
    %4417 = vmatpush.bf16.msra.mxu0 %v4282
    %4418 = vmatpush.bf16.msra.mxu0 %v4278
    %4419 = vmatpush.bf16.msra.mxu0 %v4274
    %4420 = vmatpush.bf16.msra.mxu0 %v4270
    %4421 = vmatpush.bf16.msra.mxu0 %v4266
    %4422 = vmatpush.bf16.msra.mxu0 %v4262
    %4423 = vmatmul.bf16.gmra.mxu0 %v2581
    %v4424 = vpop.f32.mrf.mxu0
    %v4425 = vadd.f32 %v914, %v4424
    %v4426 = vpop.f32.mrf.mxu0
    %4427 = vdwg.mxu0
    %4428 = vmatpush.bf16.msra.mxu0 %v4322
    %4429 = vmatpush.bf16.msra.mxu0 %v4318
    %4430 = vmatpush.bf16.msra.mxu0 %v4314
    %4431 = vmatpush.bf16.msra.mxu0 %v4310
    %4432 = vmatpush.bf16.msra.mxu0 %v4306
    %4433 = vmatpush.bf16.msra.mxu0 %v4302
    %4434 = vmatpush.bf16.msra.mxu0 %v4298
    %4435 = vmatpush.bf16.msra.mxu0 %v4294
    %4436 = vmatmul.bf16.gmra.mxu0 %v3133
    %v4437 = vpop.f32.mrf.mxu0
    %v4438 = vadd.f32 %v4425, %v4437
    %v4439 = vpop.f32.mrf.mxu0
    %4440 = vdwg.mxu0
    %4441 = vmatpush.bf16.msra.mxu0 %v4291
    %4442 = vmatpush.bf16.msra.mxu0 %v4287
    %4443 = vmatpush.bf16.msra.mxu0 %v4283
    %4444 = vmatpush.bf16.msra.mxu0 %v4279
    %4445 = vmatpush.bf16.msra.mxu0 %v4275
    %4446 = vmatpush.bf16.msra.mxu0 %v4271
    %4447 = vmatpush.bf16.msra.mxu0 %v4267
    %4448 = vmatpush.bf16.msra.mxu0 %v4263
    %4449 = vmatmul.bf16.gmra.mxu0 %v2581
    %v4450 = vpop.f32.mrf.mxu0
    %v4451 = vadd.f32 %v915, %v4450
    %v4452 = vpop.f32.mrf.mxu0
    %4453 = vdwg.mxu0
    %4454 = vmatpush.bf16.msra.mxu0 %v4323
    %4455 = vmatpush.bf16.msra.mxu0 %v4319
    %4456 = vmatpush.bf16.msra.mxu0 %v4315
    %4457 = vmatpush.bf16.msra.mxu0 %v4311
    %4458 = vmatpush.bf16.msra.mxu0 %v4307
    %4459 = vmatpush.bf16.msra.mxu0 %v4303
    %4460 = vmatpush.bf16.msra.mxu0 %v4299
    %4461 = vmatpush.bf16.msra.mxu0 %v4295
    %4462 = vmatmul.bf16.gmra.mxu0 %v3133
    %v4463 = vpop.f32.mrf.mxu0
    %v4464 = vadd.f32 %v4451, %v4463
    %v4465 = vpop.f32.mrf.mxu0
    %4466 = vdwg.mxu0
    %4467 = vmatpush.bf16.msra.mxu0 %v4292
    %4468 = vmatpush.bf16.msra.mxu0 %v4288
    %4469 = vmatpush.bf16.msra.mxu0 %v4284
    %4470 = vmatpush.bf16.msra.mxu0 %v4280
    %4471 = vmatpush.bf16.msra.mxu0 %v4276
    %4472 = vmatpush.bf16.msra.mxu0 %v4272
    %4473 = vmatpush.bf16.msra.mxu0 %v4268
    %4474 = vmatpush.bf16.msra.mxu0 %v4264
    %4475 = vmatmul.bf16.gmra.mxu0 %v2581
    %v4476 = vpop.f32.mrf.mxu0
    %v4477 = vadd.f32 %v916, %v4476
    %v4478 = vpop.f32.mrf.mxu0
    %4479 = vdwg.mxu0
    %4480 = vmatpush.bf16.msra.mxu0 %v4324
    %4481 = vmatpush.bf16.msra.mxu0 %v4320
    %4482 = vmatpush.bf16.msra.mxu0 %v4316
    %4483 = vmatpush.bf16.msra.mxu0 %v4312
    %4484 = vmatpush.bf16.msra.mxu0 %v4308
    %4485 = vmatpush.bf16.msra.mxu0 %v4304
    %4486 = vmatpush.bf16.msra.mxu0 %v4300
    %4487 = vmatpush.bf16.msra.mxu0 %v4296
    %4488 = vmatmul.bf16.gmra.mxu0 %v3133
    %v4489 = vpop.f32.mrf.mxu0
    %v4490 = vadd.f32 %v4477, %v4489
    %v4491 = vpop.f32.mrf.mxu0
    %4492 = vdwg.mxu0
    %v4493 = vxor.u32 %v4412, 2147483648
    %v4494 = vxor.u32 %v4438, 2147483648
    %v4495 = vxor.u32 %v4464, 2147483648
    %v4496 = vmul.f32 %v4493, 1.442695
    %v4497 = vpow.pop %v4496
    %v4498 = vmul.f32 %v4494, 1.442695
    %v4499 = vpow.pop %v4498
    %v4500 = vmul.f32 %v4495, 1.442695
    %v4501 = vpow.pop %v4500
    %v4502 = vadd.f32 %v4497, 1.0
    %v4503 = vadd.f32 %v4499, 1.0
    %v4504 = vadd.f32 %v4501, 1.0
    %v4505 = vrcp.pop %v4502
    %v4506 = vmul.f32 %v4502, %v4505
    %v4507 = vsub.f32 1.0, %v4506
    %v4508 = vmul.f32 %v4505, %v4507
    %v4509 = vadd.f32 %v4505, %v4508
    %vm4510 = vweird.f32 %v4502
    %vm4511 = vweird.f32 %v4505
    %vm4512 = vmor %vm4510, %vm4511
    %v4513 = vsel %vm4512, %v4505, %v4509
    %v4514 = vand.u32 2147483647, %v4502
    %vm4515 = vcmp.eq.f32.partialorder %v4514, 8.507059e+37
    %v4516 = vand.u32 %v4502, 2147483648
    %v4517 = vor.u32 1.1754944e-38, %v4516
    %v4518 = vsel %vm4515, %v4517, %v4513
    %v4519 = vmul.f32 1.0, %v4518
    %v4520 = vrcp.pop %v4503
    %v4521 = vmul.f32 %v4503, %v4520
    %v4522 = vsub.f32 1.0, %v4521
    %v4523 = vmul.f32 %v4520, %v4522
    %v4524 = vadd.f32 %v4520, %v4523
    %vm4525 = vweird.f32 %v4503
    %vm4526 = vweird.f32 %v4520
    %vm4527 = vmor %vm4525, %vm4526
    %v4528 = vsel %vm4527, %v4520, %v4524
    %v4529 = vand.u32 2147483647, %v4503
    %vm4530 = vcmp.eq.f32.partialorder %v4529, 8.507059e+37
    %v4531 = vand.u32 %v4503, 2147483648
    %v4532 = vor.u32 1.1754944e-38, %v4531
    %v4533 = vsel %vm4530, %v4532, %v4528
    %v4534 = vmul.f32 1.0, %v4533
    %v4535 = vrcp.pop %v4504
    %v4536 = vmul.f32 %v4504, %v4535
    %v4537 = vsub.f32 1.0, %v4536
    %v4538 = vmul.f32 %v4535, %v4537
    %v4539 = vadd.f32 %v4535, %v4538
    %vm4540 = vweird.f32 %v4504
    %vm4541 = vweird.f32 %v4535
    %vm4542 = vmor %vm4540, %vm4541
    %v4543 = vsel %vm4542, %v4535, %v4539
    %v4544 = vand.u32 2147483647, %v4504
    %vm4545 = vcmp.eq.f32.partialorder %v4544, 8.507059e+37
    %v4546 = vand.u32 %v4504, 2147483648
    %v4547 = vor.u32 1.1754944e-38, %v4546
    %v4548 = vsel %vm4545, %v4547, %v4543
    %v4549 = vmul.f32 1.0, %v4548
    %v4550 = vtanh.pop %v4490
    %v4551 = vmul.f32 %v4534, %v3130
    %v4552 = vmul.f32 %v4519, %v4550
    %v4553 = vadd.f32 %v4551, %v4552
    %v4554 = vtanh.pop %v4553
    %v4555 = vmul.f32 %v4549, %v4554
    %v4556 = vpack.c.bf16 %v4555, %v4555
    %v4557 = vld [vmem:[%s1702] sm:$0xff]
    %v4558 = vld [vmem:[%s1702 + $0x8] sm:$0xff]
    %v4559 = vld [vmem:[%s1702 + $0x10] sm:$0xff]
    %v4560 = vld [vmem:[%s1702 + $0x18] sm:$0xff]
    %v4561 = vld [vmem:[%s1702 + $0x20] sm:$0xff]
    %v4562 = vld [vmem:[%s1702 + $0x28] sm:$0xff]
    %v4563 = vld [vmem:[%s1702 + $0x30] sm:$0xff]
    %v4564 = vld [vmem:[%s1702 + $0x38] sm:$0xff]
    %v4565 = vld [vmem:[%s1702 + $0x40] sm:$0xff]
    %v4566 = vld [vmem:[%s1702 + $0x48] sm:$0xff]
    %v4567 = vld [vmem:[%s1702 + $0x50] sm:$0xff]
    %v4568 = vld [vmem:[%s1702 + $0x58] sm:$0xff]
    %v4569 = vld [vmem:[%s1702 + $0x60] sm:$0xff]
    %v4570 = vld [vmem:[%s1702 + $0x68] sm:$0xff]
    %v4571 = vld [vmem:[%s1702 + $0x70] sm:$0xff]
    %v4572 = vld [vmem:[%s1702 + $0x78] sm:$0xff]
    %v4573 = vld [vmem:[%s1702 + $0x80] sm:$0xff]
    %v4574 = vld [vmem:[%s1702 + $0x88] sm:$0xff]
    %v4575 = vld [vmem:[%s1702 + $0x90] sm:$0xff]
    %v4576 = vld [vmem:[%s1702 + $0x98] sm:$0xff]
    %v4577 = vld [vmem:[%s1702 + $0xa0] sm:$0xff]
    %v4578 = vld [vmem:[%s1702 + $0xa8] sm:$0xff]
    %v4579 = vld [vmem:[%s1702 + $0xb0] sm:$0xff]
    %v4580 = vld [vmem:[%s1702 + $0xb8] sm:$0xff]
    %v4581 = vld [vmem:[%s1702 + $0xc0] sm:$0xff]
    %v4582 = vld [vmem:[%s1702 + $0xc8] sm:$0xff]
    %v4583 = vld [vmem:[%s1702 + $0xd0] sm:$0xff]
    %v4584 = vld [vmem:[%s1702 + $0xd8] sm:$0xff]
    %v4585 = vld [vmem:[%s1702 + $0xe0] sm:$0xff]
    %v4586 = vld [vmem:[%s1702 + $0xe8] sm:$0xff]
    %v4587 = vld [vmem:[%s1702 + $0xf0] sm:$0xff]
    %v4588 = vld [vmem:[%s1702 + $0xf8] sm:$0xff]
    %v4589 = vld [vmem:[%s1702 + $0x100] sm:$0xff]
    %v4590 = vld [vmem:[%s1702 + $0x108] sm:$0xff]
    %v4591 = vld [vmem:[%s1702 + $0x110] sm:$0xff]
    %v4592 = vld [vmem:[%s1702 + $0x118] sm:$0xff]
    %v4593 = vld [vmem:[%s1702 + $0x120] sm:$0xff]
    %v4594 = vld [vmem:[%s1702 + $0x128] sm:$0xff]
    %v4595 = vld [vmem:[%s1702 + $0x130] sm:$0xff]
    %v4596 = vld [vmem:[%s1702 + $0x138] sm:$0xff]
    %v4597 = vld [vmem:[%s1702 + $0x140] sm:$0xff]
    %v4598 = vld [vmem:[%s1702 + $0x148] sm:$0xff]
    %v4599 = vld [vmem:[%s1702 + $0x150] sm:$0xff]
    %v4600 = vld [vmem:[%s1702 + $0x158] sm:$0xff]
    %v4601 = vld [vmem:[%s1702 + $0x160] sm:$0xff]
    %v4602 = vld [vmem:[%s1702 + $0x168] sm:$0xff]
    %v4603 = vld [vmem:[%s1702 + $0x170] sm:$0xff]
    %v4604 = vld [vmem:[%s1702 + $0x178] sm:$0xff]
    %v4605 = vld [vmem:[%s1702 + $0x180] sm:$0xff]
    %v4606 = vld [vmem:[%s1702 + $0x188] sm:$0xff]
    %v4607 = vld [vmem:[%s1702 + $0x190] sm:$0xff]
    %v4608 = vld [vmem:[%s1702 + $0x198] sm:$0xff]
    %v4609 = vld [vmem:[%s1702 + $0x1a0] sm:$0xff]
    %v4610 = vld [vmem:[%s1702 + $0x1a8] sm:$0xff]
    %v4611 = vld [vmem:[%s1702 + $0x1b0] sm:$0xff]
    %v4612 = vld [vmem:[%s1702 + $0x1b8] sm:$0xff]
    %v4613 = vld [vmem:[%s1702 + $0x1c0] sm:$0xff]
    %v4614 = vld [vmem:[%s1702 + $0x1c8] sm:$0xff]
    %v4615 = vld [vmem:[%s1702 + $0x1d0] sm:$0xff]
    %v4616 = vld [vmem:[%s1702 + $0x1d8] sm:$0xff]
    %v4617 = vld [vmem:[%s1702 + $0x1e0] sm:$0xff]
    %v4618 = vld [vmem:[%s1702 + $0x1e8] sm:$0xff]
    %v4619 = vld [vmem:[%s1702 + $0x1f0] sm:$0xff]
    %v4620 = vld [vmem:[%s1702 + $0x1f8] sm:$0xff]
    %v4685 = vunpack.c.l.b16 %v4557
    %v4686 = vunpack.c.h.b16 %v4557
    %v4687 = vunpack.c.l.b16 %v4558
    %v4688 = vunpack.c.h.b16 %v4558
    %v4689 = vunpack.c.l.b16 %v4559
    %v4690 = vunpack.c.h.b16 %v4559
    %v4691 = vunpack.c.l.b16 %v4560
    %v4692 = vunpack.c.h.b16 %v4560
    %v4693 = vunpack.c.l.b16 %v4561
    %v4694 = vunpack.c.h.b16 %v4561
    %v4695 = vunpack.c.l.b16 %v4562
    %v4696 = vunpack.c.h.b16 %v4562
    %v4697 = vunpack.c.l.b16 %v4563
    %v4698 = vunpack.c.h.b16 %v4563
    %v4699 = vunpack.c.l.b16 %v4564
    %v4700 = vunpack.c.h.b16 %v4564
    %v4701 = vunpack.c.l.b16 %v4565
    %v4702 = vunpack.c.h.b16 %v4565
    %v4703 = vunpack.c.l.b16 %v4566
    %v4704 = vunpack.c.h.b16 %v4566
    %v4705 = vunpack.c.l.b16 %v4567
    %v4706 = vunpack.c.h.b16 %v4567
    %v4707 = vunpack.c.l.b16 %v4568
    %v4708 = vunpack.c.h.b16 %v4568
    %v4709 = vunpack.c.l.b16 %v4569
    %v4710 = vunpack.c.h.b16 %v4569
    %v4711 = vunpack.c.l.b16 %v4570
    %v4712 = vunpack.c.h.b16 %v4570
    %v4713 = vunpack.c.l.b16 %v4571
    %v4714 = vunpack.c.h.b16 %v4571
    %v4715 = vunpack.c.l.b16 %v4572
    %v4716 = vunpack.c.h.b16 %v4572
    %v4717 = vunpack.c.l.b16 %v4573
    %v4718 = vunpack.c.h.b16 %v4573
    %v4719 = vunpack.c.l.b16 %v4574
    %v4720 = vunpack.c.h.b16 %v4574
    %v4721 = vunpack.c.l.b16 %v4575
    %v4722 = vunpack.c.h.b16 %v4575
    %v4723 = vunpack.c.l.b16 %v4576
    %v4724 = vunpack.c.h.b16 %v4576
    %v4725 = vunpack.c.l.b16 %v4577
    %v4726 = vunpack.c.h.b16 %v4577
    %v4727 = vunpack.c.l.b16 %v4578
    %v4728 = vunpack.c.h.b16 %v4578
    %v4729 = vunpack.c.l.b16 %v4579
    %v4730 = vunpack.c.h.b16 %v4579
    %v4731 = vunpack.c.l.b16 %v4580
    %v4732 = vunpack.c.h.b16 %v4580
    %v4733 = vunpack.c.l.b16 %v4581
    %v4734 = vunpack.c.h.b16 %v4581
    %v4735 = vunpack.c.l.b16 %v4582
    %v4736 = vunpack.c.h.b16 %v4582
    %v4737 = vunpack.c.l.b16 %v4583
    %v4738 = vunpack.c.h.b16 %v4583
    %v4739 = vunpack.c.l.b16 %v4584
    %v4740 = vunpack.c.h.b16 %v4584
    %v4741 = vunpack.c.l.b16 %v4585
    %v4742 = vunpack.c.h.b16 %v4585
    %v4743 = vunpack.c.l.b16 %v4586
    %v4744 = vunpack.c.h.b16 %v4586
    %v4745 = vunpack.c.l.b16 %v4587
    %v4746 = vunpack.c.h.b16 %v4587
    %v4747 = vunpack.c.l.b16 %v4588
    %v4748 = vunpack.c.h.b16 %v4588
    %v4749 = vunpack.c.l.b16 %v4589
    %v4750 = vunpack.c.h.b16 %v4589
    %v4751 = vunpack.c.l.b16 %v4590
    %v4752 = vunpack.c.h.b16 %v4590
    %v4753 = vunpack.c.l.b16 %v4591
    %v4754 = vunpack.c.h.b16 %v4591
    %v4755 = vunpack.c.l.b16 %v4592
    %v4756 = vunpack.c.h.b16 %v4592
    %v4757 = vunpack.c.l.b16 %v4593
    %v4758 = vunpack.c.h.b16 %v4593
    %v4759 = vunpack.c.l.b16 %v4594
    %v4760 = vunpack.c.h.b16 %v4594
    %v4761 = vunpack.c.l.b16 %v4595
    %v4762 = vunpack.c.h.b16 %v4595
    %v4763 = vunpack.c.l.b16 %v4596
    %v4764 = vunpack.c.h.b16 %v4596
    %v4765 = vunpack.c.l.b16 %v4597
    %v4766 = vunpack.c.h.b16 %v4597
    %v4767 = vunpack.c.l.b16 %v4598
    %v4768 = vunpack.c.h.b16 %v4598
    %v4769 = vunpack.c.l.b16 %v4599
    %v4770 = vunpack.c.h.b16 %v4599
    %v4771 = vunpack.c.l.b16 %v4600
    %v4772 = vunpack.c.h.b16 %v4600
    %v4773 = vunpack.c.l.b16 %v4601
    %v4774 = vunpack.c.h.b16 %v4601
    %v4775 = vunpack.c.l.b16 %v4602
    %v4776 = vunpack.c.h.b16 %v4602
    %v4777 = vunpack.c.l.b16 %v4603
    %v4778 = vunpack.c.h.b16 %v4603
    %v4779 = vunpack.c.l.b16 %v4604
    %v4780 = vunpack.c.h.b16 %v4604
    %v4781 = vunpack.c.l.b16 %v4605
    %v4782 = vunpack.c.h.b16 %v4605
    %v4783 = vunpack.c.l.b16 %v4606
    %v4784 = vunpack.c.h.b16 %v4606
    %v4785 = vunpack.c.l.b16 %v4607
    %v4786 = vunpack.c.h.b16 %v4607
    %v4787 = vunpack.c.l.b16 %v4608
    %v4788 = vunpack.c.h.b16 %v4608
    %v4789 = vunpack.c.l.b16 %v4609
    %v4790 = vunpack.c.h.b16 %v4609
    %v4791 = vunpack.c.l.b16 %v4610
    %v4792 = vunpack.c.h.b16 %v4610
    %v4793 = vunpack.c.l.b16 %v4611
    %v4794 = vunpack.c.h.b16 %v4611
    %v4795 = vunpack.c.l.b16 %v4612
    %v4796 = vunpack.c.h.b16 %v4612
    %v4797 = vunpack.c.l.b16 %v4613
    %v4798 = vunpack.c.h.b16 %v4613
    %v4799 = vunpack.c.l.b16 %v4614
    %v4800 = vunpack.c.h.b16 %v4614
    %v4801 = vunpack.c.l.b16 %v4615
    %v4802 = vunpack.c.h.b16 %v4615
    %v4803 = vunpack.c.l.b16 %v4616
    %v4804 = vunpack.c.h.b16 %v4616
    %v4805 = vunpack.c.l.b16 %v4617
    %v4806 = vunpack.c.h.b16 %v4617
    %v4807 = vunpack.c.l.b16 %v4618
    %v4808 = vunpack.c.h.b16 %v4618
    %v4809 = vunpack.c.l.b16 %v4619
    %v4810 = vunpack.c.h.b16 %v4619
    %v4811 = vunpack.c.l.b16 %v4620
    %v4812 = vunpack.c.h.b16 %v4620
    %v4813 = vpack.c.b16 %v4689, %v4685
    %v4814 = vpack.c.b16 %v4690, %v4686
    %v4815 = vpack.c.b16 %v4691, %v4687
    %v4816 = vpack.c.b16 %v4692, %v4688
    %v4817 = vpack.c.b16 %v4697, %v4693
    %v4818 = vpack.c.b16 %v4698, %v4694
    %v4819 = vpack.c.b16 %v4699, %v4695
    %v4820 = vpack.c.b16 %v4700, %v4696
    %v4821 = vpack.c.b16 %v4705, %v4701
    %v4822 = vpack.c.b16 %v4706, %v4702
    %v4823 = vpack.c.b16 %v4707, %v4703
    %v4824 = vpack.c.b16 %v4708, %v4704
    %v4825 = vpack.c.b16 %v4713, %v4709
    %v4826 = vpack.c.b16 %v4714, %v4710
    %v4827 = vpack.c.b16 %v4715, %v4711
    %v4828 = vpack.c.b16 %v4716, %v4712
    %v4829 = vpack.c.b16 %v4721, %v4717
    %v4830 = vpack.c.b16 %v4722, %v4718
    %v4831 = vpack.c.b16 %v4723, %v4719
    %v4832 = vpack.c.b16 %v4724, %v4720
    %v4833 = vpack.c.b16 %v4729, %v4725
    %v4834 = vpack.c.b16 %v4730, %v4726
    %v4835 = vpack.c.b16 %v4731, %v4727
    %v4836 = vpack.c.b16 %v4732, %v4728
    %v4837 = vpack.c.b16 %v4737, %v4733
    %v4838 = vpack.c.b16 %v4738, %v4734
    %v4839 = vpack.c.b16 %v4739, %v4735
    %v4840 = vpack.c.b16 %v4740, %v4736
    %v4841 = vpack.c.b16 %v4745, %v4741
    %v4842 = vpack.c.b16 %v4746, %v4742
    %v4843 = vpack.c.b16 %v4747, %v4743
    %v4844 = vpack.c.b16 %v4748, %v4744
    %v4845 = vpack.c.b16 %v4753, %v4749
    %v4846 = vpack.c.b16 %v4754, %v4750
    %v4847 = vpack.c.b16 %v4755, %v4751
    %v4848 = vpack.c.b16 %v4756, %v4752
    %v4849 = vpack.c.b16 %v4761, %v4757
    %v4850 = vpack.c.b16 %v4762, %v4758
    %v4851 = vpack.c.b16 %v4763, %v4759
    %v4852 = vpack.c.b16 %v4764, %v4760
    %v4853 = vpack.c.b16 %v4769, %v4765
    %v4854 = vpack.c.b16 %v4770, %v4766
    %v4855 = vpack.c.b16 %v4771, %v4767
    %v4856 = vpack.c.b16 %v4772, %v4768
    %v4857 = vpack.c.b16 %v4777, %v4773
    %v4858 = vpack.c.b16 %v4778, %v4774
    %v4859 = vpack.c.b16 %v4779, %v4775
    %v4860 = vpack.c.b16 %v4780, %v4776
    %v4861 = vpack.c.b16 %v4785, %v4781
    %v4862 = vpack.c.b16 %v4786, %v4782
    %v4863 = vpack.c.b16 %v4787, %v4783
    %v4864 = vpack.c.b16 %v4788, %v4784
    %v4865 = vpack.c.b16 %v4793, %v4789
    %v4866 = vpack.c.b16 %v4794, %v4790
    %v4867 = vpack.c.b16 %v4795, %v4791
    %v4868 = vpack.c.b16 %v4796, %v4792
    %v4869 = vpack.c.b16 %v4801, %v4797
    %v4870 = vpack.c.b16 %v4802, %v4798
    %v4871 = vpack.c.b16 %v4803, %v4799
    %v4872 = vpack.c.b16 %v4804, %v4800
    %v4873 = vpack.c.b16 %v4809, %v4805
    %v4874 = vpack.c.b16 %v4810, %v4806
    %v4875 = vpack.c.b16 %v4811, %v4807
    %v4876 = vpack.c.b16 %v4812, %v4808
    %4941 = vmatpush.bf16.msra.mxu0 %v4841
    %4942 = vmatpush.bf16.msra.mxu0 %v4837
    %4943 = vmatpush.bf16.msra.mxu0 %v4833
    %4944 = vmatpush.bf16.msra.mxu0 %v4829
    %4945 = vmatpush.bf16.msra.mxu0 %v4825
    %4946 = vmatpush.bf16.msra.mxu0 %v4821
    %4947 = vmatpush.bf16.msra.mxu0 %v4817
    %4948 = vmatpush.bf16.msra.mxu0 %v4813
    %4949 = vmatmul.bf16.gmra.mxu0 %v3133
    %v4950 = vpop.f32.mrf.mxu0
    %v4951 = vadd.f32 %v1768, %v4950
    %v4952 = vpop.f32.mrf.mxu0
    %4953 = vdwg.mxu0
    %4954 = vmatpush.bf16.msra.mxu0 %v4873
    %4955 = vmatpush.bf16.msra.mxu0 %v4869
    %4956 = vmatpush.bf16.msra.mxu0 %v4865
    %4957 = vmatpush.bf16.msra.mxu0 %v4861
    %4958 = vmatpush.bf16.msra.mxu0 %v4857
    %4959 = vmatpush.bf16.msra.mxu0 %v4853
    %4960 = vmatpush.bf16.msra.mxu0 %v4849
    %4961 = vmatpush.bf16.msra.mxu0 %v4845
    %4962 = vmatmul.bf16.gmra.mxu0 %v3685
    %v4963 = vpop.f32.mrf.mxu0
    %v4964 = vadd.f32 %v4951, %v4963
    %v4965 = vpop.f32.mrf.mxu0
    %4966 = vdwg.mxu0
    %4967 = vmatpush.bf16.msra.mxu0 %v4842
    %4968 = vmatpush.bf16.msra.mxu0 %v4838
    %4969 = vmatpush.bf16.msra.mxu0 %v4834
    %4970 = vmatpush.bf16.msra.mxu0 %v4830
    %4971 = vmatpush.bf16.msra.mxu0 %v4826
    %4972 = vmatpush.bf16.msra.mxu0 %v4822
    %4973 = vmatpush.bf16.msra.mxu0 %v4818
    %4974 = vmatpush.bf16.msra.mxu0 %v4814
    %4975 = vmatmul.bf16.gmra.mxu0 %v3133
    %v4976 = vpop.f32.mrf.mxu0
    %v4977 = vadd.f32 %v1769, %v4976
    %v4978 = vpop.f32.mrf.mxu0
    %4979 = vdwg.mxu0
    %4980 = vmatpush.bf16.msra.mxu0 %v4874
    %4981 = vmatpush.bf16.msra.mxu0 %v4870
    %4982 = vmatpush.bf16.msra.mxu0 %v4866
    %4983 = vmatpush.bf16.msra.mxu0 %v4862
    %4984 = vmatpush.bf16.msra.mxu0 %v4858
    %4985 = vmatpush.bf16.msra.mxu0 %v4854
    %4986 = vmatpush.bf16.msra.mxu0 %v4850
    %4987 = vmatpush.bf16.msra.mxu0 %v4846
    %4988 = vmatmul.bf16.gmra.mxu0 %v3685
    %v4989 = vpop.f32.mrf.mxu0
    %v4990 = vadd.f32 %v4977, %v4989
    %v4991 = vpop.f32.mrf.mxu0
    %4992 = vdwg.mxu0
    %4993 = vmatpush.bf16.msra.mxu0 %v4843
    %4994 = vmatpush.bf16.msra.mxu0 %v4839
    %4995 = vmatpush.bf16.msra.mxu0 %v4835
    %4996 = vmatpush.bf16.msra.mxu0 %v4831
    %4997 = vmatpush.bf16.msra.mxu0 %v4827
    %4998 = vmatpush.bf16.msra.mxu0 %v4823
    %4999 = vmatpush.bf16.msra.mxu0 %v4819
    %5000 = vmatpush.bf16.msra.mxu0 %v4815
    %5001 = vmatmul.bf16.gmra.mxu0 %v3133
    %v5002 = vpop.f32.mrf.mxu0
    %v5003 = vadd.f32 %v1770, %v5002
    %v5004 = vpop.f32.mrf.mxu0
    %5005 = vdwg.mxu0
    %5006 = vmatpush.bf16.msra.mxu0 %v4875
    %5007 = vmatpush.bf16.msra.mxu0 %v4871
    %5008 = vmatpush.bf16.msra.mxu0 %v4867
    %5009 = vmatpush.bf16.msra.mxu0 %v4863
    %5010 = vmatpush.bf16.msra.mxu0 %v4859
    %5011 = vmatpush.bf16.msra.mxu0 %v4855
    %5012 = vmatpush.bf16.msra.mxu0 %v4851
    %5013 = vmatpush.bf16.msra.mxu0 %v4847
    %5014 = vmatmul.bf16.gmra.mxu0 %v3685
    %v5015 = vpop.f32.mrf.mxu0
    %v5016 = vadd.f32 %v5003, %v5015
    %v5017 = vpop.f32.mrf.mxu0
    %5018 = vdwg.mxu0
    %5019 = vmatpush.bf16.msra.mxu0 %v4844
    %5020 = vmatpush.bf16.msra.mxu0 %v4840
    %5021 = vmatpush.bf16.msra.mxu0 %v4836
    %5022 = vmatpush.bf16.msra.mxu0 %v4832
    %5023 = vmatpush.bf16.msra.mxu0 %v4828
    %5024 = vmatpush.bf16.msra.mxu0 %v4824
    %5025 = vmatpush.bf16.msra.mxu0 %v4820
    %5026 = vmatpush.bf16.msra.mxu0 %v4816
    %5027 = vmatmul.bf16.gmra.mxu0 %v3133
    %v5028 = vpop.f32.mrf.mxu0
    %v5029 = vadd.f32 %v1771, %v5028
    %v5030 = vpop.f32.mrf.mxu0
    %5031 = vdwg.mxu0
    %5032 = vmatpush.bf16.msra.mxu0 %v4876
    %5033 = vmatpush.bf16.msra.mxu0 %v4872
    %5034 = vmatpush.bf16.msra.mxu0 %v4868
    %5035 = vmatpush.bf16.msra.mxu0 %v4864
    %5036 = vmatpush.bf16.msra.mxu0 %v4860
    %5037 = vmatpush.bf16.msra.mxu0 %v4856
    %5038 = vmatpush.bf16.msra.mxu0 %v4852
    %5039 = vmatpush.bf16.msra.mxu0 %v4848
    %5040 = vmatmul.bf16.gmra.mxu0 %v3685
    %v5041 = vpop.f32.mrf.mxu0
    %v5042 = vadd.f32 %v5029, %v5041
    %v5043 = vpop.f32.mrf.mxu0
    %5044 = vdwg.mxu0
    %v5045 = vxor.u32 %v4964, 2147483648
    %v5046 = vxor.u32 %v4990, 2147483648
    %v5047 = vxor.u32 %v5016, 2147483648
    %v5048 = vmul.f32 %v5045, 1.442695
    %v5049 = vpow.pop %v5048
    %v5050 = vmul.f32 %v5046, 1.442695
    %v5051 = vpow.pop %v5050
    %v5052 = vmul.f32 %v5047, 1.442695
    %v5053 = vpow.pop %v5052
    %v5054 = vadd.f32 %v5049, 1.0
    %v5055 = vadd.f32 %v5051, 1.0
    %v5056 = vadd.f32 %v5053, 1.0
    %v5057 = vrcp.pop %v5054
    %v5058 = vmul.f32 %v5054, %v5057
    %v5059 = vsub.f32 1.0, %v5058
    %v5060 = vmul.f32 %v5057, %v5059
    %v5061 = vadd.f32 %v5057, %v5060
    %vm5062 = vweird.f32 %v5054
    %vm5063 = vweird.f32 %v5057
    %vm5064 = vmor %vm5062, %vm5063
    %v5065 = vsel %vm5064, %v5057, %v5061
    %v5066 = vand.u32 2147483647, %v5054
    %vm5067 = vcmp.eq.f32.partialorder %v5066, 8.507059e+37
    %v5068 = vand.u32 %v5054, 2147483648
    %v5069 = vor.u32 1.1754944e-38, %v5068
    %v5070 = vsel %vm5067, %v5069, %v5065
    %v5071 = vmul.f32 1.0, %v5070
    %v5072 = vrcp.pop %v5055
    %v5073 = vmul.f32 %v5055, %v5072
    %v5074 = vsub.f32 1.0, %v5073
    %v5075 = vmul.f32 %v5072, %v5074
    %v5076 = vadd.f32 %v5072, %v5075
    %vm5077 = vweird.f32 %v5055
    %vm5078 = vweird.f32 %v5072
    %vm5079 = vmor %vm5077, %vm5078
    %v5080 = vsel %vm5079, %v5072, %v5076
    %v5081 = vand.u32 2147483647, %v5055
    %vm5082 = vcmp.eq.f32.partialorder %v5081, 8.507059e+37
    %v5083 = vand.u32 %v5055, 2147483648
    %v5084 = vor.u32 1.1754944e-38, %v5083
    %v5085 = vsel %vm5082, %v5084, %v5080
    %v5086 = vmul.f32 1.0, %v5085
    %v5087 = vrcp.pop %v5056
    %v5088 = vmul.f32 %v5056, %v5087
    %v5089 = vsub.f32 1.0, %v5088
    %v5090 = vmul.f32 %v5087, %v5089
    %v5091 = vadd.f32 %v5087, %v5090
    %vm5092 = vweird.f32 %v5056
    %vm5093 = vweird.f32 %v5087
    %vm5094 = vmor %vm5092, %vm5093
    %v5095 = vsel %vm5094, %v5087, %v5091
    %v5096 = vand.u32 2147483647, %v5056
    %vm5097 = vcmp.eq.f32.partialorder %v5096, 8.507059e+37
    %v5098 = vand.u32 %v5056, 2147483648
    %v5099 = vor.u32 1.1754944e-38, %v5098
    %v5100 = vsel %vm5097, %v5099, %v5095
    %v5101 = vmul.f32 1.0, %v5100
    %v5102 = vtanh.pop %v5042
    %v5103 = vmul.f32 %v5086, %v3682
    %v5104 = vmul.f32 %v5071, %v5102
    %v5105 = vadd.f32 %v5103, %v5104
    %v5106 = vtanh.pop %v5105
    %v5107 = vmul.f32 %v5101, %v5106
    %v5108 = vpack.c.bf16 %v5107, %v5107
    %s5109 = scalar_lea.vmem [#allocation3], 8
    %5110 = vst [vmem:[%s5109] sm:$0xf] %v5108
    %s5111 = scalar_lea.vmem [#allocation2], 160
    %v5112 = vld [vmem:[%s5111] sm:$0xff]
    %v5113 = vld [vmem:[%s5111 + $0x8] sm:$0xff]
    %v5114 = vld [vmem:[%s5111 + $0x10] sm:$0xff]
    %v5115 = vld [vmem:[%s5111 + $0x18] sm:$0xff]
    %v5116 = vld [vmem:[#allocation12] sm:$0xff]
    %v5117 = vld [vmem:[#allocation12 + $0x8] sm:$0xff]
    %v5118 = vld [vmem:[#allocation12 + $0x10] sm:$0xff]
    %v5119 = vld [vmem:[#allocation12 + $0x18] sm:$0xff]
    %v5120 = vld [vmem:[#allocation12 + $0x20] sm:$0xff]
    %v5121 = vld [vmem:[#allocation12 + $0x28] sm:$0xff]
    %v5122 = vld [vmem:[#allocation12 + $0x30] sm:$0xff]
    %v5123 = vld [vmem:[#allocation12 + $0x38] sm:$0xff]
    %v5124 = vld [vmem:[#allocation12 + $0x40] sm:$0xff]
    %v5125 = vld [vmem:[#allocation12 + $0x48] sm:$0xff]
    %v5126 = vld [vmem:[#allocation12 + $0x50] sm:$0xff]
    %v5127 = vld [vmem:[#allocation12 + $0x58] sm:$0xff]
    %v5128 = vld [vmem:[#allocation12 + $0x60] sm:$0xff]
    %v5129 = vld [vmem:[#allocation12 + $0x68] sm:$0xff]
    %v5130 = vld [vmem:[#allocation12 + $0x70] sm:$0xff]
    %v5131 = vld [vmem:[#allocation12 + $0x78] sm:$0xff]
    %v5132 = vld [vmem:[#allocation12 + $0x80] sm:$0xff]
    %v5133 = vld [vmem:[#allocation12 + $0x88] sm:$0xff]
    %v5134 = vld [vmem:[#allocation12 + $0x90] sm:$0xff]
    %v5135 = vld [vmem:[#allocation12 + $0x98] sm:$0xff]
    %v5136 = vld [vmem:[#allocation12 + $0xa0] sm:$0xff]
    %v5137 = vld [vmem:[#allocation12 + $0xa8] sm:$0xff]
    %v5138 = vld [vmem:[#allocation12 + $0xb0] sm:$0xff]
    %v5139 = vld [vmem:[#allocation12 + $0xb8] sm:$0xff]
    %v5140 = vld [vmem:[#allocation12 + $0xc0] sm:$0xff]
    %v5141 = vld [vmem:[#allocation12 + $0xc8] sm:$0xff]
    %v5142 = vld [vmem:[#allocation12 + $0xd0] sm:$0xff]
    %v5143 = vld [vmem:[#allocation12 + $0xd8] sm:$0xff]
    %v5144 = vld [vmem:[#allocation12 + $0xe0] sm:$0xff]
    %v5145 = vld [vmem:[#allocation12 + $0xe8] sm:$0xff]
    %v5146 = vld [vmem:[#allocation12 + $0xf0] sm:$0xff]
    %v5147 = vld [vmem:[#allocation12 + $0xf8] sm:$0xff]
    %v5180 = vunpack.c.l.b16 %v5116
    %v5181 = vunpack.c.h.b16 %v5116
    %v5182 = vunpack.c.l.b16 %v5117
    %v5183 = vunpack.c.h.b16 %v5117
    %v5184 = vunpack.c.l.b16 %v5118
    %v5185 = vunpack.c.h.b16 %v5118
    %v5186 = vunpack.c.l.b16 %v5119
    %v5187 = vunpack.c.h.b16 %v5119
    %v5188 = vunpack.c.l.b16 %v5120
    %v5189 = vunpack.c.h.b16 %v5120
    %v5190 = vunpack.c.l.b16 %v5121
    %v5191 = vunpack.c.h.b16 %v5121
    %v5192 = vunpack.c.l.b16 %v5122
    %v5193 = vunpack.c.h.b16 %v5122
    %v5194 = vunpack.c.l.b16 %v5123
    %v5195 = vunpack.c.h.b16 %v5123
    %v5196 = vunpack.c.l.b16 %v5124
    %v5197 = vunpack.c.h.b16 %v5124
    %v5198 = vunpack.c.l.b16 %v5125
    %v5199 = vunpack.c.h.b16 %v5125
    %v5200 = vunpack.c.l.b16 %v5126
    %v5201 = vunpack.c.h.b16 %v5126
    %v5202 = vunpack.c.l.b16 %v5127
    %v5203 = vunpack.c.h.b16 %v5127
    %v5204 = vunpack.c.l.b16 %v5128
    %v5205 = vunpack.c.h.b16 %v5128
    %v5206 = vunpack.c.l.b16 %v5129
    %v5207 = vunpack.c.h.b16 %v5129
    %v5208 = vunpack.c.l.b16 %v5130
    %v5209 = vunpack.c.h.b16 %v5130
    %v5210 = vunpack.c.l.b16 %v5131
    %v5211 = vunpack.c.h.b16 %v5131
    %v5212 = vunpack.c.l.b16 %v5132
    %v5213 = vunpack.c.h.b16 %v5132
    %v5214 = vunpack.c.l.b16 %v5133
    %v5215 = vunpack.c.h.b16 %v5133
    %v5216 = vunpack.c.l.b16 %v5134
    %v5217 = vunpack.c.h.b16 %v5134
    %v5218 = vunpack.c.l.b16 %v5135
    %v5219 = vunpack.c.h.b16 %v5135
    %v5220 = vunpack.c.l.b16 %v5136
    %v5221 = vunpack.c.h.b16 %v5136
    %v5222 = vunpack.c.l.b16 %v5137
    %v5223 = vunpack.c.h.b16 %v5137
    %v5224 = vunpack.c.l.b16 %v5138
    %v5225 = vunpack.c.h.b16 %v5138
    %v5226 = vunpack.c.l.b16 %v5139
    %v5227 = vunpack.c.h.b16 %v5139
    %v5228 = vunpack.c.l.b16 %v5140
    %v5229 = vunpack.c.h.b16 %v5140
    %v5230 = vunpack.c.l.b16 %v5141
    %v5231 = vunpack.c.h.b16 %v5141
    %v5232 = vunpack.c.l.b16 %v5142
    %v5233 = vunpack.c.h.b16 %v5142
    %v5234 = vunpack.c.l.b16 %v5143
    %v5235 = vunpack.c.h.b16 %v5143
    %v5236 = vunpack.c.l.b16 %v5144
    %v5237 = vunpack.c.h.b16 %v5144
    %v5238 = vunpack.c.l.b16 %v5145
    %v5239 = vunpack.c.h.b16 %v5145
    %v5240 = vunpack.c.l.b16 %v5146
    %v5241 = vunpack.c.h.b16 %v5146
    %v5242 = vunpack.c.l.b16 %v5147
    %v5243 = vunpack.c.h.b16 %v5147
    %v5244 = vpack.c.b16 %v5184, %v5180
    %v5245 = vpack.c.b16 %v5185, %v5181
    %v5246 = vpack.c.b16 %v5186, %v5182
    %v5247 = vpack.c.b16 %v5187, %v5183
    %v5248 = vpack.c.b16 %v5192, %v5188
    %v5249 = vpack.c.b16 %v5193, %v5189
    %v5250 = vpack.c.b16 %v5194, %v5190
    %v5251 = vpack.c.b16 %v5195, %v5191
    %v5252 = vpack.c.b16 %v5200, %v5196
    %v5253 = vpack.c.b16 %v5201, %v5197
    %v5254 = vpack.c.b16 %v5202, %v5198
    %v5255 = vpack.c.b16 %v5203, %v5199
    %v5256 = vpack.c.b16 %v5208, %v5204
    %v5257 = vpack.c.b16 %v5209, %v5205
    %v5258 = vpack.c.b16 %v5210, %v5206
    %v5259 = vpack.c.b16 %v5211, %v5207
    %v5260 = vpack.c.b16 %v5216, %v5212
    %v5261 = vpack.c.b16 %v5217, %v5213
    %v5262 = vpack.c.b16 %v5218, %v5214
    %v5263 = vpack.c.b16 %v5219, %v5215
    %v5264 = vpack.c.b16 %v5224, %v5220
    %v5265 = vpack.c.b16 %v5225, %v5221
    %v5266 = vpack.c.b16 %v5226, %v5222
    %v5267 = vpack.c.b16 %v5227, %v5223
    %v5268 = vpack.c.b16 %v5232, %v5228
    %v5269 = vpack.c.b16 %v5233, %v5229
    %v5270 = vpack.c.b16 %v5234, %v5230
    %v5271 = vpack.c.b16 %v5235, %v5231
    %v5272 = vpack.c.b16 %v5240, %v5236
    %v5273 = vpack.c.b16 %v5241, %v5237
    %v5274 = vpack.c.b16 %v5242, %v5238
    %v5275 = vpack.c.b16 %v5243, %v5239
    %5308 = vmatpush.bf16.msra.mxu0 %v5272
    %5309 = vmatpush.bf16.msra.mxu0 %v5268
    %5310 = vmatpush.bf16.msra.mxu0 %v5264
    %5311 = vmatpush.bf16.msra.mxu0 %v5260
    %5312 = vmatpush.bf16.msra.mxu0 %v5256
    %5313 = vmatpush.bf16.msra.mxu0 %v5252
    %5314 = vmatpush.bf16.msra.mxu0 %v5248
    %5315 = vmatpush.bf16.msra.mxu0 %v5244
    %5316 = vmatmul.bf16.gmra.mxu0 %v4004
    %v5317 = vpop.f32.mrf.mxu0
    %v5318 = vadd.f32 0.0, %v5317
    %v5319 = vpop.f32.mrf.mxu0
    %5320 = vdwg.mxu0
    %5321 = vmatpush.bf16.msra.mxu0 %v5273
    %5322 = vmatpush.bf16.msra.mxu0 %v5269
    %5323 = vmatpush.bf16.msra.mxu0 %v5265
    %5324 = vmatpush.bf16.msra.mxu0 %v5261
    %5325 = vmatpush.bf16.msra.mxu0 %v5257
    %5326 = vmatpush.bf16.msra.mxu0 %v5253
    %5327 = vmatpush.bf16.msra.mxu0 %v5249
    %5328 = vmatpush.bf16.msra.mxu0 %v5245
    %5329 = vmatmul.bf16.gmra.mxu0 %v4004
    %v5330 = vpop.f32.mrf.mxu0
    %v5331 = vadd.f32 0.0, %v5330
    %v5332 = vpop.f32.mrf.mxu0
    %5333 = vdwg.mxu0
    %5334 = vmatpush.bf16.msra.mxu0 %v5274
    %5335 = vmatpush.bf16.msra.mxu0 %v5270
    %5336 = vmatpush.bf16.msra.mxu0 %v5266
    %5337 = vmatpush.bf16.msra.mxu0 %v5262
    %5338 = vmatpush.bf16.msra.mxu0 %v5258
    %5339 = vmatpush.bf16.msra.mxu0 %v5254
    %5340 = vmatpush.bf16.msra.mxu0 %v5250
    %5341 = vmatpush.bf16.msra.mxu0 %v5246
    %5342 = vmatmul.bf16.gmra.mxu0 %v4004
    %v5343 = vpop.f32.mrf.mxu0
    %v5344 = vadd.f32 0.0, %v5343
    %v5345 = vpop.f32.mrf.mxu0
    %5346 = vdwg.mxu0
    %5347 = vmatpush.bf16.msra.mxu0 %v5275
    %5348 = vmatpush.bf16.msra.mxu0 %v5271
    %5349 = vmatpush.bf16.msra.mxu0 %v5267
    %5350 = vmatpush.bf16.msra.mxu0 %v5263
    %5351 = vmatpush.bf16.msra.mxu0 %v5259
    %5352 = vmatpush.bf16.msra.mxu0 %v5255
    %5353 = vmatpush.bf16.msra.mxu0 %v5251
    %5354 = vmatpush.bf16.msra.mxu0 %v5247
    %5355 = vmatmul.bf16.gmra.mxu0 %v4004
    %v5356 = vpop.f32.mrf.mxu0
    %v5357 = vadd.f32 0.0, %v5356
    %v5358 = vpop.f32.mrf.mxu0
    %5359 = vdwg.mxu0
    %v5360 = vadd.f32 %v5112, %v5318
    %v5361 = vadd.f32 %v5113, %v5331
    %v5362 = vadd.f32 %v5114, %v5344
    %v5363 = vadd.f32 %v5115, %v5357
    %v5364 = vxor.u32 %v5360, 2147483648
    %v5365 = vxor.u32 %v5361, 2147483648
    %v5366 = vxor.u32 %v5362, 2147483648
    %v5367 = vmul.f32 %v5364, 1.442695
    %v5368 = vpow.pop %v5367
    %v5369 = vmul.f32 %v5365, 1.442695
    %v5370 = vpow.pop %v5369
    %v5371 = vmul.f32 %v5366, 1.442695
    %v5372 = vpow.pop %v5371
    %v5373 = vadd.f32 %v5368, 1.0
    %v5374 = vadd.f32 %v5370, 1.0
    %v5375 = vadd.f32 %v5372, 1.0
    %v5376 = vrcp.pop %v5373
    %v5377 = vmul.f32 %v5373, %v5376
    %v5378 = vsub.f32 1.0, %v5377
    %v5379 = vmul.f32 %v5376, %v5378
    %v5380 = vadd.f32 %v5376, %v5379
    %vm5381 = vweird.f32 %v5373
    %vm5382 = vweird.f32 %v5376
    %vm5383 = vmor %vm5381, %vm5382
    %v5384 = vsel %vm5383, %v5376, %v5380
    %v5385 = vand.u32 2147483647, %v5373
    %vm5386 = vcmp.eq.f32.partialorder %v5385, 8.507059e+37
    %v5387 = vand.u32 %v5373, 2147483648
    %v5388 = vor.u32 1.1754944e-38, %v5387
    %v5389 = vsel %vm5386, %v5388, %v5384
    %v5390 = vmul.f32 1.0, %v5389
    %v5391 = vrcp.pop %v5374
    %v5392 = vmul.f32 %v5374, %v5391
    %v5393 = vsub.f32 1.0, %v5392
    %v5394 = vmul.f32 %v5391, %v5393
    %v5395 = vadd.f32 %v5391, %v5394
    %vm5396 = vweird.f32 %v5374
    %vm5397 = vweird.f32 %v5391
    %vm5398 = vmor %vm5396, %vm5397
    %v5399 = vsel %vm5398, %v5391, %v5395
    %v5400 = vand.u32 2147483647, %v5374
    %vm5401 = vcmp.eq.f32.partialorder %v5400, 8.507059e+37
    %v5402 = vand.u32 %v5374, 2147483648
    %v5403 = vor.u32 1.1754944e-38, %v5402
    %v5404 = vsel %vm5401, %v5403, %v5399
    %v5405 = vmul.f32 1.0, %v5404
    %v5406 = vrcp.pop %v5375
    %v5407 = vmul.f32 %v5375, %v5406
    %v5408 = vsub.f32 1.0, %v5407
    %v5409 = vmul.f32 %v5406, %v5408
    %v5410 = vadd.f32 %v5406, %v5409
    %vm5411 = vweird.f32 %v5375
    %vm5412 = vweird.f32 %v5406
    %vm5413 = vmor %vm5411, %vm5412
    %v5414 = vsel %vm5413, %v5406, %v5410
    %v5415 = vand.u32 2147483647, %v5375
    %vm5416 = vcmp.eq.f32.partialorder %v5415, 8.507059e+37
    %v5417 = vand.u32 %v5375, 2147483648
    %v5418 = vor.u32 1.1754944e-38, %v5417
    %v5419 = vsel %vm5416, %v5418, %v5414
    %v5420 = vmul.f32 1.0, %v5419
    %v5421 = vtanh.pop %v5363
    %v5422 = vmul.f32 %v5405, %v4001
    %v5423 = vmul.f32 %v5390, %v5421
    %v5424 = vadd.f32 %v5422, %v5423
    %v5425 = vtanh.pop %v5424
    %v5426 = vmul.f32 %v5420, %v5425
    %v5427 = vpack.c.bf16 %v5426, %v5426
    %v5428 = vld [vmem:[#allocation13] sm:$0xff]
    %v5429 = vld [vmem:[#allocation13 + $0x8] sm:$0xff]
    %v5430 = vld [vmem:[#allocation13 + $0x10] sm:$0xff]
    %v5431 = vld [vmem:[#allocation13 + $0x18] sm:$0xff]
    %v5432 = vld [vmem:[#allocation13 + $0x20] sm:$0xff]
    %v5433 = vld [vmem:[#allocation13 + $0x28] sm:$0xff]
    %v5434 = vld [vmem:[#allocation13 + $0x30] sm:$0xff]
    %v5435 = vld [vmem:[#allocation13 + $0x38] sm:$0xff]
    %v5436 = vld [vmem:[#allocation13 + $0x40] sm:$0xff]
    %v5437 = vld [vmem:[#allocation13 + $0x48] sm:$0xff]
    %v5438 = vld [vmem:[#allocation13 + $0x50] sm:$0xff]
    %v5439 = vld [vmem:[#allocation13 + $0x58] sm:$0xff]
    %v5440 = vld [vmem:[#allocation13 + $0x60] sm:$0xff]
    %v5441 = vld [vmem:[#allocation13 + $0x68] sm:$0xff]
    %v5442 = vld [vmem:[#allocation13 + $0x70] sm:$0xff]
    %v5443 = vld [vmem:[#allocation13 + $0x78] sm:$0xff]
    %v5444 = vld [vmem:[#allocation13 + $0x80] sm:$0xff]
    %v5445 = vld [vmem:[#allocation13 + $0x88] sm:$0xff]
    %v5446 = vld [vmem:[#allocation13 + $0x90] sm:$0xff]
    %v5447 = vld [vmem:[#allocation13 + $0x98] sm:$0xff]
    %v5448 = vld [vmem:[#allocation13 + $0xa0] sm:$0xff]
    %v5449 = vld [vmem:[#allocation13 + $0xa8] sm:$0xff]
    %v5450 = vld [vmem:[#allocation13 + $0xb0] sm:$0xff]
    %v5451 = vld [vmem:[#allocation13 + $0xb8] sm:$0xff]
    %v5452 = vld [vmem:[#allocation13 + $0xc0] sm:$0xff]
    %v5453 = vld [vmem:[#allocation13 + $0xc8] sm:$0xff]
    %v5454 = vld [vmem:[#allocation13 + $0xd0] sm:$0xff]
    %v5455 = vld [vmem:[#allocation13 + $0xd8] sm:$0xff]
    %v5456 = vld [vmem:[#allocation13 + $0xe0] sm:$0xff]
    %v5457 = vld [vmem:[#allocation13 + $0xe8] sm:$0xff]
    %v5458 = vld [vmem:[#allocation13 + $0xf0] sm:$0xff]
    %v5459 = vld [vmem:[#allocation13 + $0xf8] sm:$0xff]
    %v5460 = vld [vmem:[#allocation13 + $0x100] sm:$0xff]
    %v5461 = vld [vmem:[#allocation13 + $0x108] sm:$0xff]
    %v5462 = vld [vmem:[#allocation13 + $0x110] sm:$0xff]
    %v5463 = vld [vmem:[#allocation13 + $0x118] sm:$0xff]
    %v5464 = vld [vmem:[#allocation13 + $0x120] sm:$0xff]
    %v5465 = vld [vmem:[#allocation13 + $0x128] sm:$0xff]
    %v5466 = vld [vmem:[#allocation13 + $0x130] sm:$0xff]
    %v5467 = vld [vmem:[#allocation13 + $0x138] sm:$0xff]
    %v5468 = vld [vmem:[#allocation13 + $0x140] sm:$0xff]
    %v5469 = vld [vmem:[#allocation13 + $0x148] sm:$0xff]
    %v5470 = vld [vmem:[#allocation13 + $0x150] sm:$0xff]
    %v5471 = vld [vmem:[#allocation13 + $0x158] sm:$0xff]
    %v5472 = vld [vmem:[#allocation13 + $0x160] sm:$0xff]
    %v5473 = vld [vmem:[#allocation13 + $0x168] sm:$0xff]
    %v5474 = vld [vmem:[#allocation13 + $0x170] sm:$0xff]
    %v5475 = vld [vmem:[#allocation13 + $0x178] sm:$0xff]
    %v5476 = vld [vmem:[#allocation13 + $0x180] sm:$0xff]
    %v5477 = vld [vmem:[#allocation13 + $0x188] sm:$0xff]
    %v5478 = vld [vmem:[#allocation13 + $0x190] sm:$0xff]
    %v5479 = vld [vmem:[#allocation13 + $0x198] sm:$0xff]
    %v5480 = vld [vmem:[#allocation13 + $0x1a0] sm:$0xff]
    %v5481 = vld [vmem:[#allocation13 + $0x1a8] sm:$0xff]
    %v5482 = vld [vmem:[#allocation13 + $0x1b0] sm:$0xff]
    %v5483 = vld [vmem:[#allocation13 + $0x1b8] sm:$0xff]
    %v5484 = vld [vmem:[#allocation13 + $0x1c0] sm:$0xff]
    %v5485 = vld [vmem:[#allocation13 + $0x1c8] sm:$0xff]
    %v5486 = vld [vmem:[#allocation13 + $0x1d0] sm:$0xff]
    %v5487 = vld [vmem:[#allocation13 + $0x1d8] sm:$0xff]
    %v5488 = vld [vmem:[#allocation13 + $0x1e0] sm:$0xff]
    %v5489 = vld [vmem:[#allocation13 + $0x1e8] sm:$0xff]
    %v5490 = vld [vmem:[#allocation13 + $0x1f0] sm:$0xff]
    %v5491 = vld [vmem:[#allocation13 + $0x1f8] sm:$0xff]
    %v5556 = vunpack.c.l.b16 %v5428
    %v5557 = vunpack.c.h.b16 %v5428
    %v5558 = vunpack.c.l.b16 %v5429
    %v5559 = vunpack.c.h.b16 %v5429
    %v5560 = vunpack.c.l.b16 %v5430
    %v5561 = vunpack.c.h.b16 %v5430
    %v5562 = vunpack.c.l.b16 %v5431
    %v5563 = vunpack.c.h.b16 %v5431
    %v5564 = vunpack.c.l.b16 %v5432
    %v5565 = vunpack.c.h.b16 %v5432
    %v5566 = vunpack.c.l.b16 %v5433
    %v5567 = vunpack.c.h.b16 %v5433
    %v5568 = vunpack.c.l.b16 %v5434
    %v5569 = vunpack.c.h.b16 %v5434
    %v5570 = vunpack.c.l.b16 %v5435
    %v5571 = vunpack.c.h.b16 %v5435
    %v5572 = vunpack.c.l.b16 %v5436
    %v5573 = vunpack.c.h.b16 %v5436
    %v5574 = vunpack.c.l.b16 %v5437
    %v5575 = vunpack.c.h.b16 %v5437
    %v5576 = vunpack.c.l.b16 %v5438
    %v5577 = vunpack.c.h.b16 %v5438
    %v5578 = vunpack.c.l.b16 %v5439
    %v5579 = vunpack.c.h.b16 %v5439
    %v5580 = vunpack.c.l.b16 %v5440
    %v5581 = vunpack.c.h.b16 %v5440
    %v5582 = vunpack.c.l.b16 %v5441
    %v5583 = vunpack.c.h.b16 %v5441
    %v5584 = vunpack.c.l.b16 %v5442
    %v5585 = vunpack.c.h.b16 %v5442
    %v5586 = vunpack.c.l.b16 %v5443
    %v5587 = vunpack.c.h.b16 %v5443
    %v5588 = vunpack.c.l.b16 %v5444
    %v5589 = vunpack.c.h.b16 %v5444
    %v5590 = vunpack.c.l.b16 %v5445
    %v5591 = vunpack.c.h.b16 %v5445
    %v5592 = vunpack.c.l.b16 %v5446
    %v5593 = vunpack.c.h.b16 %v5446
    %v5594 = vunpack.c.l.b16 %v5447
    %v5595 = vunpack.c.h.b16 %v5447
    %v5596 = vunpack.c.l.b16 %v5448
    %v5597 = vunpack.c.h.b16 %v5448
    %v5598 = vunpack.c.l.b16 %v5449
    %v5599 = vunpack.c.h.b16 %v5449
    %v5600 = vunpack.c.l.b16 %v5450
    %v5601 = vunpack.c.h.b16 %v5450
    %v5602 = vunpack.c.l.b16 %v5451
    %v5603 = vunpack.c.h.b16 %v5451
    %v5604 = vunpack.c.l.b16 %v5452
    %v5605 = vunpack.c.h.b16 %v5452
    %v5606 = vunpack.c.l.b16 %v5453
    %v5607 = vunpack.c.h.b16 %v5453
    %v5608 = vunpack.c.l.b16 %v5454
    %v5609 = vunpack.c.h.b16 %v5454
    %v5610 = vunpack.c.l.b16 %v5455
    %v5611 = vunpack.c.h.b16 %v5455
    %v5612 = vunpack.c.l.b16 %v5456
    %v5613 = vunpack.c.h.b16 %v5456
    %v5614 = vunpack.c.l.b16 %v5457
    %v5615 = vunpack.c.h.b16 %v5457
    %v5616 = vunpack.c.l.b16 %v5458
    %v5617 = vunpack.c.h.b16 %v5458
    %v5618 = vunpack.c.l.b16 %v5459
    %v5619 = vunpack.c.h.b16 %v5459
    %v5620 = vunpack.c.l.b16 %v5460
    %v5621 = vunpack.c.h.b16 %v5460
    %v5622 = vunpack.c.l.b16 %v5461
    %v5623 = vunpack.c.h.b16 %v5461
    %v5624 = vunpack.c.l.b16 %v5462
    %v5625 = vunpack.c.h.b16 %v5462
    %v5626 = vunpack.c.l.b16 %v5463
    %v5627 = vunpack.c.h.b16 %v5463
    %v5628 = vunpack.c.l.b16 %v5464
    %v5629 = vunpack.c.h.b16 %v5464
    %v5630 = vunpack.c.l.b16 %v5465
    %v5631 = vunpack.c.h.b16 %v5465
    %v5632 = vunpack.c.l.b16 %v5466
    %v5633 = vunpack.c.h.b16 %v5466
    %v5634 = vunpack.c.l.b16 %v5467
    %v5635 = vunpack.c.h.b16 %v5467
    %v5636 = vunpack.c.l.b16 %v5468
    %v5637 = vunpack.c.h.b16 %v5468
    %v5638 = vunpack.c.l.b16 %v5469
    %v5639 = vunpack.c.h.b16 %v5469
    %v5640 = vunpack.c.l.b16 %v5470
    %v5641 = vunpack.c.h.b16 %v5470
    %v5642 = vunpack.c.l.b16 %v5471
    %v5643 = vunpack.c.h.b16 %v5471
    %v5644 = vunpack.c.l.b16 %v5472
    %v5645 = vunpack.c.h.b16 %v5472
    %v5646 = vunpack.c.l.b16 %v5473
    %v5647 = vunpack.c.h.b16 %v5473
    %v5648 = vunpack.c.l.b16 %v5474
    %v5649 = vunpack.c.h.b16 %v5474
    %v5650 = vunpack.c.l.b16 %v5475
    %v5651 = vunpack.c.h.b16 %v5475
    %v5652 = vunpack.c.l.b16 %v5476
    %v5653 = vunpack.c.h.b16 %v5476
    %v5654 = vunpack.c.l.b16 %v5477
    %v5655 = vunpack.c.h.b16 %v5477
    %v5656 = vunpack.c.l.b16 %v5478
    %v5657 = vunpack.c.h.b16 %v5478
    %v5658 = vunpack.c.l.b16 %v5479
    %v5659 = vunpack.c.h.b16 %v5479
    %v5660 = vunpack.c.l.b16 %v5480
    %v5661 = vunpack.c.h.b16 %v5480
    %v5662 = vunpack.c.l.b16 %v5481
    %v5663 = vunpack.c.h.b16 %v5481
    %v5664 = vunpack.c.l.b16 %v5482
    %v5665 = vunpack.c.h.b16 %v5482
    %v5666 = vunpack.c.l.b16 %v5483
    %v5667 = vunpack.c.h.b16 %v5483
    %v5668 = vunpack.c.l.b16 %v5484
    %v5669 = vunpack.c.h.b16 %v5484
    %v5670 = vunpack.c.l.b16 %v5485
    %v5671 = vunpack.c.h.b16 %v5485
    %v5672 = vunpack.c.l.b16 %v5486
    %v5673 = vunpack.c.h.b16 %v5486
    %v5674 = vunpack.c.l.b16 %v5487
    %v5675 = vunpack.c.h.b16 %v5487
    %v5676 = vunpack.c.l.b16 %v5488
    %v5677 = vunpack.c.h.b16 %v5488
    %v5678 = vunpack.c.l.b16 %v5489
    %v5679 = vunpack.c.h.b16 %v5489
    %v5680 = vunpack.c.l.b16 %v5490
    %v5681 = vunpack.c.h.b16 %v5490
    %v5682 = vunpack.c.l.b16 %v5491
    %v5683 = vunpack.c.h.b16 %v5491
    %v5684 = vpack.c.b16 %v5560, %v5556
    %v5685 = vpack.c.b16 %v5561, %v5557
    %v5686 = vpack.c.b16 %v5562, %v5558
    %v5687 = vpack.c.b16 %v5563, %v5559
    %v5688 = vpack.c.b16 %v5568, %v5564
    %v5689 = vpack.c.b16 %v5569, %v5565
    %v5690 = vpack.c.b16 %v5570, %v5566
    %v5691 = vpack.c.b16 %v5571, %v5567
    %v5692 = vpack.c.b16 %v5576, %v5572
    %v5693 = vpack.c.b16 %v5577, %v5573
    %v5694 = vpack.c.b16 %v5578, %v5574
    %v5695 = vpack.c.b16 %v5579, %v5575
    %v5696 = vpack.c.b16 %v5584, %v5580
    %v5697 = vpack.c.b16 %v5585, %v5581
    %v5698 = vpack.c.b16 %v5586, %v5582
    %v5699 = vpack.c.b16 %v5587, %v5583
    %v5700 = vpack.c.b16 %v5592, %v5588
    %v5701 = vpack.c.b16 %v5593, %v5589
    %v5702 = vpack.c.b16 %v5594, %v5590
    %v5703 = vpack.c.b16 %v5595, %v5591
    %v5704 = vpack.c.b16 %v5600, %v5596
    %v5705 = vpack.c.b16 %v5601, %v5597
    %v5706 = vpack.c.b16 %v5602, %v5598
    %v5707 = vpack.c.b16 %v5603, %v5599
    %v5708 = vpack.c.b16 %v5608, %v5604
    %v5709 = vpack.c.b16 %v5609, %v5605
    %v5710 = vpack.c.b16 %v5610, %v5606
    %v5711 = vpack.c.b16 %v5611, %v5607
    %v5712 = vpack.c.b16 %v5616, %v5612
    %v5713 = vpack.c.b16 %v5617, %v5613
    %v5714 = vpack.c.b16 %v5618, %v5614
    %v5715 = vpack.c.b16 %v5619, %v5615
    %v5716 = vpack.c.b16 %v5624, %v5620
    %v5717 = vpack.c.b16 %v5625, %v5621
    %v5718 = vpack.c.b16 %v5626, %v5622
    %v5719 = vpack.c.b16 %v5627, %v5623
    %v5720 = vpack.c.b16 %v5632, %v5628
    %v5721 = vpack.c.b16 %v5633, %v5629
    %v5722 = vpack.c.b16 %v5634, %v5630
    %v5723 = vpack.c.b16 %v5635, %v5631
    %v5724 = vpack.c.b16 %v5640, %v5636
    %v5725 = vpack.c.b16 %v5641, %v5637
    %v5726 = vpack.c.b16 %v5642, %v5638
    %v5727 = vpack.c.b16 %v5643, %v5639
    %v5728 = vpack.c.b16 %v5648, %v5644
    %v5729 = vpack.c.b16 %v5649, %v5645
    %v5730 = vpack.c.b16 %v5650, %v5646
    %v5731 = vpack.c.b16 %v5651, %v5647
    %v5732 = vpack.c.b16 %v5656, %v5652
    %v5733 = vpack.c.b16 %v5657, %v5653
    %v5734 = vpack.c.b16 %v5658, %v5654
    %v5735 = vpack.c.b16 %v5659, %v5655
    %v5736 = vpack.c.b16 %v5664, %v5660
    %v5737 = vpack.c.b16 %v5665, %v5661
    %v5738 = vpack.c.b16 %v5666, %v5662
    %v5739 = vpack.c.b16 %v5667, %v5663
    %v5740 = vpack.c.b16 %v5672, %v5668
    %v5741 = vpack.c.b16 %v5673, %v5669
    %v5742 = vpack.c.b16 %v5674, %v5670
    %v5743 = vpack.c.b16 %v5675, %v5671
    %v5744 = vpack.c.b16 %v5680, %v5676
    %v5745 = vpack.c.b16 %v5681, %v5677
    %v5746 = vpack.c.b16 %v5682, %v5678
    %v5747 = vpack.c.b16 %v5683, %v5679
    %5812 = vmatpush.bf16.msra.mxu0 %v5712
    %5813 = vmatpush.bf16.msra.mxu0 %v5708
    %5814 = vmatpush.bf16.msra.mxu0 %v5704
    %5815 = vmatpush.bf16.msra.mxu0 %v5700
    %5816 = vmatpush.bf16.msra.mxu0 %v5696
    %5817 = vmatpush.bf16.msra.mxu0 %v5692
    %5818 = vmatpush.bf16.msra.mxu0 %v5688
    %5819 = vmatpush.bf16.msra.mxu0 %v5684
    %5820 = vmatmul.bf16.gmra.mxu0 %v4004
    %v5821 = vpop.f32.mrf.mxu0
    %v5822 = vadd.f32 %v913, %v5821
    %v5823 = vpop.f32.mrf.mxu0
    %5824 = vdwg.mxu0
    %5825 = vmatpush.bf16.msra.mxu0 %v5744
    %5826 = vmatpush.bf16.msra.mxu0 %v5740
    %5827 = vmatpush.bf16.msra.mxu0 %v5736
    %5828 = vmatpush.bf16.msra.mxu0 %v5732
    %5829 = vmatpush.bf16.msra.mxu0 %v5728
    %5830 = vmatpush.bf16.msra.mxu0 %v5724
    %5831 = vmatpush.bf16.msra.mxu0 %v5720
    %5832 = vmatpush.bf16.msra.mxu0 %v5716
    %5833 = vmatmul.bf16.gmra.mxu0 %v4556
    %v5834 = vpop.f32.mrf.mxu0
    %v5835 = vadd.f32 %v5822, %v5834
    %v5836 = vpop.f32.mrf.mxu0
    %5837 = vdwg.mxu0
    %5838 = vmatpush.bf16.msra.mxu0 %v5713
    %5839 = vmatpush.bf16.msra.mxu0 %v5709
    %5840 = vmatpush.bf16.msra.mxu0 %v5705
    %5841 = vmatpush.bf16.msra.mxu0 %v5701
    %5842 = vmatpush.bf16.msra.mxu0 %v5697
    %5843 = vmatpush.bf16.msra.mxu0 %v5693
    %5844 = vmatpush.bf16.msra.mxu0 %v5689
    %5845 = vmatpush.bf16.msra.mxu0 %v5685
    %5846 = vmatmul.bf16.gmra.mxu0 %v4004
    %v5847 = vpop.f32.mrf.mxu0
    %v5848 = vadd.f32 %v914, %v5847
    %v5849 = vpop.f32.mrf.mxu0
    %5850 = vdwg.mxu0
    %5851 = vmatpush.bf16.msra.mxu0 %v5745
    %5852 = vmatpush.bf16.msra.mxu0 %v5741
    %5853 = vmatpush.bf16.msra.mxu0 %v5737
    %5854 = vmatpush.bf16.msra.mxu0 %v5733
    %5855 = vmatpush.bf16.msra.mxu0 %v5729
    %5856 = vmatpush.bf16.msra.mxu0 %v5725
    %5857 = vmatpush.bf16.msra.mxu0 %v5721
    %5858 = vmatpush.bf16.msra.mxu0 %v5717
    %5859 = vmatmul.bf16.gmra.mxu0 %v4556
    %v5860 = vpop.f32.mrf.mxu0
    %v5861 = vadd.f32 %v5848, %v5860
    %v5862 = vpop.f32.mrf.mxu0
    %5863 = vdwg.mxu0
    %5864 = vmatpush.bf16.msra.mxu0 %v5714
    %5865 = vmatpush.bf16.msra.mxu0 %v5710
    %5866 = vmatpush.bf16.msra.mxu0 %v5706
    %5867 = vmatpush.bf16.msra.mxu0 %v5702
    %5868 = vmatpush.bf16.msra.mxu0 %v5698
    %5869 = vmatpush.bf16.msra.mxu0 %v5694
    %5870 = vmatpush.bf16.msra.mxu0 %v5690
    %5871 = vmatpush.bf16.msra.mxu0 %v5686
    %5872 = vmatmul.bf16.gmra.mxu0 %v4004
    %v5873 = vpop.f32.mrf.mxu0
    %v5874 = vadd.f32 %v915, %v5873
    %v5875 = vpop.f32.mrf.mxu0
    %5876 = vdwg.mxu0
    %5877 = vmatpush.bf16.msra.mxu0 %v5746
    %5878 = vmatpush.bf16.msra.mxu0 %v5742
    %5879 = vmatpush.bf16.msra.mxu0 %v5738
    %5880 = vmatpush.bf16.msra.mxu0 %v5734
    %5881 = vmatpush.bf16.msra.mxu0 %v5730
    %5882 = vmatpush.bf16.msra.mxu0 %v5726
    %5883 = vmatpush.bf16.msra.mxu0 %v5722
    %5884 = vmatpush.bf16.msra.mxu0 %v5718
    %5885 = vmatmul.bf16.gmra.mxu0 %v4556
    %v5886 = vpop.f32.mrf.mxu0
    %v5887 = vadd.f32 %v5874, %v5886
    %v5888 = vpop.f32.mrf.mxu0
    %5889 = vdwg.mxu0
    %5890 = vmatpush.bf16.msra.mxu0 %v5715
    %5891 = vmatpush.bf16.msra.mxu0 %v5711
    %5892 = vmatpush.bf16.msra.mxu0 %v5707
    %5893 = vmatpush.bf16.msra.mxu0 %v5703
    %5894 = vmatpush.bf16.msra.mxu0 %v5699
    %5895 = vmatpush.bf16.msra.mxu0 %v5695
    %5896 = vmatpush.bf16.msra.mxu0 %v5691
    %5897 = vmatpush.bf16.msra.mxu0 %v5687
    %5898 = vmatmul.bf16.gmra.mxu0 %v4004
    %v5899 = vpop.f32.mrf.mxu0
    %v5900 = vadd.f32 %v916, %v5899
    %v5901 = vpop.f32.mrf.mxu0
    %5902 = vdwg.mxu0
    %5903 = vmatpush.bf16.msra.mxu0 %v5747
    %5904 = vmatpush.bf16.msra.mxu0 %v5743
    %5905 = vmatpush.bf16.msra.mxu0 %v5739
    %5906 = vmatpush.bf16.msra.mxu0 %v5735
    %5907 = vmatpush.bf16.msra.mxu0 %v5731
    %5908 = vmatpush.bf16.msra.mxu0 %v5727
    %5909 = vmatpush.bf16.msra.mxu0 %v5723
    %5910 = vmatpush.bf16.msra.mxu0 %v5719
    %5911 = vmatmul.bf16.gmra.mxu0 %v4556
    %v5912 = vpop.f32.mrf.mxu0
    %v5913 = vadd.f32 %v5900, %v5912
    %v5914 = vpop.f32.mrf.mxu0
    %5915 = vdwg.mxu0
    %v5916 = vxor.u32 %v5835, 2147483648
    %v5917 = vxor.u32 %v5861, 2147483648
    %v5918 = vxor.u32 %v5887, 2147483648
    %v5919 = vmul.f32 %v5916, 1.442695
    %v5920 = vpow.pop %v5919
    %v5921 = vmul.f32 %v5917, 1.442695
    %v5922 = vpow.pop %v5921
    %v5923 = vmul.f32 %v5918, 1.442695
    %v5924 = vpow.pop %v5923
    %v5925 = vadd.f32 %v5920, 1.0
    %v5926 = vadd.f32 %v5922, 1.0
    %v5927 = vadd.f32 %v5924, 1.0
    %v5928 = vrcp.pop %v5925
    %v5929 = vmul.f32 %v5925, %v5928
    %v5930 = vsub.f32 1.0, %v5929
    %v5931 = vmul.f32 %v5928, %v5930
    %v5932 = vadd.f32 %v5928, %v5931
    %vm5933 = vweird.f32 %v5925
    %vm5934 = vweird.f32 %v5928
    %vm5935 = vmor %vm5933, %vm5934
    %v5936 = vsel %vm5935, %v5928, %v5932
    %v5937 = vand.u32 2147483647, %v5925
    %vm5938 = vcmp.eq.f32.partialorder %v5937, 8.507059e+37
    %v5939 = vand.u32 %v5925, 2147483648
    %v5940 = vor.u32 1.1754944e-38, %v5939
    %v5941 = vsel %vm5938, %v5940, %v5936
    %v5942 = vmul.f32 1.0, %v5941
    %v5943 = vrcp.pop %v5926
    %v5944 = vmul.f32 %v5926, %v5943
    %v5945 = vsub.f32 1.0, %v5944
    %v5946 = vmul.f32 %v5943, %v5945
    %v5947 = vadd.f32 %v5943, %v5946
    %vm5948 = vweird.f32 %v5926
    %vm5949 = vweird.f32 %v5943
    %vm5950 = vmor %vm5948, %vm5949
    %v5951 = vsel %vm5950, %v5943, %v5947
    %v5952 = vand.u32 2147483647, %v5926
    %vm5953 = vcmp.eq.f32.partialorder %v5952, 8.507059e+37
    %v5954 = vand.u32 %v5926, 2147483648
    %v5955 = vor.u32 1.1754944e-38, %v5954
    %v5956 = vsel %vm5953, %v5955, %v5951
    %v5957 = vmul.f32 1.0, %v5956
    %v5958 = vrcp.pop %v5927
    %v5959 = vmul.f32 %v5927, %v5958
    %v5960 = vsub.f32 1.0, %v5959
    %v5961 = vmul.f32 %v5958, %v5960
    %v5962 = vadd.f32 %v5958, %v5961
    %vm5963 = vweird.f32 %v5927
    %vm5964 = vweird.f32 %v5958
    %vm5965 = vmor %vm5963, %vm5964
    %v5966 = vsel %vm5965, %v5958, %v5962
    %v5967 = vand.u32 2147483647, %v5927
    %vm5968 = vcmp.eq.f32.partialorder %v5967, 8.507059e+37
    %v5969 = vand.u32 %v5927, 2147483648
    %v5970 = vor.u32 1.1754944e-38, %v5969
    %v5971 = vsel %vm5968, %v5970, %v5966
    %v5972 = vmul.f32 1.0, %v5971
    %v5973 = vtanh.pop %v5913
    %v5974 = vmul.f32 %v5957, %v4553
    %v5975 = vmul.f32 %v5942, %v5973
    %v5976 = vadd.f32 %v5974, %v5975
    %v5977 = vtanh.pop %v5976
    %v5978 = vmul.f32 %v5972, %v5977
    %v5979 = vpack.c.bf16 %v5978, %v5978
    %v5980 = vld [vmem:[%s1702] sm:$0xff]
    %v5981 = vld [vmem:[%s1702 + $0x8] sm:$0xff]
    %v5982 = vld [vmem:[%s1702 + $0x10] sm:$0xff]
    %v5983 = vld [vmem:[%s1702 + $0x18] sm:$0xff]
    %v5984 = vld [vmem:[%s1702 + $0x20] sm:$0xff]
    %v5985 = vld [vmem:[%s1702 + $0x28] sm:$0xff]
    %v5986 = vld [vmem:[%s1702 + $0x30] sm:$0xff]
    %v5987 = vld [vmem:[%s1702 + $0x38] sm:$0xff]
    %v5988 = vld [vmem:[%s1702 + $0x40] sm:$0xff]
    %v5989 = vld [vmem:[%s1702 + $0x48] sm:$0xff]
    %v5990 = vld [vmem:[%s1702 + $0x50] sm:$0xff]
    %v5991 = vld [vmem:[%s1702 + $0x58] sm:$0xff]
    %v5992 = vld [vmem:[%s1702 + $0x60] sm:$0xff]
    %v5993 = vld [vmem:[%s1702 + $0x68] sm:$0xff]
    %v5994 = vld [vmem:[%s1702 + $0x70] sm:$0xff]
    %v5995 = vld [vmem:[%s1702 + $0x78] sm:$0xff]
    %v5996 = vld [vmem:[%s1702 + $0x80] sm:$0xff]
    %v5997 = vld [vmem:[%s1702 + $0x88] sm:$0xff]
    %v5998 = vld [vmem:[%s1702 + $0x90] sm:$0xff]
    %v5999 = vld [vmem:[%s1702 + $0x98] sm:$0xff]
    %v6000 = vld [vmem:[%s1702 + $0xa0] sm:$0xff]
    %v6001 = vld [vmem:[%s1702 + $0xa8] sm:$0xff]
    %v6002 = vld [vmem:[%s1702 + $0xb0] sm:$0xff]
    %v6003 = vld [vmem:[%s1702 + $0xb8] sm:$0xff]
    %v6004 = vld [vmem:[%s1702 + $0xc0] sm:$0xff]
    %v6005 = vld [vmem:[%s1702 + $0xc8] sm:$0xff]
    %v6006 = vld [vmem:[%s1702 + $0xd0] sm:$0xff]
    %v6007 = vld [vmem:[%s1702 + $0xd8] sm:$0xff]
    %v6008 = vld [vmem:[%s1702 + $0xe0] sm:$0xff]
    %v6009 = vld [vmem:[%s1702 + $0xe8] sm:$0xff]
    %v6010 = vld [vmem:[%s1702 + $0xf0] sm:$0xff]
    %v6011 = vld [vmem:[%s1702 + $0xf8] sm:$0xff]
    %v6012 = vld [vmem:[%s1702 + $0x100] sm:$0xff]
    %v6013 = vld [vmem:[%s1702 + $0x108] sm:$0xff]
    %v6014 = vld [vmem:[%s1702 + $0x110] sm:$0xff]
    %v6015 = vld [vmem:[%s1702 + $0x118] sm:$0xff]
    %v6016 = vld [vmem:[%s1702 + $0x120] sm:$0xff]
    %v6017 = vld [vmem:[%s1702 + $0x128] sm:$0xff]
    %v6018 = vld [vmem:[%s1702 + $0x130] sm:$0xff]
    %v6019 = vld [vmem:[%s1702 + $0x138] sm:$0xff]
    %v6020 = vld [vmem:[%s1702 + $0x140] sm:$0xff]
    %v6021 = vld [vmem:[%s1702 + $0x148] sm:$0xff]
    %v6022 = vld [vmem:[%s1702 + $0x150] sm:$0xff]
    %v6023 = vld [vmem:[%s1702 + $0x158] sm:$0xff]
    %v6024 = vld [vmem:[%s1702 + $0x160] sm:$0xff]
    %v6025 = vld [vmem:[%s1702 + $0x168] sm:$0xff]
    %v6026 = vld [vmem:[%s1702 + $0x170] sm:$0xff]
    %v6027 = vld [vmem:[%s1702 + $0x178] sm:$0xff]
    %v6028 = vld [vmem:[%s1702 + $0x180] sm:$0xff]
    %v6029 = vld [vmem:[%s1702 + $0x188] sm:$0xff]
    %v6030 = vld [vmem:[%s1702 + $0x190] sm:$0xff]
    %v6031 = vld [vmem:[%s1702 + $0x198] sm:$0xff]
    %v6032 = vld [vmem:[%s1702 + $0x1a0] sm:$0xff]
    %v6033 = vld [vmem:[%s1702 + $0x1a8] sm:$0xff]
    %v6034 = vld [vmem:[%s1702 + $0x1b0] sm:$0xff]
    %v6035 = vld [vmem:[%s1702 + $0x1b8] sm:$0xff]
    %v6036 = vld [vmem:[%s1702 + $0x1c0] sm:$0xff]
    %v6037 = vld [vmem:[%s1702 + $0x1c8] sm:$0xff]
    %v6038 = vld [vmem:[%s1702 + $0x1d0] sm:$0xff]
    %v6039 = vld [vmem:[%s1702 + $0x1d8] sm:$0xff]
    %v6040 = vld [vmem:[%s1702 + $0x1e0] sm:$0xff]
    %v6041 = vld [vmem:[%s1702 + $0x1e8] sm:$0xff]
    %v6042 = vld [vmem:[%s1702 + $0x1f0] sm:$0xff]
    %v6043 = vld [vmem:[%s1702 + $0x1f8] sm:$0xff]
    %v6108 = vunpack.c.l.b16 %v5980
    %v6109 = vunpack.c.h.b16 %v5980
    %v6110 = vunpack.c.l.b16 %v5981
    %v6111 = vunpack.c.h.b16 %v5981
    %v6112 = vunpack.c.l.b16 %v5982
    %v6113 = vunpack.c.h.b16 %v5982
    %v6114 = vunpack.c.l.b16 %v5983
    %v6115 = vunpack.c.h.b16 %v5983
    %v6116 = vunpack.c.l.b16 %v5984
    %v6117 = vunpack.c.h.b16 %v5984
    %v6118 = vunpack.c.l.b16 %v5985
    %v6119 = vunpack.c.h.b16 %v5985
    %v6120 = vunpack.c.l.b16 %v5986
    %v6121 = vunpack.c.h.b16 %v5986
    %v6122 = vunpack.c.l.b16 %v5987
    %v6123 = vunpack.c.h.b16 %v5987
    %v6124 = vunpack.c.l.b16 %v5988
    %v6125 = vunpack.c.h.b16 %v5988
    %v6126 = vunpack.c.l.b16 %v5989
    %v6127 = vunpack.c.h.b16 %v5989
    %v6128 = vunpack.c.l.b16 %v5990
    %v6129 = vunpack.c.h.b16 %v5990
    %v6130 = vunpack.c.l.b16 %v5991
    %v6131 = vunpack.c.h.b16 %v5991
    %v6132 = vunpack.c.l.b16 %v5992
    %v6133 = vunpack.c.h.b16 %v5992
    %v6134 = vunpack.c.l.b16 %v5993
    %v6135 = vunpack.c.h.b16 %v5993
    %v6136 = vunpack.c.l.b16 %v5994
    %v6137 = vunpack.c.h.b16 %v5994
    %v6138 = vunpack.c.l.b16 %v5995
    %v6139 = vunpack.c.h.b16 %v5995
    %v6140 = vunpack.c.l.b16 %v5996
    %v6141 = vunpack.c.h.b16 %v5996
    %v6142 = vunpack.c.l.b16 %v5997
    %v6143 = vunpack.c.h.b16 %v5997
    %v6144 = vunpack.c.l.b16 %v5998
    %v6145 = vunpack.c.h.b16 %v5998
    %v6146 = vunpack.c.l.b16 %v5999
    %v6147 = vunpack.c.h.b16 %v5999
    %v6148 = vunpack.c.l.b16 %v6000
    %v6149 = vunpack.c.h.b16 %v6000
    %v6150 = vunpack.c.l.b16 %v6001
    %v6151 = vunpack.c.h.b16 %v6001
    %v6152 = vunpack.c.l.b16 %v6002
    %v6153 = vunpack.c.h.b16 %v6002
    %v6154 = vunpack.c.l.b16 %v6003
    %v6155 = vunpack.c.h.b16 %v6003
    %v6156 = vunpack.c.l.b16 %v6004
    %v6157 = vunpack.c.h.b16 %v6004
    %v6158 = vunpack.c.l.b16 %v6005
    %v6159 = vunpack.c.h.b16 %v6005
    %v6160 = vunpack.c.l.b16 %v6006
    %v6161 = vunpack.c.h.b16 %v6006
    %v6162 = vunpack.c.l.b16 %v6007
    %v6163 = vunpack.c.h.b16 %v6007
    %v6164 = vunpack.c.l.b16 %v6008
    %v6165 = vunpack.c.h.b16 %v6008
    %v6166 = vunpack.c.l.b16 %v6009
    %v6167 = vunpack.c.h.b16 %v6009
    %v6168 = vunpack.c.l.b16 %v6010
    %v6169 = vunpack.c.h.b16 %v6010
    %v6170 = vunpack.c.l.b16 %v6011
    %v6171 = vunpack.c.h.b16 %v6011
    %v6172 = vunpack.c.l.b16 %v6012
    %v6173 = vunpack.c.h.b16 %v6012
    %v6174 = vunpack.c.l.b16 %v6013
    %v6175 = vunpack.c.h.b16 %v6013
    %v6176 = vunpack.c.l.b16 %v6014
    %v6177 = vunpack.c.h.b16 %v6014
    %v6178 = vunpack.c.l.b16 %v6015
    %v6179 = vunpack.c.h.b16 %v6015
    %v6180 = vunpack.c.l.b16 %v6016
    %v6181 = vunpack.c.h.b16 %v6016
    %v6182 = vunpack.c.l.b16 %v6017
    %v6183 = vunpack.c.h.b16 %v6017
    %v6184 = vunpack.c.l.b16 %v6018
    %v6185 = vunpack.c.h.b16 %v6018
    %v6186 = vunpack.c.l.b16 %v6019
    %v6187 = vunpack.c.h.b16 %v6019
    %v6188 = vunpack.c.l.b16 %v6020
    %v6189 = vunpack.c.h.b16 %v6020
    %v6190 = vunpack.c.l.b16 %v6021
    %v6191 = vunpack.c.h.b16 %v6021
    %v6192 = vunpack.c.l.b16 %v6022
    %v6193 = vunpack.c.h.b16 %v6022
    %v6194 = vunpack.c.l.b16 %v6023
    %v6195 = vunpack.c.h.b16 %v6023
    %v6196 = vunpack.c.l.b16 %v6024
    %v6197 = vunpack.c.h.b16 %v6024
    %v6198 = vunpack.c.l.b16 %v6025
    %v6199 = vunpack.c.h.b16 %v6025
    %v6200 = vunpack.c.l.b16 %v6026
    %v6201 = vunpack.c.h.b16 %v6026
    %v6202 = vunpack.c.l.b16 %v6027
    %v6203 = vunpack.c.h.b16 %v6027
    %v6204 = vunpack.c.l.b16 %v6028
    %v6205 = vunpack.c.h.b16 %v6028
    %v6206 = vunpack.c.l.b16 %v6029
    %v6207 = vunpack.c.h.b16 %v6029
    %v6208 = vunpack.c.l.b16 %v6030
    %v6209 = vunpack.c.h.b16 %v6030
    %v6210 = vunpack.c.l.b16 %v6031
    %v6211 = vunpack.c.h.b16 %v6031
    %v6212 = vunpack.c.l.b16 %v6032
    %v6213 = vunpack.c.h.b16 %v6032
    %v6214 = vunpack.c.l.b16 %v6033
    %v6215 = vunpack.c.h.b16 %v6033
    %v6216 = vunpack.c.l.b16 %v6034
    %v6217 = vunpack.c.h.b16 %v6034
    %v6218 = vunpack.c.l.b16 %v6035
    %v6219 = vunpack.c.h.b16 %v6035
    %v6220 = vunpack.c.l.b16 %v6036
    %v6221 = vunpack.c.h.b16 %v6036
    %v6222 = vunpack.c.l.b16 %v6037
    %v6223 = vunpack.c.h.b16 %v6037
    %v6224 = vunpack.c.l.b16 %v6038
    %v6225 = vunpack.c.h.b16 %v6038
    %v6226 = vunpack.c.l.b16 %v6039
    %v6227 = vunpack.c.h.b16 %v6039
    %v6228 = vunpack.c.l.b16 %v6040
    %v6229 = vunpack.c.h.b16 %v6040
    %v6230 = vunpack.c.l.b16 %v6041
    %v6231 = vunpack.c.h.b16 %v6041
    %v6232 = vunpack.c.l.b16 %v6042
    %v6233 = vunpack.c.h.b16 %v6042
    %v6234 = vunpack.c.l.b16 %v6043
    %v6235 = vunpack.c.h.b16 %v6043
    %v6236 = vpack.c.b16 %v6112, %v6108
    %v6237 = vpack.c.b16 %v6113, %v6109
    %v6238 = vpack.c.b16 %v6114, %v6110
    %v6239 = vpack.c.b16 %v6115, %v6111
    %v6240 = vpack.c.b16 %v6120, %v6116
    %v6241 = vpack.c.b16 %v6121, %v6117
    %v6242 = vpack.c.b16 %v6122, %v6118
    %v6243 = vpack.c.b16 %v6123, %v6119
    %v6244 = vpack.c.b16 %v6128, %v6124
    %v6245 = vpack.c.b16 %v6129, %v6125
    %v6246 = vpack.c.b16 %v6130, %v6126
    %v6247 = vpack.c.b16 %v6131, %v6127
    %v6248 = vpack.c.b16 %v6136, %v6132
    %v6249 = vpack.c.b16 %v6137, %v6133
    %v6250 = vpack.c.b16 %v6138, %v6134
    %v6251 = vpack.c.b16 %v6139, %v6135
    %v6252 = vpack.c.b16 %v6144, %v6140
    %v6253 = vpack.c.b16 %v6145, %v6141
    %v6254 = vpack.c.b16 %v6146, %v6142
    %v6255 = vpack.c.b16 %v6147, %v6143
    %v6256 = vpack.c.b16 %v6152, %v6148
    %v6257 = vpack.c.b16 %v6153, %v6149
    %v6258 = vpack.c.b16 %v6154, %v6150
    %v6259 = vpack.c.b16 %v6155, %v6151
    %v6260 = vpack.c.b16 %v6160, %v6156
    %v6261 = vpack.c.b16 %v6161, %v6157
    %v6262 = vpack.c.b16 %v6162, %v6158
    %v6263 = vpack.c.b16 %v6163, %v6159
    %v6264 = vpack.c.b16 %v6168, %v6164
    %v6265 = vpack.c.b16 %v6169, %v6165
    %v6266 = vpack.c.b16 %v6170, %v6166
    %v6267 = vpack.c.b16 %v6171, %v6167
    %v6268 = vpack.c.b16 %v6176, %v6172
    %v6269 = vpack.c.b16 %v6177, %v6173
    %v6270 = vpack.c.b16 %v6178, %v6174
    %v6271 = vpack.c.b16 %v6179, %v6175
    %v6272 = vpack.c.b16 %v6184, %v6180
    %v6273 = vpack.c.b16 %v6185, %v6181
    %v6274 = vpack.c.b16 %v6186, %v6182
    %v6275 = vpack.c.b16 %v6187, %v6183
    %v6276 = vpack.c.b16 %v6192, %v6188
    %v6277 = vpack.c.b16 %v6193, %v6189
    %v6278 = vpack.c.b16 %v6194, %v6190
    %v6279 = vpack.c.b16 %v6195, %v6191
    %v6280 = vpack.c.b16 %v6200, %v6196
    %v6281 = vpack.c.b16 %v6201, %v6197
    %v6282 = vpack.c.b16 %v6202, %v6198
    %v6283 = vpack.c.b16 %v6203, %v6199
    %v6284 = vpack.c.b16 %v6208, %v6204
    %v6285 = vpack.c.b16 %v6209, %v6205
    %v6286 = vpack.c.b16 %v6210, %v6206
    %v6287 = vpack.c.b16 %v6211, %v6207
    %v6288 = vpack.c.b16 %v6216, %v6212
    %v6289 = vpack.c.b16 %v6217, %v6213
    %v6290 = vpack.c.b16 %v6218, %v6214
    %v6291 = vpack.c.b16 %v6219, %v6215
    %v6292 = vpack.c.b16 %v6224, %v6220
    %v6293 = vpack.c.b16 %v6225, %v6221
    %v6294 = vpack.c.b16 %v6226, %v6222
    %v6295 = vpack.c.b16 %v6227, %v6223
    %v6296 = vpack.c.b16 %v6232, %v6228
    %v6297 = vpack.c.b16 %v6233, %v6229
    %v6298 = vpack.c.b16 %v6234, %v6230
    %v6299 = vpack.c.b16 %v6235, %v6231
    %6364 = vmatpush.bf16.msra.mxu0 %v6264
    %6365 = vmatpush.bf16.msra.mxu0 %v6260
    %6366 = vmatpush.bf16.msra.mxu0 %v6256
    %6367 = vmatpush.bf16.msra.mxu0 %v6252
    %6368 = vmatpush.bf16.msra.mxu0 %v6248
    %6369 = vmatpush.bf16.msra.mxu0 %v6244
    %6370 = vmatpush.bf16.msra.mxu0 %v6240
    %6371 = vmatpush.bf16.msra.mxu0 %v6236
    %6372 = vmatmul.bf16.gmra.mxu0 %v4556
    %v6373 = vpop.f32.mrf.mxu0
    %v6374 = vadd.f32 %v1768, %v6373
    %v6375 = vpop.f32.mrf.mxu0
    %6376 = vdwg.mxu0
    %6377 = vmatpush.bf16.msra.mxu0 %v6296
    %6378 = vmatpush.bf16.msra.mxu0 %v6292
    %6379 = vmatpush.bf16.msra.mxu0 %v6288
    %6380 = vmatpush.bf16.msra.mxu0 %v6284
    %6381 = vmatpush.bf16.msra.mxu0 %v6280
    %6382 = vmatpush.bf16.msra.mxu0 %v6276
    %6383 = vmatpush.bf16.msra.mxu0 %v6272
    %6384 = vmatpush.bf16.msra.mxu0 %v6268
    %6385 = vmatmul.bf16.gmra.mxu0 %v5108
    %v6386 = vpop.f32.mrf.mxu0
    %v6387 = vadd.f32 %v6374, %v6386
    %v6388 = vpop.f32.mrf.mxu0
    %6389 = vdwg.mxu0
    %6390 = vmatpush.bf16.msra.mxu0 %v6265
    %6391 = vmatpush.bf16.msra.mxu0 %v6261
    %6392 = vmatpush.bf16.msra.mxu0 %v6257
    %6393 = vmatpush.bf16.msra.mxu0 %v6253
    %6394 = vmatpush.bf16.msra.mxu0 %v6249
    %6395 = vmatpush.bf16.msra.mxu0 %v6245
    %6396 = vmatpush.bf16.msra.mxu0 %v6241
    %6397 = vmatpush.bf16.msra.mxu0 %v6237
    %6398 = vmatmul.bf16.gmra.mxu0 %v4556
    %v6399 = vpop.f32.mrf.mxu0
    %v6400 = vadd.f32 %v1769, %v6399
    %v6401 = vpop.f32.mrf.mxu0
    %6402 = vdwg.mxu0
    %6403 = vmatpush.bf16.msra.mxu0 %v6297
    %6404 = vmatpush.bf16.msra.mxu0 %v6293
    %6405 = vmatpush.bf16.msra.mxu0 %v6289
    %6406 = vmatpush.bf16.msra.mxu0 %v6285
    %6407 = vmatpush.bf16.msra.mxu0 %v6281
    %6408 = vmatpush.bf16.msra.mxu0 %v6277
    %6409 = vmatpush.bf16.msra.mxu0 %v6273
    %6410 = vmatpush.bf16.msra.mxu0 %v6269
    %6411 = vmatmul.bf16.gmra.mxu0 %v5108
    %v6412 = vpop.f32.mrf.mxu0
    %v6413 = vadd.f32 %v6400, %v6412
    %v6414 = vpop.f32.mrf.mxu0
    %6415 = vdwg.mxu0
    %6416 = vmatpush.bf16.msra.mxu0 %v6266
    %6417 = vmatpush.bf16.msra.mxu0 %v6262
    %6418 = vmatpush.bf16.msra.mxu0 %v6258
    %6419 = vmatpush.bf16.msra.mxu0 %v6254
    %6420 = vmatpush.bf16.msra.mxu0 %v6250
    %6421 = vmatpush.bf16.msra.mxu0 %v6246
    %6422 = vmatpush.bf16.msra.mxu0 %v6242
    %6423 = vmatpush.bf16.msra.mxu0 %v6238
    %6424 = vmatmul.bf16.gmra.mxu0 %v4556
    %v6425 = vpop.f32.mrf.mxu0
    %v6426 = vadd.f32 %v1770, %v6425
    %v6427 = vpop.f32.mrf.mxu0
    %6428 = vdwg.mxu0
    %6429 = vmatpush.bf16.msra.mxu0 %v6298
    %6430 = vmatpush.bf16.msra.mxu0 %v6294
    %6431 = vmatpush.bf16.msra.mxu0 %v6290
    %6432 = vmatpush.bf16.msra.mxu0 %v6286
    %6433 = vmatpush.bf16.msra.mxu0 %v6282
    %6434 = vmatpush.bf16.msra.mxu0 %v6278
    %6435 = vmatpush.bf16.msra.mxu0 %v6274
    %6436 = vmatpush.bf16.msra.mxu0 %v6270
    %6437 = vmatmul.bf16.gmra.mxu0 %v5108
    %v6438 = vpop.f32.mrf.mxu0
    %v6439 = vadd.f32 %v6426, %v6438
    %v6440 = vpop.f32.mrf.mxu0
    %6441 = vdwg.mxu0
    %6442 = vmatpush.bf16.msra.mxu0 %v6267
    %6443 = vmatpush.bf16.msra.mxu0 %v6263
    %6444 = vmatpush.bf16.msra.mxu0 %v6259
    %6445 = vmatpush.bf16.msra.mxu0 %v6255
    %6446 = vmatpush.bf16.msra.mxu0 %v6251
    %6447 = vmatpush.bf16.msra.mxu0 %v6247
    %6448 = vmatpush.bf16.msra.mxu0 %v6243
    %6449 = vmatpush.bf16.msra.mxu0 %v6239
    %6450 = vmatmul.bf16.gmra.mxu0 %v4556
    %v6451 = vpop.f32.mrf.mxu0
    %v6452 = vadd.f32 %v1771, %v6451
    %v6453 = vpop.f32.mrf.mxu0
    %6454 = vdwg.mxu0
    %6455 = vmatpush.bf16.msra.mxu0 %v6299
    %6456 = vmatpush.bf16.msra.mxu0 %v6295
    %6457 = vmatpush.bf16.msra.mxu0 %v6291
    %6458 = vmatpush.bf16.msra.mxu0 %v6287
    %6459 = vmatpush.bf16.msra.mxu0 %v6283
    %6460 = vmatpush.bf16.msra.mxu0 %v6279
    %6461 = vmatpush.bf16.msra.mxu0 %v6275
    %6462 = vmatpush.bf16.msra.mxu0 %v6271
    %6463 = vmatmul.bf16.gmra.mxu0 %v5108
    %v6464 = vpop.f32.mrf.mxu0
    %v6465 = vadd.f32 %v6452, %v6464
    %v6466 = vpop.f32.mrf.mxu0
    %6467 = vdwg.mxu0
    %v6468 = vxor.u32 %v6387, 2147483648
    %v6469 = vxor.u32 %v6413, 2147483648
    %v6470 = vxor.u32 %v6439, 2147483648
    %v6471 = vmul.f32 %v6468, 1.442695
    %v6472 = vpow.pop %v6471
    %v6473 = vmul.f32 %v6469, 1.442695
    %v6474 = vpow.pop %v6473
    %v6475 = vmul.f32 %v6470, 1.442695
    %v6476 = vpow.pop %v6475
    %v6477 = vadd.f32 %v6472, 1.0
    %v6478 = vadd.f32 %v6474, 1.0
    %v6479 = vadd.f32 %v6476, 1.0
    %v6480 = vrcp.pop %v6477
    %v6481 = vmul.f32 %v6477, %v6480
    %v6482 = vsub.f32 1.0, %v6481
    %v6483 = vmul.f32 %v6480, %v6482
    %v6484 = vadd.f32 %v6480, %v6483
    %vm6485 = vweird.f32 %v6477
    %vm6486 = vweird.f32 %v6480
    %vm6487 = vmor %vm6485, %vm6486
    %v6488 = vsel %vm6487, %v6480, %v6484
    %v6489 = vand.u32 2147483647, %v6477
    %vm6490 = vcmp.eq.f32.partialorder %v6489, 8.507059e+37
    %v6491 = vand.u32 %v6477, 2147483648
    %v6492 = vor.u32 1.1754944e-38, %v6491
    %v6493 = vsel %vm6490, %v6492, %v6488
    %v6494 = vmul.f32 1.0, %v6493
    %v6495 = vrcp.pop %v6478
    %v6496 = vmul.f32 %v6478, %v6495
    %v6497 = vsub.f32 1.0, %v6496
    %v6498 = vmul.f32 %v6495, %v6497
    %v6499 = vadd.f32 %v6495, %v6498
    %vm6500 = vweird.f32 %v6478
    %vm6501 = vweird.f32 %v6495
    %vm6502 = vmor %vm6500, %vm6501
    %v6503 = vsel %vm6502, %v6495, %v6499
    %v6504 = vand.u32 2147483647, %v6478
    %vm6505 = vcmp.eq.f32.partialorder %v6504, 8.507059e+37
    %v6506 = vand.u32 %v6478, 2147483648
    %v6507 = vor.u32 1.1754944e-38, %v6506
    %v6508 = vsel %vm6505, %v6507, %v6503
    %v6509 = vmul.f32 1.0, %v6508
    %v6510 = vrcp.pop %v6479
    %v6511 = vmul.f32 %v6479, %v6510
    %v6512 = vsub.f32 1.0, %v6511
    %v6513 = vmul.f32 %v6510, %v6512
    %v6514 = vadd.f32 %v6510, %v6513
    %vm6515 = vweird.f32 %v6479
    %vm6516 = vweird.f32 %v6510
    %vm6517 = vmor %vm6515, %vm6516
    %v6518 = vsel %vm6517, %v6510, %v6514
    %v6519 = vand.u32 2147483647, %v6479
    %vm6520 = vcmp.eq.f32.partialorder %v6519, 8.507059e+37
    %v6521 = vand.u32 %v6479, 2147483648
    %v6522 = vor.u32 1.1754944e-38, %v6521
    %v6523 = vsel %vm6520, %v6522, %v6518
    %v6524 = vmul.f32 1.0, %v6523
    %v6525 = vtanh.pop %v6465
    %v6526 = vmul.f32 %v6509, %v5105
    %v6527 = vmul.f32 %v6494, %v6525
    %v6528 = vadd.f32 %v6526, %v6527
    %v6529 = vtanh.pop %v6528
    %v6530 = vmul.f32 %v6524, %v6529
    %v6531 = vpack.c.bf16 %v6530, %v6530
    %s6532 = scalar_lea.vmem [#allocation3], 12
    %6533 = vst [vmem:[%s6532] sm:$0xf] %v6531
    %s6534 = scalar_lea.vmem [#allocation2], 192
    %v6535 = vld [vmem:[%s6534] sm:$0xff]
    %v6536 = vld [vmem:[%s6534 + $0x8] sm:$0xff]
    %v6537 = vld [vmem:[%s6534 + $0x10] sm:$0xff]
    %v6538 = vld [vmem:[%s6534 + $0x18] sm:$0xff]
    %v6539 = vld [vmem:[#allocation12] sm:$0xff]
    %v6540 = vld [vmem:[#allocation12 + $0x8] sm:$0xff]
    %v6541 = vld [vmem:[#allocation12 + $0x10] sm:$0xff]
    %v6542 = vld [vmem:[#allocation12 + $0x18] sm:$0xff]
    %v6543 = vld [vmem:[#allocation12 + $0x20] sm:$0xff]
    %v6544 = vld [vmem:[#allocation12 + $0x28] sm:$0xff]
    %v6545 = vld [vmem:[#allocation12 + $0x30] sm:$0xff]
    %v6546 = vld [vmem:[#allocation12 + $0x38] sm:$0xff]
    %v6547 = vld [vmem:[#allocation12 + $0x40] sm:$0xff]
    %v6548 = vld [vmem:[#allocation12 + $0x48] sm:$0xff]
    %v6549 = vld [vmem:[#allocation12 + $0x50] sm:$0xff]
    %v6550 = vld [vmem:[#allocation12 + $0x58] sm:$0xff]
    %v6551 = vld [vmem:[#allocation12 + $0x60] sm:$0xff]
    %v6552 = vld [vmem:[#allocation12 + $0x68] sm:$0xff]
    %v6553 = vld [vmem:[#allocation12 + $0x70] sm:$0xff]
    %v6554 = vld [vmem:[#allocation12 + $0x78] sm:$0xff]
    %v6555 = vld [vmem:[#allocation12 + $0x80] sm:$0xff]
    %v6556 = vld [vmem:[#allocation12 + $0x88] sm:$0xff]
    %v6557 = vld [vmem:[#allocation12 + $0x90] sm:$0xff]
    %v6558 = vld [vmem:[#allocation12 + $0x98] sm:$0xff]
    %v6559 = vld [vmem:[#allocation12 + $0xa0] sm:$0xff]
    %v6560 = vld [vmem:[#allocation12 + $0xa8] sm:$0xff]
    %v6561 = vld [vmem:[#allocation12 + $0xb0] sm:$0xff]
    %v6562 = vld [vmem:[#allocation12 + $0xb8] sm:$0xff]
    %v6563 = vld [vmem:[#allocation12 + $0xc0] sm:$0xff]
    %v6564 = vld [vmem:[#allocation12 + $0xc8] sm:$0xff]
    %v6565 = vld [vmem:[#allocation12 + $0xd0] sm:$0xff]
    %v6566 = vld [vmem:[#allocation12 + $0xd8] sm:$0xff]
    %v6567 = vld [vmem:[#allocation12 + $0xe0] sm:$0xff]
    %v6568 = vld [vmem:[#allocation12 + $0xe8] sm:$0xff]
    %v6569 = vld [vmem:[#allocation12 + $0xf0] sm:$0xff]
    %v6570 = vld [vmem:[#allocation12 + $0xf8] sm:$0xff]
    %v6603 = vunpack.c.l.b16 %v6539
    %v6604 = vunpack.c.h.b16 %v6539
    %v6605 = vunpack.c.l.b16 %v6540
    %v6606 = vunpack.c.h.b16 %v6540
    %v6607 = vunpack.c.l.b16 %v6541
    %v6608 = vunpack.c.h.b16 %v6541
    %v6609 = vunpack.c.l.b16 %v6542
    %v6610 = vunpack.c.h.b16 %v6542
    %v6611 = vunpack.c.l.b16 %v6543
    %v6612 = vunpack.c.h.b16 %v6543
    %v6613 = vunpack.c.l.b16 %v6544
    %v6614 = vunpack.c.h.b16 %v6544
    %v6615 = vunpack.c.l.b16 %v6545
    %v6616 = vunpack.c.h.b16 %v6545
    %v6617 = vunpack.c.l.b16 %v6546
    %v6618 = vunpack.c.h.b16 %v6546
    %v6619 = vunpack.c.l.b16 %v6547
    %v6620 = vunpack.c.h.b16 %v6547
    %v6621 = vunpack.c.l.b16 %v6548
    %v6622 = vunpack.c.h.b16 %v6548
    %v6623 = vunpack.c.l.b16 %v6549
    %v6624 = vunpack.c.h.b16 %v6549
    %v6625 = vunpack.c.l.b16 %v6550
    %v6626 = vunpack.c.h.b16 %v6550
    %v6627 = vunpack.c.l.b16 %v6551
    %v6628 = vunpack.c.h.b16 %v6551
    %v6629 = vunpack.c.l.b16 %v6552
    %v6630 = vunpack.c.h.b16 %v6552
    %v6631 = vunpack.c.l.b16 %v6553
    %v6632 = vunpack.c.h.b16 %v6553
    %v6633 = vunpack.c.l.b16 %v6554
    %v6634 = vunpack.c.h.b16 %v6554
    %v6635 = vunpack.c.l.b16 %v6555
    %v6636 = vunpack.c.h.b16 %v6555
    %v6637 = vunpack.c.l.b16 %v6556
    %v6638 = vunpack.c.h.b16 %v6556
    %v6639 = vunpack.c.l.b16 %v6557
    %v6640 = vunpack.c.h.b16 %v6557
    %v6641 = vunpack.c.l.b16 %v6558
    %v6642 = vunpack.c.h.b16 %v6558
    %v6643 = vunpack.c.l.b16 %v6559
    %v6644 = vunpack.c.h.b16 %v6559
    %v6645 = vunpack.c.l.b16 %v6560
    %v6646 = vunpack.c.h.b16 %v6560
    %v6647 = vunpack.c.l.b16 %v6561
    %v6648 = vunpack.c.h.b16 %v6561
    %v6649 = vunpack.c.l.b16 %v6562
    %v6650 = vunpack.c.h.b16 %v6562
    %v6651 = vunpack.c.l.b16 %v6563
    %v6652 = vunpack.c.h.b16 %v6563
    %v6653 = vunpack.c.l.b16 %v6564
    %v6654 = vunpack.c.h.b16 %v6564
    %v6655 = vunpack.c.l.b16 %v6565
    %v6656 = vunpack.c.h.b16 %v6565
    %v6657 = vunpack.c.l.b16 %v6566
    %v6658 = vunpack.c.h.b16 %v6566
    %v6659 = vunpack.c.l.b16 %v6567
    %v6660 = vunpack.c.h.b16 %v6567
    %v6661 = vunpack.c.l.b16 %v6568
    %v6662 = vunpack.c.h.b16 %v6568
    %v6663 = vunpack.c.l.b16 %v6569
    %v6664 = vunpack.c.h.b16 %v6569
    %v6665 = vunpack.c.l.b16 %v6570
    %v6666 = vunpack.c.h.b16 %v6570
    %v6667 = vpack.c.b16 %v6607, %v6603
    %v6668 = vpack.c.b16 %v6608, %v6604
    %v6669 = vpack.c.b16 %v6609, %v6605
    %v6670 = vpack.c.b16 %v6610, %v6606
    %v6671 = vpack.c.b16 %v6615, %v6611
    %v6672 = vpack.c.b16 %v6616, %v6612
    %v6673 = vpack.c.b16 %v6617, %v6613
    %v6674 = vpack.c.b16 %v6618, %v6614
    %v6675 = vpack.c.b16 %v6623, %v6619
    %v6676 = vpack.c.b16 %v6624, %v6620
    %v6677 = vpack.c.b16 %v6625, %v6621
    %v6678 = vpack.c.b16 %v6626, %v6622
    %v6679 = vpack.c.b16 %v6631, %v6627
    %v6680 = vpack.c.b16 %v6632, %v6628
    %v6681 = vpack.c.b16 %v6633, %v6629
    %v6682 = vpack.c.b16 %v6634, %v6630
    %v6683 = vpack.c.b16 %v6639, %v6635
    %v6684 = vpack.c.b16 %v6640, %v6636
    %v6685 = vpack.c.b16 %v6641, %v6637
    %v6686 = vpack.c.b16 %v6642, %v6638
    %v6687 = vpack.c.b16 %v6647, %v6643
    %v6688 = vpack.c.b16 %v6648, %v6644
    %v6689 = vpack.c.b16 %v6649, %v6645
    %v6690 = vpack.c.b16 %v6650, %v6646
    %v6691 = vpack.c.b16 %v6655, %v6651
    %v6692 = vpack.c.b16 %v6656, %v6652
    %v6693 = vpack.c.b16 %v6657, %v6653
    %v6694 = vpack.c.b16 %v6658, %v6654
    %v6695 = vpack.c.b16 %v6663, %v6659
    %v6696 = vpack.c.b16 %v6664, %v6660
    %v6697 = vpack.c.b16 %v6665, %v6661
    %v6698 = vpack.c.b16 %v6666, %v6662
    %6731 = vmatpush.bf16.msra.mxu0 %v6695
    %6732 = vmatpush.bf16.msra.mxu0 %v6691
    %6733 = vmatpush.bf16.msra.mxu0 %v6687
    %6734 = vmatpush.bf16.msra.mxu0 %v6683
    %6735 = vmatpush.bf16.msra.mxu0 %v6679
    %6736 = vmatpush.bf16.msra.mxu0 %v6675
    %6737 = vmatpush.bf16.msra.mxu0 %v6671
    %6738 = vmatpush.bf16.msra.mxu0 %v6667
    %6739 = vmatmul.bf16.gmra.mxu0 %v5427
    %v6740 = vpop.f32.mrf.mxu0
    %v6741 = vadd.f32 0.0, %v6740
    %v6742 = vpop.f32.mrf.mxu0
    %6743 = vdwg.mxu0
    %6744 = vmatpush.bf16.msra.mxu0 %v6696
    %6745 = vmatpush.bf16.msra.mxu0 %v6692
    %6746 = vmatpush.bf16.msra.mxu0 %v6688
    %6747 = vmatpush.bf16.msra.mxu0 %v6684
    %6748 = vmatpush.bf16.msra.mxu0 %v6680
    %6749 = vmatpush.bf16.msra.mxu0 %v6676
    %6750 = vmatpush.bf16.msra.mxu0 %v6672
    %6751 = vmatpush.bf16.msra.mxu0 %v6668
    %6752 = vmatmul.bf16.gmra.mxu0 %v5427
    %v6753 = vpop.f32.mrf.mxu0
    %v6754 = vadd.f32 0.0, %v6753
    %v6755 = vpop.f32.mrf.mxu0
    %6756 = vdwg.mxu0
    %6757 = vmatpush.bf16.msra.mxu0 %v6697
    %6758 = vmatpush.bf16.msra.mxu0 %v6693
    %6759 = vmatpush.bf16.msra.mxu0 %v6689
    %6760 = vmatpush.bf16.msra.mxu0 %v6685
    %6761 = vmatpush.bf16.msra.mxu0 %v6681
    %6762 = vmatpush.bf16.msra.mxu0 %v6677
    %6763 = vmatpush.bf16.msra.mxu0 %v6673
    %6764 = vmatpush.bf16.msra.mxu0 %v6669
    %6765 = vmatmul.bf16.gmra.mxu0 %v5427
    %v6766 = vpop.f32.mrf.mxu0
    %v6767 = vadd.f32 0.0, %v6766
    %v6768 = vpop.f32.mrf.mxu0
    %6769 = vdwg.mxu0
    %6770 = vmatpush.bf16.msra.mxu0 %v6698
    %6771 = vmatpush.bf16.msra.mxu0 %v6694
    %6772 = vmatpush.bf16.msra.mxu0 %v6690
    %6773 = vmatpush.bf16.msra.mxu0 %v6686
    %6774 = vmatpush.bf16.msra.mxu0 %v6682
    %6775 = vmatpush.bf16.msra.mxu0 %v6678
    %6776 = vmatpush.bf16.msra.mxu0 %v6674
    %6777 = vmatpush.bf16.msra.mxu0 %v6670
    %6778 = vmatmul.bf16.gmra.mxu0 %v5427
    %v6779 = vpop.f32.mrf.mxu0
    %v6780 = vadd.f32 0.0, %v6779
    %v6781 = vpop.f32.mrf.mxu0
    %6782 = vdwg.mxu0
    %v6783 = vadd.f32 %v6535, %v6741
    %v6784 = vadd.f32 %v6536, %v6754
    %v6785 = vadd.f32 %v6537, %v6767
    %v6786 = vadd.f32 %v6538, %v6780
    %v6787 = vxor.u32 %v6783, 2147483648
    %v6788 = vxor.u32 %v6784, 2147483648
    %v6789 = vxor.u32 %v6785, 2147483648
    %v6790 = vmul.f32 %v6787, 1.442695
    %v6791 = vpow.pop %v6790
    %v6792 = vmul.f32 %v6788, 1.442695
    %v6793 = vpow.pop %v6792
    %v6794 = vmul.f32 %v6789, 1.442695
    %v6795 = vpow.pop %v6794
    %v6796 = vadd.f32 %v6791, 1.0
    %v6797 = vadd.f32 %v6793, 1.0
    %v6798 = vadd.f32 %v6795, 1.0
    %v6799 = vrcp.pop %v6796
    %v6800 = vmul.f32 %v6796, %v6799
    %v6801 = vsub.f32 1.0, %v6800
    %v6802 = vmul.f32 %v6799, %v6801
    %v6803 = vadd.f32 %v6799, %v6802
    %vm6804 = vweird.f32 %v6796
    %vm6805 = vweird.f32 %v6799
    %vm6806 = vmor %vm6804, %vm6805
    %v6807 = vsel %vm6806, %v6799, %v6803
    %v6808 = vand.u32 2147483647, %v6796
    %vm6809 = vcmp.eq.f32.partialorder %v6808, 8.507059e+37
    %v6810 = vand.u32 %v6796, 2147483648
    %v6811 = vor.u32 1.1754944e-38, %v6810
    %v6812 = vsel %vm6809, %v6811, %v6807
    %v6813 = vmul.f32 1.0, %v6812
    %v6814 = vrcp.pop %v6797
    %v6815 = vmul.f32 %v6797, %v6814
    %v6816 = vsub.f32 1.0, %v6815
    %v6817 = vmul.f32 %v6814, %v6816
    %v6818 = vadd.f32 %v6814, %v6817
    %vm6819 = vweird.f32 %v6797
    %vm6820 = vweird.f32 %v6814
    %vm6821 = vmor %vm6819, %vm6820
    %v6822 = vsel %vm6821, %v6814, %v6818
    %v6823 = vand.u32 2147483647, %v6797
    %vm6824 = vcmp.eq.f32.partialorder %v6823, 8.507059e+37
    %v6825 = vand.u32 %v6797, 2147483648
    %v6826 = vor.u32 1.1754944e-38, %v6825
    %v6827 = vsel %vm6824, %v6826, %v6822
    %v6828 = vmul.f32 1.0, %v6827
    %v6829 = vrcp.pop %v6798
    %v6830 = vmul.f32 %v6798, %v6829
    %v6831 = vsub.f32 1.0, %v6830
    %v6832 = vmul.f32 %v6829, %v6831
    %v6833 = vadd.f32 %v6829, %v6832
    %vm6834 = vweird.f32 %v6798
    %vm6835 = vweird.f32 %v6829
    %vm6836 = vmor %vm6834, %vm6835
    %v6837 = vsel %vm6836, %v6829, %v6833
    %v6838 = vand.u32 2147483647, %v6798
    %vm6839 = vcmp.eq.f32.partialorder %v6838, 8.507059e+37
    %v6840 = vand.u32 %v6798, 2147483648
    %v6841 = vor.u32 1.1754944e-38, %v6840
    %v6842 = vsel %vm6839, %v6841, %v6837
    %v6843 = vmul.f32 1.0, %v6842
    %v6844 = vtanh.pop %v6786
    %v6845 = vmul.f32 %v6828, %v5424
    %v6846 = vmul.f32 %v6813, %v6844
    %v6847 = vadd.f32 %v6845, %v6846
    %v6848 = vtanh.pop %v6847
    %v6849 = vmul.f32 %v6843, %v6848
    %v6850 = vpack.c.bf16 %v6849, %v6849
    %v6851 = vld [vmem:[#allocation13] sm:$0xff]
    %v6852 = vld [vmem:[#allocation13 + $0x8] sm:$0xff]
    %v6853 = vld [vmem:[#allocation13 + $0x10] sm:$0xff]
    %v6854 = vld [vmem:[#allocation13 + $0x18] sm:$0xff]
    %v6855 = vld [vmem:[#allocation13 + $0x20] sm:$0xff]
    %v6856 = vld [vmem:[#allocation13 + $0x28] sm:$0xff]
    %v6857 = vld [vmem:[#allocation13 + $0x30] sm:$0xff]
    %v6858 = vld [vmem:[#allocation13 + $0x38] sm:$0xff]
    %v6859 = vld [vmem:[#allocation13 + $0x40] sm:$0xff]
    %v6860 = vld [vmem:[#allocation13 + $0x48] sm:$0xff]
    %v6861 = vld [vmem:[#allocation13 + $0x50] sm:$0xff]
    %v6862 = vld [vmem:[#allocation13 + $0x58] sm:$0xff]
    %v6863 = vld [vmem:[#allocation13 + $0x60] sm:$0xff]
    %v6864 = vld [vmem:[#allocation13 + $0x68] sm:$0xff]
    %v6865 = vld [vmem:[#allocation13 + $0x70] sm:$0xff]
    %v6866 = vld [vmem:[#allocation13 + $0x78] sm:$0xff]
    %v6867 = vld [vmem:[#allocation13 + $0x80] sm:$0xff]
    %v6868 = vld [vmem:[#allocation13 + $0x88] sm:$0xff]
    %v6869 = vld [vmem:[#allocation13 + $0x90] sm:$0xff]
    %v6870 = vld [vmem:[#allocation13 + $0x98] sm:$0xff]
    %v6871 = vld [vmem:[#allocation13 + $0xa0] sm:$0xff]
    %v6872 = vld [vmem:[#allocation13 + $0xa8] sm:$0xff]
    %v6873 = vld [vmem:[#allocation13 + $0xb0] sm:$0xff]
    %v6874 = vld [vmem:[#allocation13 + $0xb8] sm:$0xff]
    %v6875 = vld [vmem:[#allocation13 + $0xc0] sm:$0xff]
    %v6876 = vld [vmem:[#allocation13 + $0xc8] sm:$0xff]
    %v6877 = vld [vmem:[#allocation13 + $0xd0] sm:$0xff]
    %v6878 = vld [vmem:[#allocation13 + $0xd8] sm:$0xff]
    %v6879 = vld [vmem:[#allocation13 + $0xe0] sm:$0xff]
    %v6880 = vld [vmem:[#allocation13 + $0xe8] sm:$0xff]
    %v6881 = vld [vmem:[#allocation13 + $0xf0] sm:$0xff]
    %v6882 = vld [vmem:[#allocation13 + $0xf8] sm:$0xff]
    %v6883 = vld [vmem:[#allocation13 + $0x100] sm:$0xff]
    %v6884 = vld [vmem:[#allocation13 + $0x108] sm:$0xff]
    %v6885 = vld [vmem:[#allocation13 + $0x110] sm:$0xff]
    %v6886 = vld [vmem:[#allocation13 + $0x118] sm:$0xff]
    %v6887 = vld [vmem:[#allocation13 + $0x120] sm:$0xff]
    %v6888 = vld [vmem:[#allocation13 + $0x128] sm:$0xff]
    %v6889 = vld [vmem:[#allocation13 + $0x130] sm:$0xff]
    %v6890 = vld [vmem:[#allocation13 + $0x138] sm:$0xff]
    %v6891 = vld [vmem:[#allocation13 + $0x140] sm:$0xff]
    %v6892 = vld [vmem:[#allocation13 + $0x148] sm:$0xff]
    %v6893 = vld [vmem:[#allocation13 + $0x150] sm:$0xff]
    %v6894 = vld [vmem:[#allocation13 + $0x158] sm:$0xff]
    %v6895 = vld [vmem:[#allocation13 + $0x160] sm:$0xff]
    %v6896 = vld [vmem:[#allocation13 + $0x168] sm:$0xff]
    %v6897 = vld [vmem:[#allocation13 + $0x170] sm:$0xff]
    %v6898 = vld [vmem:[#allocation13 + $0x178] sm:$0xff]
    %v6899 = vld [vmem:[#allocation13 + $0x180] sm:$0xff]
    %v6900 = vld [vmem:[#allocation13 + $0x188] sm:$0xff]
    %v6901 = vld [vmem:[#allocation13 + $0x190] sm:$0xff]
    %v6902 = vld [vmem:[#allocation13 + $0x198] sm:$0xff]
    %v6903 = vld [vmem:[#allocation13 + $0x1a0] sm:$0xff]
    %v6904 = vld [vmem:[#allocation13 + $0x1a8] sm:$0xff]
    %v6905 = vld [vmem:[#allocation13 + $0x1b0] sm:$0xff]
    %v6906 = vld [vmem:[#allocation13 + $0x1b8] sm:$0xff]
    %v6907 = vld [vmem:[#allocation13 + $0x1c0] sm:$0xff]
    %v6908 = vld [vmem:[#allocation13 + $0x1c8] sm:$0xff]
    %v6909 = vld [vmem:[#allocation13 + $0x1d0] sm:$0xff]
    %v6910 = vld [vmem:[#allocation13 + $0x1d8] sm:$0xff]
    %v6911 = vld [vmem:[#allocation13 + $0x1e0] sm:$0xff]
    %v6912 = vld [vmem:[#allocation13 + $0x1e8] sm:$0xff]
    %v6913 = vld [vmem:[#allocation13 + $0x1f0] sm:$0xff]
    %v6914 = vld [vmem:[#allocation13 + $0x1f8] sm:$0xff]
    %v6979 = vunpack.c.l.b16 %v6851
    %v6980 = vunpack.c.h.b16 %v6851
    %v6981 = vunpack.c.l.b16 %v6852
    %v6982 = vunpack.c.h.b16 %v6852
    %v6983 = vunpack.c.l.b16 %v6853
    %v6984 = vunpack.c.h.b16 %v6853
    %v6985 = vunpack.c.l.b16 %v6854
    %v6986 = vunpack.c.h.b16 %v6854
    %v6987 = vunpack.c.l.b16 %v6855
    %v6988 = vunpack.c.h.b16 %v6855
    %v6989 = vunpack.c.l.b16 %v6856
    %v6990 = vunpack.c.h.b16 %v6856
    %v6991 = vunpack.c.l.b16 %v6857
    %v6992 = vunpack.c.h.b16 %v6857
    %v6993 = vunpack.c.l.b16 %v6858
    %v6994 = vunpack.c.h.b16 %v6858
    %v6995 = vunpack.c.l.b16 %v6859
    %v6996 = vunpack.c.h.b16 %v6859
    %v6997 = vunpack.c.l.b16 %v6860
    %v6998 = vunpack.c.h.b16 %v6860
    %v6999 = vunpack.c.l.b16 %v6861
    %v7000 = vunpack.c.h.b16 %v6861
    %v7001 = vunpack.c.l.b16 %v6862
    %v7002 = vunpack.c.h.b16 %v6862
    %v7003 = vunpack.c.l.b16 %v6863
    %v7004 = vunpack.c.h.b16 %v6863
    %v7005 = vunpack.c.l.b16 %v6864
    %v7006 = vunpack.c.h.b16 %v6864
    %v7007 = vunpack.c.l.b16 %v6865
    %v7008 = vunpack.c.h.b16 %v6865
    %v7009 = vunpack.c.l.b16 %v6866
    %v7010 = vunpack.c.h.b16 %v6866
    %v7011 = vunpack.c.l.b16 %v6867
    %v7012 = vunpack.c.h.b16 %v6867
    %v7013 = vunpack.c.l.b16 %v6868
    %v7014 = vunpack.c.h.b16 %v6868
    %v7015 = vunpack.c.l.b16 %v6869
    %v7016 = vunpack.c.h.b16 %v6869
    %v7017 = vunpack.c.l.b16 %v6870
    %v7018 = vunpack.c.h.b16 %v6870
    %v7019 = vunpack.c.l.b16 %v6871
    %v7020 = vunpack.c.h.b16 %v6871
    %v7021 = vunpack.c.l.b16 %v6872
    %v7022 = vunpack.c.h.b16 %v6872
    %v7023 = vunpack.c.l.b16 %v6873
    %v7024 = vunpack.c.h.b16 %v6873
    %v7025 = vunpack.c.l.b16 %v6874
    %v7026 = vunpack.c.h.b16 %v6874
    %v7027 = vunpack.c.l.b16 %v6875
    %v7028 = vunpack.c.h.b16 %v6875
    %v7029 = vunpack.c.l.b16 %v6876
    %v7030 = vunpack.c.h.b16 %v6876
    %v7031 = vunpack.c.l.b16 %v6877
    %v7032 = vunpack.c.h.b16 %v6877
    %v7033 = vunpack.c.l.b16 %v6878
    %v7034 = vunpack.c.h.b16 %v6878
    %v7035 = vunpack.c.l.b16 %v6879
    %v7036 = vunpack.c.h.b16 %v6879
    %v7037 = vunpack.c.l.b16 %v6880
    %v7038 = vunpack.c.h.b16 %v6880
    %v7039 = vunpack.c.l.b16 %v6881
    %v7040 = vunpack.c.h.b16 %v6881
    %v7041 = vunpack.c.l.b16 %v6882
    %v7042 = vunpack.c.h.b16 %v6882
    %v7043 = vunpack.c.l.b16 %v6883
    %v7044 = vunpack.c.h.b16 %v6883
    %v7045 = vunpack.c.l.b16 %v6884
    %v7046 = vunpack.c.h.b16 %v6884
    %v7047 = vunpack.c.l.b16 %v6885
    %v7048 = vunpack.c.h.b16 %v6885
    %v7049 = vunpack.c.l.b16 %v6886
    %v7050 = vunpack.c.h.b16 %v6886
    %v7051 = vunpack.c.l.b16 %v6887
    %v7052 = vunpack.c.h.b16 %v6887
    %v7053 = vunpack.c.l.b16 %v6888
    %v7054 = vunpack.c.h.b16 %v6888
    %v7055 = vunpack.c.l.b16 %v6889
    %v7056 = vunpack.c.h.b16 %v6889
    %v7057 = vunpack.c.l.b16 %v6890
    %v7058 = vunpack.c.h.b16 %v6890
    %v7059 = vunpack.c.l.b16 %v6891
    %v7060 = vunpack.c.h.b16 %v6891
    %v7061 = vunpack.c.l.b16 %v6892
    %v7062 = vunpack.c.h.b16 %v6892
    %v7063 = vunpack.c.l.b16 %v6893
    %v7064 = vunpack.c.h.b16 %v6893
    %v7065 = vunpack.c.l.b16 %v6894
    %v7066 = vunpack.c.h.b16 %v6894
    %v7067 = vunpack.c.l.b16 %v6895
    %v7068 = vunpack.c.h.b16 %v6895
    %v7069 = vunpack.c.l.b16 %v6896
    %v7070 = vunpack.c.h.b16 %v6896
    %v7071 = vunpack.c.l.b16 %v6897
    %v7072 = vunpack.c.h.b16 %v6897
    %v7073 = vunpack.c.l.b16 %v6898
    %v7074 = vunpack.c.h.b16 %v6898
    %v7075 = vunpack.c.l.b16 %v6899
    %v7076 = vunpack.c.h.b16 %v6899
    %v7077 = vunpack.c.l.b16 %v6900
    %v7078 = vunpack.c.h.b16 %v6900
    %v7079 = vunpack.c.l.b16 %v6901
    %v7080 = vunpack.c.h.b16 %v6901
    %v7081 = vunpack.c.l.b16 %v6902
    %v7082 = vunpack.c.h.b16 %v6902
    %v7083 = vunpack.c.l.b16 %v6903
    %v7084 = vunpack.c.h.b16 %v6903
    %v7085 = vunpack.c.l.b16 %v6904
    %v7086 = vunpack.c.h.b16 %v6904
    %v7087 = vunpack.c.l.b16 %v6905
    %v7088 = vunpack.c.h.b16 %v6905
    %v7089 = vunpack.c.l.b16 %v6906
    %v7090 = vunpack.c.h.b16 %v6906
    %v7091 = vunpack.c.l.b16 %v6907
    %v7092 = vunpack.c.h.b16 %v6907
    %v7093 = vunpack.c.l.b16 %v6908
    %v7094 = vunpack.c.h.b16 %v6908
    %v7095 = vunpack.c.l.b16 %v6909
    %v7096 = vunpack.c.h.b16 %v6909
    %v7097 = vunpack.c.l.b16 %v6910
    %v7098 = vunpack.c.h.b16 %v6910
    %v7099 = vunpack.c.l.b16 %v6911
    %v7100 = vunpack.c.h.b16 %v6911
    %v7101 = vunpack.c.l.b16 %v6912
    %v7102 = vunpack.c.h.b16 %v6912
    %v7103 = vunpack.c.l.b16 %v6913
    %v7104 = vunpack.c.h.b16 %v6913
    %v7105 = vunpack.c.l.b16 %v6914
    %v7106 = vunpack.c.h.b16 %v6914
    %v7107 = vpack.c.b16 %v6983, %v6979
    %v7108 = vpack.c.b16 %v6984, %v6980
    %v7109 = vpack.c.b16 %v6985, %v6981
    %v7110 = vpack.c.b16 %v6986, %v6982
    %v7111 = vpack.c.b16 %v6991, %v6987
    %v7112 = vpack.c.b16 %v6992, %v6988
    %v7113 = vpack.c.b16 %v6993, %v6989
    %v7114 = vpack.c.b16 %v6994, %v6990
    %v7115 = vpack.c.b16 %v6999, %v6995
    %v7116 = vpack.c.b16 %v7000, %v6996
    %v7117 = vpack.c.b16 %v7001, %v6997
    %v7118 = vpack.c.b16 %v7002, %v6998
    %v7119 = vpack.c.b16 %v7007, %v7003
    %v7120 = vpack.c.b16 %v7008, %v7004
    %v7121 = vpack.c.b16 %v7009, %v7005
    %v7122 = vpack.c.b16 %v7010, %v7006
    %v7123 = vpack.c.b16 %v7015, %v7011
    %v7124 = vpack.c.b16 %v7016, %v7012
    %v7125 = vpack.c.b16 %v7017, %v7013
    %v7126 = vpack.c.b16 %v7018, %v7014
    %v7127 = vpack.c.b16 %v7023, %v7019
    %v7128 = vpack.c.b16 %v7024, %v7020
    %v7129 = vpack.c.b16 %v7025, %v7021
    %v7130 = vpack.c.b16 %v7026, %v7022
    %v7131 = vpack.c.b16 %v7031, %v7027
    %v7132 = vpack.c.b16 %v7032, %v7028
    %v7133 = vpack.c.b16 %v7033, %v7029
    %v7134 = vpack.c.b16 %v7034, %v7030
    %v7135 = vpack.c.b16 %v7039, %v7035
    %v7136 = vpack.c.b16 %v7040, %v7036
    %v7137 = vpack.c.b16 %v7041, %v7037
    %v7138 = vpack.c.b16 %v7042, %v7038
    %v7139 = vpack.c.b16 %v7047, %v7043
    %v7140 = vpack.c.b16 %v7048, %v7044
    %v7141 = vpack.c.b16 %v7049, %v7045
    %v7142 = vpack.c.b16 %v7050, %v7046
    %v7143 = vpack.c.b16 %v7055, %v7051
    %v7144 = vpack.c.b16 %v7056, %v7052
    %v7145 = vpack.c.b16 %v7057, %v7053
    %v7146 = vpack.c.b16 %v7058, %v7054
    %v7147 = vpack.c.b16 %v7063, %v7059
    %v7148 = vpack.c.b16 %v7064, %v7060
    %v7149 = vpack.c.b16 %v7065, %v7061
    %v7150 = vpack.c.b16 %v7066, %v7062
    %v7151 = vpack.c.b16 %v7071, %v7067
    %v7152 = vpack.c.b16 %v7072, %v7068
    %v7153 = vpack.c.b16 %v7073, %v7069
    %v7154 = vpack.c.b16 %v7074, %v7070
    %v7155 = vpack.c.b16 %v7079, %v7075
    %v7156 = vpack.c.b16 %v7080, %v7076
    %v7157 = vpack.c.b16 %v7081, %v7077
    %v7158 = vpack.c.b16 %v7082, %v7078
    %v7159 = vpack.c.b16 %v7087, %v7083
    %v7160 = vpack.c.b16 %v7088, %v7084
    %v7161 = vpack.c.b16 %v7089, %v7085
    %v7162 = vpack.c.b16 %v7090, %v7086
    %v7163 = vpack.c.b16 %v7095, %v7091
    %v7164 = vpack.c.b16 %v7096, %v7092
    %v7165 = vpack.c.b16 %v7097, %v7093
    %v7166 = vpack.c.b16 %v7098, %v7094
    %v7167 = vpack.c.b16 %v7103, %v7099
    %v7168 = vpack.c.b16 %v7104, %v7100
    %v7169 = vpack.c.b16 %v7105, %v7101
    %v7170 = vpack.c.b16 %v7106, %v7102
    %7235 = vmatpush.bf16.msra.mxu0 %v7135
    %7236 = vmatpush.bf16.msra.mxu0 %v7131
    %7237 = vmatpush.bf16.msra.mxu0 %v7127
    %7238 = vmatpush.bf16.msra.mxu0 %v7123
    %7239 = vmatpush.bf16.msra.mxu0 %v7119
    %7240 = vmatpush.bf16.msra.mxu0 %v7115
    %7241 = vmatpush.bf16.msra.mxu0 %v7111
    %7242 = vmatpush.bf16.msra.mxu0 %v7107
    %7243 = vmatmul.bf16.gmra.mxu0 %v5427
    %v7244 = vpop.f32.mrf.mxu0
    %v7245 = vadd.f32 %v913, %v7244
    %v7246 = vpop.f32.mrf.mxu0
    %7247 = vdwg.mxu0
    %7248 = vmatpush.bf16.msra.mxu0 %v7167
    %7249 = vmatpush.bf16.msra.mxu0 %v7163
    %7250 = vmatpush.bf16.msra.mxu0 %v7159
    %7251 = vmatpush.bf16.msra.mxu0 %v7155
    %7252 = vmatpush.bf16.msra.mxu0 %v7151
    %7253 = vmatpush.bf16.msra.mxu0 %v7147
    %7254 = vmatpush.bf16.msra.mxu0 %v7143
    %7255 = vmatpush.bf16.msra.mxu0 %v7139
    %7256 = vmatmul.bf16.gmra.mxu0 %v5979
    %v7257 = vpop.f32.mrf.mxu0
    %v7258 = vadd.f32 %v7245, %v7257
    %v7259 = vpop.f32.mrf.mxu0
    %7260 = vdwg.mxu0
    %7261 = vmatpush.bf16.msra.mxu0 %v7136
    %7262 = vmatpush.bf16.msra.mxu0 %v7132
    %7263 = vmatpush.bf16.msra.mxu0 %v7128
    %7264 = vmatpush.bf16.msra.mxu0 %v7124
    %7265 = vmatpush.bf16.msra.mxu0 %v7120
    %7266 = vmatpush.bf16.msra.mxu0 %v7116
    %7267 = vmatpush.bf16.msra.mxu0 %v7112
    %7268 = vmatpush.bf16.msra.mxu0 %v7108
    %7269 = vmatmul.bf16.gmra.mxu0 %v5427
    %v7270 = vpop.f32.mrf.mxu0
    %v7271 = vadd.f32 %v914, %v7270
    %v7272 = vpop.f32.mrf.mxu0
    %7273 = vdwg.mxu0
    %7274 = vmatpush.bf16.msra.mxu0 %v7168
    %7275 = vmatpush.bf16.msra.mxu0 %v7164
    %7276 = vmatpush.bf16.msra.mxu0 %v7160
    %7277 = vmatpush.bf16.msra.mxu0 %v7156
    %7278 = vmatpush.bf16.msra.mxu0 %v7152
    %7279 = vmatpush.bf16.msra.mxu0 %v7148
    %7280 = vmatpush.bf16.msra.mxu0 %v7144
    %7281 = vmatpush.bf16.msra.mxu0 %v7140
    %7282 = vmatmul.bf16.gmra.mxu0 %v5979
    %v7283 = vpop.f32.mrf.mxu0
    %v7284 = vadd.f32 %v7271, %v7283
    %v7285 = vpop.f32.mrf.mxu0
    %7286 = vdwg.mxu0
    %7287 = vmatpush.bf16.msra.mxu0 %v7137
    %7288 = vmatpush.bf16.msra.mxu0 %v7133
    %7289 = vmatpush.bf16.msra.mxu0 %v7129
    %7290 = vmatpush.bf16.msra.mxu0 %v7125
    %7291 = vmatpush.bf16.msra.mxu0 %v7121
    %7292 = vmatpush.bf16.msra.mxu0 %v7117
    %7293 = vmatpush.bf16.msra.mxu0 %v7113
    %7294 = vmatpush.bf16.msra.mxu0 %v7109
    %7295 = vmatmul.bf16.gmra.mxu0 %v5427
    %v7296 = vpop.f32.mrf.mxu0
    %v7297 = vadd.f32 %v915, %v7296
    %v7298 = vpop.f32.mrf.mxu0
    %7299 = vdwg.mxu0
    %7300 = vmatpush.bf16.msra.mxu0 %v7169
    %7301 = vmatpush.bf16.msra.mxu0 %v7165
    %7302 = vmatpush.bf16.msra.mxu0 %v7161
    %7303 = vmatpush.bf16.msra.mxu0 %v7157
    %7304 = vmatpush.bf16.msra.mxu0 %v7153
    %7305 = vmatpush.bf16.msra.mxu0 %v7149
    %7306 = vmatpush.bf16.msra.mxu0 %v7145
    %7307 = vmatpush.bf16.msra.mxu0 %v7141
    %7308 = vmatmul.bf16.gmra.mxu0 %v5979
    %v7309 = vpop.f32.mrf.mxu0
    %v7310 = vadd.f32 %v7297, %v7309
    %v7311 = vpop.f32.mrf.mxu0
    %7312 = vdwg.mxu0
    %7313 = vmatpush.bf16.msra.mxu0 %v7138
    %7314 = vmatpush.bf16.msra.mxu0 %v7134
    %7315 = vmatpush.bf16.msra.mxu0 %v7130
    %7316 = vmatpush.bf16.msra.mxu0 %v7126
    %7317 = vmatpush.bf16.msra.mxu0 %v7122
    %7318 = vmatpush.bf16.msra.mxu0 %v7118
    %7319 = vmatpush.bf16.msra.mxu0 %v7114
    %7320 = vmatpush.bf16.msra.mxu0 %v7110
    %7321 = vmatmul.bf16.gmra.mxu0 %v5427
    %v7322 = vpop.f32.mrf.mxu0
    %v7323 = vadd.f32 %v916, %v7322
    %v7324 = vpop.f32.mrf.mxu0
    %7325 = vdwg.mxu0
    %7326 = vmatpush.bf16.msra.mxu0 %v7170
    %7327 = vmatpush.bf16.msra.mxu0 %v7166
    %7328 = vmatpush.bf16.msra.mxu0 %v7162
    %7329 = vmatpush.bf16.msra.mxu0 %v7158
    %7330 = vmatpush.bf16.msra.mxu0 %v7154
    %7331 = vmatpush.bf16.msra.mxu0 %v7150
    %7332 = vmatpush.bf16.msra.mxu0 %v7146
    %7333 = vmatpush.bf16.msra.mxu0 %v7142
    %7334 = vmatmul.bf16.gmra.mxu0 %v5979
    %v7335 = vpop.f32.mrf.mxu0
    %v7336 = vadd.f32 %v7323, %v7335
    %v7337 = vpop.f32.mrf.mxu0
    %7338 = vdwg.mxu0
    %v7339 = vxor.u32 %v7258, 2147483648
    %v7340 = vxor.u32 %v7284, 2147483648
    %v7341 = vxor.u32 %v7310, 2147483648
    %v7342 = vmul.f32 %v7339, 1.442695
    %v7343 = vpow.pop %v7342
    %v7344 = vmul.f32 %v7340, 1.442695
    %v7345 = vpow.pop %v7344
    %v7346 = vmul.f32 %v7341, 1.442695
    %v7347 = vpow.pop %v7346
    %v7348 = vadd.f32 %v7343, 1.0
    %v7349 = vadd.f32 %v7345, 1.0
    %v7350 = vadd.f32 %v7347, 1.0
    %v7351 = vrcp.pop %v7348
    %v7352 = vmul.f32 %v7348, %v7351
    %v7353 = vsub.f32 1.0, %v7352
    %v7354 = vmul.f32 %v7351, %v7353
    %v7355 = vadd.f32 %v7351, %v7354
    %vm7356 = vweird.f32 %v7348
    %vm7357 = vweird.f32 %v7351
    %vm7358 = vmor %vm7356, %vm7357
    %v7359 = vsel %vm7358, %v7351, %v7355
    %v7360 = vand.u32 2147483647, %v7348
    %vm7361 = vcmp.eq.f32.partialorder %v7360, 8.507059e+37
    %v7362 = vand.u32 %v7348, 2147483648
    %v7363 = vor.u32 1.1754944e-38, %v7362
    %v7364 = vsel %vm7361, %v7363, %v7359
    %v7365 = vmul.f32 1.0, %v7364
    %v7366 = vrcp.pop %v7349
    %v7367 = vmul.f32 %v7349, %v7366
    %v7368 = vsub.f32 1.0, %v7367
    %v7369 = vmul.f32 %v7366, %v7368
    %v7370 = vadd.f32 %v7366, %v7369
    %vm7371 = vweird.f32 %v7349
    %vm7372 = vweird.f32 %v7366
    %vm7373 = vmor %vm7371, %vm7372
    %v7374 = vsel %vm7373, %v7366, %v7370
    %v7375 = vand.u32 2147483647, %v7349
    %vm7376 = vcmp.eq.f32.partialorder %v7375, 8.507059e+37
    %v7377 = vand.u32 %v7349, 2147483648
    %v7378 = vor.u32 1.1754944e-38, %v7377
    %v7379 = vsel %vm7376, %v7378, %v7374
    %v7380 = vmul.f32 1.0, %v7379
    %v7381 = vrcp.pop %v7350
    %v7382 = vmul.f32 %v7350, %v7381
    %v7383 = vsub.f32 1.0, %v7382
    %v7384 = vmul.f32 %v7381, %v7383
    %v7385 = vadd.f32 %v7381, %v7384
    %vm7386 = vweird.f32 %v7350
    %vm7387 = vweird.f32 %v7381
    %vm7388 = vmor %vm7386, %vm7387
    %v7389 = vsel %vm7388, %v7381, %v7385
    %v7390 = vand.u32 2147483647, %v7350
    %vm7391 = vcmp.eq.f32.partialorder %v7390, 8.507059e+37
    %v7392 = vand.u32 %v7350, 2147483648
    %v7393 = vor.u32 1.1754944e-38, %v7392
    %v7394 = vsel %vm7391, %v7393, %v7389
    %v7395 = vmul.f32 1.0, %v7394
    %v7396 = vtanh.pop %v7336
    %v7397 = vmul.f32 %v7380, %v5976
    %v7398 = vmul.f32 %v7365, %v7396
    %v7399 = vadd.f32 %v7397, %v7398
    %v7400 = vtanh.pop %v7399
    %v7401 = vmul.f32 %v7395, %v7400
    %v7402 = vpack.c.bf16 %v7401, %v7401
    %v7403 = vld [vmem:[%s1702] sm:$0xff]
    %v7404 = vld [vmem:[%s1702 + $0x8] sm:$0xff]
    %v7405 = vld [vmem:[%s1702 + $0x10] sm:$0xff]
    %v7406 = vld [vmem:[%s1702 + $0x18] sm:$0xff]
    %v7407 = vld [vmem:[%s1702 + $0x20] sm:$0xff]
    %v7408 = vld [vmem:[%s1702 + $0x28] sm:$0xff]
    %v7409 = vld [vmem:[%s1702 + $0x30] sm:$0xff]
    %v7410 = vld [vmem:[%s1702 + $0x38] sm:$0xff]
    %v7411 = vld [vmem:[%s1702 + $0x40] sm:$0xff]
    %v7412 = vld [vmem:[%s1702 + $0x48] sm:$0xff]
    %v7413 = vld [vmem:[%s1702 + $0x50] sm:$0xff]
    %v7414 = vld [vmem:[%s1702 + $0x58] sm:$0xff]
    %v7415 = vld [vmem:[%s1702 + $0x60] sm:$0xff]
    %v7416 = vld [vmem:[%s1702 + $0x68] sm:$0xff]
    %v7417 = vld [vmem:[%s1702 + $0x70] sm:$0xff]
    %v7418 = vld [vmem:[%s1702 + $0x78] sm:$0xff]
    %v7419 = vld [vmem:[%s1702 + $0x80] sm:$0xff]
    %v7420 = vld [vmem:[%s1702 + $0x88] sm:$0xff]
    %v7421 = vld [vmem:[%s1702 + $0x90] sm:$0xff]
    %v7422 = vld [vmem:[%s1702 + $0x98] sm:$0xff]
    %v7423 = vld [vmem:[%s1702 + $0xa0] sm:$0xff]
    %v7424 = vld [vmem:[%s1702 + $0xa8] sm:$0xff]
    %v7425 = vld [vmem:[%s1702 + $0xb0] sm:$0xff]
    %v7426 = vld [vmem:[%s1702 + $0xb8] sm:$0xff]
    %v7427 = vld [vmem:[%s1702 + $0xc0] sm:$0xff]
    %v7428 = vld [vmem:[%s1702 + $0xc8] sm:$0xff]
    %v7429 = vld [vmem:[%s1702 + $0xd0] sm:$0xff]
    %v7430 = vld [vmem:[%s1702 + $0xd8] sm:$0xff]
    %v7431 = vld [vmem:[%s1702 + $0xe0] sm:$0xff]
    %v7432 = vld [vmem:[%s1702 + $0xe8] sm:$0xff]
    %v7433 = vld [vmem:[%s1702 + $0xf0] sm:$0xff]
    %v7434 = vld [vmem:[%s1702 + $0xf8] sm:$0xff]
    %v7435 = vld [vmem:[%s1702 + $0x100] sm:$0xff]
    %v7436 = vld [vmem:[%s1702 + $0x108] sm:$0xff]
    %v7437 = vld [vmem:[%s1702 + $0x110] sm:$0xff]
    %v7438 = vld [vmem:[%s1702 + $0x118] sm:$0xff]
    %v7439 = vld [vmem:[%s1702 + $0x120] sm:$0xff]
    %v7440 = vld [vmem:[%s1702 + $0x128] sm:$0xff]
    %v7441 = vld [vmem:[%s1702 + $0x130] sm:$0xff]
    %v7442 = vld [vmem:[%s1702 + $0x138] sm:$0xff]
    %v7443 = vld [vmem:[%s1702 + $0x140] sm:$0xff]
    %v7444 = vld [vmem:[%s1702 + $0x148] sm:$0xff]
    %v7445 = vld [vmem:[%s1702 + $0x150] sm:$0xff]
    %v7446 = vld [vmem:[%s1702 + $0x158] sm:$0xff]
    %v7447 = vld [vmem:[%s1702 + $0x160] sm:$0xff]
    %v7448 = vld [vmem:[%s1702 + $0x168] sm:$0xff]
    %v7449 = vld [vmem:[%s1702 + $0x170] sm:$0xff]
    %v7450 = vld [vmem:[%s1702 + $0x178] sm:$0xff]
    %v7451 = vld [vmem:[%s1702 + $0x180] sm:$0xff]
    %v7452 = vld [vmem:[%s1702 + $0x188] sm:$0xff]
    %v7453 = vld [vmem:[%s1702 + $0x190] sm:$0xff]
    %v7454 = vld [vmem:[%s1702 + $0x198] sm:$0xff]
    %v7455 = vld [vmem:[%s1702 + $0x1a0] sm:$0xff]
    %v7456 = vld [vmem:[%s1702 + $0x1a8] sm:$0xff]
    %v7457 = vld [vmem:[%s1702 + $0x1b0] sm:$0xff]
    %v7458 = vld [vmem:[%s1702 + $0x1b8] sm:$0xff]
    %v7459 = vld [vmem:[%s1702 + $0x1c0] sm:$0xff]
    %v7460 = vld [vmem:[%s1702 + $0x1c8] sm:$0xff]
    %v7461 = vld [vmem:[%s1702 + $0x1d0] sm:$0xff]
    %v7462 = vld [vmem:[%s1702 + $0x1d8] sm:$0xff]
    %v7463 = vld [vmem:[%s1702 + $0x1e0] sm:$0xff]
    %v7464 = vld [vmem:[%s1702 + $0x1e8] sm:$0xff]
    %v7465 = vld [vmem:[%s1702 + $0x1f0] sm:$0xff]
    %v7466 = vld [vmem:[%s1702 + $0x1f8] sm:$0xff]
    %v7531 = vunpack.c.l.b16 %v7403
    %v7532 = vunpack.c.h.b16 %v7403
    %v7533 = vunpack.c.l.b16 %v7404
    %v7534 = vunpack.c.h.b16 %v7404
    %v7535 = vunpack.c.l.b16 %v7405
    %v7536 = vunpack.c.h.b16 %v7405
    %v7537 = vunpack.c.l.b16 %v7406
    %v7538 = vunpack.c.h.b16 %v7406
    %v7539 = vunpack.c.l.b16 %v7407
    %v7540 = vunpack.c.h.b16 %v7407
    %v7541 = vunpack.c.l.b16 %v7408
    %v7542 = vunpack.c.h.b16 %v7408
    %v7543 = vunpack.c.l.b16 %v7409
    %v7544 = vunpack.c.h.b16 %v7409
    %v7545 = vunpack.c.l.b16 %v7410
    %v7546 = vunpack.c.h.b16 %v7410
    %v7547 = vunpack.c.l.b16 %v7411
    %v7548 = vunpack.c.h.b16 %v7411
    %v7549 = vunpack.c.l.b16 %v7412
    %v7550 = vunpack.c.h.b16 %v7412
    %v7551 = vunpack.c.l.b16 %v7413
    %v7552 = vunpack.c.h.b16 %v7413
    %v7553 = vunpack.c.l.b16 %v7414
    %v7554 = vunpack.c.h.b16 %v7414
    %v7555 = vunpack.c.l.b16 %v7415
    %v7556 = vunpack.c.h.b16 %v7415
    %v7557 = vunpack.c.l.b16 %v7416
    %v7558 = vunpack.c.h.b16 %v7416
    %v7559 = vunpack.c.l.b16 %v7417
    %v7560 = vunpack.c.h.b16 %v7417
    %v7561 = vunpack.c.l.b16 %v7418
    %v7562 = vunpack.c.h.b16 %v7418
    %v7563 = vunpack.c.l.b16 %v7419
    %v7564 = vunpack.c.h.b16 %v7419
    %v7565 = vunpack.c.l.b16 %v7420
    %v7566 = vunpack.c.h.b16 %v7420
    %v7567 = vunpack.c.l.b16 %v7421
    %v7568 = vunpack.c.h.b16 %v7421
    %v7569 = vunpack.c.l.b16 %v7422
    %v7570 = vunpack.c.h.b16 %v7422
    %v7571 = vunpack.c.l.b16 %v7423
    %v7572 = vunpack.c.h.b16 %v7423
    %v7573 = vunpack.c.l.b16 %v7424
    %v7574 = vunpack.c.h.b16 %v7424
    %v7575 = vunpack.c.l.b16 %v7425
    %v7576 = vunpack.c.h.b16 %v7425
    %v7577 = vunpack.c.l.b16 %v7426
    %v7578 = vunpack.c.h.b16 %v7426
    %v7579 = vunpack.c.l.b16 %v7427
    %v7580 = vunpack.c.h.b16 %v7427
    %v7581 = vunpack.c.l.b16 %v7428
    %v7582 = vunpack.c.h.b16 %v7428
    %v7583 = vunpack.c.l.b16 %v7429
    %v7584 = vunpack.c.h.b16 %v7429
    %v7585 = vunpack.c.l.b16 %v7430
    %v7586 = vunpack.c.h.b16 %v7430
    %v7587 = vunpack.c.l.b16 %v7431
    %v7588 = vunpack.c.h.b16 %v7431
    %v7589 = vunpack.c.l.b16 %v7432
    %v7590 = vunpack.c.h.b16 %v7432
    %v7591 = vunpack.c.l.b16 %v7433
    %v7592 = vunpack.c.h.b16 %v7433
    %v7593 = vunpack.c.l.b16 %v7434
    %v7594 = vunpack.c.h.b16 %v7434
    %v7595 = vunpack.c.l.b16 %v7435
    %v7596 = vunpack.c.h.b16 %v7435
    %v7597 = vunpack.c.l.b16 %v7436
    %v7598 = vunpack.c.h.b16 %v7436
    %v7599 = vunpack.c.l.b16 %v7437
    %v7600 = vunpack.c.h.b16 %v7437
    %v7601 = vunpack.c.l.b16 %v7438
    %v7602 = vunpack.c.h.b16 %v7438
    %v7603 = vunpack.c.l.b16 %v7439
    %v7604 = vunpack.c.h.b16 %v7439
    %v7605 = vunpack.c.l.b16 %v7440
    %v7606 = vunpack.c.h.b16 %v7440
    %v7607 = vunpack.c.l.b16 %v7441
    %v7608 = vunpack.c.h.b16 %v7441
    %v7609 = vunpack.c.l.b16 %v7442
    %v7610 = vunpack.c.h.b16 %v7442
    %v7611 = vunpack.c.l.b16 %v7443
    %v7612 = vunpack.c.h.b16 %v7443
    %v7613 = vunpack.c.l.b16 %v7444
    %v7614 = vunpack.c.h.b16 %v7444
    %v7615 = vunpack.c.l.b16 %v7445
    %v7616 = vunpack.c.h.b16 %v7445
    %v7617 = vunpack.c.l.b16 %v7446
    %v7618 = vunpack.c.h.b16 %v7446
    %v7619 = vunpack.c.l.b16 %v7447
    %v7620 = vunpack.c.h.b16 %v7447
    %v7621 = vunpack.c.l.b16 %v7448
    %v7622 = vunpack.c.h.b16 %v7448
    %v7623 = vunpack.c.l.b16 %v7449
    %v7624 = vunpack.c.h.b16 %v7449
    %v7625 = vunpack.c.l.b16 %v7450
    %v7626 = vunpack.c.h.b16 %v7450
    %v7627 = vunpack.c.l.b16 %v7451
    %v7628 = vunpack.c.h.b16 %v7451
    %v7629 = vunpack.c.l.b16 %v7452
    %v7630 = vunpack.c.h.b16 %v7452
    %v7631 = vunpack.c.l.b16 %v7453
    %v7632 = vunpack.c.h.b16 %v7453
    %v7633 = vunpack.c.l.b16 %v7454
    %v7634 = vunpack.c.h.b16 %v7454
    %v7635 = vunpack.c.l.b16 %v7455
    %v7636 = vunpack.c.h.b16 %v7455
    %v7637 = vunpack.c.l.b16 %v7456
    %v7638 = vunpack.c.h.b16 %v7456
    %v7639 = vunpack.c.l.b16 %v7457
    %v7640 = vunpack.c.h.b16 %v7457
    %v7641 = vunpack.c.l.b16 %v7458
    %v7642 = vunpack.c.h.b16 %v7458
    %v7643 = vunpack.c.l.b16 %v7459
    %v7644 = vunpack.c.h.b16 %v7459
    %v7645 = vunpack.c.l.b16 %v7460
    %v7646 = vunpack.c.h.b16 %v7460
    %v7647 = vunpack.c.l.b16 %v7461
    %v7648 = vunpack.c.h.b16 %v7461
    %v7649 = vunpack.c.l.b16 %v7462
    %v7650 = vunpack.c.h.b16 %v7462
    %v7651 = vunpack.c.l.b16 %v7463
    %v7652 = vunpack.c.h.b16 %v7463
    %v7653 = vunpack.c.l.b16 %v7464
    %v7654 = vunpack.c.h.b16 %v7464
    %v7655 = vunpack.c.l.b16 %v7465
    %v7656 = vunpack.c.h.b16 %v7465
    %v7657 = vunpack.c.l.b16 %v7466
    %v7658 = vunpack.c.h.b16 %v7466
    %v7659 = vpack.c.b16 %v7535, %v7531
    %v7660 = vpack.c.b16 %v7536, %v7532
    %v7661 = vpack.c.b16 %v7537, %v7533
    %v7662 = vpack.c.b16 %v7538, %v7534
    %v7663 = vpack.c.b16 %v7543, %v7539
    %v7664 = vpack.c.b16 %v7544, %v7540
    %v7665 = vpack.c.b16 %v7545, %v7541
    %v7666 = vpack.c.b16 %v7546, %v7542
    %v7667 = vpack.c.b16 %v7551, %v7547
    %v7668 = vpack.c.b16 %v7552, %v7548
    %v7669 = vpack.c.b16 %v7553, %v7549
    %v7670 = vpack.c.b16 %v7554, %v7550
    %v7671 = vpack.c.b16 %v7559, %v7555
    %v7672 = vpack.c.b16 %v7560, %v7556
    %v7673 = vpack.c.b16 %v7561, %v7557
    %v7674 = vpack.c.b16 %v7562, %v7558
    %v7675 = vpack.c.b16 %v7567, %v7563
    %v7676 = vpack.c.b16 %v7568, %v7564
    %v7677 = vpack.c.b16 %v7569, %v7565
    %v7678 = vpack.c.b16 %v7570, %v7566
    %v7679 = vpack.c.b16 %v7575, %v7571
    %v7680 = vpack.c.b16 %v7576, %v7572
    %v7681 = vpack.c.b16 %v7577, %v7573
    %v7682 = vpack.c.b16 %v7578, %v7574
    %v7683 = vpack.c.b16 %v7583, %v7579
    %v7684 = vpack.c.b16 %v7584, %v7580
    %v7685 = vpack.c.b16 %v7585, %v7581
    %v7686 = vpack.c.b16 %v7586, %v7582
    %v7687 = vpack.c.b16 %v7591, %v7587
    %v7688 = vpack.c.b16 %v7592, %v7588
    %v7689 = vpack.c.b16 %v7593, %v7589
    %v7690 = vpack.c.b16 %v7594, %v7590
    %v7691 = vpack.c.b16 %v7599, %v7595
    %v7692 = vpack.c.b16 %v7600, %v7596
    %v7693 = vpack.c.b16 %v7601, %v7597
    %v7694 = vpack.c.b16 %v7602, %v7598
    %v7695 = vpack.c.b16 %v7607, %v7603
    %v7696 = vpack.c.b16 %v7608, %v7604
    %v7697 = vpack.c.b16 %v7609, %v7605
    %v7698 = vpack.c.b16 %v7610, %v7606
    %v7699 = vpack.c.b16 %v7615, %v7611
    %v7700 = vpack.c.b16 %v7616, %v7612
    %v7701 = vpack.c.b16 %v7617, %v7613
    %v7702 = vpack.c.b16 %v7618, %v7614
    %v7703 = vpack.c.b16 %v7623, %v7619
    %v7704 = vpack.c.b16 %v7624, %v7620
    %v7705 = vpack.c.b16 %v7625, %v7621
    %v7706 = vpack.c.b16 %v7626, %v7622
    %v7707 = vpack.c.b16 %v7631, %v7627
    %v7708 = vpack.c.b16 %v7632, %v7628
    %v7709 = vpack.c.b16 %v7633, %v7629
    %v7710 = vpack.c.b16 %v7634, %v7630
    %v7711 = vpack.c.b16 %v7639, %v7635
    %v7712 = vpack.c.b16 %v7640, %v7636
    %v7713 = vpack.c.b16 %v7641, %v7637
    %v7714 = vpack.c.b16 %v7642, %v7638
    %v7715 = vpack.c.b16 %v7647, %v7643
    %v7716 = vpack.c.b16 %v7648, %v7644
    %v7717 = vpack.c.b16 %v7649, %v7645
    %v7718 = vpack.c.b16 %v7650, %v7646
    %v7719 = vpack.c.b16 %v7655, %v7651
    %v7720 = vpack.c.b16 %v7656, %v7652
    %v7721 = vpack.c.b16 %v7657, %v7653
    %v7722 = vpack.c.b16 %v7658, %v7654
    %7787 = vmatpush.bf16.msra.mxu0 %v7687
    %7788 = vmatpush.bf16.msra.mxu0 %v7683
    %7789 = vmatpush.bf16.msra.mxu0 %v7679
    %7790 = vmatpush.bf16.msra.mxu0 %v7675
    %7791 = vmatpush.bf16.msra.mxu0 %v7671
    %7792 = vmatpush.bf16.msra.mxu0 %v7667
    %7793 = vmatpush.bf16.msra.mxu0 %v7663
    %7794 = vmatpush.bf16.msra.mxu0 %v7659
    %7795 = vmatmul.bf16.gmra.mxu0 %v5979
    %v7796 = vpop.f32.mrf.mxu0
    %v7797 = vadd.f32 %v1768, %v7796
    %v7798 = vpop.f32.mrf.mxu0
    %7799 = vdwg.mxu0
    %7800 = vmatpush.bf16.msra.mxu0 %v7719
    %7801 = vmatpush.bf16.msra.mxu0 %v7715
    %7802 = vmatpush.bf16.msra.mxu0 %v7711
    %7803 = vmatpush.bf16.msra.mxu0 %v7707
    %7804 = vmatpush.bf16.msra.mxu0 %v7703
    %7805 = vmatpush.bf16.msra.mxu0 %v7699
    %7806 = vmatpush.bf16.msra.mxu0 %v7695
    %7807 = vmatpush.bf16.msra.mxu0 %v7691
    %7808 = vmatmul.bf16.gmra.mxu0 %v6531
    %v7809 = vpop.f32.mrf.mxu0
    %v7810 = vadd.f32 %v7797, %v7809
    %v7811 = vpop.f32.mrf.mxu0
    %7812 = vdwg.mxu0
    %7813 = vmatpush.bf16.msra.mxu0 %v7688
    %7814 = vmatpush.bf16.msra.mxu0 %v7684
    %7815 = vmatpush.bf16.msra.mxu0 %v7680
    %7816 = vmatpush.bf16.msra.mxu0 %v7676
    %7817 = vmatpush.bf16.msra.mxu0 %v7672
    %7818 = vmatpush.bf16.msra.mxu0 %v7668
    %7819 = vmatpush.bf16.msra.mxu0 %v7664
    %7820 = vmatpush.bf16.msra.mxu0 %v7660
    %7821 = vmatmul.bf16.gmra.mxu0 %v5979
    %v7822 = vpop.f32.mrf.mxu0
    %v7823 = vadd.f32 %v1769, %v7822
    %v7824 = vpop.f32.mrf.mxu0
    %7825 = vdwg.mxu0
    %7826 = vmatpush.bf16.msra.mxu0 %v7720
    %7827 = vmatpush.bf16.msra.mxu0 %v7716
    %7828 = vmatpush.bf16.msra.mxu0 %v7712
    %7829 = vmatpush.bf16.msra.mxu0 %v7708
    %7830 = vmatpush.bf16.msra.mxu0 %v7704
    %7831 = vmatpush.bf16.msra.mxu0 %v7700
    %7832 = vmatpush.bf16.msra.mxu0 %v7696
    %7833 = vmatpush.bf16.msra.mxu0 %v7692
    %7834 = vmatmul.bf16.gmra.mxu0 %v6531
    %v7835 = vpop.f32.mrf.mxu0
    %v7836 = vadd.f32 %v7823, %v7835
    %v7837 = vpop.f32.mrf.mxu0
    %7838 = vdwg.mxu0
    %7839 = vmatpush.bf16.msra.mxu0 %v7689
    %7840 = vmatpush.bf16.msra.mxu0 %v7685
    %7841 = vmatpush.bf16.msra.mxu0 %v7681
    %7842 = vmatpush.bf16.msra.mxu0 %v7677
    %7843 = vmatpush.bf16.msra.mxu0 %v7673
    %7844 = vmatpush.bf16.msra.mxu0 %v7669
    %7845 = vmatpush.bf16.msra.mxu0 %v7665
    %7846 = vmatpush.bf16.msra.mxu0 %v7661
    %7847 = vmatmul.bf16.gmra.mxu0 %v5979
    %v7848 = vpop.f32.mrf.mxu0
    %v7849 = vadd.f32 %v1770, %v7848
    %v7850 = vpop.f32.mrf.mxu0
    %7851 = vdwg.mxu0
    %7852 = vmatpush.bf16.msra.mxu0 %v7721
    %7853 = vmatpush.bf16.msra.mxu0 %v7717
    %7854 = vmatpush.bf16.msra.mxu0 %v7713
    %7855 = vmatpush.bf16.msra.mxu0 %v7709
    %7856 = vmatpush.bf16.msra.mxu0 %v7705
    %7857 = vmatpush.bf16.msra.mxu0 %v7701
    %7858 = vmatpush.bf16.msra.mxu0 %v7697
    %7859 = vmatpush.bf16.msra.mxu0 %v7693
    %7860 = vmatmul.bf16.gmra.mxu0 %v6531
    %v7861 = vpop.f32.mrf.mxu0
    %v7862 = vadd.f32 %v7849, %v7861
    %v7863 = vpop.f32.mrf.mxu0
    %7864 = vdwg.mxu0
    %7865 = vmatpush.bf16.msra.mxu0 %v7690
    %7866 = vmatpush.bf16.msra.mxu0 %v7686
    %7867 = vmatpush.bf16.msra.mxu0 %v7682
    %7868 = vmatpush.bf16.msra.mxu0 %v7678
    %7869 = vmatpush.bf16.msra.mxu0 %v7674
    %7870 = vmatpush.bf16.msra.mxu0 %v7670
    %7871 = vmatpush.bf16.msra.mxu0 %v7666
    %7872 = vmatpush.bf16.msra.mxu0 %v7662
    %7873 = vmatmul.bf16.gmra.mxu0 %v5979
    %v7874 = vpop.f32.mrf.mxu0
    %v7875 = vadd.f32 %v1771, %v7874
    %v7876 = vpop.f32.mrf.mxu0
    %7877 = vdwg.mxu0
    %7878 = vmatpush.bf16.msra.mxu0 %v7722
    %7879 = vmatpush.bf16.msra.mxu0 %v7718
    %7880 = vmatpush.bf16.msra.mxu0 %v7714
    %7881 = vmatpush.bf16.msra.mxu0 %v7710
    %7882 = vmatpush.bf16.msra.mxu0 %v7706
    %7883 = vmatpush.bf16.msra.mxu0 %v7702
    %7884 = vmatpush.bf16.msra.mxu0 %v7698
    %7885 = vmatpush.bf16.msra.mxu0 %v7694
    %7886 = vmatmul.bf16.gmra.mxu0 %v6531
    %v7887 = vpop.f32.mrf.mxu0
    %v7888 = vadd.f32 %v7875, %v7887
    %v7889 = vpop.f32.mrf.mxu0
    %7890 = vdwg.mxu0
    %v7891 = vxor.u32 %v7810, 2147483648
    %v7892 = vxor.u32 %v7836, 2147483648
    %v7893 = vxor.u32 %v7862, 2147483648
    %v7894 = vmul.f32 %v7891, 1.442695
    %v7895 = vpow.pop %v7894
    %v7896 = vmul.f32 %v7892, 1.442695
    %v7897 = vpow.pop %v7896
    %v7898 = vmul.f32 %v7893, 1.442695
    %v7899 = vpow.pop %v7898
    %v7900 = vadd.f32 %v7895, 1.0
    %v7901 = vadd.f32 %v7897, 1.0
    %v7902 = vadd.f32 %v7899, 1.0
    %v7903 = vrcp.pop %v7900
    %v7904 = vmul.f32 %v7900, %v7903
    %v7905 = vsub.f32 1.0, %v7904
    %v7906 = vmul.f32 %v7903, %v7905
    %v7907 = vadd.f32 %v7903, %v7906
    %vm7908 = vweird.f32 %v7900
    %vm7909 = vweird.f32 %v7903
    %vm7910 = vmor %vm7908, %vm7909
    %v7911 = vsel %vm7910, %v7903, %v7907
    %v7912 = vand.u32 2147483647, %v7900
    %vm7913 = vcmp.eq.f32.partialorder %v7912, 8.507059e+37
    %v7914 = vand.u32 %v7900, 2147483648
    %v7915 = vor.u32 1.1754944e-38, %v7914
    %v7916 = vsel %vm7913, %v7915, %v7911
    %v7917 = vmul.f32 1.0, %v7916
    %v7918 = vrcp.pop %v7901
    %v7919 = vmul.f32 %v7901, %v7918
    %v7920 = vsub.f32 1.0, %v7919
    %v7921 = vmul.f32 %v7918, %v7920
    %v7922 = vadd.f32 %v7918, %v7921
    %vm7923 = vweird.f32 %v7901
    %vm7924 = vweird.f32 %v7918
    %vm7925 = vmor %vm7923, %vm7924
    %v7926 = vsel %vm7925, %v7918, %v7922
    %v7927 = vand.u32 2147483647, %v7901
    %vm7928 = vcmp.eq.f32.partialorder %v7927, 8.507059e+37
    %v7929 = vand.u32 %v7901, 2147483648
    %v7930 = vor.u32 1.1754944e-38, %v7929
    %v7931 = vsel %vm7928, %v7930, %v7926
    %v7932 = vmul.f32 1.0, %v7931
    %v7933 = vrcp.pop %v7902
    %v7934 = vmul.f32 %v7902, %v7933
    %v7935 = vsub.f32 1.0, %v7934
    %v7936 = vmul.f32 %v7933, %v7935
    %v7937 = vadd.f32 %v7933, %v7936
    %vm7938 = vweird.f32 %v7902
    %vm7939 = vweird.f32 %v7933
    %vm7940 = vmor %vm7938, %vm7939
    %v7941 = vsel %vm7940, %v7933, %v7937
    %v7942 = vand.u32 2147483647, %v7902
    %vm7943 = vcmp.eq.f32.partialorder %v7942, 8.507059e+37
    %v7944 = vand.u32 %v7902, 2147483648
    %v7945 = vor.u32 1.1754944e-38, %v7944
    %v7946 = vsel %vm7943, %v7945, %v7941
    %v7947 = vmul.f32 1.0, %v7946
    %v7948 = vtanh.pop %v7888
    %v7949 = vmul.f32 %v7932, %v6528
    %v7950 = vmul.f32 %v7917, %v7948
    %v7951 = vadd.f32 %v7949, %v7950
    %v7952 = vtanh.pop %v7951
    %v7953 = vmul.f32 %v7947, %v7952
    %v7954 = vpack.c.bf16 %v7953, %v7953
    %s7955 = scalar_lea.vmem [#allocation3], 16
    %7956 = vst [vmem:[%s7955] sm:$0xf] %v7954
    %s7957 = scalar_lea.vmem [#allocation2], 224
    %v7958 = vld [vmem:[%s7957] sm:$0xff]
    %v7959 = vld [vmem:[%s7957 + $0x8] sm:$0xff]
    %v7960 = vld [vmem:[%s7957 + $0x10] sm:$0xff]
    %v7961 = vld [vmem:[%s7957 + $0x18] sm:$0xff]
    %v7962 = vld [vmem:[#allocation12] sm:$0xff]
    %v7963 = vld [vmem:[#allocation12 + $0x8] sm:$0xff]
    %v7964 = vld [vmem:[#allocation12 + $0x10] sm:$0xff]
    %v7965 = vld [vmem:[#allocation12 + $0x18] sm:$0xff]
    %v7966 = vld [vmem:[#allocation12 + $0x20] sm:$0xff]
    %v7967 = vld [vmem:[#allocation12 + $0x28] sm:$0xff]
    %v7968 = vld [vmem:[#allocation12 + $0x30] sm:$0xff]
    %v7969 = vld [vmem:[#allocation12 + $0x38] sm:$0xff]
    %v7970 = vld [vmem:[#allocation12 + $0x40] sm:$0xff]
    %v7971 = vld [vmem:[#allocation12 + $0x48] sm:$0xff]
    %v7972 = vld [vmem:[#allocation12 + $0x50] sm:$0xff]
    %v7973 = vld [vmem:[#allocation12 + $0x58] sm:$0xff]
    %v7974 = vld [vmem:[#allocation12 + $0x60] sm:$0xff]
    %v7975 = vld [vmem:[#allocation12 + $0x68] sm:$0xff]
    %v7976 = vld [vmem:[#allocation12 + $0x70] sm:$0xff]
    %v7977 = vld [vmem:[#allocation12 + $0x78] sm:$0xff]
    %v7978 = vld [vmem:[#allocation12 + $0x80] sm:$0xff]
    %v7979 = vld [vmem:[#allocation12 + $0x88] sm:$0xff]
    %v7980 = vld [vmem:[#allocation12 + $0x90] sm:$0xff]
    %v7981 = vld [vmem:[#allocation12 + $0x98] sm:$0xff]
    %v7982 = vld [vmem:[#allocation12 + $0xa0] sm:$0xff]
    %v7983 = vld [vmem:[#allocation12 + $0xa8] sm:$0xff]
    %v7984 = vld [vmem:[#allocation12 + $0xb0] sm:$0xff]
    %v7985 = vld [vmem:[#allocation12 + $0xb8] sm:$0xff]
    %v7986 = vld [vmem:[#allocation12 + $0xc0] sm:$0xff]
    %v7987 = vld [vmem:[#allocation12 + $0xc8] sm:$0xff]
    %v7988 = vld [vmem:[#allocation12 + $0xd0] sm:$0xff]
    %v7989 = vld [vmem:[#allocation12 + $0xd8] sm:$0xff]
    %v7990 = vld [vmem:[#allocation12 + $0xe0] sm:$0xff]
    %v7991 = vld [vmem:[#allocation12 + $0xe8] sm:$0xff]
    %v7992 = vld [vmem:[#allocation12 + $0xf0] sm:$0xff]
    %v7993 = vld [vmem:[#allocation12 + $0xf8] sm:$0xff]
    %v8026 = vunpack.c.l.b16 %v7962
    %v8027 = vunpack.c.h.b16 %v7962
    %v8028 = vunpack.c.l.b16 %v7963
    %v8029 = vunpack.c.h.b16 %v7963
    %v8030 = vunpack.c.l.b16 %v7964
    %v8031 = vunpack.c.h.b16 %v7964
    %v8032 = vunpack.c.l.b16 %v7965
    %v8033 = vunpack.c.h.b16 %v7965
    %v8034 = vunpack.c.l.b16 %v7966
    %v8035 = vunpack.c.h.b16 %v7966
    %v8036 = vunpack.c.l.b16 %v7967
    %v8037 = vunpack.c.h.b16 %v7967
    %v8038 = vunpack.c.l.b16 %v7968
    %v8039 = vunpack.c.h.b16 %v7968
    %v8040 = vunpack.c.l.b16 %v7969
    %v8041 = vunpack.c.h.b16 %v7969
    %v8042 = vunpack.c.l.b16 %v7970
    %v8043 = vunpack.c.h.b16 %v7970
    %v8044 = vunpack.c.l.b16 %v7971
    %v8045 = vunpack.c.h.b16 %v7971
    %v8046 = vunpack.c.l.b16 %v7972
    %v8047 = vunpack.c.h.b16 %v7972
    %v8048 = vunpack.c.l.b16 %v7973
    %v8049 = vunpack.c.h.b16 %v7973
    %v8050 = vunpack.c.l.b16 %v7974
    %v8051 = vunpack.c.h.b16 %v7974
    %v8052 = vunpack.c.l.b16 %v7975
    %v8053 = vunpack.c.h.b16 %v7975
    %v8054 = vunpack.c.l.b16 %v7976
    %v8055 = vunpack.c.h.b16 %v7976
    %v8056 = vunpack.c.l.b16 %v7977
    %v8057 = vunpack.c.h.b16 %v7977
    %v8058 = vunpack.c.l.b16 %v7978
    %v8059 = vunpack.c.h.b16 %v7978
    %v8060 = vunpack.c.l.b16 %v7979
    %v8061 = vunpack.c.h.b16 %v7979
    %v8062 = vunpack.c.l.b16 %v7980
    %v8063 = vunpack.c.h.b16 %v7980
    %v8064 = vunpack.c.l.b16 %v7981
    %v8065 = vunpack.c.h.b16 %v7981
    %v8066 = vunpack.c.l.b16 %v7982
    %v8067 = vunpack.c.h.b16 %v7982
    %v8068 = vunpack.c.l.b16 %v7983
    %v8069 = vunpack.c.h.b16 %v7983
    %v8070 = vunpack.c.l.b16 %v7984
    %v8071 = vunpack.c.h.b16 %v7984
    %v8072 = vunpack.c.l.b16 %v7985
    %v8073 = vunpack.c.h.b16 %v7985
    %v8074 = vunpack.c.l.b16 %v7986
    %v8075 = vunpack.c.h.b16 %v7986
    %v8076 = vunpack.c.l.b16 %v7987
    %v8077 = vunpack.c.h.b16 %v7987
    %v8078 = vunpack.c.l.b16 %v7988
    %v8079 = vunpack.c.h.b16 %v7988
    %v8080 = vunpack.c.l.b16 %v7989
    %v8081 = vunpack.c.h.b16 %v7989
    %v8082 = vunpack.c.l.b16 %v7990
    %v8083 = vunpack.c.h.b16 %v7990
    %v8084 = vunpack.c.l.b16 %v7991
    %v8085 = vunpack.c.h.b16 %v7991
    %v8086 = vunpack.c.l.b16 %v7992
    %v8087 = vunpack.c.h.b16 %v7992
    %v8088 = vunpack.c.l.b16 %v7993
    %v8089 = vunpack.c.h.b16 %v7993
    %v8090 = vpack.c.b16 %v8030, %v8026
    %v8091 = vpack.c.b16 %v8031, %v8027
    %v8092 = vpack.c.b16 %v8032, %v8028
    %v8093 = vpack.c.b16 %v8033, %v8029
    %v8094 = vpack.c.b16 %v8038, %v8034
    %v8095 = vpack.c.b16 %v8039, %v8035
    %v8096 = vpack.c.b16 %v8040, %v8036
    %v8097 = vpack.c.b16 %v8041, %v8037
    %v8098 = vpack.c.b16 %v8046, %v8042
    %v8099 = vpack.c.b16 %v8047, %v8043
    %v8100 = vpack.c.b16 %v8048, %v8044
    %v8101 = vpack.c.b16 %v8049, %v8045
    %v8102 = vpack.c.b16 %v8054, %v8050
    %v8103 = vpack.c.b16 %v8055, %v8051
    %v8104 = vpack.c.b16 %v8056, %v8052
    %v8105 = vpack.c.b16 %v8057, %v8053
    %v8106 = vpack.c.b16 %v8062, %v8058
    %v8107 = vpack.c.b16 %v8063, %v8059
    %v8108 = vpack.c.b16 %v8064, %v8060
    %v8109 = vpack.c.b16 %v8065, %v8061
    %v8110 = vpack.c.b16 %v8070, %v8066
    %v8111 = vpack.c.b16 %v8071, %v8067
    %v8112 = vpack.c.b16 %v8072, %v8068
    %v8113 = vpack.c.b16 %v8073, %v8069
    %v8114 = vpack.c.b16 %v8078, %v8074
    %v8115 = vpack.c.b16 %v8079, %v8075
    %v8116 = vpack.c.b16 %v8080, %v8076
    %v8117 = vpack.c.b16 %v8081, %v8077
    %v8118 = vpack.c.b16 %v8086, %v8082
    %v8119 = vpack.c.b16 %v8087, %v8083
    %v8120 = vpack.c.b16 %v8088, %v8084
    %v8121 = vpack.c.b16 %v8089, %v8085
    %8154 = vmatpush.bf16.msra.mxu0 %v8118
    %8155 = vmatpush.bf16.msra.mxu0 %v8114
    %8156 = vmatpush.bf16.msra.mxu0 %v8110
    %8157 = vmatpush.bf16.msra.mxu0 %v8106
    %8158 = vmatpush.bf16.msra.mxu0 %v8102
    %8159 = vmatpush.bf16.msra.mxu0 %v8098
    %8160 = vmatpush.bf16.msra.mxu0 %v8094
    %8161 = vmatpush.bf16.msra.mxu0 %v8090
    %8162 = vmatmul.bf16.gmra.mxu0 %v6850
    %v8163 = vpop.f32.mrf.mxu0
    %v8164 = vadd.f32 0.0, %v8163
    %v8165 = vpop.f32.mrf.mxu0
    %8166 = vdwg.mxu0
    %8167 = vmatpush.bf16.msra.mxu0 %v8119
    %8168 = vmatpush.bf16.msra.mxu0 %v8115
    %8169 = vmatpush.bf16.msra.mxu0 %v8111
    %8170 = vmatpush.bf16.msra.mxu0 %v8107
    %8171 = vmatpush.bf16.msra.mxu0 %v8103
    %8172 = vmatpush.bf16.msra.mxu0 %v8099
    %8173 = vmatpush.bf16.msra.mxu0 %v8095
    %8174 = vmatpush.bf16.msra.mxu0 %v8091
    %8175 = vmatmul.bf16.gmra.mxu0 %v6850
    %v8176 = vpop.f32.mrf.mxu0
    %v8177 = vadd.f32 0.0, %v8176
    %v8178 = vpop.f32.mrf.mxu0
    %8179 = vdwg.mxu0
    %8180 = vmatpush.bf16.msra.mxu0 %v8120
    %8181 = vmatpush.bf16.msra.mxu0 %v8116
    %8182 = vmatpush.bf16.msra.mxu0 %v8112
    %8183 = vmatpush.bf16.msra.mxu0 %v8108
    %8184 = vmatpush.bf16.msra.mxu0 %v8104
    %8185 = vmatpush.bf16.msra.mxu0 %v8100
    %8186 = vmatpush.bf16.msra.mxu0 %v8096
    %8187 = vmatpush.bf16.msra.mxu0 %v8092
    %8188 = vmatmul.bf16.gmra.mxu0 %v6850
    %v8189 = vpop.f32.mrf.mxu0
    %v8190 = vadd.f32 0.0, %v8189
    %v8191 = vpop.f32.mrf.mxu0
    %8192 = vdwg.mxu0
    %8193 = vmatpush.bf16.msra.mxu0 %v8121
    %8194 = vmatpush.bf16.msra.mxu0 %v8117
    %8195 = vmatpush.bf16.msra.mxu0 %v8113
    %8196 = vmatpush.bf16.msra.mxu0 %v8109
    %8197 = vmatpush.bf16.msra.mxu0 %v8105
    %8198 = vmatpush.bf16.msra.mxu0 %v8101
    %8199 = vmatpush.bf16.msra.mxu0 %v8097
    %8200 = vmatpush.bf16.msra.mxu0 %v8093
    %8201 = vmatmul.bf16.gmra.mxu0 %v6850
    %v8202 = vpop.f32.mrf.mxu0
    %v8203 = vadd.f32 0.0, %v8202
    %v8204 = vpop.f32.mrf.mxu0
    %8205 = vdwg.mxu0
    %v8206 = vadd.f32 %v7958, %v8164
    %v8207 = vadd.f32 %v7959, %v8177
    %v8208 = vadd.f32 %v7960, %v8190
    %v8209 = vadd.f32 %v7961, %v8203
    %v8210 = vxor.u32 %v8206, 2147483648
    %v8211 = vxor.u32 %v8207, 2147483648
    %v8212 = vxor.u32 %v8208, 2147483648
    %v8213 = vmul.f32 %v8210, 1.442695
    %v8214 = vpow.pop %v8213
    %v8215 = vmul.f32 %v8211, 1.442695
    %v8216 = vpow.pop %v8215
    %v8217 = vmul.f32 %v8212, 1.442695
    %v8218 = vpow.pop %v8217
    %v8219 = vadd.f32 %v8214, 1.0
    %v8220 = vadd.f32 %v8216, 1.0
    %v8221 = vadd.f32 %v8218, 1.0
    %v8222 = vrcp.pop %v8219
    %v8223 = vmul.f32 %v8219, %v8222
    %v8224 = vsub.f32 1.0, %v8223
    %v8225 = vmul.f32 %v8222, %v8224
    %v8226 = vadd.f32 %v8222, %v8225
    %vm8227 = vweird.f32 %v8219
    %vm8228 = vweird.f32 %v8222
    %vm8229 = vmor %vm8227, %vm8228
    %v8230 = vsel %vm8229, %v8222, %v8226
    %v8231 = vand.u32 2147483647, %v8219
    %vm8232 = vcmp.eq.f32.partialorder %v8231, 8.507059e+37
    %v8233 = vand.u32 %v8219, 2147483648
    %v8234 = vor.u32 1.1754944e-38, %v8233
    %v8235 = vsel %vm8232, %v8234, %v8230
    %v8236 = vmul.f32 1.0, %v8235
    %v8237 = vrcp.pop %v8220
    %v8238 = vmul.f32 %v8220, %v8237
    %v8239 = vsub.f32 1.0, %v8238
    %v8240 = vmul.f32 %v8237, %v8239
    %v8241 = vadd.f32 %v8237, %v8240
    %vm8242 = vweird.f32 %v8220
    %vm8243 = vweird.f32 %v8237
    %vm8244 = vmor %vm8242, %vm8243
    %v8245 = vsel %vm8244, %v8237, %v8241
    %v8246 = vand.u32 2147483647, %v8220
    %vm8247 = vcmp.eq.f32.partialorder %v8246, 8.507059e+37
    %v8248 = vand.u32 %v8220, 2147483648
    %v8249 = vor.u32 1.1754944e-38, %v8248
    %v8250 = vsel %vm8247, %v8249, %v8245
    %v8251 = vmul.f32 1.0, %v8250
    %v8252 = vrcp.pop %v8221
    %v8253 = vmul.f32 %v8221, %v8252
    %v8254 = vsub.f32 1.0, %v8253
    %v8255 = vmul.f32 %v8252, %v8254
    %v8256 = vadd.f32 %v8252, %v8255
    %vm8257 = vweird.f32 %v8221
    %vm8258 = vweird.f32 %v8252
    %vm8259 = vmor %vm8257, %vm8258
    %v8260 = vsel %vm8259, %v8252, %v8256
    %v8261 = vand.u32 2147483647, %v8221
    %vm8262 = vcmp.eq.f32.partialorder %v8261, 8.507059e+37
    %v8263 = vand.u32 %v8221, 2147483648
    %v8264 = vor.u32 1.1754944e-38, %v8263
    %v8265 = vsel %vm8262, %v8264, %v8260
    %v8266 = vmul.f32 1.0, %v8265
    %v8267 = vtanh.pop %v8209
    %v8268 = vmul.f32 %v8251, %v6847
    %v8269 = vmul.f32 %v8236, %v8267
    %v8270 = vadd.f32 %v8268, %v8269
    %v8271 = vtanh.pop %v8270
    %v8272 = vmul.f32 %v8266, %v8271
    %v8273 = vpack.c.bf16 %v8272, %v8272
    %v8274 = vld [vmem:[#allocation13] sm:$0xff]
    %v8275 = vld [vmem:[#allocation13 + $0x8] sm:$0xff]
    %v8276 = vld [vmem:[#allocation13 + $0x10] sm:$0xff]
    %v8277 = vld [vmem:[#allocation13 + $0x18] sm:$0xff]
    %v8278 = vld [vmem:[#allocation13 + $0x20] sm:$0xff]
    %v8279 = vld [vmem:[#allocation13 + $0x28] sm:$0xff]
    %v8280 = vld [vmem:[#allocation13 + $0x30] sm:$0xff]
    %v8281 = vld [vmem:[#allocation13 + $0x38] sm:$0xff]
    %v8282 = vld [vmem:[#allocation13 + $0x40] sm:$0xff]
    %v8283 = vld [vmem:[#allocation13 + $0x48] sm:$0xff]
    %v8284 = vld [vmem:[#allocation13 + $0x50] sm:$0xff]
    %v8285 = vld [vmem:[#allocation13 + $0x58] sm:$0xff]
    %v8286 = vld [vmem:[#allocation13 + $0x60] sm:$0xff]
    %v8287 = vld [vmem:[#allocation13 + $0x68] sm:$0xff]
    %v8288 = vld [vmem:[#allocation13 + $0x70] sm:$0xff]
    %v8289 = vld [vmem:[#allocation13 + $0x78] sm:$0xff]
    %v8290 = vld [vmem:[#allocation13 + $0x80] sm:$0xff]
    %v8291 = vld [vmem:[#allocation13 + $0x88] sm:$0xff]
    %v8292 = vld [vmem:[#allocation13 + $0x90] sm:$0xff]
    %v8293 = vld [vmem:[#allocation13 + $0x98] sm:$0xff]
    %v8294 = vld [vmem:[#allocation13 + $0xa0] sm:$0xff]
    %v8295 = vld [vmem:[#allocation13 + $0xa8] sm:$0xff]
    %v8296 = vld [vmem:[#allocation13 + $0xb0] sm:$0xff]
    %v8297 = vld [vmem:[#allocation13 + $0xb8] sm:$0xff]
    %v8298 = vld [vmem:[#allocation13 + $0xc0] sm:$0xff]
    %v8299 = vld [vmem:[#allocation13 + $0xc8] sm:$0xff]
    %v8300 = vld [vmem:[#allocation13 + $0xd0] sm:$0xff]
    %v8301 = vld [vmem:[#allocation13 + $0xd8] sm:$0xff]
    %v8302 = vld [vmem:[#allocation13 + $0xe0] sm:$0xff]
    %v8303 = vld [vmem:[#allocation13 + $0xe8] sm:$0xff]
    %v8304 = vld [vmem:[#allocation13 + $0xf0] sm:$0xff]
    %v8305 = vld [vmem:[#allocation13 + $0xf8] sm:$0xff]
    %v8306 = vld [vmem:[#allocation13 + $0x100] sm:$0xff]
    %v8307 = vld [vmem:[#allocation13 + $0x108] sm:$0xff]
    %v8308 = vld [vmem:[#allocation13 + $0x110] sm:$0xff]
    %v8309 = vld [vmem:[#allocation13 + $0x118] sm:$0xff]
    %v8310 = vld [vmem:[#allocation13 + $0x120] sm:$0xff]
    %v8311 = vld [vmem:[#allocation13 + $0x128] sm:$0xff]
    %v8312 = vld [vmem:[#allocation13 + $0x130] sm:$0xff]
    %v8313 = vld [vmem:[#allocation13 + $0x138] sm:$0xff]
    %v8314 = vld [vmem:[#allocation13 + $0x140] sm:$0xff]
    %v8315 = vld [vmem:[#allocation13 + $0x148] sm:$0xff]
    %v8316 = vld [vmem:[#allocation13 + $0x150] sm:$0xff]
    %v8317 = vld [vmem:[#allocation13 + $0x158] sm:$0xff]
    %v8318 = vld [vmem:[#allocation13 + $0x160] sm:$0xff]
    %v8319 = vld [vmem:[#allocation13 + $0x168] sm:$0xff]
    %v8320 = vld [vmem:[#allocation13 + $0x170] sm:$0xff]
    %v8321 = vld [vmem:[#allocation13 + $0x178] sm:$0xff]
    %v8322 = vld [vmem:[#allocation13 + $0x180] sm:$0xff]
    %v8323 = vld [vmem:[#allocation13 + $0x188] sm:$0xff]
    %v8324 = vld [vmem:[#allocation13 + $0x190] sm:$0xff]
    %v8325 = vld [vmem:[#allocation13 + $0x198] sm:$0xff]
    %v8326 = vld [vmem:[#allocation13 + $0x1a0] sm:$0xff]
    %v8327 = vld [vmem:[#allocation13 + $0x1a8] sm:$0xff]
    %v8328 = vld [vmem:[#allocation13 + $0x1b0] sm:$0xff]
    %v8329 = vld [vmem:[#allocation13 + $0x1b8] sm:$0xff]
    %v8330 = vld [vmem:[#allocation13 + $0x1c0] sm:$0xff]
    %v8331 = vld [vmem:[#allocation13 + $0x1c8] sm:$0xff]
    %v8332 = vld [vmem:[#allocation13 + $0x1d0] sm:$0xff]
    %v8333 = vld [vmem:[#allocation13 + $0x1d8] sm:$0xff]
    %v8334 = vld [vmem:[#allocation13 + $0x1e0] sm:$0xff]
    %v8335 = vld [vmem:[#allocation13 + $0x1e8] sm:$0xff]
    %v8336 = vld [vmem:[#allocation13 + $0x1f0] sm:$0xff]
    %v8337 = vld [vmem:[#allocation13 + $0x1f8] sm:$0xff]
    %v8402 = vunpack.c.l.b16 %v8274
    %v8403 = vunpack.c.h.b16 %v8274
    %v8404 = vunpack.c.l.b16 %v8275
    %v8405 = vunpack.c.h.b16 %v8275
    %v8406 = vunpack.c.l.b16 %v8276
    %v8407 = vunpack.c.h.b16 %v8276
    %v8408 = vunpack.c.l.b16 %v8277
    %v8409 = vunpack.c.h.b16 %v8277
    %v8410 = vunpack.c.l.b16 %v8278
    %v8411 = vunpack.c.h.b16 %v8278
    %v8412 = vunpack.c.l.b16 %v8279
    %v8413 = vunpack.c.h.b16 %v8279
    %v8414 = vunpack.c.l.b16 %v8280
    %v8415 = vunpack.c.h.b16 %v8280
    %v8416 = vunpack.c.l.b16 %v8281
    %v8417 = vunpack.c.h.b16 %v8281
    %v8418 = vunpack.c.l.b16 %v8282
    %v8419 = vunpack.c.h.b16 %v8282
    %v8420 = vunpack.c.l.b16 %v8283
    %v8421 = vunpack.c.h.b16 %v8283
    %v8422 = vunpack.c.l.b16 %v8284
    %v8423 = vunpack.c.h.b16 %v8284
    %v8424 = vunpack.c.l.b16 %v8285
    %v8425 = vunpack.c.h.b16 %v8285
    %v8426 = vunpack.c.l.b16 %v8286
    %v8427 = vunpack.c.h.b16 %v8286
    %v8428 = vunpack.c.l.b16 %v8287
    %v8429 = vunpack.c.h.b16 %v8287
    %v8430 = vunpack.c.l.b16 %v8288
    %v8431 = vunpack.c.h.b16 %v8288
    %v8432 = vunpack.c.l.b16 %v8289
    %v8433 = vunpack.c.h.b16 %v8289
    %v8434 = vunpack.c.l.b16 %v8290
    %v8435 = vunpack.c.h.b16 %v8290
    %v8436 = vunpack.c.l.b16 %v8291
    %v8437 = vunpack.c.h.b16 %v8291
    %v8438 = vunpack.c.l.b16 %v8292
    %v8439 = vunpack.c.h.b16 %v8292
    %v8440 = vunpack.c.l.b16 %v8293
    %v8441 = vunpack.c.h.b16 %v8293
    %v8442 = vunpack.c.l.b16 %v8294
    %v8443 = vunpack.c.h.b16 %v8294
    %v8444 = vunpack.c.l.b16 %v8295
    %v8445 = vunpack.c.h.b16 %v8295
    %v8446 = vunpack.c.l.b16 %v8296
    %v8447 = vunpack.c.h.b16 %v8296
    %v8448 = vunpack.c.l.b16 %v8297
    %v8449 = vunpack.c.h.b16 %v8297
    %v8450 = vunpack.c.l.b16 %v8298
    %v8451 = vunpack.c.h.b16 %v8298
    %v8452 = vunpack.c.l.b16 %v8299
    %v8453 = vunpack.c.h.b16 %v8299
    %v8454 = vunpack.c.l.b16 %v8300
    %v8455 = vunpack.c.h.b16 %v8300
    %v8456 = vunpack.c.l.b16 %v8301
    %v8457 = vunpack.c.h.b16 %v8301
    %v8458 = vunpack.c.l.b16 %v8302
    %v8459 = vunpack.c.h.b16 %v8302
    %v8460 = vunpack.c.l.b16 %v8303
    %v8461 = vunpack.c.h.b16 %v8303
    %v8462 = vunpack.c.l.b16 %v8304
    %v8463 = vunpack.c.h.b16 %v8304
    %v8464 = vunpack.c.l.b16 %v8305
    %v8465 = vunpack.c.h.b16 %v8305
    %v8466 = vunpack.c.l.b16 %v8306
    %v8467 = vunpack.c.h.b16 %v8306
    %v8468 = vunpack.c.l.b16 %v8307
    %v8469 = vunpack.c.h.b16 %v8307
    %v8470 = vunpack.c.l.b16 %v8308
    %v8471 = vunpack.c.h.b16 %v8308
    %v8472 = vunpack.c.l.b16 %v8309
    %v8473 = vunpack.c.h.b16 %v8309
    %v8474 = vunpack.c.l.b16 %v8310
    %v8475 = vunpack.c.h.b16 %v8310
    %v8476 = vunpack.c.l.b16 %v8311
    %v8477 = vunpack.c.h.b16 %v8311
    %v8478 = vunpack.c.l.b16 %v8312
    %v8479 = vunpack.c.h.b16 %v8312
    %v8480 = vunpack.c.l.b16 %v8313
    %v8481 = vunpack.c.h.b16 %v8313
    %v8482 = vunpack.c.l.b16 %v8314
    %v8483 = vunpack.c.h.b16 %v8314
    %v8484 = vunpack.c.l.b16 %v8315
    %v8485 = vunpack.c.h.b16 %v8315
    %v8486 = vunpack.c.l.b16 %v8316
    %v8487 = vunpack.c.h.b16 %v8316
    %v8488 = vunpack.c.l.b16 %v8317
    %v8489 = vunpack.c.h.b16 %v8317
    %v8490 = vunpack.c.l.b16 %v8318
    %v8491 = vunpack.c.h.b16 %v8318
    %v8492 = vunpack.c.l.b16 %v8319
    %v8493 = vunpack.c.h.b16 %v8319
    %v8494 = vunpack.c.l.b16 %v8320
    %v8495 = vunpack.c.h.b16 %v8320
    %v8496 = vunpack.c.l.b16 %v8321
    %v8497 = vunpack.c.h.b16 %v8321
    %v8498 = vunpack.c.l.b16 %v8322
    %v8499 = vunpack.c.h.b16 %v8322
    %v8500 = vunpack.c.l.b16 %v8323
    %v8501 = vunpack.c.h.b16 %v8323
    %v8502 = vunpack.c.l.b16 %v8324
    %v8503 = vunpack.c.h.b16 %v8324
    %v8504 = vunpack.c.l.b16 %v8325
    %v8505 = vunpack.c.h.b16 %v8325
    %v8506 = vunpack.c.l.b16 %v8326
    %v8507 = vunpack.c.h.b16 %v8326
    %v8508 = vunpack.c.l.b16 %v8327
    %v8509 = vunpack.c.h.b16 %v8327
    %v8510 = vunpack.c.l.b16 %v8328
    %v8511 = vunpack.c.h.b16 %v8328
    %v8512 = vunpack.c.l.b16 %v8329
    %v8513 = vunpack.c.h.b16 %v8329
    %v8514 = vunpack.c.l.b16 %v8330
    %v8515 = vunpack.c.h.b16 %v8330
    %v8516 = vunpack.c.l.b16 %v8331
    %v8517 = vunpack.c.h.b16 %v8331
    %v8518 = vunpack.c.l.b16 %v8332
    %v8519 = vunpack.c.h.b16 %v8332
    %v8520 = vunpack.c.l.b16 %v8333
    %v8521 = vunpack.c.h.b16 %v8333
    %v8522 = vunpack.c.l.b16 %v8334
    %v8523 = vunpack.c.h.b16 %v8334
    %v8524 = vunpack.c.l.b16 %v8335
    %v8525 = vunpack.c.h.b16 %v8335
    %v8526 = vunpack.c.l.b16 %v8336
    %v8527 = vunpack.c.h.b16 %v8336
    %v8528 = vunpack.c.l.b16 %v8337
    %v8529 = vunpack.c.h.b16 %v8337
    %v8530 = vpack.c.b16 %v8406, %v8402
    %v8531 = vpack.c.b16 %v8407, %v8403
    %v8532 = vpack.c.b16 %v8408, %v8404
    %v8533 = vpack.c.b16 %v8409, %v8405
    %v8534 = vpack.c.b16 %v8414, %v8410
    %v8535 = vpack.c.b16 %v8415, %v8411
    %v8536 = vpack.c.b16 %v8416, %v8412
    %v8537 = vpack.c.b16 %v8417, %v8413
    %v8538 = vpack.c.b16 %v8422, %v8418
    %v8539 = vpack.c.b16 %v8423, %v8419
    %v8540 = vpack.c.b16 %v8424, %v8420
    %v8541 = vpack.c.b16 %v8425, %v8421
    %v8542 = vpack.c.b16 %v8430, %v8426
    %v8543 = vpack.c.b16 %v8431, %v8427
    %v8544 = vpack.c.b16 %v8432, %v8428
    %v8545 = vpack.c.b16 %v8433, %v8429
    %v8546 = vpack.c.b16 %v8438, %v8434
    %v8547 = vpack.c.b16 %v8439, %v8435
    %v8548 = vpack.c.b16 %v8440, %v8436
    %v8549 = vpack.c.b16 %v8441, %v8437
    %v8550 = vpack.c.b16 %v8446, %v8442
    %v8551 = vpack.c.b16 %v8447, %v8443
    %v8552 = vpack.c.b16 %v8448, %v8444
    %v8553 = vpack.c.b16 %v8449, %v8445
    %v8554 = vpack.c.b16 %v8454, %v8450
    %v8555 = vpack.c.b16 %v8455, %v8451
    %v8556 = vpack.c.b16 %v8456, %v8452
    %v8557 = vpack.c.b16 %v8457, %v8453
    %v8558 = vpack.c.b16 %v8462, %v8458
    %v8559 = vpack.c.b16 %v8463, %v8459
    %v8560 = vpack.c.b16 %v8464, %v8460
    %v8561 = vpack.c.b16 %v8465, %v8461
    %v8562 = vpack.c.b16 %v8470, %v8466
    %v8563 = vpack.c.b16 %v8471, %v8467
    %v8564 = vpack.c.b16 %v8472, %v8468
    %v8565 = vpack.c.b16 %v8473, %v8469
    %v8566 = vpack.c.b16 %v8478, %v8474
    %v8567 = vpack.c.b16 %v8479, %v8475
    %v8568 = vpack.c.b16 %v8480, %v8476
    %v8569 = vpack.c.b16 %v8481, %v8477
    %v8570 = vpack.c.b16 %v8486, %v8482
    %v8571 = vpack.c.b16 %v8487, %v8483
    %v8572 = vpack.c.b16 %v8488, %v8484
    %v8573 = vpack.c.b16 %v8489, %v8485
    %v8574 = vpack.c.b16 %v8494, %v8490
    %v8575 = vpack.c.b16 %v8495, %v8491
    %v8576 = vpack.c.b16 %v8496, %v8492
    %v8577 = vpack.c.b16 %v8497, %v8493
    %v8578 = vpack.c.b16 %v8502, %v8498
    %v8579 = vpack.c.b16 %v8503, %v8499
    %v8580 = vpack.c.b16 %v8504, %v8500
    %v8581 = vpack.c.b16 %v8505, %v8501
    %v8582 = vpack.c.b16 %v8510, %v8506
    %v8583 = vpack.c.b16 %v8511, %v8507
    %v8584 = vpack.c.b16 %v8512, %v8508
    %v8585 = vpack.c.b16 %v8513, %v8509
    %v8586 = vpack.c.b16 %v8518, %v8514
    %v8587 = vpack.c.b16 %v8519, %v8515
    %v8588 = vpack.c.b16 %v8520, %v8516
    %v8589 = vpack.c.b16 %v8521, %v8517
    %v8590 = vpack.c.b16 %v8526, %v8522
    %v8591 = vpack.c.b16 %v8527, %v8523
    %v8592 = vpack.c.b16 %v8528, %v8524
    %v8593 = vpack.c.b16 %v8529, %v8525
    %8658 = vmatpush.bf16.msra.mxu0 %v8558
    %8659 = vmatpush.bf16.msra.mxu0 %v8554
    %8660 = vmatpush.bf16.msra.mxu0 %v8550
    %8661 = vmatpush.bf16.msra.mxu0 %v8546
    %8662 = vmatpush.bf16.msra.mxu0 %v8542
    %8663 = vmatpush.bf16.msra.mxu0 %v8538
    %8664 = vmatpush.bf16.msra.mxu0 %v8534
    %8665 = vmatpush.bf16.msra.mxu0 %v8530
    %8666 = vmatmul.bf16.gmra.mxu0 %v6850
    %v8667 = vpop.f32.mrf.mxu0
    %v8668 = vadd.f32 %v913, %v8667
    %v8669 = vpop.f32.mrf.mxu0
    %8670 = vdwg.mxu0
    %8671 = vmatpush.bf16.msra.mxu0 %v8590
    %8672 = vmatpush.bf16.msra.mxu0 %v8586
    %8673 = vmatpush.bf16.msra.mxu0 %v8582
    %8674 = vmatpush.bf16.msra.mxu0 %v8578
    %8675 = vmatpush.bf16.msra.mxu0 %v8574
    %8676 = vmatpush.bf16.msra.mxu0 %v8570
    %8677 = vmatpush.bf16.msra.mxu0 %v8566
    %8678 = vmatpush.bf16.msra.mxu0 %v8562
    %8679 = vmatmul.bf16.gmra.mxu0 %v7402
    %v8680 = vpop.f32.mrf.mxu0
    %v8681 = vadd.f32 %v8668, %v8680
    %v8682 = vpop.f32.mrf.mxu0
    %8683 = vdwg.mxu0
    %8684 = vmatpush.bf16.msra.mxu0 %v8559
    %8685 = vmatpush.bf16.msra.mxu0 %v8555
    %8686 = vmatpush.bf16.msra.mxu0 %v8551
    %8687 = vmatpush.bf16.msra.mxu0 %v8547
    %8688 = vmatpush.bf16.msra.mxu0 %v8543
    %8689 = vmatpush.bf16.msra.mxu0 %v8539
    %8690 = vmatpush.bf16.msra.mxu0 %v8535
    %8691 = vmatpush.bf16.msra.mxu0 %v8531
    %8692 = vmatmul.bf16.gmra.mxu0 %v6850
    %v8693 = vpop.f32.mrf.mxu0
    %v8694 = vadd.f32 %v914, %v8693
    %v8695 = vpop.f32.mrf.mxu0
    %8696 = vdwg.mxu0
    %8697 = vmatpush.bf16.msra.mxu0 %v8591
    %8698 = vmatpush.bf16.msra.mxu0 %v8587
    %8699 = vmatpush.bf16.msra.mxu0 %v8583
    %8700 = vmatpush.bf16.msra.mxu0 %v8579
    %8701 = vmatpush.bf16.msra.mxu0 %v8575
    %8702 = vmatpush.bf16.msra.mxu0 %v8571
    %8703 = vmatpush.bf16.msra.mxu0 %v8567
    %8704 = vmatpush.bf16.msra.mxu0 %v8563
    %8705 = vmatmul.bf16.gmra.mxu0 %v7402
    %v8706 = vpop.f32.mrf.mxu0
    %v8707 = vadd.f32 %v8694, %v8706
    %v8708 = vpop.f32.mrf.mxu0
    %8709 = vdwg.mxu0
    %8710 = vmatpush.bf16.msra.mxu0 %v8560
    %8711 = vmatpush.bf16.msra.mxu0 %v8556
    %8712 = vmatpush.bf16.msra.mxu0 %v8552
    %8713 = vmatpush.bf16.msra.mxu0 %v8548
    %8714 = vmatpush.bf16.msra.mxu0 %v8544
    %8715 = vmatpush.bf16.msra.mxu0 %v8540
    %8716 = vmatpush.bf16.msra.mxu0 %v8536
    %8717 = vmatpush.bf16.msra.mxu0 %v8532
    %8718 = vmatmul.bf16.gmra.mxu0 %v6850
    %v8719 = vpop.f32.mrf.mxu0
    %v8720 = vadd.f32 %v915, %v8719
    %v8721 = vpop.f32.mrf.mxu0
    %8722 = vdwg.mxu0
    %8723 = vmatpush.bf16.msra.mxu0 %v8592
    %8724 = vmatpush.bf16.msra.mxu0 %v8588
    %8725 = vmatpush.bf16.msra.mxu0 %v8584
    %8726 = vmatpush.bf16.msra.mxu0 %v8580
    %8727 = vmatpush.bf16.msra.mxu0 %v8576
    %8728 = vmatpush.bf16.msra.mxu0 %v8572
    %8729 = vmatpush.bf16.msra.mxu0 %v8568
    %8730 = vmatpush.bf16.msra.mxu0 %v8564
    %8731 = vmatmul.bf16.gmra.mxu0 %v7402
    %v8732 = vpop.f32.mrf.mxu0
    %v8733 = vadd.f32 %v8720, %v8732
    %v8734 = vpop.f32.mrf.mxu0
    %8735 = vdwg.mxu0
    %8736 = vmatpush.bf16.msra.mxu0 %v8561
    %8737 = vmatpush.bf16.msra.mxu0 %v8557
    %8738 = vmatpush.bf16.msra.mxu0 %v8553
    %8739 = vmatpush.bf16.msra.mxu0 %v8549
    %8740 = vmatpush.bf16.msra.mxu0 %v8545
    %8741 = vmatpush.bf16.msra.mxu0 %v8541
    %8742 = vmatpush.bf16.msra.mxu0 %v8537
    %8743 = vmatpush.bf16.msra.mxu0 %v8533
    %8744 = vmatmul.bf16.gmra.mxu0 %v6850
    %v8745 = vpop.f32.mrf.mxu0
    %v8746 = vadd.f32 %v916, %v8745
    %v8747 = vpop.f32.mrf.mxu0
    %8748 = vdwg.mxu0
    %8749 = vmatpush.bf16.msra.mxu0 %v8593
    %8750 = vmatpush.bf16.msra.mxu0 %v8589
    %8751 = vmatpush.bf16.msra.mxu0 %v8585
    %8752 = vmatpush.bf16.msra.mxu0 %v8581
    %8753 = vmatpush.bf16.msra.mxu0 %v8577
    %8754 = vmatpush.bf16.msra.mxu0 %v8573
    %8755 = vmatpush.bf16.msra.mxu0 %v8569
    %8756 = vmatpush.bf16.msra.mxu0 %v8565
    %8757 = vmatmul.bf16.gmra.mxu0 %v7402
    %v8758 = vpop.f32.mrf.mxu0
    %v8759 = vadd.f32 %v8746, %v8758
    %v8760 = vpop.f32.mrf.mxu0
    %8761 = vdwg.mxu0
    %v8762 = vxor.u32 %v8681, 2147483648
    %v8763 = vxor.u32 %v8707, 2147483648
    %v8764 = vxor.u32 %v8733, 2147483648
    %v8765 = vmul.f32 %v8762, 1.442695
    %v8766 = vpow.pop %v8765
    %v8767 = vmul.f32 %v8763, 1.442695
    %v8768 = vpow.pop %v8767
    %v8769 = vmul.f32 %v8764, 1.442695
    %v8770 = vpow.pop %v8769
    %v8771 = vadd.f32 %v8766, 1.0
    %v8772 = vadd.f32 %v8768, 1.0
    %v8773 = vadd.f32 %v8770, 1.0
    %v8774 = vrcp.pop %v8771
    %v8775 = vmul.f32 %v8771, %v8774
    %v8776 = vsub.f32 1.0, %v8775
    %v8777 = vmul.f32 %v8774, %v8776
    %v8778 = vadd.f32 %v8774, %v8777
    %vm8779 = vweird.f32 %v8771
    %vm8780 = vweird.f32 %v8774
    %vm8781 = vmor %vm8779, %vm8780
    %v8782 = vsel %vm8781, %v8774, %v8778
    %v8783 = vand.u32 2147483647, %v8771
    %vm8784 = vcmp.eq.f32.partialorder %v8783, 8.507059e+37
    %v8785 = vand.u32 %v8771, 2147483648
    %v8786 = vor.u32 1.1754944e-38, %v8785
    %v8787 = vsel %vm8784, %v8786, %v8782
    %v8788 = vmul.f32 1.0, %v8787
    %v8789 = vrcp.pop %v8772
    %v8790 = vmul.f32 %v8772, %v8789
    %v8791 = vsub.f32 1.0, %v8790
    %v8792 = vmul.f32 %v8789, %v8791
    %v8793 = vadd.f32 %v8789, %v8792
    %vm8794 = vweird.f32 %v8772
    %vm8795 = vweird.f32 %v8789
    %vm8796 = vmor %vm8794, %vm8795
    %v8797 = vsel %vm8796, %v8789, %v8793
    %v8798 = vand.u32 2147483647, %v8772
    %vm8799 = vcmp.eq.f32.partialorder %v8798, 8.507059e+37
    %v8800 = vand.u32 %v8772, 2147483648
    %v8801 = vor.u32 1.1754944e-38, %v8800
    %v8802 = vsel %vm8799, %v8801, %v8797
    %v8803 = vmul.f32 1.0, %v8802
    %v8804 = vrcp.pop %v8773
    %v8805 = vmul.f32 %v8773, %v8804
    %v8806 = vsub.f32 1.0, %v8805
    %v8807 = vmul.f32 %v8804, %v8806
    %v8808 = vadd.f32 %v8804, %v8807
    %vm8809 = vweird.f32 %v8773
    %vm8810 = vweird.f32 %v8804
    %vm8811 = vmor %vm8809, %vm8810
    %v8812 = vsel %vm8811, %v8804, %v8808
    %v8813 = vand.u32 2147483647, %v8773
    %vm8814 = vcmp.eq.f32.partialorder %v8813, 8.507059e+37
    %v8815 = vand.u32 %v8773, 2147483648
    %v8816 = vor.u32 1.1754944e-38, %v8815
    %v8817 = vsel %vm8814, %v8816, %v8812
    %v8818 = vmul.f32 1.0, %v8817
    %v8819 = vtanh.pop %v8759
    %v8820 = vmul.f32 %v8803, %v7399
    %v8821 = vmul.f32 %v8788, %v8819
    %v8822 = vadd.f32 %v8820, %v8821
    %v8823 = vtanh.pop %v8822
    %v8824 = vmul.f32 %v8818, %v8823
    %v8825 = vpack.c.bf16 %v8824, %v8824
    %v8826 = vld [vmem:[%s1702] sm:$0xff]
    %v8827 = vld [vmem:[%s1702 + $0x8] sm:$0xff]
    %v8828 = vld [vmem:[%s1702 + $0x10] sm:$0xff]
    %v8829 = vld [vmem:[%s1702 + $0x18] sm:$0xff]
    %v8830 = vld [vmem:[%s1702 + $0x20] sm:$0xff]
    %v8831 = vld [vmem:[%s1702 + $0x28] sm:$0xff]
    %v8832 = vld [vmem:[%s1702 + $0x30] sm:$0xff]
    %v8833 = vld [vmem:[%s1702 + $0x38] sm:$0xff]
    %v8834 = vld [vmem:[%s1702 + $0x40] sm:$0xff]
    %v8835 = vld [vmem:[%s1702 + $0x48] sm:$0xff]
    %v8836 = vld [vmem:[%s1702 + $0x50] sm:$0xff]
    %v8837 = vld [vmem:[%s1702 + $0x58] sm:$0xff]
    %v8838 = vld [vmem:[%s1702 + $0x60] sm:$0xff]
    %v8839 = vld [vmem:[%s1702 + $0x68] sm:$0xff]
    %v8840 = vld [vmem:[%s1702 + $0x70] sm:$0xff]
    %v8841 = vld [vmem:[%s1702 + $0x78] sm:$0xff]
    %v8842 = vld [vmem:[%s1702 + $0x80] sm:$0xff]
    %v8843 = vld [vmem:[%s1702 + $0x88] sm:$0xff]
    %v8844 = vld [vmem:[%s1702 + $0x90] sm:$0xff]
    %v8845 = vld [vmem:[%s1702 + $0x98] sm:$0xff]
    %v8846 = vld [vmem:[%s1702 + $0xa0] sm:$0xff]
    %v8847 = vld [vmem:[%s1702 + $0xa8] sm:$0xff]
    %v8848 = vld [vmem:[%s1702 + $0xb0] sm:$0xff]
    %v8849 = vld [vmem:[%s1702 + $0xb8] sm:$0xff]
    %v8850 = vld [vmem:[%s1702 + $0xc0] sm:$0xff]
    %v8851 = vld [vmem:[%s1702 + $0xc8] sm:$0xff]
    %v8852 = vld [vmem:[%s1702 + $0xd0] sm:$0xff]
    %v8853 = vld [vmem:[%s1702 + $0xd8] sm:$0xff]
    %v8854 = vld [vmem:[%s1702 + $0xe0] sm:$0xff]
    %v8855 = vld [vmem:[%s1702 + $0xe8] sm:$0xff]
    %v8856 = vld [vmem:[%s1702 + $0xf0] sm:$0xff]
    %v8857 = vld [vmem:[%s1702 + $0xf8] sm:$0xff]
    %v8858 = vld [vmem:[%s1702 + $0x100] sm:$0xff]
    %v8859 = vld [vmem:[%s1702 + $0x108] sm:$0xff]
    %v8860 = vld [vmem:[%s1702 + $0x110] sm:$0xff]
    %v8861 = vld [vmem:[%s1702 + $0x118] sm:$0xff]
    %v8862 = vld [vmem:[%s1702 + $0x120] sm:$0xff]
    %v8863 = vld [vmem:[%s1702 + $0x128] sm:$0xff]
    %v8864 = vld [vmem:[%s1702 + $0x130] sm:$0xff]
    %v8865 = vld [vmem:[%s1702 + $0x138] sm:$0xff]
    %v8866 = vld [vmem:[%s1702 + $0x140] sm:$0xff]
    %v8867 = vld [vmem:[%s1702 + $0x148] sm:$0xff]
    %v8868 = vld [vmem:[%s1702 + $0x150] sm:$0xff]
    %v8869 = vld [vmem:[%s1702 + $0x158] sm:$0xff]
    %v8870 = vld [vmem:[%s1702 + $0x160] sm:$0xff]
    %v8871 = vld [vmem:[%s1702 + $0x168] sm:$0xff]
    %v8872 = vld [vmem:[%s1702 + $0x170] sm:$0xff]
    %v8873 = vld [vmem:[%s1702 + $0x178] sm:$0xff]
    %v8874 = vld [vmem:[%s1702 + $0x180] sm:$0xff]
    %v8875 = vld [vmem:[%s1702 + $0x188] sm:$0xff]
    %v8876 = vld [vmem:[%s1702 + $0x190] sm:$0xff]
    %v8877 = vld [vmem:[%s1702 + $0x198] sm:$0xff]
    %v8878 = vld [vmem:[%s1702 + $0x1a0] sm:$0xff]
    %v8879 = vld [vmem:[%s1702 + $0x1a8] sm:$0xff]
    %v8880 = vld [vmem:[%s1702 + $0x1b0] sm:$0xff]
    %v8881 = vld [vmem:[%s1702 + $0x1b8] sm:$0xff]
    %v8882 = vld [vmem:[%s1702 + $0x1c0] sm:$0xff]
    %v8883 = vld [vmem:[%s1702 + $0x1c8] sm:$0xff]
    %v8884 = vld [vmem:[%s1702 + $0x1d0] sm:$0xff]
    %v8885 = vld [vmem:[%s1702 + $0x1d8] sm:$0xff]
    %v8886 = vld [vmem:[%s1702 + $0x1e0] sm:$0xff]
    %v8887 = vld [vmem:[%s1702 + $0x1e8] sm:$0xff]
    %v8888 = vld [vmem:[%s1702 + $0x1f0] sm:$0xff]
    %v8889 = vld [vmem:[%s1702 + $0x1f8] sm:$0xff]
    %v8954 = vunpack.c.l.b16 %v8826
    %v8955 = vunpack.c.h.b16 %v8826
    %v8956 = vunpack.c.l.b16 %v8827
    %v8957 = vunpack.c.h.b16 %v8827
    %v8958 = vunpack.c.l.b16 %v8828
    %v8959 = vunpack.c.h.b16 %v8828
    %v8960 = vunpack.c.l.b16 %v8829
    %v8961 = vunpack.c.h.b16 %v8829
    %v8962 = vunpack.c.l.b16 %v8830
    %v8963 = vunpack.c.h.b16 %v8830
    %v8964 = vunpack.c.l.b16 %v8831
    %v8965 = vunpack.c.h.b16 %v8831
    %v8966 = vunpack.c.l.b16 %v8832
    %v8967 = vunpack.c.h.b16 %v8832
    %v8968 = vunpack.c.l.b16 %v8833
    %v8969 = vunpack.c.h.b16 %v8833
    %v8970 = vunpack.c.l.b16 %v8834
    %v8971 = vunpack.c.h.b16 %v8834
    %v8972 = vunpack.c.l.b16 %v8835
    %v8973 = vunpack.c.h.b16 %v8835
    %v8974 = vunpack.c.l.b16 %v8836
    %v8975 = vunpack.c.h.b16 %v8836
    %v8976 = vunpack.c.l.b16 %v8837
    %v8977 = vunpack.c.h.b16 %v8837
    %v8978 = vunpack.c.l.b16 %v8838
    %v8979 = vunpack.c.h.b16 %v8838
    %v8980 = vunpack.c.l.b16 %v8839
    %v8981 = vunpack.c.h.b16 %v8839
    %v8982 = vunpack.c.l.b16 %v8840
    %v8983 = vunpack.c.h.b16 %v8840
    %v8984 = vunpack.c.l.b16 %v8841
    %v8985 = vunpack.c.h.b16 %v8841
    %v8986 = vunpack.c.l.b16 %v8842
    %v8987 = vunpack.c.h.b16 %v8842
    %v8988 = vunpack.c.l.b16 %v8843
    %v8989 = vunpack.c.h.b16 %v8843
    %v8990 = vunpack.c.l.b16 %v8844
    %v8991 = vunpack.c.h.b16 %v8844
    %v8992 = vunpack.c.l.b16 %v8845
    %v8993 = vunpack.c.h.b16 %v8845
    %v8994 = vunpack.c.l.b16 %v8846
    %v8995 = vunpack.c.h.b16 %v8846
    %v8996 = vunpack.c.l.b16 %v8847
    %v8997 = vunpack.c.h.b16 %v8847
    %v8998 = vunpack.c.l.b16 %v8848
    %v8999 = vunpack.c.h.b16 %v8848
    %v9000 = vunpack.c.l.b16 %v8849
    %v9001 = vunpack.c.h.b16 %v8849
    %v9002 = vunpack.c.l.b16 %v8850
    %v9003 = vunpack.c.h.b16 %v8850
    %v9004 = vunpack.c.l.b16 %v8851
    %v9005 = vunpack.c.h.b16 %v8851
    %v9006 = vunpack.c.l.b16 %v8852
    %v9007 = vunpack.c.h.b16 %v8852
    %v9008 = vunpack.c.l.b16 %v8853
    %v9009 = vunpack.c.h.b16 %v8853
    %v9010 = vunpack.c.l.b16 %v8854
    %v9011 = vunpack.c.h.b16 %v8854
    %v9012 = vunpack.c.l.b16 %v8855
    %v9013 = vunpack.c.h.b16 %v8855
    %v9014 = vunpack.c.l.b16 %v8856
    %v9015 = vunpack.c.h.b16 %v8856
    %v9016 = vunpack.c.l.b16 %v8857
    %v9017 = vunpack.c.h.b16 %v8857
    %v9018 = vunpack.c.l.b16 %v8858
    %v9019 = vunpack.c.h.b16 %v8858
    %v9020 = vunpack.c.l.b16 %v8859
    %v9021 = vunpack.c.h.b16 %v8859
    %v9022 = vunpack.c.l.b16 %v8860
    %v9023 = vunpack.c.h.b16 %v8860
    %v9024 = vunpack.c.l.b16 %v8861
    %v9025 = vunpack.c.h.b16 %v8861
    %v9026 = vunpack.c.l.b16 %v8862
    %v9027 = vunpack.c.h.b16 %v8862
    %v9028 = vunpack.c.l.b16 %v8863
    %v9029 = vunpack.c.h.b16 %v8863
    %v9030 = vunpack.c.l.b16 %v8864
    %v9031 = vunpack.c.h.b16 %v8864
    %v9032 = vunpack.c.l.b16 %v8865
    %v9033 = vunpack.c.h.b16 %v8865
    %v9034 = vunpack.c.l.b16 %v8866
    %v9035 = vunpack.c.h.b16 %v8866
    %v9036 = vunpack.c.l.b16 %v8867
    %v9037 = vunpack.c.h.b16 %v8867
    %v9038 = vunpack.c.l.b16 %v8868
    %v9039 = vunpack.c.h.b16 %v8868
    %v9040 = vunpack.c.l.b16 %v8869
    %v9041 = vunpack.c.h.b16 %v8869
    %v9042 = vunpack.c.l.b16 %v8870
    %v9043 = vunpack.c.h.b16 %v8870
    %v9044 = vunpack.c.l.b16 %v8871
    %v9045 = vunpack.c.h.b16 %v8871
    %v9046 = vunpack.c.l.b16 %v8872
    %v9047 = vunpack.c.h.b16 %v8872
    %v9048 = vunpack.c.l.b16 %v8873
    %v9049 = vunpack.c.h.b16 %v8873
    %v9050 = vunpack.c.l.b16 %v8874
    %v9051 = vunpack.c.h.b16 %v8874
    %v9052 = vunpack.c.l.b16 %v8875
    %v9053 = vunpack.c.h.b16 %v8875
    %v9054 = vunpack.c.l.b16 %v8876
    %v9055 = vunpack.c.h.b16 %v8876
    %v9056 = vunpack.c.l.b16 %v8877
    %v9057 = vunpack.c.h.b16 %v8877
    %v9058 = vunpack.c.l.b16 %v8878
    %v9059 = vunpack.c.h.b16 %v8878
    %v9060 = vunpack.c.l.b16 %v8879
    %v9061 = vunpack.c.h.b16 %v8879
    %v9062 = vunpack.c.l.b16 %v8880
    %v9063 = vunpack.c.h.b16 %v8880
    %v9064 = vunpack.c.l.b16 %v8881
    %v9065 = vunpack.c.h.b16 %v8881
    %v9066 = vunpack.c.l.b16 %v8882
    %v9067 = vunpack.c.h.b16 %v8882
    %v9068 = vunpack.c.l.b16 %v8883
    %v9069 = vunpack.c.h.b16 %v8883
    %v9070 = vunpack.c.l.b16 %v8884
    %v9071 = vunpack.c.h.b16 %v8884
    %v9072 = vunpack.c.l.b16 %v8885
    %v9073 = vunpack.c.h.b16 %v8885
    %v9074 = vunpack.c.l.b16 %v8886
    %v9075 = vunpack.c.h.b16 %v8886
    %v9076 = vunpack.c.l.b16 %v8887
    %v9077 = vunpack.c.h.b16 %v8887
    %v9078 = vunpack.c.l.b16 %v8888
    %v9079 = vunpack.c.h.b16 %v8888
    %v9080 = vunpack.c.l.b16 %v8889
    %v9081 = vunpack.c.h.b16 %v8889
    %v9082 = vpack.c.b16 %v8958, %v8954
    %v9083 = vpack.c.b16 %v8959, %v8955
    %v9084 = vpack.c.b16 %v8960, %v8956
    %v9085 = vpack.c.b16 %v8961, %v8957
    %v9086 = vpack.c.b16 %v8966, %v8962
    %v9087 = vpack.c.b16 %v8967, %v8963
    %v9088 = vpack.c.b16 %v8968, %v8964
    %v9089 = vpack.c.b16 %v8969, %v8965
    %v9090 = vpack.c.b16 %v8974, %v8970
    %v9091 = vpack.c.b16 %v8975, %v8971
    %v9092 = vpack.c.b16 %v8976, %v8972
    %v9093 = vpack.c.b16 %v8977, %v8973
    %v9094 = vpack.c.b16 %v8982, %v8978
    %v9095 = vpack.c.b16 %v8983, %v8979
    %v9096 = vpack.c.b16 %v8984, %v8980
    %v9097 = vpack.c.b16 %v8985, %v8981
    %v9098 = vpack.c.b16 %v8990, %v8986
    %v9099 = vpack.c.b16 %v8991, %v8987
    %v9100 = vpack.c.b16 %v8992, %v8988
    %v9101 = vpack.c.b16 %v8993, %v8989
    %v9102 = vpack.c.b16 %v8998, %v8994
    %v9103 = vpack.c.b16 %v8999, %v8995
    %v9104 = vpack.c.b16 %v9000, %v8996
    %v9105 = vpack.c.b16 %v9001, %v8997
    %v9106 = vpack.c.b16 %v9006, %v9002
    %v9107 = vpack.c.b16 %v9007, %v9003
    %v9108 = vpack.c.b16 %v9008, %v9004
    %v9109 = vpack.c.b16 %v9009, %v9005
    %v9110 = vpack.c.b16 %v9014, %v9010
    %v9111 = vpack.c.b16 %v9015, %v9011
    %v9112 = vpack.c.b16 %v9016, %v9012
    %v9113 = vpack.c.b16 %v9017, %v9013
    %v9114 = vpack.c.b16 %v9022, %v9018
    %v9115 = vpack.c.b16 %v9023, %v9019
    %v9116 = vpack.c.b16 %v9024, %v9020
    %v9117 = vpack.c.b16 %v9025, %v9021
    %v9118 = vpack.c.b16 %v9030, %v9026
    %v9119 = vpack.c.b16 %v9031, %v9027
    %v9120 = vpack.c.b16 %v9032, %v9028
    %v9121 = vpack.c.b16 %v9033, %v9029
    %v9122 = vpack.c.b16 %v9038, %v9034
    %v9123 = vpack.c.b16 %v9039, %v9035
    %v9124 = vpack.c.b16 %v9040, %v9036
    %v9125 = vpack.c.b16 %v9041, %v9037
    %v9126 = vpack.c.b16 %v9046, %v9042
    %v9127 = vpack.c.b16 %v9047, %v9043
    %v9128 = vpack.c.b16 %v9048, %v9044
    %v9129 = vpack.c.b16 %v9049, %v9045
    %v9130 = vpack.c.b16 %v9054, %v9050
    %v9131 = vpack.c.b16 %v9055, %v9051
    %v9132 = vpack.c.b16 %v9056, %v9052
    %v9133 = vpack.c.b16 %v9057, %v9053
    %v9134 = vpack.c.b16 %v9062, %v9058
    %v9135 = vpack.c.b16 %v9063, %v9059
    %v9136 = vpack.c.b16 %v9064, %v9060
    %v9137 = vpack.c.b16 %v9065, %v9061
    %v9138 = vpack.c.b16 %v9070, %v9066
    %v9139 = vpack.c.b16 %v9071, %v9067
    %v9140 = vpack.c.b16 %v9072, %v9068
    %v9141 = vpack.c.b16 %v9073, %v9069
    %v9142 = vpack.c.b16 %v9078, %v9074
    %v9143 = vpack.c.b16 %v9079, %v9075
    %v9144 = vpack.c.b16 %v9080, %v9076
    %v9145 = vpack.c.b16 %v9081, %v9077
    %9210 = vmatpush.bf16.msra.mxu0 %v9110
    %9211 = vmatpush.bf16.msra.mxu0 %v9106
    %9212 = vmatpush.bf16.msra.mxu0 %v9102
    %9213 = vmatpush.bf16.msra.mxu0 %v9098
    %9214 = vmatpush.bf16.msra.mxu0 %v9094
    %9215 = vmatpush.bf16.msra.mxu0 %v9090
    %9216 = vmatpush.bf16.msra.mxu0 %v9086
    %9217 = vmatpush.bf16.msra.mxu0 %v9082
    %9218 = vmatmul.bf16.gmra.mxu0 %v7402
    %v9219 = vpop.f32.mrf.mxu0
    %v9220 = vadd.f32 %v1768, %v9219
    %v9221 = vpop.f32.mrf.mxu0
    %9222 = vdwg.mxu0
    %9223 = vmatpush.bf16.msra.mxu0 %v9142
    %9224 = vmatpush.bf16.msra.mxu0 %v9138
    %9225 = vmatpush.bf16.msra.mxu0 %v9134
    %9226 = vmatpush.bf16.msra.mxu0 %v9130
    %9227 = vmatpush.bf16.msra.mxu0 %v9126
    %9228 = vmatpush.bf16.msra.mxu0 %v9122
    %9229 = vmatpush.bf16.msra.mxu0 %v9118
    %9230 = vmatpush.bf16.msra.mxu0 %v9114
    %9231 = vmatmul.bf16.gmra.mxu0 %v7954
    %v9232 = vpop.f32.mrf.mxu0
    %v9233 = vadd.f32 %v9220, %v9232
    %v9234 = vpop.f32.mrf.mxu0
    %9235 = vdwg.mxu0
    %9236 = vmatpush.bf16.msra.mxu0 %v9111
    %9237 = vmatpush.bf16.msra.mxu0 %v9107
    %9238 = vmatpush.bf16.msra.mxu0 %v9103
    %9239 = vmatpush.bf16.msra.mxu0 %v9099
    %9240 = vmatpush.bf16.msra.mxu0 %v9095
    %9241 = vmatpush.bf16.msra.mxu0 %v9091
    %9242 = vmatpush.bf16.msra.mxu0 %v9087
    %9243 = vmatpush.bf16.msra.mxu0 %v9083
    %9244 = vmatmul.bf16.gmra.mxu0 %v7402
    %v9245 = vpop.f32.mrf.mxu0
    %v9246 = vadd.f32 %v1769, %v9245
    %v9247 = vpop.f32.mrf.mxu0
    %9248 = vdwg.mxu0
    %9249 = vmatpush.bf16.msra.mxu0 %v9143
    %9250 = vmatpush.bf16.msra.mxu0 %v9139
    %9251 = vmatpush.bf16.msra.mxu0 %v9135
    %9252 = vmatpush.bf16.msra.mxu0 %v9131
    %9253 = vmatpush.bf16.msra.mxu0 %v9127
    %9254 = vmatpush.bf16.msra.mxu0 %v9123
    %9255 = vmatpush.bf16.msra.mxu0 %v9119
    %9256 = vmatpush.bf16.msra.mxu0 %v9115
    %9257 = vmatmul.bf16.gmra.mxu0 %v7954
    %v9258 = vpop.f32.mrf.mxu0
    %v9259 = vadd.f32 %v9246, %v9258
    %v9260 = vpop.f32.mrf.mxu0
    %9261 = vdwg.mxu0
    %9262 = vmatpush.bf16.msra.mxu0 %v9112
    %9263 = vmatpush.bf16.msra.mxu0 %v9108
    %9264 = vmatpush.bf16.msra.mxu0 %v9104
    %9265 = vmatpush.bf16.msra.mxu0 %v9100
    %9266 = vmatpush.bf16.msra.mxu0 %v9096
    %9267 = vmatpush.bf16.msra.mxu0 %v9092
    %9268 = vmatpush.bf16.msra.mxu0 %v9088
    %9269 = vmatpush.bf16.msra.mxu0 %v9084
    %9270 = vmatmul.bf16.gmra.mxu0 %v7402
    %v9271 = vpop.f32.mrf.mxu0
    %v9272 = vadd.f32 %v1770, %v9271
    %v9273 = vpop.f32.mrf.mxu0
    %9274 = vdwg.mxu0
    %9275 = vmatpush.bf16.msra.mxu0 %v9144
    %9276 = vmatpush.bf16.msra.mxu0 %v9140
    %9277 = vmatpush.bf16.msra.mxu0 %v9136
    %9278 = vmatpush.bf16.msra.mxu0 %v9132
    %9279 = vmatpush.bf16.msra.mxu0 %v9128
    %9280 = vmatpush.bf16.msra.mxu0 %v9124
    %9281 = vmatpush.bf16.msra.mxu0 %v9120
    %9282 = vmatpush.bf16.msra.mxu0 %v9116
    %9283 = vmatmul.bf16.gmra.mxu0 %v7954
    %v9284 = vpop.f32.mrf.mxu0
    %v9285 = vadd.f32 %v9272, %v9284
    %v9286 = vpop.f32.mrf.mxu0
    %9287 = vdwg.mxu0
    %9288 = vmatpush.bf16.msra.mxu0 %v9113
    %9289 = vmatpush.bf16.msra.mxu0 %v9109
    %9290 = vmatpush.bf16.msra.mxu0 %v9105
    %9291 = vmatpush.bf16.msra.mxu0 %v9101
    %9292 = vmatpush.bf16.msra.mxu0 %v9097
    %9293 = vmatpush.bf16.msra.mxu0 %v9093
    %9294 = vmatpush.bf16.msra.mxu0 %v9089
    %9295 = vmatpush.bf16.msra.mxu0 %v9085
    %9296 = vmatmul.bf16.gmra.mxu0 %v7402
    %v9297 = vpop.f32.mrf.mxu0
    %v9298 = vadd.f32 %v1771, %v9297
    %v9299 = vpop.f32.mrf.mxu0
    %9300 = vdwg.mxu0
    %9301 = vmatpush.bf16.msra.mxu0 %v9145
    %9302 = vmatpush.bf16.msra.mxu0 %v9141
    %9303 = vmatpush.bf16.msra.mxu0 %v9137
    %9304 = vmatpush.bf16.msra.mxu0 %v9133
    %9305 = vmatpush.bf16.msra.mxu0 %v9129
    %9306 = vmatpush.bf16.msra.mxu0 %v9125
    %9307 = vmatpush.bf16.msra.mxu0 %v9121
    %9308 = vmatpush.bf16.msra.mxu0 %v9117
    %9309 = vmatmul.bf16.gmra.mxu0 %v7954
    %v9310 = vpop.f32.mrf.mxu0
    %v9311 = vadd.f32 %v9298, %v9310
    %v9312 = vpop.f32.mrf.mxu0
    %9313 = vdwg.mxu0
    %v9314 = vxor.u32 %v9233, 2147483648
    %v9315 = vxor.u32 %v9259, 2147483648
    %v9316 = vxor.u32 %v9285, 2147483648
    %v9317 = vmul.f32 %v9314, 1.442695
    %v9318 = vpow.pop %v9317
    %v9319 = vmul.f32 %v9315, 1.442695
    %v9320 = vpow.pop %v9319
    %v9321 = vmul.f32 %v9316, 1.442695
    %v9322 = vpow.pop %v9321
    %v9323 = vadd.f32 %v9318, 1.0
    %v9324 = vadd.f32 %v9320, 1.0
    %v9325 = vadd.f32 %v9322, 1.0
    %v9326 = vrcp.pop %v9323
    %v9327 = vmul.f32 %v9323, %v9326
    %v9328 = vsub.f32 1.0, %v9327
    %v9329 = vmul.f32 %v9326, %v9328
    %v9330 = vadd.f32 %v9326, %v9329
    %vm9331 = vweird.f32 %v9323
    %vm9332 = vweird.f32 %v9326
    %vm9333 = vmor %vm9331, %vm9332
    %v9334 = vsel %vm9333, %v9326, %v9330
    %v9335 = vand.u32 2147483647, %v9323
    %vm9336 = vcmp.eq.f32.partialorder %v9335, 8.507059e+37
    %v9337 = vand.u32 %v9323, 2147483648
    %v9338 = vor.u32 1.1754944e-38, %v9337
    %v9339 = vsel %vm9336, %v9338, %v9334
    %v9340 = vmul.f32 1.0, %v9339
    %v9341 = vrcp.pop %v9324
    %v9342 = vmul.f32 %v9324, %v9341
    %v9343 = vsub.f32 1.0, %v9342
    %v9344 = vmul.f32 %v9341, %v9343
    %v9345 = vadd.f32 %v9341, %v9344
    %vm9346 = vweird.f32 %v9324
    %vm9347 = vweird.f32 %v9341
    %vm9348 = vmor %vm9346, %vm9347
    %v9349 = vsel %vm9348, %v9341, %v9345
    %v9350 = vand.u32 2147483647, %v9324
    %vm9351 = vcmp.eq.f32.partialorder %v9350, 8.507059e+37
    %v9352 = vand.u32 %v9324, 2147483648
    %v9353 = vor.u32 1.1754944e-38, %v9352
    %v9354 = vsel %vm9351, %v9353, %v9349
    %v9355 = vmul.f32 1.0, %v9354
    %v9356 = vrcp.pop %v9325
    %v9357 = vmul.f32 %v9325, %v9356
    %v9358 = vsub.f32 1.0, %v9357
    %v9359 = vmul.f32 %v9356, %v9358
    %v9360 = vadd.f32 %v9356, %v9359
    %vm9361 = vweird.f32 %v9325
    %vm9362 = vweird.f32 %v9356
    %vm9363 = vmor %vm9361, %vm9362
    %v9364 = vsel %vm9363, %v9356, %v9360
    %v9365 = vand.u32 2147483647, %v9325
    %vm9366 = vcmp.eq.f32.partialorder %v9365, 8.507059e+37
    %v9367 = vand.u32 %v9325, 2147483648
    %v9368 = vor.u32 1.1754944e-38, %v9367
    %v9369 = vsel %vm9366, %v9368, %v9364
    %v9370 = vmul.f32 1.0, %v9369
    %v9371 = vtanh.pop %v9311
    %v9372 = vmul.f32 %v9355, %v7951
    %v9373 = vmul.f32 %v9340, %v9371
    %v9374 = vadd.f32 %v9372, %v9373
    %v9375 = vtanh.pop %v9374
    %v9376 = vmul.f32 %v9370, %v9375
    %v9377 = vpack.c.bf16 %v9376, %v9376
    %s9378 = scalar_lea.vmem [#allocation3], 20
    %9379 = vst [vmem:[%s9378] sm:$0xf] %v9377
    %v9380 = vld [vmem:[#allocation13] sm:$0xff]
    %v9381 = vld [vmem:[#allocation13 + $0x8] sm:$0xff]
    %v9382 = vld [vmem:[#allocation13 + $0x10] sm:$0xff]
    %v9383 = vld [vmem:[#allocation13 + $0x18] sm:$0xff]
    %v9384 = vld [vmem:[#allocation13 + $0x20] sm:$0xff]
    %v9385 = vld [vmem:[#allocation13 + $0x28] sm:$0xff]
    %v9386 = vld [vmem:[#allocation13 + $0x30] sm:$0xff]
    %v9387 = vld [vmem:[#allocation13 + $0x38] sm:$0xff]
    %v9388 = vld [vmem:[#allocation13 + $0x40] sm:$0xff]
    %v9389 = vld [vmem:[#allocation13 + $0x48] sm:$0xff]
    %v9390 = vld [vmem:[#allocation13 + $0x50] sm:$0xff]
    %v9391 = vld [vmem:[#allocation13 + $0x58] sm:$0xff]
    %v9392 = vld [vmem:[#allocation13 + $0x60] sm:$0xff]
    %v9393 = vld [vmem:[#allocation13 + $0x68] sm:$0xff]
    %v9394 = vld [vmem:[#allocation13 + $0x70] sm:$0xff]
    %v9395 = vld [vmem:[#allocation13 + $0x78] sm:$0xff]
    %v9396 = vld [vmem:[#allocation13 + $0x80] sm:$0xff]
    %v9397 = vld [vmem:[#allocation13 + $0x88] sm:$0xff]
    %v9398 = vld [vmem:[#allocation13 + $0x90] sm:$0xff]
    %v9399 = vld [vmem:[#allocation13 + $0x98] sm:$0xff]
    %v9400 = vld [vmem:[#allocation13 + $0xa0] sm:$0xff]
    %v9401 = vld [vmem:[#allocation13 + $0xa8] sm:$0xff]
    %v9402 = vld [vmem:[#allocation13 + $0xb0] sm:$0xff]
    %v9403 = vld [vmem:[#allocation13 + $0xb8] sm:$0xff]
    %v9404 = vld [vmem:[#allocation13 + $0xc0] sm:$0xff]
    %v9405 = vld [vmem:[#allocation13 + $0xc8] sm:$0xff]
    %v9406 = vld [vmem:[#allocation13 + $0xd0] sm:$0xff]
    %v9407 = vld [vmem:[#allocation13 + $0xd8] sm:$0xff]
    %v9408 = vld [vmem:[#allocation13 + $0xe0] sm:$0xff]
    %v9409 = vld [vmem:[#allocation13 + $0xe8] sm:$0xff]
    %v9410 = vld [vmem:[#allocation13 + $0xf0] sm:$0xff]
    %v9411 = vld [vmem:[#allocation13 + $0xf8] sm:$0xff]
    %v9412 = vld [vmem:[#allocation13 + $0x100] sm:$0xff]
    %v9413 = vld [vmem:[#allocation13 + $0x108] sm:$0xff]
    %v9414 = vld [vmem:[#allocation13 + $0x110] sm:$0xff]
    %v9415 = vld [vmem:[#allocation13 + $0x118] sm:$0xff]
    %v9416 = vld [vmem:[#allocation13 + $0x120] sm:$0xff]
    %v9417 = vld [vmem:[#allocation13 + $0x128] sm:$0xff]
    %v9418 = vld [vmem:[#allocation13 + $0x130] sm:$0xff]
    %v9419 = vld [vmem:[#allocation13 + $0x138] sm:$0xff]
    %v9420 = vld [vmem:[#allocation13 + $0x140] sm:$0xff]
    %v9421 = vld [vmem:[#allocation13 + $0x148] sm:$0xff]
    %v9422 = vld [vmem:[#allocation13 + $0x150] sm:$0xff]
    %v9423 = vld [vmem:[#allocation13 + $0x158] sm:$0xff]
    %v9424 = vld [vmem:[#allocation13 + $0x160] sm:$0xff]
    %v9425 = vld [vmem:[#allocation13 + $0x168] sm:$0xff]
    %v9426 = vld [vmem:[#allocation13 + $0x170] sm:$0xff]
    %v9427 = vld [vmem:[#allocation13 + $0x178] sm:$0xff]
    %v9428 = vld [vmem:[#allocation13 + $0x180] sm:$0xff]
    %v9429 = vld [vmem:[#allocation13 + $0x188] sm:$0xff]
    %v9430 = vld [vmem:[#allocation13 + $0x190] sm:$0xff]
    %v9431 = vld [vmem:[#allocation13 + $0x198] sm:$0xff]
    %v9432 = vld [vmem:[#allocation13 + $0x1a0] sm:$0xff]
    %v9433 = vld [vmem:[#allocation13 + $0x1a8] sm:$0xff]
    %v9434 = vld [vmem:[#allocation13 + $0x1b0] sm:$0xff]
    %v9435 = vld [vmem:[#allocation13 + $0x1b8] sm:$0xff]
    %v9436 = vld [vmem:[#allocation13 + $0x1c0] sm:$0xff]
    %v9437 = vld [vmem:[#allocation13 + $0x1c8] sm:$0xff]
    %v9438 = vld [vmem:[#allocation13 + $0x1d0] sm:$0xff]
    %v9439 = vld [vmem:[#allocation13 + $0x1d8] sm:$0xff]
    %v9440 = vld [vmem:[#allocation13 + $0x1e0] sm:$0xff]
    %v9441 = vld [vmem:[#allocation13 + $0x1e8] sm:$0xff]
    %v9442 = vld [vmem:[#allocation13 + $0x1f0] sm:$0xff]
    %v9443 = vld [vmem:[#allocation13 + $0x1f8] sm:$0xff]
    %v9508 = vunpack.c.l.b16 %v9380
    %v9509 = vunpack.c.h.b16 %v9380
    %v9510 = vunpack.c.l.b16 %v9381
    %v9511 = vunpack.c.h.b16 %v9381
    %v9512 = vunpack.c.l.b16 %v9382
    %v9513 = vunpack.c.h.b16 %v9382
    %v9514 = vunpack.c.l.b16 %v9383
    %v9515 = vunpack.c.h.b16 %v9383
    %v9516 = vunpack.c.l.b16 %v9384
    %v9517 = vunpack.c.h.b16 %v9384
    %v9518 = vunpack.c.l.b16 %v9385
    %v9519 = vunpack.c.h.b16 %v9385
    %v9520 = vunpack.c.l.b16 %v9386
    %v9521 = vunpack.c.h.b16 %v9386
    %v9522 = vunpack.c.l.b16 %v9387
    %v9523 = vunpack.c.h.b16 %v9387
    %v9524 = vunpack.c.l.b16 %v9388
    %v9525 = vunpack.c.h.b16 %v9388
    %v9526 = vunpack.c.l.b16 %v9389
    %v9527 = vunpack.c.h.b16 %v9389
    %v9528 = vunpack.c.l.b16 %v9390
    %v9529 = vunpack.c.h.b16 %v9390
    %v9530 = vunpack.c.l.b16 %v9391
    %v9531 = vunpack.c.h.b16 %v9391
    %v9532 = vunpack.c.l.b16 %v9392
    %v9533 = vunpack.c.h.b16 %v9392
    %v9534 = vunpack.c.l.b16 %v9393
    %v9535 = vunpack.c.h.b16 %v9393
    %v9536 = vunpack.c.l.b16 %v9394
    %v9537 = vunpack.c.h.b16 %v9394
    %v9538 = vunpack.c.l.b16 %v9395
    %v9539 = vunpack.c.h.b16 %v9395
    %v9540 = vunpack.c.l.b16 %v9396
    %v9541 = vunpack.c.h.b16 %v9396
    %v9542 = vunpack.c.l.b16 %v9397
    %v9543 = vunpack.c.h.b16 %v9397
    %v9544 = vunpack.c.l.b16 %v9398
    %v9545 = vunpack.c.h.b16 %v9398
    %v9546 = vunpack.c.l.b16 %v9399
    %v9547 = vunpack.c.h.b16 %v9399
    %v9548 = vunpack.c.l.b16 %v9400
    %v9549 = vunpack.c.h.b16 %v9400
    %v9550 = vunpack.c.l.b16 %v9401
    %v9551 = vunpack.c.h.b16 %v9401
    %v9552 = vunpack.c.l.b16 %v9402
    %v9553 = vunpack.c.h.b16 %v9402
    %v9554 = vunpack.c.l.b16 %v9403
    %v9555 = vunpack.c.h.b16 %v9403
    %v9556 = vunpack.c.l.b16 %v9404
    %v9557 = vunpack.c.h.b16 %v9404
    %v9558 = vunpack.c.l.b16 %v9405
    %v9559 = vunpack.c.h.b16 %v9405
    %v9560 = vunpack.c.l.b16 %v9406
    %v9561 = vunpack.c.h.b16 %v9406
    %v9562 = vunpack.c.l.b16 %v9407
    %v9563 = vunpack.c.h.b16 %v9407
    %v9564 = vunpack.c.l.b16 %v9408
    %v9565 = vunpack.c.h.b16 %v9408
    %v9566 = vunpack.c.l.b16 %v9409
    %v9567 = vunpack.c.h.b16 %v9409
    %v9568 = vunpack.c.l.b16 %v9410
    %v9569 = vunpack.c.h.b16 %v9410
    %v9570 = vunpack.c.l.b16 %v9411
    %v9571 = vunpack.c.h.b16 %v9411
    %v9572 = vunpack.c.l.b16 %v9412
    %v9573 = vunpack.c.h.b16 %v9412
    %v9574 = vunpack.c.l.b16 %v9413
    %v9575 = vunpack.c.h.b16 %v9413
    %v9576 = vunpack.c.l.b16 %v9414
    %v9577 = vunpack.c.h.b16 %v9414
    %v9578 = vunpack.c.l.b16 %v9415
    %v9579 = vunpack.c.h.b16 %v9415
    %v9580 = vunpack.c.l.b16 %v9416
    %v9581 = vunpack.c.h.b16 %v9416
    %v9582 = vunpack.c.l.b16 %v9417
    %v9583 = vunpack.c.h.b16 %v9417
    %v9584 = vunpack.c.l.b16 %v9418
    %v9585 = vunpack.c.h.b16 %v9418
    %v9586 = vunpack.c.l.b16 %v9419
    %v9587 = vunpack.c.h.b16 %v9419
    %v9588 = vunpack.c.l.b16 %v9420
    %v9589 = vunpack.c.h.b16 %v9420
    %v9590 = vunpack.c.l.b16 %v9421
    %v9591 = vunpack.c.h.b16 %v9421
    %v9592 = vunpack.c.l.b16 %v9422
    %v9593 = vunpack.c.h.b16 %v9422
    %v9594 = vunpack.c.l.b16 %v9423
    %v9595 = vunpack.c.h.b16 %v9423
    %v9596 = vunpack.c.l.b16 %v9424
    %v9597 = vunpack.c.h.b16 %v9424
    %v9598 = vunpack.c.l.b16 %v9425
    %v9599 = vunpack.c.h.b16 %v9425
    %v9600 = vunpack.c.l.b16 %v9426
    %v9601 = vunpack.c.h.b16 %v9426
    %v9602 = vunpack.c.l.b16 %v9427
    %v9603 = vunpack.c.h.b16 %v9427
    %v9604 = vunpack.c.l.b16 %v9428
    %v9605 = vunpack.c.h.b16 %v9428
    %v9606 = vunpack.c.l.b16 %v9429
    %v9607 = vunpack.c.h.b16 %v9429
    %v9608 = vunpack.c.l.b16 %v9430
    %v9609 = vunpack.c.h.b16 %v9430
    %v9610 = vunpack.c.l.b16 %v9431
    %v9611 = vunpack.c.h.b16 %v9431
    %v9612 = vunpack.c.l.b16 %v9432
    %v9613 = vunpack.c.h.b16 %v9432
    %v9614 = vunpack.c.l.b16 %v9433
    %v9615 = vunpack.c.h.b16 %v9433
    %v9616 = vunpack.c.l.b16 %v9434
    %v9617 = vunpack.c.h.b16 %v9434
    %v9618 = vunpack.c.l.b16 %v9435
    %v9619 = vunpack.c.h.b16 %v9435
    %v9620 = vunpack.c.l.b16 %v9436
    %v9621 = vunpack.c.h.b16 %v9436
    %v9622 = vunpack.c.l.b16 %v9437
    %v9623 = vunpack.c.h.b16 %v9437
    %v9624 = vunpack.c.l.b16 %v9438
    %v9625 = vunpack.c.h.b16 %v9438
    %v9626 = vunpack.c.l.b16 %v9439
    %v9627 = vunpack.c.h.b16 %v9439
    %v9628 = vunpack.c.l.b16 %v9440
    %v9629 = vunpack.c.h.b16 %v9440
    %v9630 = vunpack.c.l.b16 %v9441
    %v9631 = vunpack.c.h.b16 %v9441
    %v9632 = vunpack.c.l.b16 %v9442
    %v9633 = vunpack.c.h.b16 %v9442
    %v9634 = vunpack.c.l.b16 %v9443
    %v9635 = vunpack.c.h.b16 %v9443
    %v9636 = vpack.c.b16 %v9512, %v9508
    %v9637 = vpack.c.b16 %v9513, %v9509
    %v9638 = vpack.c.b16 %v9514, %v9510
    %v9639 = vpack.c.b16 %v9515, %v9511
    %v9640 = vpack.c.b16 %v9520, %v9516
    %v9641 = vpack.c.b16 %v9521, %v9517
    %v9642 = vpack.c.b16 %v9522, %v9518
    %v9643 = vpack.c.b16 %v9523, %v9519
    %v9644 = vpack.c.b16 %v9528, %v9524
    %v9645 = vpack.c.b16 %v9529, %v9525
    %v9646 = vpack.c.b16 %v9530, %v9526
    %v9647 = vpack.c.b16 %v9531, %v9527
    %v9648 = vpack.c.b16 %v9536, %v9532
    %v9649 = vpack.c.b16 %v9537, %v9533
    %v9650 = vpack.c.b16 %v9538, %v9534
    %v9651 = vpack.c.b16 %v9539, %v9535
    %v9652 = vpack.c.b16 %v9544, %v9540
    %v9653 = vpack.c.b16 %v9545, %v9541
    %v9654 = vpack.c.b16 %v9546, %v9542
    %v9655 = vpack.c.b16 %v9547, %v9543
    %v9656 = vpack.c.b16 %v9552, %v9548
    %v9657 = vpack.c.b16 %v9553, %v9549
    %v9658 = vpack.c.b16 %v9554, %v9550
    %v9659 = vpack.c.b16 %v9555, %v9551
    %v9660 = vpack.c.b16 %v9560, %v9556
    %v9661 = vpack.c.b16 %v9561, %v9557
    %v9662 = vpack.c.b16 %v9562, %v9558
    %v9663 = vpack.c.b16 %v9563, %v9559
    %v9664 = vpack.c.b16 %v9568, %v9564
    %v9665 = vpack.c.b16 %v9569, %v9565
    %v9666 = vpack.c.b16 %v9570, %v9566
    %v9667 = vpack.c.b16 %v9571, %v9567
    %v9668 = vpack.c.b16 %v9576, %v9572
    %v9669 = vpack.c.b16 %v9577, %v9573
    %v9670 = vpack.c.b16 %v9578, %v9574
    %v9671 = vpack.c.b16 %v9579, %v9575
    %v9672 = vpack.c.b16 %v9584, %v9580
    %v9673 = vpack.c.b16 %v9585, %v9581
    %v9674 = vpack.c.b16 %v9586, %v9582
    %v9675 = vpack.c.b16 %v9587, %v9583
    %v9676 = vpack.c.b16 %v9592, %v9588
    %v9677 = vpack.c.b16 %v9593, %v9589
    %v9678 = vpack.c.b16 %v9594, %v9590
    %v9679 = vpack.c.b16 %v9595, %v9591
    %v9680 = vpack.c.b16 %v9600, %v9596
    %v9681 = vpack.c.b16 %v9601, %v9597
    %v9682 = vpack.c.b16 %v9602, %v9598
    %v9683 = vpack.c.b16 %v9603, %v9599
    %v9684 = vpack.c.b16 %v9608, %v9604
    %v9685 = vpack.c.b16 %v9609, %v9605
    %v9686 = vpack.c.b16 %v9610, %v9606
    %v9687 = vpack.c.b16 %v9611, %v9607
    %v9688 = vpack.c.b16 %v9616, %v9612
    %v9689 = vpack.c.b16 %v9617, %v9613
    %v9690 = vpack.c.b16 %v9618, %v9614
    %v9691 = vpack.c.b16 %v9619, %v9615
    %v9692 = vpack.c.b16 %v9624, %v9620
    %v9693 = vpack.c.b16 %v9625, %v9621
    %v9694 = vpack.c.b16 %v9626, %v9622
    %v9695 = vpack.c.b16 %v9627, %v9623
    %v9696 = vpack.c.b16 %v9632, %v9628
    %v9697 = vpack.c.b16 %v9633, %v9629
    %v9698 = vpack.c.b16 %v9634, %v9630
    %v9699 = vpack.c.b16 %v9635, %v9631
    %9764 = vmatpush.bf16.msra.mxu0 %v9664
    %9765 = vmatpush.bf16.msra.mxu0 %v9660
    %9766 = vmatpush.bf16.msra.mxu0 %v9656
    %9767 = vmatpush.bf16.msra.mxu0 %v9652
    %9768 = vmatpush.bf16.msra.mxu0 %v9648
    %9769 = vmatpush.bf16.msra.mxu0 %v9644
    %9770 = vmatpush.bf16.msra.mxu0 %v9640
    %9771 = vmatpush.bf16.msra.mxu0 %v9636
    %9772 = vmatmul.bf16.gmra.mxu0 %v8273
    %v9773 = vpop.f32.mrf.mxu0
    %v9774 = vadd.f32 %v913, %v9773
    %v9775 = vpop.f32.mrf.mxu0
    %9776 = vdwg.mxu0
    %9777 = vmatpush.bf16.msra.mxu0 %v9696
    %9778 = vmatpush.bf16.msra.mxu0 %v9692
    %9779 = vmatpush.bf16.msra.mxu0 %v9688
    %9780 = vmatpush.bf16.msra.mxu0 %v9684
    %9781 = vmatpush.bf16.msra.mxu0 %v9680
    %9782 = vmatpush.bf16.msra.mxu0 %v9676
    %9783 = vmatpush.bf16.msra.mxu0 %v9672
    %9784 = vmatpush.bf16.msra.mxu0 %v9668
    %9785 = vmatmul.bf16.gmra.mxu0 %v8825
    %v9786 = vpop.f32.mrf.mxu0
    %v9787 = vadd.f32 %v9774, %v9786
    %v9788 = vpop.f32.mrf.mxu0
    %9789 = vdwg.mxu0
    %9790 = vmatpush.bf16.msra.mxu0 %v9665
    %9791 = vmatpush.bf16.msra.mxu0 %v9661
    %9792 = vmatpush.bf16.msra.mxu0 %v9657
    %9793 = vmatpush.bf16.msra.mxu0 %v9653
    %9794 = vmatpush.bf16.msra.mxu0 %v9649
    %9795 = vmatpush.bf16.msra.mxu0 %v9645
    %9796 = vmatpush.bf16.msra.mxu0 %v9641
    %9797 = vmatpush.bf16.msra.mxu0 %v9637
    %9798 = vmatmul.bf16.gmra.mxu0 %v8273
    %v9799 = vpop.f32.mrf.mxu0
    %v9800 = vadd.f32 %v914, %v9799
    %v9801 = vpop.f32.mrf.mxu0
    %9802 = vdwg.mxu0
    %9803 = vmatpush.bf16.msra.mxu0 %v9697
    %9804 = vmatpush.bf16.msra.mxu0 %v9693
    %9805 = vmatpush.bf16.msra.mxu0 %v9689
    %9806 = vmatpush.bf16.msra.mxu0 %v9685
    %9807 = vmatpush.bf16.msra.mxu0 %v9681
    %9808 = vmatpush.bf16.msra.mxu0 %v9677
    %9809 = vmatpush.bf16.msra.mxu0 %v9673
    %9810 = vmatpush.bf16.msra.mxu0 %v9669
    %9811 = vmatmul.bf16.gmra.mxu0 %v8825
    %v9812 = vpop.f32.mrf.mxu0
    %v9813 = vadd.f32 %v9800, %v9812
    %v9814 = vpop.f32.mrf.mxu0
    %9815 = vdwg.mxu0
    %9816 = vmatpush.bf16.msra.mxu0 %v9666
    %9817 = vmatpush.bf16.msra.mxu0 %v9662
    %9818 = vmatpush.bf16.msra.mxu0 %v9658
    %9819 = vmatpush.bf16.msra.mxu0 %v9654
    %9820 = vmatpush.bf16.msra.mxu0 %v9650
    %9821 = vmatpush.bf16.msra.mxu0 %v9646
    %9822 = vmatpush.bf16.msra.mxu0 %v9642
    %9823 = vmatpush.bf16.msra.mxu0 %v9638
    %9824 = vmatmul.bf16.gmra.mxu0 %v8273
    %v9825 = vpop.f32.mrf.mxu0
    %v9826 = vadd.f32 %v915, %v9825
    %v9827 = vpop.f32.mrf.mxu0
    %9828 = vdwg.mxu0
    %9829 = vmatpush.bf16.msra.mxu0 %v9698
    %9830 = vmatpush.bf16.msra.mxu0 %v9694
    %9831 = vmatpush.bf16.msra.mxu0 %v9690
    %9832 = vmatpush.bf16.msra.mxu0 %v9686
    %9833 = vmatpush.bf16.msra.mxu0 %v9682
    %9834 = vmatpush.bf16.msra.mxu0 %v9678
    %9835 = vmatpush.bf16.msra.mxu0 %v9674
    %9836 = vmatpush.bf16.msra.mxu0 %v9670
    %9837 = vmatmul.bf16.gmra.mxu0 %v8825
    %v9838 = vpop.f32.mrf.mxu0
    %v9839 = vadd.f32 %v9826, %v9838
    %v9840 = vpop.f32.mrf.mxu0
    %9841 = vdwg.mxu0
    %9842 = vmatpush.bf16.msra.mxu0 %v9667
    %9843 = vmatpush.bf16.msra.mxu0 %v9663
    %9844 = vmatpush.bf16.msra.mxu0 %v9659
    %9845 = vmatpush.bf16.msra.mxu0 %v9655
    %9846 = vmatpush.bf16.msra.mxu0 %v9651
    %9847 = vmatpush.bf16.msra.mxu0 %v9647
    %9848 = vmatpush.bf16.msra.mxu0 %v9643
    %9849 = vmatpush.bf16.msra.mxu0 %v9639
    %9850 = vmatmul.bf16.gmra.mxu0 %v8273
    %v9851 = vpop.f32.mrf.mxu0
    %v9852 = vadd.f32 %v916, %v9851
    %v9853 = vpop.f32.mrf.mxu0
    %9854 = vdwg.mxu0
    %9855 = vmatpush.bf16.msra.mxu0 %v9699
    %9856 = vmatpush.bf16.msra.mxu0 %v9695
    %9857 = vmatpush.bf16.msra.mxu0 %v9691
    %9858 = vmatpush.bf16.msra.mxu0 %v9687
    %9859 = vmatpush.bf16.msra.mxu0 %v9683
    %9860 = vmatpush.bf16.msra.mxu0 %v9679
    %9861 = vmatpush.bf16.msra.mxu0 %v9675
    %9862 = vmatpush.bf16.msra.mxu0 %v9671
    %9863 = vmatmul.bf16.gmra.mxu0 %v8825
    %v9864 = vpop.f32.mrf.mxu0
    %v9865 = vadd.f32 %v9852, %v9864
    %v9866 = vpop.f32.mrf.mxu0
    %9867 = vdwg.mxu0
    %v9868 = vxor.u32 %v9787, 2147483648
    %v9869 = vxor.u32 %v9813, 2147483648
    %v9870 = vxor.u32 %v9839, 2147483648
    %v9871 = vmul.f32 %v9868, 1.442695
    %v9872 = vpow.pop %v9871
    %v9873 = vmul.f32 %v9869, 1.442695
    %v9874 = vpow.pop %v9873
    %v9875 = vmul.f32 %v9870, 1.442695
    %v9876 = vpow.pop %v9875
    %v9877 = vadd.f32 %v9872, 1.0
    %v9878 = vadd.f32 %v9874, 1.0
    %v9879 = vadd.f32 %v9876, 1.0
    %v9880 = vrcp.pop %v9877
    %v9881 = vmul.f32 %v9877, %v9880
    %v9882 = vsub.f32 1.0, %v9881
    %v9883 = vmul.f32 %v9880, %v9882
    %v9884 = vadd.f32 %v9880, %v9883
    %vm9885 = vweird.f32 %v9877
    %vm9886 = vweird.f32 %v9880
    %vm9887 = vmor %vm9885, %vm9886
    %v9888 = vsel %vm9887, %v9880, %v9884
    %v9889 = vand.u32 2147483647, %v9877
    %vm9890 = vcmp.eq.f32.partialorder %v9889, 8.507059e+37
    %v9891 = vand.u32 %v9877, 2147483648
    %v9892 = vor.u32 1.1754944e-38, %v9891
    %v9893 = vsel %vm9890, %v9892, %v9888
    %v9894 = vmul.f32 1.0, %v9893
    %v9895 = vrcp.pop %v9878
    %v9896 = vmul.f32 %v9878, %v9895
    %v9897 = vsub.f32 1.0, %v9896
    %v9898 = vmul.f32 %v9895, %v9897
    %v9899 = vadd.f32 %v9895, %v9898
    %vm9900 = vweird.f32 %v9878
    %vm9901 = vweird.f32 %v9895
    %vm9902 = vmor %vm9900, %vm9901
    %v9903 = vsel %vm9902, %v9895, %v9899
    %v9904 = vand.u32 2147483647, %v9878
    %vm9905 = vcmp.eq.f32.partialorder %v9904, 8.507059e+37
    %v9906 = vand.u32 %v9878, 2147483648
    %v9907 = vor.u32 1.1754944e-38, %v9906
    %v9908 = vsel %vm9905, %v9907, %v9903
    %v9909 = vmul.f32 1.0, %v9908
    %v9910 = vrcp.pop %v9879
    %v9911 = vmul.f32 %v9879, %v9910
    %v9912 = vsub.f32 1.0, %v9911
    %v9913 = vmul.f32 %v9910, %v9912
    %v9914 = vadd.f32 %v9910, %v9913
    %vm9915 = vweird.f32 %v9879
    %vm9916 = vweird.f32 %v9910
    %vm9917 = vmor %vm9915, %vm9916
    %v9918 = vsel %vm9917, %v9910, %v9914
    %v9919 = vand.u32 2147483647, %v9879
    %vm9920 = vcmp.eq.f32.partialorder %v9919, 8.507059e+37
    %v9921 = vand.u32 %v9879, 2147483648
    %v9922 = vor.u32 1.1754944e-38, %v9921
    %v9923 = vsel %vm9920, %v9922, %v9918
    %v9924 = vmul.f32 1.0, %v9923
    %v9925 = vtanh.pop %v9865
    %v9926 = vmul.f32 %v9909, %v8822
    %v9927 = vmul.f32 %v9894, %v9925
    %v9928 = vadd.f32 %v9926, %v9927
    %v9929 = vtanh.pop %v9928
    %v9930 = vmul.f32 %v9924, %v9929
    %v9931 = vpack.c.bf16 %v9930, %v9930
    %v9932 = vld [vmem:[%s1702] sm:$0xff]
    %v9933 = vld [vmem:[%s1702 + $0x8] sm:$0xff]
    %v9934 = vld [vmem:[%s1702 + $0x10] sm:$0xff]
    %v9935 = vld [vmem:[%s1702 + $0x18] sm:$0xff]
    %v9936 = vld [vmem:[%s1702 + $0x20] sm:$0xff]
    %v9937 = vld [vmem:[%s1702 + $0x28] sm:$0xff]
    %v9938 = vld [vmem:[%s1702 + $0x30] sm:$0xff]
    %v9939 = vld [vmem:[%s1702 + $0x38] sm:$0xff]
    %v9940 = vld [vmem:[%s1702 + $0x40] sm:$0xff]
    %v9941 = vld [vmem:[%s1702 + $0x48] sm:$0xff]
    %v9942 = vld [vmem:[%s1702 + $0x50] sm:$0xff]
    %v9943 = vld [vmem:[%s1702 + $0x58] sm:$0xff]
    %v9944 = vld [vmem:[%s1702 + $0x60] sm:$0xff]
    %v9945 = vld [vmem:[%s1702 + $0x68] sm:$0xff]
    %v9946 = vld [vmem:[%s1702 + $0x70] sm:$0xff]
    %v9947 = vld [vmem:[%s1702 + $0x78] sm:$0xff]
    %v9948 = vld [vmem:[%s1702 + $0x80] sm:$0xff]
    %v9949 = vld [vmem:[%s1702 + $0x88] sm:$0xff]
    %v9950 = vld [vmem:[%s1702 + $0x90] sm:$0xff]
    %v9951 = vld [vmem:[%s1702 + $0x98] sm:$0xff]
    %v9952 = vld [vmem:[%s1702 + $0xa0] sm:$0xff]
    %v9953 = vld [vmem:[%s1702 + $0xa8] sm:$0xff]
    %v9954 = vld [vmem:[%s1702 + $0xb0] sm:$0xff]
    %v9955 = vld [vmem:[%s1702 + $0xb8] sm:$0xff]
    %v9956 = vld [vmem:[%s1702 + $0xc0] sm:$0xff]
    %v9957 = vld [vmem:[%s1702 + $0xc8] sm:$0xff]
    %v9958 = vld [vmem:[%s1702 + $0xd0] sm:$0xff]
    %v9959 = vld [vmem:[%s1702 + $0xd8] sm:$0xff]
    %v9960 = vld [vmem:[%s1702 + $0xe0] sm:$0xff]
    %v9961 = vld [vmem:[%s1702 + $0xe8] sm:$0xff]
    %v9962 = vld [vmem:[%s1702 + $0xf0] sm:$0xff]
    %v9963 = vld [vmem:[%s1702 + $0xf8] sm:$0xff]
    %v9964 = vld [vmem:[%s1702 + $0x100] sm:$0xff]
    %v9965 = vld [vmem:[%s1702 + $0x108] sm:$0xff]
    %v9966 = vld [vmem:[%s1702 + $0x110] sm:$0xff]
    %v9967 = vld [vmem:[%s1702 + $0x118] sm:$0xff]
    %v9968 = vld [vmem:[%s1702 + $0x120] sm:$0xff]
    %v9969 = vld [vmem:[%s1702 + $0x128] sm:$0xff]
    %v9970 = vld [vmem:[%s1702 + $0x130] sm:$0xff]
    %v9971 = vld [vmem:[%s1702 + $0x138] sm:$0xff]
    %v9972 = vld [vmem:[%s1702 + $0x140] sm:$0xff]
    %v9973 = vld [vmem:[%s1702 + $0x148] sm:$0xff]
    %v9974 = vld [vmem:[%s1702 + $0x150] sm:$0xff]
    %v9975 = vld [vmem:[%s1702 + $0x158] sm:$0xff]
    %v9976 = vld [vmem:[%s1702 + $0x160] sm:$0xff]
    %v9977 = vld [vmem:[%s1702 + $0x168] sm:$0xff]
    %v9978 = vld [vmem:[%s1702 + $0x170] sm:$0xff]
    %v9979 = vld [vmem:[%s1702 + $0x178] sm:$0xff]
    %v9980 = vld [vmem:[%s1702 + $0x180] sm:$0xff]
    %v9981 = vld [vmem:[%s1702 + $0x188] sm:$0xff]
    %v9982 = vld [vmem:[%s1702 + $0x190] sm:$0xff]
    %v9983 = vld [vmem:[%s1702 + $0x198] sm:$0xff]
    %v9984 = vld [vmem:[%s1702 + $0x1a0] sm:$0xff]
    %v9985 = vld [vmem:[%s1702 + $0x1a8] sm:$0xff]
    %v9986 = vld [vmem:[%s1702 + $0x1b0] sm:$0xff]
    %v9987 = vld [vmem:[%s1702 + $0x1b8] sm:$0xff]
    %v9988 = vld [vmem:[%s1702 + $0x1c0] sm:$0xff]
    %v9989 = vld [vmem:[%s1702 + $0x1c8] sm:$0xff]
    %v9990 = vld [vmem:[%s1702 + $0x1d0] sm:$0xff]
    %v9991 = vld [vmem:[%s1702 + $0x1d8] sm:$0xff]
    %v9992 = vld [vmem:[%s1702 + $0x1e0] sm:$0xff]
    %v9993 = vld [vmem:[%s1702 + $0x1e8] sm:$0xff]
    %v9994 = vld [vmem:[%s1702 + $0x1f0] sm:$0xff]
    %v9995 = vld [vmem:[%s1702 + $0x1f8] sm:$0xff]
    %v10060 = vunpack.c.l.b16 %v9932
    %v10061 = vunpack.c.h.b16 %v9932
    %v10062 = vunpack.c.l.b16 %v9933
    %v10063 = vunpack.c.h.b16 %v9933
    %v10064 = vunpack.c.l.b16 %v9934
    %v10065 = vunpack.c.h.b16 %v9934
    %v10066 = vunpack.c.l.b16 %v9935
    %v10067 = vunpack.c.h.b16 %v9935
    %v10068 = vunpack.c.l.b16 %v9936
    %v10069 = vunpack.c.h.b16 %v9936
    %v10070 = vunpack.c.l.b16 %v9937
    %v10071 = vunpack.c.h.b16 %v9937
    %v10072 = vunpack.c.l.b16 %v9938
    %v10073 = vunpack.c.h.b16 %v9938
    %v10074 = vunpack.c.l.b16 %v9939
    %v10075 = vunpack.c.h.b16 %v9939
    %v10076 = vunpack.c.l.b16 %v9940
    %v10077 = vunpack.c.h.b16 %v9940
    %v10078 = vunpack.c.l.b16 %v9941
    %v10079 = vunpack.c.h.b16 %v9941
    %v10080 = vunpack.c.l.b16 %v9942
    %v10081 = vunpack.c.h.b16 %v9942
    %v10082 = vunpack.c.l.b16 %v9943
    %v10083 = vunpack.c.h.b16 %v9943
    %v10084 = vunpack.c.l.b16 %v9944
    %v10085 = vunpack.c.h.b16 %v9944
    %v10086 = vunpack.c.l.b16 %v9945
    %v10087 = vunpack.c.h.b16 %v9945
    %v10088 = vunpack.c.l.b16 %v9946
    %v10089 = vunpack.c.h.b16 %v9946
    %v10090 = vunpack.c.l.b16 %v9947
    %v10091 = vunpack.c.h.b16 %v9947
    %v10092 = vunpack.c.l.b16 %v9948
    %v10093 = vunpack.c.h.b16 %v9948
    %v10094 = vunpack.c.l.b16 %v9949
    %v10095 = vunpack.c.h.b16 %v9949
    %v10096 = vunpack.c.l.b16 %v9950
    %v10097 = vunpack.c.h.b16 %v9950
    %v10098 = vunpack.c.l.b16 %v9951
    %v10099 = vunpack.c.h.b16 %v9951
    %v10100 = vunpack.c.l.b16 %v9952
    %v10101 = vunpack.c.h.b16 %v9952
    %v10102 = vunpack.c.l.b16 %v9953
    %v10103 = vunpack.c.h.b16 %v9953
    %v10104 = vunpack.c.l.b16 %v9954
    %v10105 = vunpack.c.h.b16 %v9954
    %v10106 = vunpack.c.l.b16 %v9955
    %v10107 = vunpack.c.h.b16 %v9955
    %v10108 = vunpack.c.l.b16 %v9956
    %v10109 = vunpack.c.h.b16 %v9956
    %v10110 = vunpack.c.l.b16 %v9957
    %v10111 = vunpack.c.h.b16 %v9957
    %v10112 = vunpack.c.l.b16 %v9958
    %v10113 = vunpack.c.h.b16 %v9958
    %v10114 = vunpack.c.l.b16 %v9959
    %v10115 = vunpack.c.h.b16 %v9959
    %v10116 = vunpack.c.l.b16 %v9960
    %v10117 = vunpack.c.h.b16 %v9960
    %v10118 = vunpack.c.l.b16 %v9961
    %v10119 = vunpack.c.h.b16 %v9961
    %v10120 = vunpack.c.l.b16 %v9962
    %v10121 = vunpack.c.h.b16 %v9962
    %v10122 = vunpack.c.l.b16 %v9963
    %v10123 = vunpack.c.h.b16 %v9963
    %v10124 = vunpack.c.l.b16 %v9964
    %v10125 = vunpack.c.h.b16 %v9964
    %v10126 = vunpack.c.l.b16 %v9965
    %v10127 = vunpack.c.h.b16 %v9965
    %v10128 = vunpack.c.l.b16 %v9966
    %v10129 = vunpack.c.h.b16 %v9966
    %v10130 = vunpack.c.l.b16 %v9967
    %v10131 = vunpack.c.h.b16 %v9967
    %v10132 = vunpack.c.l.b16 %v9968
    %v10133 = vunpack.c.h.b16 %v9968
    %v10134 = vunpack.c.l.b16 %v9969
    %v10135 = vunpack.c.h.b16 %v9969
    %v10136 = vunpack.c.l.b16 %v9970
    %v10137 = vunpack.c.h.b16 %v9970
    %v10138 = vunpack.c.l.b16 %v9971
    %v10139 = vunpack.c.h.b16 %v9971
    %v10140 = vunpack.c.l.b16 %v9972
    %v10141 = vunpack.c.h.b16 %v9972
    %v10142 = vunpack.c.l.b16 %v9973
    %v10143 = vunpack.c.h.b16 %v9973
    %v10144 = vunpack.c.l.b16 %v9974
    %v10145 = vunpack.c.h.b16 %v9974
    %v10146 = vunpack.c.l.b16 %v9975
    %v10147 = vunpack.c.h.b16 %v9975
    %v10148 = vunpack.c.l.b16 %v9976
    %v10149 = vunpack.c.h.b16 %v9976
    %v10150 = vunpack.c.l.b16 %v9977
    %v10151 = vunpack.c.h.b16 %v9977
    %v10152 = vunpack.c.l.b16 %v9978
    %v10153 = vunpack.c.h.b16 %v9978
    %v10154 = vunpack.c.l.b16 %v9979
    %v10155 = vunpack.c.h.b16 %v9979
    %v10156 = vunpack.c.l.b16 %v9980
    %v10157 = vunpack.c.h.b16 %v9980
    %v10158 = vunpack.c.l.b16 %v9981
    %v10159 = vunpack.c.h.b16 %v9981
    %v10160 = vunpack.c.l.b16 %v9982
    %v10161 = vunpack.c.h.b16 %v9982
    %v10162 = vunpack.c.l.b16 %v9983
    %v10163 = vunpack.c.h.b16 %v9983
    %v10164 = vunpack.c.l.b16 %v9984
    %v10165 = vunpack.c.h.b16 %v9984
    %v10166 = vunpack.c.l.b16 %v9985
    %v10167 = vunpack.c.h.b16 %v9985
    %v10168 = vunpack.c.l.b16 %v9986
    %v10169 = vunpack.c.h.b16 %v9986
    %v10170 = vunpack.c.l.b16 %v9987
    %v10171 = vunpack.c.h.b16 %v9987
    %v10172 = vunpack.c.l.b16 %v9988
    %v10173 = vunpack.c.h.b16 %v9988
    %v10174 = vunpack.c.l.b16 %v9989
    %v10175 = vunpack.c.h.b16 %v9989
    %v10176 = vunpack.c.l.b16 %v9990
    %v10177 = vunpack.c.h.b16 %v9990
    %v10178 = vunpack.c.l.b16 %v9991
    %v10179 = vunpack.c.h.b16 %v9991
    %v10180 = vunpack.c.l.b16 %v9992
    %v10181 = vunpack.c.h.b16 %v9992
    %v10182 = vunpack.c.l.b16 %v9993
    %v10183 = vunpack.c.h.b16 %v9993
    %v10184 = vunpack.c.l.b16 %v9994
    %v10185 = vunpack.c.h.b16 %v9994
    %v10186 = vunpack.c.l.b16 %v9995
    %v10187 = vunpack.c.h.b16 %v9995
    %v10188 = vpack.c.b16 %v10064, %v10060
    %v10189 = vpack.c.b16 %v10065, %v10061
    %v10190 = vpack.c.b16 %v10066, %v10062
    %v10191 = vpack.c.b16 %v10067, %v10063
    %v10192 = vpack.c.b16 %v10072, %v10068
    %v10193 = vpack.c.b16 %v10073, %v10069
    %v10194 = vpack.c.b16 %v10074, %v10070
    %v10195 = vpack.c.b16 %v10075, %v10071
    %v10196 = vpack.c.b16 %v10080, %v10076
    %v10197 = vpack.c.b16 %v10081, %v10077
    %v10198 = vpack.c.b16 %v10082, %v10078
    %v10199 = vpack.c.b16 %v10083, %v10079
    %v10200 = vpack.c.b16 %v10088, %v10084
    %v10201 = vpack.c.b16 %v10089, %v10085
    %v10202 = vpack.c.b16 %v10090, %v10086
    %v10203 = vpack.c.b16 %v10091, %v10087
    %v10204 = vpack.c.b16 %v10096, %v10092
    %v10205 = vpack.c.b16 %v10097, %v10093
    %v10206 = vpack.c.b16 %v10098, %v10094
    %v10207 = vpack.c.b16 %v10099, %v10095
    %v10208 = vpack.c.b16 %v10104, %v10100
    %v10209 = vpack.c.b16 %v10105, %v10101
    %v10210 = vpack.c.b16 %v10106, %v10102
    %v10211 = vpack.c.b16 %v10107, %v10103
    %v10212 = vpack.c.b16 %v10112, %v10108
    %v10213 = vpack.c.b16 %v10113, %v10109
    %v10214 = vpack.c.b16 %v10114, %v10110
    %v10215 = vpack.c.b16 %v10115, %v10111
    %v10216 = vpack.c.b16 %v10120, %v10116
    %v10217 = vpack.c.b16 %v10121, %v10117
    %v10218 = vpack.c.b16 %v10122, %v10118
    %v10219 = vpack.c.b16 %v10123, %v10119
    %v10220 = vpack.c.b16 %v10128, %v10124
    %v10221 = vpack.c.b16 %v10129, %v10125
    %v10222 = vpack.c.b16 %v10130, %v10126
    %v10223 = vpack.c.b16 %v10131, %v10127
    %v10224 = vpack.c.b16 %v10136, %v10132
    %v10225 = vpack.c.b16 %v10137, %v10133
    %v10226 = vpack.c.b16 %v10138, %v10134
    %v10227 = vpack.c.b16 %v10139, %v10135
    %v10228 = vpack.c.b16 %v10144, %v10140
    %v10229 = vpack.c.b16 %v10145, %v10141
    %v10230 = vpack.c.b16 %v10146, %v10142
    %v10231 = vpack.c.b16 %v10147, %v10143
    %v10232 = vpack.c.b16 %v10152, %v10148
    %v10233 = vpack.c.b16 %v10153, %v10149
    %v10234 = vpack.c.b16 %v10154, %v10150
    %v10235 = vpack.c.b16 %v10155, %v10151
    %v10236 = vpack.c.b16 %v10160, %v10156
    %v10237 = vpack.c.b16 %v10161, %v10157
    %v10238 = vpack.c.b16 %v10162, %v10158
    %v10239 = vpack.c.b16 %v10163, %v10159
    %v10240 = vpack.c.b16 %v10168, %v10164
    %v10241 = vpack.c.b16 %v10169, %v10165
    %v10242 = vpack.c.b16 %v10170, %v10166
    %v10243 = vpack.c.b16 %v10171, %v10167
    %v10244 = vpack.c.b16 %v10176, %v10172
    %v10245 = vpack.c.b16 %v10177, %v10173
    %v10246 = vpack.c.b16 %v10178, %v10174
    %v10247 = vpack.c.b16 %v10179, %v10175
    %v10248 = vpack.c.b16 %v10184, %v10180
    %v10249 = vpack.c.b16 %v10185, %v10181
    %v10250 = vpack.c.b16 %v10186, %v10182
    %v10251 = vpack.c.b16 %v10187, %v10183
    %10316 = vmatpush.bf16.msra.mxu0 %v10216
    %10317 = vmatpush.bf16.msra.mxu0 %v10212
    %10318 = vmatpush.bf16.msra.mxu0 %v10208
    %10319 = vmatpush.bf16.msra.mxu0 %v10204
    %10320 = vmatpush.bf16.msra.mxu0 %v10200
    %10321 = vmatpush.bf16.msra.mxu0 %v10196
    %10322 = vmatpush.bf16.msra.mxu0 %v10192
    %10323 = vmatpush.bf16.msra.mxu0 %v10188
    %10324 = vmatmul.bf16.gmra.mxu0 %v8825
    %v10325 = vpop.f32.mrf.mxu0
    %v10326 = vadd.f32 %v1768, %v10325
    %v10327 = vpop.f32.mrf.mxu0
    %10328 = vdwg.mxu0
    %10329 = vmatpush.bf16.msra.mxu0 %v10248
    %10330 = vmatpush.bf16.msra.mxu0 %v10244
    %10331 = vmatpush.bf16.msra.mxu0 %v10240
    %10332 = vmatpush.bf16.msra.mxu0 %v10236
    %10333 = vmatpush.bf16.msra.mxu0 %v10232
    %10334 = vmatpush.bf16.msra.mxu0 %v10228
    %10335 = vmatpush.bf16.msra.mxu0 %v10224
    %10336 = vmatpush.bf16.msra.mxu0 %v10220
    %10337 = vmatmul.bf16.gmra.mxu0 %v9377
    %v10338 = vpop.f32.mrf.mxu0
    %v10339 = vadd.f32 %v10326, %v10338
    %v10340 = vpop.f32.mrf.mxu0
    %10341 = vdwg.mxu0
    %10342 = vmatpush.bf16.msra.mxu0 %v10217
    %10343 = vmatpush.bf16.msra.mxu0 %v10213
    %10344 = vmatpush.bf16.msra.mxu0 %v10209
    %10345 = vmatpush.bf16.msra.mxu0 %v10205
    %10346 = vmatpush.bf16.msra.mxu0 %v10201
    %10347 = vmatpush.bf16.msra.mxu0 %v10197
    %10348 = vmatpush.bf16.msra.mxu0 %v10193
    %10349 = vmatpush.bf16.msra.mxu0 %v10189
    %10350 = vmatmul.bf16.gmra.mxu0 %v8825
    %v10351 = vpop.f32.mrf.mxu0
    %v10352 = vadd.f32 %v1769, %v10351
    %v10353 = vpop.f32.mrf.mxu0
    %10354 = vdwg.mxu0
    %10355 = vmatpush.bf16.msra.mxu0 %v10249
    %10356 = vmatpush.bf16.msra.mxu0 %v10245
    %10357 = vmatpush.bf16.msra.mxu0 %v10241
    %10358 = vmatpush.bf16.msra.mxu0 %v10237
    %10359 = vmatpush.bf16.msra.mxu0 %v10233
    %10360 = vmatpush.bf16.msra.mxu0 %v10229
    %10361 = vmatpush.bf16.msra.mxu0 %v10225
    %10362 = vmatpush.bf16.msra.mxu0 %v10221
    %10363 = vmatmul.bf16.gmra.mxu0 %v9377
    %v10364 = vpop.f32.mrf.mxu0
    %v10365 = vadd.f32 %v10352, %v10364
    %v10366 = vpop.f32.mrf.mxu0
    %10367 = vdwg.mxu0
    %10368 = vmatpush.bf16.msra.mxu0 %v10218
    %10369 = vmatpush.bf16.msra.mxu0 %v10214
    %10370 = vmatpush.bf16.msra.mxu0 %v10210
    %10371 = vmatpush.bf16.msra.mxu0 %v10206
    %10372 = vmatpush.bf16.msra.mxu0 %v10202
    %10373 = vmatpush.bf16.msra.mxu0 %v10198
    %10374 = vmatpush.bf16.msra.mxu0 %v10194
    %10375 = vmatpush.bf16.msra.mxu0 %v10190
    %10376 = vmatmul.bf16.gmra.mxu0 %v8825
    %v10377 = vpop.f32.mrf.mxu0
    %v10378 = vadd.f32 %v1770, %v10377
    %v10379 = vpop.f32.mrf.mxu0
    %10380 = vdwg.mxu0
    %10381 = vmatpush.bf16.msra.mxu0 %v10250
    %10382 = vmatpush.bf16.msra.mxu0 %v10246
    %10383 = vmatpush.bf16.msra.mxu0 %v10242
    %10384 = vmatpush.bf16.msra.mxu0 %v10238
    %10385 = vmatpush.bf16.msra.mxu0 %v10234
    %10386 = vmatpush.bf16.msra.mxu0 %v10230
    %10387 = vmatpush.bf16.msra.mxu0 %v10226
    %10388 = vmatpush.bf16.msra.mxu0 %v10222
    %10389 = vmatmul.bf16.gmra.mxu0 %v9377
    %v10390 = vpop.f32.mrf.mxu0
    %v10391 = vadd.f32 %v10378, %v10390
    %v10392 = vpop.f32.mrf.mxu0
    %10393 = vdwg.mxu0
    %10394 = vmatpush.bf16.msra.mxu0 %v10219
    %10395 = vmatpush.bf16.msra.mxu0 %v10215
    %10396 = vmatpush.bf16.msra.mxu0 %v10211
    %10397 = vmatpush.bf16.msra.mxu0 %v10207
    %10398 = vmatpush.bf16.msra.mxu0 %v10203
    %10399 = vmatpush.bf16.msra.mxu0 %v10199
    %10400 = vmatpush.bf16.msra.mxu0 %v10195
    %10401 = vmatpush.bf16.msra.mxu0 %v10191
    %10402 = vmatmul.bf16.gmra.mxu0 %v8825
    %v10403 = vpop.f32.mrf.mxu0
    %v10404 = vadd.f32 %v1771, %v10403
    %v10405 = vpop.f32.mrf.mxu0
    %10406 = vdwg.mxu0
    %10407 = vmatpush.bf16.msra.mxu0 %v10251
    %10408 = vmatpush.bf16.msra.mxu0 %v10247
    %10409 = vmatpush.bf16.msra.mxu0 %v10243
    %10410 = vmatpush.bf16.msra.mxu0 %v10239
    %10411 = vmatpush.bf16.msra.mxu0 %v10235
    %10412 = vmatpush.bf16.msra.mxu0 %v10231
    %10413 = vmatpush.bf16.msra.mxu0 %v10227
    %10414 = vmatpush.bf16.msra.mxu0 %v10223
    %10415 = vmatmul.bf16.gmra.mxu0 %v9377
    %v10416 = vpop.f32.mrf.mxu0
    %v10417 = vadd.f32 %v10404, %v10416
    %v10418 = vpop.f32.mrf.mxu0
    %10419 = vdwg.mxu0
    %v10420 = vxor.u32 %v10339, 2147483648
    %v10421 = vxor.u32 %v10365, 2147483648
    %v10422 = vxor.u32 %v10391, 2147483648
    %v10423 = vmul.f32 %v10420, 1.442695
    %v10424 = vpow.pop %v10423
    %v10425 = vmul.f32 %v10421, 1.442695
    %v10426 = vpow.pop %v10425
    %v10427 = vmul.f32 %v10422, 1.442695
    %v10428 = vpow.pop %v10427
    %v10429 = vadd.f32 %v10424, 1.0
    %v10430 = vadd.f32 %v10426, 1.0
    %v10431 = vadd.f32 %v10428, 1.0
    %v10432 = vrcp.pop %v10429
    %v10433 = vmul.f32 %v10429, %v10432
    %v10434 = vsub.f32 1.0, %v10433
    %v10435 = vmul.f32 %v10432, %v10434
    %v10436 = vadd.f32 %v10432, %v10435
    %vm10437 = vweird.f32 %v10429
    %vm10438 = vweird.f32 %v10432
    %vm10439 = vmor %vm10437, %vm10438
    %v10440 = vsel %vm10439, %v10432, %v10436
    %v10441 = vand.u32 2147483647, %v10429
    %vm10442 = vcmp.eq.f32.partialorder %v10441, 8.507059e+37
    %v10443 = vand.u32 %v10429, 2147483648
    %v10444 = vor.u32 1.1754944e-38, %v10443
    %v10445 = vsel %vm10442, %v10444, %v10440
    %v10446 = vmul.f32 1.0, %v10445
    %v10447 = vrcp.pop %v10430
    %v10448 = vmul.f32 %v10430, %v10447
    %v10449 = vsub.f32 1.0, %v10448
    %v10450 = vmul.f32 %v10447, %v10449
    %v10451 = vadd.f32 %v10447, %v10450
    %vm10452 = vweird.f32 %v10430
    %vm10453 = vweird.f32 %v10447
    %vm10454 = vmor %vm10452, %vm10453
    %v10455 = vsel %vm10454, %v10447, %v10451
    %v10456 = vand.u32 2147483647, %v10430
    %vm10457 = vcmp.eq.f32.partialorder %v10456, 8.507059e+37
    %v10458 = vand.u32 %v10430, 2147483648
    %v10459 = vor.u32 1.1754944e-38, %v10458
    %v10460 = vsel %vm10457, %v10459, %v10455
    %v10461 = vmul.f32 1.0, %v10460
    %v10462 = vrcp.pop %v10431
    %v10463 = vmul.f32 %v10431, %v10462
    %v10464 = vsub.f32 1.0, %v10463
    %v10465 = vmul.f32 %v10462, %v10464
    %v10466 = vadd.f32 %v10462, %v10465
    %vm10467 = vweird.f32 %v10431
    %vm10468 = vweird.f32 %v10462
    %vm10469 = vmor %vm10467, %vm10468
    %v10470 = vsel %vm10469, %v10462, %v10466
    %v10471 = vand.u32 2147483647, %v10431
    %vm10472 = vcmp.eq.f32.partialorder %v10471, 8.507059e+37
    %v10473 = vand.u32 %v10431, 2147483648
    %v10474 = vor.u32 1.1754944e-38, %v10473
    %v10475 = vsel %vm10472, %v10474, %v10470
    %v10476 = vmul.f32 1.0, %v10475
    %v10477 = vtanh.pop %v10417
    %v10478 = vmul.f32 %v10461, %v9374
    %v10479 = vmul.f32 %v10446, %v10477
    %v10480 = vadd.f32 %v10478, %v10479
    %v10481 = vtanh.pop %v10480
    %v10482 = vmul.f32 %v10476, %v10481
    %v10483 = vpack.c.bf16 %v10482, %v10482
    %s10484 = scalar_lea.vmem [#allocation3], 24
    %10485 = vst [vmem:[%s10484] sm:$0xf] %v10483
    %v10486 = vld [vmem:[%s1702] sm:$0xff]
    %v10487 = vld [vmem:[%s1702 + $0x8] sm:$0xff]
    %v10488 = vld [vmem:[%s1702 + $0x10] sm:$0xff]
    %v10489 = vld [vmem:[%s1702 + $0x18] sm:$0xff]
    %v10490 = vld [vmem:[%s1702 + $0x20] sm:$0xff]
    %v10491 = vld [vmem:[%s1702 + $0x28] sm:$0xff]
    %v10492 = vld [vmem:[%s1702 + $0x30] sm:$0xff]
    %v10493 = vld [vmem:[%s1702 + $0x38] sm:$0xff]
    %v10494 = vld [vmem:[%s1702 + $0x40] sm:$0xff]
    %v10495 = vld [vmem:[%s1702 + $0x48] sm:$0xff]
    %v10496 = vld [vmem:[%s1702 + $0x50] sm:$0xff]
    %v10497 = vld [vmem:[%s1702 + $0x58] sm:$0xff]
    %v10498 = vld [vmem:[%s1702 + $0x60] sm:$0xff]
    %v10499 = vld [vmem:[%s1702 + $0x68] sm:$0xff]
    %v10500 = vld [vmem:[%s1702 + $0x70] sm:$0xff]
    %v10501 = vld [vmem:[%s1702 + $0x78] sm:$0xff]
    %v10502 = vld [vmem:[%s1702 + $0x80] sm:$0xff]
    %v10503 = vld [vmem:[%s1702 + $0x88] sm:$0xff]
    %v10504 = vld [vmem:[%s1702 + $0x90] sm:$0xff]
    %v10505 = vld [vmem:[%s1702 + $0x98] sm:$0xff]
    %v10506 = vld [vmem:[%s1702 + $0xa0] sm:$0xff]
    %v10507 = vld [vmem:[%s1702 + $0xa8] sm:$0xff]
    %v10508 = vld [vmem:[%s1702 + $0xb0] sm:$0xff]
    %v10509 = vld [vmem:[%s1702 + $0xb8] sm:$0xff]
    %v10510 = vld [vmem:[%s1702 + $0xc0] sm:$0xff]
    %v10511 = vld [vmem:[%s1702 + $0xc8] sm:$0xff]
    %v10512 = vld [vmem:[%s1702 + $0xd0] sm:$0xff]
    %v10513 = vld [vmem:[%s1702 + $0xd8] sm:$0xff]
    %v10514 = vld [vmem:[%s1702 + $0xe0] sm:$0xff]
    %v10515 = vld [vmem:[%s1702 + $0xe8] sm:$0xff]
    %v10516 = vld [vmem:[%s1702 + $0xf0] sm:$0xff]
    %v10517 = vld [vmem:[%s1702 + $0xf8] sm:$0xff]
    %v10518 = vld [vmem:[%s1702 + $0x100] sm:$0xff]
    %v10519 = vld [vmem:[%s1702 + $0x108] sm:$0xff]
    %v10520 = vld [vmem:[%s1702 + $0x110] sm:$0xff]
    %v10521 = vld [vmem:[%s1702 + $0x118] sm:$0xff]
    %v10522 = vld [vmem:[%s1702 + $0x120] sm:$0xff]
    %v10523 = vld [vmem:[%s1702 + $0x128] sm:$0xff]
    %v10524 = vld [vmem:[%s1702 + $0x130] sm:$0xff]
    %v10525 = vld [vmem:[%s1702 + $0x138] sm:$0xff]
    %v10526 = vld [vmem:[%s1702 + $0x140] sm:$0xff]
    %v10527 = vld [vmem:[%s1702 + $0x148] sm:$0xff]
    %v10528 = vld [vmem:[%s1702 + $0x150] sm:$0xff]
    %v10529 = vld [vmem:[%s1702 + $0x158] sm:$0xff]
    %v10530 = vld [vmem:[%s1702 + $0x160] sm:$0xff]
    %v10531 = vld [vmem:[%s1702 + $0x168] sm:$0xff]
    %v10532 = vld [vmem:[%s1702 + $0x170] sm:$0xff]
    %v10533 = vld [vmem:[%s1702 + $0x178] sm:$0xff]
    %v10534 = vld [vmem:[%s1702 + $0x180] sm:$0xff]
    %v10535 = vld [vmem:[%s1702 + $0x188] sm:$0xff]
    %v10536 = vld [vmem:[%s1702 + $0x190] sm:$0xff]
    %v10537 = vld [vmem:[%s1702 + $0x198] sm:$0xff]
    %v10538 = vld [vmem:[%s1702 + $0x1a0] sm:$0xff]
    %v10539 = vld [vmem:[%s1702 + $0x1a8] sm:$0xff]
    %v10540 = vld [vmem:[%s1702 + $0x1b0] sm:$0xff]
    %v10541 = vld [vmem:[%s1702 + $0x1b8] sm:$0xff]
    %v10542 = vld [vmem:[%s1702 + $0x1c0] sm:$0xff]
    %v10543 = vld [vmem:[%s1702 + $0x1c8] sm:$0xff]
    %v10544 = vld [vmem:[%s1702 + $0x1d0] sm:$0xff]
    %v10545 = vld [vmem:[%s1702 + $0x1d8] sm:$0xff]
    %v10546 = vld [vmem:[%s1702 + $0x1e0] sm:$0xff]
    %v10547 = vld [vmem:[%s1702 + $0x1e8] sm:$0xff]
    %v10548 = vld [vmem:[%s1702 + $0x1f0] sm:$0xff]
    %v10549 = vld [vmem:[%s1702 + $0x1f8] sm:$0xff]
    %v10614 = vunpack.c.l.b16 %v10486
    %v10615 = vunpack.c.h.b16 %v10486
    %v10616 = vunpack.c.l.b16 %v10487
    %v10617 = vunpack.c.h.b16 %v10487
    %v10618 = vunpack.c.l.b16 %v10488
    %v10619 = vunpack.c.h.b16 %v10488
    %v10620 = vunpack.c.l.b16 %v10489
    %v10621 = vunpack.c.h.b16 %v10489
    %v10622 = vunpack.c.l.b16 %v10490
    %v10623 = vunpack.c.h.b16 %v10490
    %v10624 = vunpack.c.l.b16 %v10491
    %v10625 = vunpack.c.h.b16 %v10491
    %v10626 = vunpack.c.l.b16 %v10492
    %v10627 = vunpack.c.h.b16 %v10492
    %v10628 = vunpack.c.l.b16 %v10493
    %v10629 = vunpack.c.h.b16 %v10493
    %v10630 = vunpack.c.l.b16 %v10494
    %v10631 = vunpack.c.h.b16 %v10494
    %v10632 = vunpack.c.l.b16 %v10495
    %v10633 = vunpack.c.h.b16 %v10495
    %v10634 = vunpack.c.l.b16 %v10496
    %v10635 = vunpack.c.h.b16 %v10496
    %v10636 = vunpack.c.l.b16 %v10497
    %v10637 = vunpack.c.h.b16 %v10497
    %v10638 = vunpack.c.l.b16 %v10498
    %v10639 = vunpack.c.h.b16 %v10498
    %v10640 = vunpack.c.l.b16 %v10499
    %v10641 = vunpack.c.h.b16 %v10499
    %v10642 = vunpack.c.l.b16 %v10500
    %v10643 = vunpack.c.h.b16 %v10500
    %v10644 = vunpack.c.l.b16 %v10501
    %v10645 = vunpack.c.h.b16 %v10501
    %v10646 = vunpack.c.l.b16 %v10502
    %v10647 = vunpack.c.h.b16 %v10502
    %v10648 = vunpack.c.l.b16 %v10503
    %v10649 = vunpack.c.h.b16 %v10503
    %v10650 = vunpack.c.l.b16 %v10504
    %v10651 = vunpack.c.h.b16 %v10504
    %v10652 = vunpack.c.l.b16 %v10505
    %v10653 = vunpack.c.h.b16 %v10505
    %v10654 = vunpack.c.l.b16 %v10506
    %v10655 = vunpack.c.h.b16 %v10506
    %v10656 = vunpack.c.l.b16 %v10507
    %v10657 = vunpack.c.h.b16 %v10507
    %v10658 = vunpack.c.l.b16 %v10508
    %v10659 = vunpack.c.h.b16 %v10508
    %v10660 = vunpack.c.l.b16 %v10509
    %v10661 = vunpack.c.h.b16 %v10509
    %v10662 = vunpack.c.l.b16 %v10510
    %v10663 = vunpack.c.h.b16 %v10510
    %v10664 = vunpack.c.l.b16 %v10511
    %v10665 = vunpack.c.h.b16 %v10511
    %v10666 = vunpack.c.l.b16 %v10512
    %v10667 = vunpack.c.h.b16 %v10512
    %v10668 = vunpack.c.l.b16 %v10513
    %v10669 = vunpack.c.h.b16 %v10513
    %v10670 = vunpack.c.l.b16 %v10514
    %v10671 = vunpack.c.h.b16 %v10514
    %v10672 = vunpack.c.l.b16 %v10515
    %v10673 = vunpack.c.h.b16 %v10515
    %v10674 = vunpack.c.l.b16 %v10516
    %v10675 = vunpack.c.h.b16 %v10516
    %v10676 = vunpack.c.l.b16 %v10517
    %v10677 = vunpack.c.h.b16 %v10517
    %v10678 = vunpack.c.l.b16 %v10518
    %v10679 = vunpack.c.h.b16 %v10518
    %v10680 = vunpack.c.l.b16 %v10519
    %v10681 = vunpack.c.h.b16 %v10519
    %v10682 = vunpack.c.l.b16 %v10520
    %v10683 = vunpack.c.h.b16 %v10520
    %v10684 = vunpack.c.l.b16 %v10521
    %v10685 = vunpack.c.h.b16 %v10521
    %v10686 = vunpack.c.l.b16 %v10522
    %v10687 = vunpack.c.h.b16 %v10522
    %v10688 = vunpack.c.l.b16 %v10523
    %v10689 = vunpack.c.h.b16 %v10523
    %v10690 = vunpack.c.l.b16 %v10524
    %v10691 = vunpack.c.h.b16 %v10524
    %v10692 = vunpack.c.l.b16 %v10525
    %v10693 = vunpack.c.h.b16 %v10525
    %v10694 = vunpack.c.l.b16 %v10526
    %v10695 = vunpack.c.h.b16 %v10526
    %v10696 = vunpack.c.l.b16 %v10527
    %v10697 = vunpack.c.h.b16 %v10527
    %v10698 = vunpack.c.l.b16 %v10528
    %v10699 = vunpack.c.h.b16 %v10528
    %v10700 = vunpack.c.l.b16 %v10529
    %v10701 = vunpack.c.h.b16 %v10529
    %v10702 = vunpack.c.l.b16 %v10530
    %v10703 = vunpack.c.h.b16 %v10530
    %v10704 = vunpack.c.l.b16 %v10531
    %v10705 = vunpack.c.h.b16 %v10531
    %v10706 = vunpack.c.l.b16 %v10532
    %v10707 = vunpack.c.h.b16 %v10532
    %v10708 = vunpack.c.l.b16 %v10533
    %v10709 = vunpack.c.h.b16 %v10533
    %v10710 = vunpack.c.l.b16 %v10534
    %v10711 = vunpack.c.h.b16 %v10534
    %v10712 = vunpack.c.l.b16 %v10535
    %v10713 = vunpack.c.h.b16 %v10535
    %v10714 = vunpack.c.l.b16 %v10536
    %v10715 = vunpack.c.h.b16 %v10536
    %v10716 = vunpack.c.l.b16 %v10537
    %v10717 = vunpack.c.h.b16 %v10537
    %v10718 = vunpack.c.l.b16 %v10538
    %v10719 = vunpack.c.h.b16 %v10538
    %v10720 = vunpack.c.l.b16 %v10539
    %v10721 = vunpack.c.h.b16 %v10539
    %v10722 = vunpack.c.l.b16 %v10540
    %v10723 = vunpack.c.h.b16 %v10540
    %v10724 = vunpack.c.l.b16 %v10541
    %v10725 = vunpack.c.h.b16 %v10541
    %v10726 = vunpack.c.l.b16 %v10542
    %v10727 = vunpack.c.h.b16 %v10542
    %v10728 = vunpack.c.l.b16 %v10543
    %v10729 = vunpack.c.h.b16 %v10543
    %v10730 = vunpack.c.l.b16 %v10544
    %v10731 = vunpack.c.h.b16 %v10544
    %v10732 = vunpack.c.l.b16 %v10545
    %v10733 = vunpack.c.h.b16 %v10545
    %v10734 = vunpack.c.l.b16 %v10546
    %v10735 = vunpack.c.h.b16 %v10546
    %v10736 = vunpack.c.l.b16 %v10547
    %v10737 = vunpack.c.h.b16 %v10547
    %v10738 = vunpack.c.l.b16 %v10548
    %v10739 = vunpack.c.h.b16 %v10548
    %v10740 = vunpack.c.l.b16 %v10549
    %v10741 = vunpack.c.h.b16 %v10549
    %v10742 = vpack.c.b16 %v10618, %v10614
    %v10743 = vpack.c.b16 %v10619, %v10615
    %v10744 = vpack.c.b16 %v10620, %v10616
    %v10745 = vpack.c.b16 %v10621, %v10617
    %v10746 = vpack.c.b16 %v10626, %v10622
    %v10747 = vpack.c.b16 %v10627, %v10623
    %v10748 = vpack.c.b16 %v10628, %v10624
    %v10749 = vpack.c.b16 %v10629, %v10625
    %v10750 = vpack.c.b16 %v10634, %v10630
    %v10751 = vpack.c.b16 %v10635, %v10631
    %v10752 = vpack.c.b16 %v10636, %v10632
    %v10753 = vpack.c.b16 %v10637, %v10633
    %v10754 = vpack.c.b16 %v10642, %v10638
    %v10755 = vpack.c.b16 %v10643, %v10639
    %v10756 = vpack.c.b16 %v10644, %v10640
    %v10757 = vpack.c.b16 %v10645, %v10641
    %v10758 = vpack.c.b16 %v10650, %v10646
    %v10759 = vpack.c.b16 %v10651, %v10647
    %v10760 = vpack.c.b16 %v10652, %v10648
    %v10761 = vpack.c.b16 %v10653, %v10649
    %v10762 = vpack.c.b16 %v10658, %v10654
    %v10763 = vpack.c.b16 %v10659, %v10655
    %v10764 = vpack.c.b16 %v10660, %v10656
    %v10765 = vpack.c.b16 %v10661, %v10657
    %v10766 = vpack.c.b16 %v10666, %v10662
    %v10767 = vpack.c.b16 %v10667, %v10663
    %v10768 = vpack.c.b16 %v10668, %v10664
    %v10769 = vpack.c.b16 %v10669, %v10665
    %v10770 = vpack.c.b16 %v10674, %v10670
    %v10771 = vpack.c.b16 %v10675, %v10671
    %v10772 = vpack.c.b16 %v10676, %v10672
    %v10773 = vpack.c.b16 %v10677, %v10673
    %v10774 = vpack.c.b16 %v10682, %v10678
    %v10775 = vpack.c.b16 %v10683, %v10679
    %v10776 = vpack.c.b16 %v10684, %v10680
    %v10777 = vpack.c.b16 %v10685, %v10681
    %v10778 = vpack.c.b16 %v10690, %v10686
    %v10779 = vpack.c.b16 %v10691, %v10687
    %v10780 = vpack.c.b16 %v10692, %v10688
    %v10781 = vpack.c.b16 %v10693, %v10689
    %v10782 = vpack.c.b16 %v10698, %v10694
    %v10783 = vpack.c.b16 %v10699, %v10695
    %v10784 = vpack.c.b16 %v10700, %v10696
    %v10785 = vpack.c.b16 %v10701, %v10697
    %v10786 = vpack.c.b16 %v10706, %v10702
    %v10787 = vpack.c.b16 %v10707, %v10703
    %v10788 = vpack.c.b16 %v10708, %v10704
    %v10789 = vpack.c.b16 %v10709, %v10705
    %v10790 = vpack.c.b16 %v10714, %v10710
    %v10791 = vpack.c.b16 %v10715, %v10711
    %v10792 = vpack.c.b16 %v10716, %v10712
    %v10793 = vpack.c.b16 %v10717, %v10713
    %v10794 = vpack.c.b16 %v10722, %v10718
    %v10795 = vpack.c.b16 %v10723, %v10719
    %v10796 = vpack.c.b16 %v10724, %v10720
    %v10797 = vpack.c.b16 %v10725, %v10721
    %v10798 = vpack.c.b16 %v10730, %v10726
    %v10799 = vpack.c.b16 %v10731, %v10727
    %v10800 = vpack.c.b16 %v10732, %v10728
    %v10801 = vpack.c.b16 %v10733, %v10729
    %v10802 = vpack.c.b16 %v10738, %v10734
    %v10803 = vpack.c.b16 %v10739, %v10735
    %v10804 = vpack.c.b16 %v10740, %v10736
    %v10805 = vpack.c.b16 %v10741, %v10737
    %10870 = vmatpush.bf16.msra.mxu0 %v10770
    %10871 = vmatpush.bf16.msra.mxu0 %v10766
    %10872 = vmatpush.bf16.msra.mxu0 %v10762
    %10873 = vmatpush.bf16.msra.mxu0 %v10758
    %10874 = vmatpush.bf16.msra.mxu0 %v10754
    %10875 = vmatpush.bf16.msra.mxu0 %v10750
    %10876 = vmatpush.bf16.msra.mxu0 %v10746
    %10877 = vmatpush.bf16.msra.mxu0 %v10742
    %10878 = vmatmul.bf16.gmra.mxu0 %v9931
    %v10879 = vpop.f32.mrf.mxu0
    %v10880 = vadd.f32 %v1768, %v10879
    %v10881 = vpop.f32.mrf.mxu0
    %10882 = vdwg.mxu0
    %10883 = vmatpush.bf16.msra.mxu0 %v10802
    %10884 = vmatpush.bf16.msra.mxu0 %v10798
    %10885 = vmatpush.bf16.msra.mxu0 %v10794
    %10886 = vmatpush.bf16.msra.mxu0 %v10790
    %10887 = vmatpush.bf16.msra.mxu0 %v10786
    %10888 = vmatpush.bf16.msra.mxu0 %v10782
    %10889 = vmatpush.bf16.msra.mxu0 %v10778
    %10890 = vmatpush.bf16.msra.mxu0 %v10774
    %10891 = vmatmul.bf16.gmra.mxu0 %v10483
    %v10892 = vpop.f32.mrf.mxu0
    %v10893 = vadd.f32 %v10880, %v10892
    %v10894 = vpop.f32.mrf.mxu0
    %10895 = vdwg.mxu0
    %10896 = vmatpush.bf16.msra.mxu0 %v10771
    %10897 = vmatpush.bf16.msra.mxu0 %v10767
    %10898 = vmatpush.bf16.msra.mxu0 %v10763
    %10899 = vmatpush.bf16.msra.mxu0 %v10759
    %10900 = vmatpush.bf16.msra.mxu0 %v10755
    %10901 = vmatpush.bf16.msra.mxu0 %v10751
    %10902 = vmatpush.bf16.msra.mxu0 %v10747
    %10903 = vmatpush.bf16.msra.mxu0 %v10743
    %10904 = vmatmul.bf16.gmra.mxu0 %v9931
    %v10905 = vpop.f32.mrf.mxu0
    %v10906 = vadd.f32 %v1769, %v10905
    %v10907 = vpop.f32.mrf.mxu0
    %10908 = vdwg.mxu0
    %10909 = vmatpush.bf16.msra.mxu0 %v10803
    %10910 = vmatpush.bf16.msra.mxu0 %v10799
    %10911 = vmatpush.bf16.msra.mxu0 %v10795
    %10912 = vmatpush.bf16.msra.mxu0 %v10791
    %10913 = vmatpush.bf16.msra.mxu0 %v10787
    %10914 = vmatpush.bf16.msra.mxu0 %v10783
    %10915 = vmatpush.bf16.msra.mxu0 %v10779
    %10916 = vmatpush.bf16.msra.mxu0 %v10775
    %10917 = vmatmul.bf16.gmra.mxu0 %v10483
    %v10918 = vpop.f32.mrf.mxu0
    %v10919 = vadd.f32 %v10906, %v10918
    %v10920 = vpop.f32.mrf.mxu0
    %10921 = vdwg.mxu0
    %10922 = vmatpush.bf16.msra.mxu0 %v10772
    %10923 = vmatpush.bf16.msra.mxu0 %v10768
    %10924 = vmatpush.bf16.msra.mxu0 %v10764
    %10925 = vmatpush.bf16.msra.mxu0 %v10760
    %10926 = vmatpush.bf16.msra.mxu0 %v10756
    %10927 = vmatpush.bf16.msra.mxu0 %v10752
    %10928 = vmatpush.bf16.msra.mxu0 %v10748
    %10929 = vmatpush.bf16.msra.mxu0 %v10744
    %10930 = vmatmul.bf16.gmra.mxu0 %v9931
    %v10931 = vpop.f32.mrf.mxu0
    %v10932 = vadd.f32 %v1770, %v10931
    %v10933 = vpop.f32.mrf.mxu0
    %10934 = vdwg.mxu0
    %10935 = vmatpush.bf16.msra.mxu0 %v10804
    %10936 = vmatpush.bf16.msra.mxu0 %v10800
    %10937 = vmatpush.bf16.msra.mxu0 %v10796
    %10938 = vmatpush.bf16.msra.mxu0 %v10792
    %10939 = vmatpush.bf16.msra.mxu0 %v10788
    %10940 = vmatpush.bf16.msra.mxu0 %v10784
    %10941 = vmatpush.bf16.msra.mxu0 %v10780
    %10942 = vmatpush.bf16.msra.mxu0 %v10776
    %10943 = vmatmul.bf16.gmra.mxu0 %v10483
    %v10944 = vpop.f32.mrf.mxu0
    %v10945 = vadd.f32 %v10932, %v10944
    %v10946 = vpop.f32.mrf.mxu0
    %10947 = vdwg.mxu0
    %10948 = vmatpush.bf16.msra.mxu0 %v10773
    %10949 = vmatpush.bf16.msra.mxu0 %v10769
    %10950 = vmatpush.bf16.msra.mxu0 %v10765
    %10951 = vmatpush.bf16.msra.mxu0 %v10761
    %10952 = vmatpush.bf16.msra.mxu0 %v10757
    %10953 = vmatpush.bf16.msra.mxu0 %v10753
    %10954 = vmatpush.bf16.msra.mxu0 %v10749
    %10955 = vmatpush.bf16.msra.mxu0 %v10745
    %10956 = vmatmul.bf16.gmra.mxu0 %v9931
    %v10957 = vpop.f32.mrf.mxu0
    %v10958 = vadd.f32 %v1771, %v10957
    %v10959 = vpop.f32.mrf.mxu0
    %10960 = vdwg.mxu0
    %10961 = vmatpush.bf16.msra.mxu0 %v10805
    %10962 = vmatpush.bf16.msra.mxu0 %v10801
    %10963 = vmatpush.bf16.msra.mxu0 %v10797
    %10964 = vmatpush.bf16.msra.mxu0 %v10793
    %10965 = vmatpush.bf16.msra.mxu0 %v10789
    %10966 = vmatpush.bf16.msra.mxu0 %v10785
    %10967 = vmatpush.bf16.msra.mxu0 %v10781
    %10968 = vmatpush.bf16.msra.mxu0 %v10777
    %10969 = vmatmul.bf16.gmra.mxu0 %v10483
    %v10970 = vpop.f32.mrf.mxu0
    %v10971 = vadd.f32 %v10958, %v10970
    %v10972 = vpop.f32.mrf.mxu0
    %10973 = vdwg.mxu0
    %v10974 = vxor.u32 %v10893, 2147483648
    %v10975 = vxor.u32 %v10919, 2147483648
    %v10976 = vxor.u32 %v10945, 2147483648
    %v10977 = vmul.f32 %v10974, 1.442695
    %v10978 = vpow.pop %v10977
    %v10979 = vmul.f32 %v10975, 1.442695
    %v10980 = vpow.pop %v10979
    %v10981 = vmul.f32 %v10976, 1.442695
    %v10982 = vpow.pop %v10981
    %v10983 = vadd.f32 %v10978, 1.0
    %v10984 = vadd.f32 %v10980, 1.0
    %v10985 = vadd.f32 %v10982, 1.0
    %v10986 = vrcp.pop %v10983
    %v10987 = vmul.f32 %v10983, %v10986
    %v10988 = vsub.f32 1.0, %v10987
    %v10989 = vmul.f32 %v10986, %v10988
    %v10990 = vadd.f32 %v10986, %v10989
    %vm10991 = vweird.f32 %v10983
    %vm10992 = vweird.f32 %v10986
    %vm10993 = vmor %vm10991, %vm10992
    %v10994 = vsel %vm10993, %v10986, %v10990
    %v10995 = vand.u32 2147483647, %v10983
    %vm10996 = vcmp.eq.f32.partialorder %v10995, 8.507059e+37
    %v10997 = vand.u32 %v10983, 2147483648
    %v10998 = vor.u32 1.1754944e-38, %v10997
    %v10999 = vsel %vm10996, %v10998, %v10994
    %v11000 = vmul.f32 1.0, %v10999
    %v11001 = vrcp.pop %v10984
    %v11002 = vmul.f32 %v10984, %v11001
    %v11003 = vsub.f32 1.0, %v11002
    %v11004 = vmul.f32 %v11001, %v11003
    %v11005 = vadd.f32 %v11001, %v11004
    %vm11006 = vweird.f32 %v10984
    %vm11007 = vweird.f32 %v11001
    %vm11008 = vmor %vm11006, %vm11007
    %v11009 = vsel %vm11008, %v11001, %v11005
    %v11010 = vand.u32 2147483647, %v10984
    %vm11011 = vcmp.eq.f32.partialorder %v11010, 8.507059e+37
    %v11012 = vand.u32 %v10984, 2147483648
    %v11013 = vor.u32 1.1754944e-38, %v11012
    %v11014 = vsel %vm11011, %v11013, %v11009
    %v11015 = vmul.f32 1.0, %v11014
    %v11016 = vrcp.pop %v10985
    %v11017 = vmul.f32 %v10985, %v11016
    %v11018 = vsub.f32 1.0, %v11017
    %v11019 = vmul.f32 %v11016, %v11018
    %v11020 = vadd.f32 %v11016, %v11019
    %vm11021 = vweird.f32 %v10985
    %vm11022 = vweird.f32 %v11016
    %vm11023 = vmor %vm11021, %vm11022
    %v11024 = vsel %vm11023, %v11016, %v11020
    %v11025 = vand.u32 2147483647, %v10985
    %vm11026 = vcmp.eq.f32.partialorder %v11025, 8.507059e+37
    %v11027 = vand.u32 %v10985, 2147483648
    %v11028 = vor.u32 1.1754944e-38, %v11027
    %v11029 = vsel %vm11026, %v11028, %v11024
    %v11030 = vmul.f32 1.0, %v11029
    %v11031 = vtanh.pop %v10971
    %v11032 = vmul.f32 %v11015, %v10480
    %v11033 = vmul.f32 %v11000, %v11031
    %v11034 = vadd.f32 %v11032, %v11033
    %v11035 = vtanh.pop %v11034
    %v11036 = vmul.f32 %v11030, %v11035
    %v11037 = vpack.c.bf16 %v11036, %v11036
    %s11038 = scalar_lea.vmem [#allocation3], 28
    %11039 = vst [vmem:[%s11038] sm:$0xf] %v11037
    %v11040 = vld [vmem:[#allocation3] sm:$0xf]
    %v11041 = vld [vmem:[#allocation3 + $0x4] sm:$0xf]
    %v11042 = vld [vmem:[#allocation3 + $0x8] sm:$0xf]
    %v11043 = vld [vmem:[#allocation3 + $0xc] sm:$0xf]
    %v11044 = vld [vmem:[#allocation3 + $0x10] sm:$0xf]
    %v11045 = vld [vmem:[#allocation3 + $0x14] sm:$0xf]
    %v11046 = vld [vmem:[#allocation3 + $0x18] sm:$0xf]
    %v11047 = vld [vmem:[#allocation3 + $0x1c] sm:$0xf]
    %v11048 = vld [vmem:[#allocation16] sm:$0xf]
    %v11049 = vld [vmem:[#allocation16 + $0x4] sm:$0xf]
    %v11050 = vld [vmem:[#allocation16 + $0x8] sm:$0xf]
    %v11051 = vld [vmem:[#allocation16 + $0xc] sm:$0xf]
    %v11052 = vld [vmem:[#allocation16 + $0x10] sm:$0xf]
    %v11053 = vld [vmem:[#allocation16 + $0x14] sm:$0xf]
    %v11054 = vld [vmem:[#allocation16 + $0x18] sm:$0xf]
    %v11055 = vld [vmem:[#allocation16 + $0x1c] sm:$0xf]
    %v11056 = vld [vmem:[#allocation16 + $0x20] sm:$0xf]
    %v11057 = vld [vmem:[#allocation16 + $0x24] sm:$0xf]
    %v11058 = vld [vmem:[#allocation16 + $0x28] sm:$0xf]
    %v11059 = vld [vmem:[#allocation16 + $0x2c] sm:$0xf]
    %v11060 = vld [vmem:[#allocation16 + $0x30] sm:$0xf]
    %v11061 = vld [vmem:[#allocation16 + $0x34] sm:$0xf]
    %v11062 = vld [vmem:[#allocation16 + $0x38] sm:$0xf]
    %v11063 = vld [vmem:[#allocation16 + $0x3c] sm:$0xf]
    %v11064 = vld [vmem:[%s8] sm:$0x1]
    %v11066 = vperm.slane %v11064, 0
    %v11076 = vunpack.c.l.b16 %v11040
    %v11077 = vunpack.c.l.b16 %v11041
    %v11078 = vunpack.c.l.b16 %v11042
    %v11079 = vunpack.c.l.b16 %v11043
    %v11080 = vunpack.c.l.b16 %v11044
    %v11081 = vunpack.c.l.b16 %v11045
    %v11082 = vunpack.c.l.b16 %v11046
    %v11083 = vunpack.c.l.b16 %v11047
    %v11084 = vpack.c.b16 %v11077, %v11076
    %v11085 = vpack.c.b16 %v11079, %v11078
    %v11086 = vpack.c.b16 %v11081, %v11080
    %v11087 = vpack.c.b16 %v11083, %v11082
    %v11108 = vunpack.c.l.b16 %v11048
    %v11109 = vunpack.c.l.b16 %v11049
    %v11110 = vunpack.c.l.b16 %v11050
    %v11111 = vunpack.c.l.b16 %v11051
    %v11112 = vunpack.c.l.b16 %v11052
    %v11113 = vunpack.c.l.b16 %v11053
    %v11114 = vunpack.c.l.b16 %v11054
    %v11115 = vunpack.c.l.b16 %v11055
    %v11116 = vunpack.c.l.b16 %v11056
    %v11117 = vunpack.c.l.b16 %v11057
    %v11118 = vunpack.c.l.b16 %v11058
    %v11119 = vunpack.c.l.b16 %v11059
    %v11120 = vunpack.c.l.b16 %v11060
    %v11121 = vunpack.c.l.b16 %v11061
    %v11122 = vunpack.c.l.b16 %v11062
    %v11123 = vunpack.c.l.b16 %v11063
    %v11124 = vpack.c.b16 %v11109, %v11108
    %v11125 = vpack.c.b16 %v11111, %v11110
    %v11126 = vpack.c.b16 %v11113, %v11112
    %v11127 = vpack.c.b16 %v11115, %v11114
    %v11128 = vpack.c.b16 %v11117, %v11116
    %v11129 = vpack.c.b16 %v11119, %v11118
    %v11130 = vpack.c.b16 %v11121, %v11120
    %v11131 = vpack.c.b16 %v11123, %v11122
    %11140 = vmatpush.bf16.msra.mxu0 %v11131
    %11141 = vmatpush.bf16.msra.mxu0 %v11130
    %11142 = vmatpush.bf16.msra.mxu0 %v11129
    %11143 = vmatpush.bf16.msra.mxu0 %v11128
    %11144 = vmatpush.bf16.msra.mxu0 %v11127
    %11145 = vmatpush.bf16.msra.mxu0 %v11126
    %11146 = vmatpush.bf16.msra.mxu0 %v11125
    %11147 = vmatpush.bf16.msra.mxu0 %v11124
    %11148 = vmatmul.bf16.gmra.mxu0 %v11084
    %v11149 = vpop.f32.mrf.mxu0
    %v11150 = vadd.f32 %v11066, %v11149
    %v11151 = vpop.f32.mrf.mxu0
    %v11152 = vadd.f32 %v11066, %v11151
    %11153 = vmatmul.bf16.gmra.mxu0 %v11085
    %v11154 = vpop.f32.mrf.mxu0
    %v11155 = vadd.f32 %v11066, %v11154
    %v11156 = vpop.f32.mrf.mxu0
    %v11157 = vadd.f32 %v11066, %v11156
    %11158 = vmatmul.bf16.gmra.mxu0 %v11086
    %v11159 = vpop.f32.mrf.mxu0
    %v11160 = vadd.f32 %v11066, %v11159
    %v11161 = vpop.f32.mrf.mxu0
    %v11162 = vadd.f32 %v11066, %v11161
    %11163 = vmatmul.bf16.gmra.mxu0 %v11087
    %v11164 = vpop.f32.mrf.mxu0
    %v11165 = vadd.f32 %v11066, %v11164
    %v11166 = vpop.f32.mrf.mxu0
    %v11167 = vadd.f32 %v11066, %v11166
    %11168 = vdwg.mxu0
    %11169 = vst [vmem:[#allocation18] sm:$0xff] %v11150
    %11170 = vst [vmem:[#allocation18 + $0x8] sm:$0xff] %v11152
    %11171 = vst [vmem:[#allocation18 + $0x10] sm:$0xff] %v11155
    %11172 = vst [vmem:[#allocation18 + $0x18] sm:$0xff] %v11157
    %11173 = vst [vmem:[#allocation18 + $0x20] sm:$0xff] %v11160
    %11174 = vst [vmem:[#allocation18 + $0x28] sm:$0xff] %v11162
    %11175 = vst [vmem:[#allocation18 + $0x30] sm:$0xff] %v11165
    %11176 = vst [vmem:[#allocation18 + $0x38] sm:$0xff] %v11167
    // Predicated region
    $region70: #{tpu_custom_call.1} parent=1 // pred_check
      _
    $region71: #{tpu_custom_call.1} parent=1 // pred_check_branch
      %11178 = sbr.rel (0) target = $region73
    $region72: #{tpu_custom_call.1} parent=1 // pred_region
      %11180 = vsyncadd [#allocation6], 0
      %s11181 = sshll.u32 [#allocation18], 4
      %s11182 = int_to_ptr.vmem [resolvable:$true] %s11181
      %s11183 = sshll.u32 %s9, 4
      %s11184 = int_to_ptr.hbm [resolvable:$true] %s11183
      %11189 = dma.vmem_to_hbm [thread:$0]  %s11182, 1024, %s11184, [#allocation6], 128, 128, 8
    $region73: #{tpu_custom_call.1} parent=1 // pred_fallthru
      _
    // Predicated region
    $region74: #{tpu_custom_call.1} parent=1 // pred_check
      _
    $region75: #{tpu_custom_call.1} parent=1 // pred_check_branch
      %11191 = sbr.rel (0) target = $region77
    $region76: #{tpu_custom_call.1} parent=1 // pred_region
      %11193 = dma.done [#allocation6], 1024
    $region77: #{tpu_custom_call.1} parent=1 // pred_fallthru
      _
    %11194 = vsyncpa [#allocation5], 1
    %11195 = vsyncpa [#allocation8], 1
    %11196 = vsyncpa [#allocation11], 1
    %11197 = vsyncpa [#allocation14], 1
    %11198 = vsyncpa [#allocation17], 1
    %11199 = vsyncpa [#allocation6], 1

</llo_original>
